<compile_context>
chip_gen: v7x
topology: tpu7x:2x2x1
jax: 0.10.0
libtpu: 0.0.40
codegen_flags: <defaults>
</compile_context>

<pallas_src>
import numpy as np
import jax
import jax.numpy as jnp
from jax.experimental import pallas as pl
from jax.experimental.pallas import tpu as pltpu

FILTER_SIZES = [1, 2, 3, 4, 6, 8, 16, 32]
FILTER_NUM = 64
CONV_W = 45                                   # conv kernel width == feature width
C_TOT = len(FILTER_SIZES) * FILTER_NUM        # 512
KMAX = max(FILTER_SIZES)                      # 32
STRIDE = 48                                   # width padded 45 -> 48 so 32*48 = 1536
K_PAD = KMAX * STRIDE                         # 1536 (lane-128 aligned)
BUCKETS = ([1, 2, 3, 4], [6, 8], [16], [32])  # zero-free conv weight buckets
BUCKET_K = (256, 384, 768, 1536)              # per-bucket K, padded to 128 multiples
K1, K2, K3, K4 = BUCKET_K
assert K4 == K_PAD
LSTM_HIDDEN = 128
H2 = 2 * LSTM_HIDDEN                          # 256
OUT_DIM = 64
OUT_PAD = 128                                 # lane-dense padded head width
BN_EPS = 1e-5
LEAKY_SLOPE = 0.01


def _sigmoid(x):
    # numerically stable sigmoid via tanh (EUP-native)
    return 0.5 * (jnp.tanh(0.5 * x) + 1.0)


# ---------------------------------------------------------------------------
# Single fused kernel: in-kernel im2col + bucketed conv (bf16 MXU) + ReLU +
# masked global max-pool + single-step bi-LSTM + BN-folded block1 head.
# ---------------------------------------------------------------------------
def _make_fused_kernel(TB, L):
    def kernel(x_ref, thr_ref,
               wc1_ref, wc2_ref, wc3_ref, wc4_ref, cb_ref,
               wl_ref, bl_ref, w1_ref, b1_ref, w2_ref, b2_ref,
               o_ref, pat_ref):
        # ---- in-kernel im2col: copy each tap window into the VMEM slab -----
        # pat[b, t, k*48 + w] = x_pad[b, t+k, w]   (w >= 45 columns are zero)
        for k in range(KMAX):                           # static unroll
            pat_ref[:, :, k * STRIDE:(k + 1) * STRIDE] = (
                x_ref[:, k:k + L, :].astype(jnp.bfloat16))
        patches = pat_ref[...].reshape(TB * L, K_PAD)   # (TB*L, 1536) bf16

        # ---- bucketed conv: zero-free packed weights, bf16 MXU, f32 acc ----
        y = jnp.concatenate([
            jnp.dot(patches[:, :K1], wc1_ref[...], preferred_element_type=jnp.float32),
            jnp.dot(patches[:, :K2], wc2_ref[...], preferred_element_type=jnp.float32),
            jnp.dot(patches[:, :K3], wc3_ref[...], preferred_element_type=jnp.float32),
            jnp.dot(patches,         wc4_ref[...], preferred_element_type=jnp.float32),
        ], axis=1) + cb_ref[...]                        # (TB*L, 512) f32
        z = jnp.maximum(y, 0.0).reshape(TB, L, C_TOT)   # ReLU BEFORE masking

        # ---- validity mask (iota vs per-column threshold) + global max -----
        row = jax.lax.broadcasted_iota(jnp.int32, (L, C_TOT), 0).reshape(1, L, C_TOT)
        valid = row <= thr_ref[...].reshape(1, 1, C_TOT)
        # zero-masking is safe only because ReLU output >= 0 (keep ordering!)
        feat = jnp.max(jnp.where(valid, z, 0.0), axis=1)        # (TB, 512) f32

        # ---- bi-LSTM, seq_len == 1, h0 = c0 = 0 (forget gate / W_hh dead) --
        # packed gate columns: [i_f | i_b | g_f | g_b | o_f | o_b]
        gates = jnp.dot(feat.astype(jnp.bfloat16), wl_ref[...],
                        preferred_element_type=jnp.float32) + bl_ref[...]
        i = _sigmoid(gates[:, 0:H2])
        g = jnp.tanh(gates[:, H2:2 * H2])
        o = _sigmoid(gates[:, 2 * H2:3 * H2])
        h = o * jnp.tanh(i * g)                          # (TB, 256) = [h_fwd | h_bwd]
        # TODO(synk): training-mode dropout (p=0.5) not modelled; eval identity.

        # ---- block1: Linear(256,256) (+folded BN) + LeakyReLU + Linear -----
        zz = jnp.dot(h.astype(jnp.bfloat16), w1_ref[...],
                     preferred_element_type=jnp.float32) + b1_ref[...]
        zz = jnp.where(zz >= 0.0, zz, LEAKY_SLOPE * zz)
        o_ref[...] = jnp.dot(zz.astype(jnp.bfloat16), w2_ref[...],
                             preferred_element_type=jnp.float32) + b2_ref[...]
    return kernel


def fused_forward(x_pad, thr, params, Bp, L, TB):
    Lp = L + KMAX - 1
    num_tiles = Bp // TB
    w_args = (params["wc1"], params["wc2"], params["wc3"], params["wc4"],
              params["conv_b"], params["w_lstm"], params["b_lstm"],
              params["w1"], params["b1"], params["w2"], params["b2"])

    def const_spec(a):
        return pl.BlockSpec(a.shape, lambda *_, nd=a.ndim: (0,) * nd)

    kernel = _make_fused_kernel(TB, L)
    out_shape = jax.ShapeDtypeStruct((Bp, OUT_PAD), jnp.float32)
    scratch = [pltpu.VMEM((TB, L, K_PAD), jnp.bfloat16)]   # im2col slab
    weight_specs = [const_spec(a) for a in w_args]

    if num_tiles > 1:
        # batch-tiled grid: x tile DMA is pipelined, weights stay VMEM-resident
        grid_spec = pltpu.PrefetchScalarGridSpec(
            num_scalar_prefetch=0,
            grid=(num_tiles,),
            in_specs=[pl.BlockSpec((TB, Lp, STRIDE), lambda i: (i, 0, 0)),
                      const_spec(thr)] + weight_specs,
            out_specs=pl.BlockSpec((TB, OUT_PAD), lambda i: (i, 0)),
            scratch_shapes=scratch)
        return pl.pallas_call(
            kernel,
            out_shape=out_shape,
            grid_spec=grid_spec,
            compiler_params=pltpu.CompilerParams(
                dimension_semantics=("parallel",)),
        )(x_pad, thr, *w_args)

    # single tile: no grid -> no pipeline prologue / weight double-buffering
    return pl.pallas_call(
        kernel,
        out_shape=out_shape,
        in_specs=[const_spec(x_pad), const_spec(thr)] + weight_specs,
        out_specs=pl.BlockSpec((Bp, OUT_PAD), lambda *_: (0, 0)),
        scratch_shapes=scratch,
    )(x_pad, thr, *w_args)


# ---------------------------------------------------------------------------
# Forward wrapper: tiny pad (time +31, width 45->48, batch to tile multiple)
# + one pallas_call; im2col happens inside the kernel.
# ---------------------------------------------------------------------------
def new_model_forward(x, params, tile_b=8):
    B, L, W = x.shape
    assert W == CONV_W
    if L < KMAX:
        raise ValueError(f"sequence length L={L} must be >= max filter size {KMAX}")
    if B <= tile_b:
        TB = B                                  # single program, no grid
    else:
        TB = max(8, ((tile_b + 7) // 8) * 8)    # keep (TB, 128) out blocks 8-aligned
    Bp = ((B + TB - 1) // TB) * TB
    xp = jnp.pad(x, ((0, Bp - B), (0, KMAX - 1), (0, STRIDE - CONV_W)))
    # per-column validity threshold: position t valid for filter fsz iff t <= L - fsz
    thr = jnp.asarray(np.repeat(np.asarray([L - f for f in FILTER_SIZES], np.int32),
                                FILTER_NUM)[None, :])
    out = fused_forward(xp, thr, params, Bp, L, TB)
    return out[:B, :OUT_DIM]


# ---------------------------------------------------------------------------
# Parameter init (PyTorch-default-style uniform, already in (in, out) layout)
# ---------------------------------------------------------------------------
def init_params(key):
    p = {}
    ks = iter(jax.random.split(key, 32))
    conv_w, conv_b = [], []
    for fsz in FILTER_SIZES:
        bound = 1.0 / (fsz * CONV_W) ** 0.5
        conv_w.append(jax.random.uniform(next(ks), (fsz, CONV_W, FILTER_NUM),
                                         jnp.float32, -bound, bound))
        conv_b.append(jax.random.uniform(next(ks), (1, FILTER_NUM),
                                         jnp.float32, -bound, bound))
    p["conv_w_list"], p["conv_b_list"] = conv_w, conv_b

    H = LSTM_HIDDEN
    bound = 1.0 / H ** 0.5
    p["w_ih_f"] = jax.random.uniform(next(ks), (C_TOT, 4 * H), jnp.float32, -bound, bound)
    p["b_f"] = (jax.random.uniform(next(ks), (1, 4 * H), jnp.float32, -bound, bound)
                + jax.random.uniform(next(ks), (1, 4 * H), jnp.float32, -bound, bound))
    p["w_ih_b"] = jax.random.uniform(next(ks), (C_TOT, 4 * H), jnp.float32, -bound, bound)
    p["b_b"] = (jax.random.uniform(next(ks), (1, 4 * H), jnp.float32, -bound, bound)
                + jax.random.uniform(next(ks), (1, 4 * H), jnp.float32, -bound, bound))

    bound = 1.0 / 256 ** 0.5
    p["w1"] = jax.random.uniform(next(ks), (256, 256), jnp.float32, -bound, bound)
    p["b1"] = jax.random.uniform(next(ks), (1, 256), jnp.float32, -bound, bound)
    p["bn_gamma"] = jnp.ones((1, 256), jnp.float32)
    p["bn_beta"] = jnp.zeros((1, 256), jnp.float32)
    p["bn_mean"] = jnp.zeros((1, 256), jnp.float32)
    p["bn_var"] = jnp.ones((1, 256), jnp.float32)
    p["w2"] = jax.random.uniform(next(ks), (256, 64), jnp.float32, -bound, bound)
    p["b2"] = jax.random.uniform(next(ks), (1, 64), jnp.float32, -bound, bound)
    return p


def pack_params(raw):
    """One-time host-side repacking for the fused kernel.

    NOTE: all matrices here are (in, out) oriented; real PyTorch weights
    (Conv2d (out,1,fsz,45), Linear/LSTM (out,in)) must be transposed first.
    """
    packed = {}

    # --- bucketed, zero-free conv weights (bf16), im2col stride = 48 --------
    def pack_bucket(sizes, K_b):
        ncols = len(sizes) * FILTER_NUM
        w = jnp.zeros((K_b, ncols), jnp.float32)
        for j, fsz in enumerate(sizes):
            idx = FILTER_SIZES.index(fsz)
            wij = raw["conv_w_list"][idx]                           # (fsz, 45, 64)
            wp = jnp.zeros((fsz, STRIDE, FILTER_NUM), jnp.float32)
            wp = wp.at[:, :CONV_W, :].set(wij)                      # cols 45..47 zero
            w = w.at[:fsz * STRIDE, j * FILTER_NUM:(j + 1) * FILTER_NUM].set(
                wp.reshape(fsz * STRIDE, FILTER_NUM))
            # rows >= fsz*48 stay zero -> padded K contributes nothing
        return w.astype(jnp.bfloat16)

    packed["wc1"] = pack_bucket(BUCKETS[0], K1)      # (256, 256)
    packed["wc2"] = pack_bucket(BUCKETS[1], K2)      # (384, 128)
    packed["wc3"] = pack_bucket(BUCKETS[2], K3)      # (768, 64)
    packed["wc4"] = pack_bucket(BUCKETS[3], K4)      # (1536, 64)
    packed["conv_b"] = jnp.concatenate(raw["conv_b_list"], axis=1)  # (1, 512) f32

    # --- merge LSTM directions, drop forget gate (c0 == 0) ------------------
    # PyTorch gate order along 4H: [i, f, g, o]; packed: [i_f|i_b|g_f|g_b|o_f|o_b]
    H = LSTM_HIDDEN

    def gate(w, g):
        return w[:, g * H:(g + 1) * H]

    wf, wb, bf, bb = raw["w_ih_f"], raw["w_ih_b"], raw["b_f"], raw["b_b"]
    packed["w_lstm"] = jnp.concatenate(
        [gate(wf, 0), gate(wb, 0), gate(wf, 2), gate(wb, 2), gate(wf, 3), gate(wb, 3)],
        axis=1).astype(jnp.bfloat16)                 # (512, 768)
    packed["b_lstm"] = jnp.concatenate(
        [gate(bf, 0), gate(bb, 0), gate(bf, 2), gate(bb, 2), gate(bf, 3), gate(bb, 3)],
        axis=1)                                      # (1, 768) f32

    # --- fold eval-mode BatchNorm1d into the preceding Linear ---------------
    scale = raw["bn_gamma"] / jnp.sqrt(raw["bn_var"] + BN_EPS)      # (1, 256)
    packed["w1"] = (raw["w1"] * scale).astype(jnp.bfloat16)
    packed["b1"] = (raw["b1"] - raw["bn_mean"]) * scale + raw["bn_beta"]
    # --- lane-pad the 64-wide head to 128 output columns --------------------
    packed["w2"] = jnp.zeros((256, OUT_PAD), jnp.float32).at[:, :OUT_DIM].set(
        raw["w2"]).astype(jnp.bfloat16)
    packed["b2"] = jnp.zeros((1, OUT_PAD), jnp.float32).at[:, :OUT_DIM].set(raw["b2"])
    return packed


# ---------------------------------------------------------------------------
# Pure-JAX reference (mirrors the PyTorch forward; bf16 cast at the matmuls
# to match the kernel's MXU precision).
# ---------------------------------------------------------------------------
def reference_forward(x, raw):
    B, L, _ = x.shape
    xb = x.astype(jnp.bfloat16)
    feats = []
    for idx, fsz in enumerate(FILTER_SIZES):
        w = raw["conv_w_list"][idx].reshape(fsz * CONV_W, FILTER_NUM).astype(jnp.bfloat16)
        b = raw["conv_b_list"][idx]
        Lout = L - fsz + 1
        gidx = np.arange(Lout)[:, None] + np.arange(fsz)[None, :]
        p = xb[:, gidx, :].reshape(B, Lout, fsz * CONV_W)
        y = jnp.maximum(jnp.dot(p, w, preferred_element_type=jnp.float32) + b, 0.0)
        feats.append(jnp.max(y, axis=1))
    feat = jnp.concatenate(feats, axis=1)                            # (B, 512)

    H = LSTM_HIDDEN

    def direction(w_ih, bias):
        g = jnp.dot(feat.astype(jnp.bfloat16), w_ih.astype(jnp.bfloat16),
                    preferred_element_type=jnp.float32) + bias
        i = jax.nn.sigmoid(g[:, 0:H])
        gg = jnp.tanh(g[:, 2 * H:3 * H])
        o = jax.nn.sigmoid(g[:, 3 * H:4 * H])
        c = i * gg                                                   # c0 == 0
        return o * jnp.tanh(c)

    h = jnp.concatenate([direction(raw["w_ih_f"], raw["b_f"]),
                         direction(raw["w_ih_b"], raw["b_b"])], axis=1)

    z = jnp.dot(h.astype(jnp.bfloat16), raw["w1"].astype(jnp.bfloat16),
                preferred_element_type=jnp.float32) + raw["b1"]
    z = (z - raw["bn_mean"]) / jnp.sqrt(raw["bn_var"] + BN_EPS) * raw["bn_gamma"] \
        + raw["bn_beta"]
    z = jnp.where(z >= 0.0, z, LEAKY_SLOPE * z)
    return jnp.dot(z.astype(jnp.bfloat16), raw["w2"].astype(jnp.bfloat16),
                   preferred_element_type=jnp.float32) + raw["b2"]


if __name__ == "__main__":
    key = jax.random.PRNGKey(0)
    pkey, xkey = jax.random.split(key)
    raw = init_params(pkey)
    params = pack_params(raw)

    L = 40                                     # L >= max filter size (32)
    fwd = jax.jit(new_model_forward, static_argnames=("tile_b",))

    # case 1: B=2  -> single-program path (no grid, no weight double-buffering)
    # case 2: B=16 -> batch-tiled "parallel" grid path (2 tiles of 8)
    for case_idx, B in enumerate((2, 16)):
        x = jax.random.normal(jax.random.fold_in(xkey, case_idx),
                              (B, L, CONV_W), jnp.float32)
        out = jax.block_until_ready(fwd(x, params, tile_b=8))
        assert out.shape == (B, OUT_DIM)
        assert bool(jnp.all(jnp.isfinite(out)))
        ref = reference_forward(x, raw)
        err = float(jnp.max(jnp.abs(out - ref)))
        assert err < 2e-2, f"kernel/reference mismatch (B={B}): max abs err {err}"
    print("KERNEL_OK")
</pallas_src>

<mosaic_0001>
module attributes {stable_mosaic.version = 11 : i64} {
  func.func @kernel(%arg0: memref<2x71x48xf32, #tpu.memory_space<vmem>>, %arg1: memref<1x512xi32, #tpu.memory_space<vmem>>, %arg2: memref<256x256xbf16, #tpu.memory_space<vmem>>, %arg3: memref<384x128xbf16, #tpu.memory_space<vmem>>, %arg4: memref<768x64xbf16, #tpu.memory_space<vmem>>, %arg5: memref<1536x64xbf16, #tpu.memory_space<vmem>>, %arg6: memref<1x512xf32, #tpu.memory_space<vmem>>, %arg7: memref<512x768xbf16, #tpu.memory_space<vmem>>, %arg8: memref<1x768xf32, #tpu.memory_space<vmem>>, %arg9: memref<256x256xbf16, #tpu.memory_space<vmem>>, %arg10: memref<1x256xf32, #tpu.memory_space<vmem>>, %arg11: memref<256x128xbf16, #tpu.memory_space<vmem>>, %arg12: memref<1x128xf32, #tpu.memory_space<vmem>>, %arg13: memref<2x128xf32, #tpu.memory_space<vmem>>, %arg14: memref<2x40x1536xbf16, #tpu.memory_space<vmem>>) attributes {dimension_semantics = [], scalar_prefetch = 0 : i64, scratch_operands = 1 : i64, tpu.core_type = #tpu.core_type<tc>} {
    %c0 = arith.constant 0 : index
    %c0_0 = arith.constant 0 : index
    %c0_1 = arith.constant 0 : index
    %0 = vector.load %arg0[%c0, %c0_0, %c0_1] : memref<2x71x48xf32, #tpu.memory_space<vmem>>, vector<2x40x48xf32>
    %1 = arith.truncf %0 : vector<2x40x48xf32> to vector<2x40x48xbf16>
    %c0_2 = arith.constant 0 : index
    %c0_3 = arith.constant 0 : index
    %c0_4 = arith.constant 0 : index
    %2 = vector.load %arg14[%c0_2, %c0_3, %c0_4] : memref<2x40x1536xbf16, #tpu.memory_space<vmem>>, vector<2x40x48xbf16>
    tpu.vector_store %arg14[%c0_2, %c0_3, %c0_4], %1 {strides = array<i32>} : memref<2x40x1536xbf16, #tpu.memory_space<vmem>>, vector<2x40x48xbf16>,
    %c0_5 = arith.constant 0 : index
    %c1 = arith.constant 1 : index
    %c0_6 = arith.constant 0 : index
    %3 = vector.load %arg0[%c0_5, %c1, %c0_6] : memref<2x71x48xf32, #tpu.memory_space<vmem>>, vector<2x40x48xf32>
    %4 = arith.truncf %3 : vector<2x40x48xf32> to vector<2x40x48xbf16>
    %c0_7 = arith.constant 0 : index
    %c0_8 = arith.constant 0 : index
    %c48 = arith.constant 48 : index
    %5 = vector.load %arg14[%c0_7, %c0_8, %c48] : memref<2x40x1536xbf16, #tpu.memory_space<vmem>>, vector<2x40x48xbf16>
    tpu.vector_store %arg14[%c0_7, %c0_8, %c48], %4 {strides = array<i32>} : memref<2x40x1536xbf16, #tpu.memory_space<vmem>>, vector<2x40x48xbf16>,
    %c0_9 = arith.constant 0 : index
    %c2 = arith.constant 2 : index
    %c0_10 = arith.constant 0 : index
    %6 = vector.load %arg0[%c0_9, %c2, %c0_10] : memref<2x71x48xf32, #tpu.memory_space<vmem>>, vector<2x40x48xf32>
    %7 = arith.truncf %6 : vector<2x40x48xf32> to vector<2x40x48xbf16>
    %c0_11 = arith.constant 0 : index
    %c0_12 = arith.constant 0 : index
    %c96 = arith.constant 96 : index
    %8 = vector.load %arg14[%c0_11, %c0_12, %c96] : memref<2x40x1536xbf16, #tpu.memory_space<vmem>>, vector<2x40x48xbf16>
    tpu.vector_store %arg14[%c0_11, %c0_12, %c96], %7 {strides = array<i32>} : memref<2x40x1536xbf16, #tpu.memory_space<vmem>>, vector<2x40x48xbf16>,
    %c0_13 = arith.constant 0 : index
    %c3 = arith.constant 3 : index
    %c0_14 = arith.constant 0 : index
    %9 = vector.load %arg0[%c0_13, %c3, %c0_14] : memref<2x71x48xf32, #tpu.memory_space<vmem>>, vector<2x40x48xf32>
    %10 = arith.truncf %9 : vector<2x40x48xf32> to vector<2x40x48xbf16>
    %c0_15 = arith.constant 0 : index
    %c0_16 = arith.constant 0 : index
    %c144 = arith.constant 144 : index
    %11 = vector.load %arg14[%c0_15, %c0_16, %c144] : memref<2x40x1536xbf16, #tpu.memory_space<vmem>>, vector<2x40x48xbf16>
    tpu.vector_store %arg14[%c0_15, %c0_16, %c144], %10 {strides = array<i32>} : memref<2x40x1536xbf16, #tpu.memory_space<vmem>>, vector<2x40x48xbf16>,
    %c0_17 = arith.constant 0 : index
    %c4 = arith.constant 4 : index
    %c0_18 = arith.constant 0 : index
    %12 = vector.load %arg0[%c0_17, %c4, %c0_18] : memref<2x71x48xf32, #tpu.memory_space<vmem>>, vector<2x40x48xf32>
    %13 = arith.truncf %12 : vector<2x40x48xf32> to vector<2x40x48xbf16>
    %c0_19 = arith.constant 0 : index
    %c0_20 = arith.constant 0 : index
    %c192 = arith.constant 192 : index
    %14 = vector.load %arg14[%c0_19, %c0_20, %c192] : memref<2x40x1536xbf16, #tpu.memory_space<vmem>>, vector<2x40x48xbf16>
    tpu.vector_store %arg14[%c0_19, %c0_20, %c192], %13 {strides = array<i32>} : memref<2x40x1536xbf16, #tpu.memory_space<vmem>>, vector<2x40x48xbf16>,
    %c0_21 = arith.constant 0 : index
    %c5 = arith.constant 5 : index
    %c0_22 = arith.constant 0 : index
    %15 = vector.load %arg0[%c0_21, %c5, %c0_22] : memref<2x71x48xf32, #tpu.memory_space<vmem>>, vector<2x40x48xf32>
    %16 = arith.truncf %15 : vector<2x40x48xf32> to vector<2x40x48xbf16>
    %c0_23 = arith.constant 0 : index
    %c0_24 = arith.constant 0 : index
    %c240 = arith.constant 240 : index
    %17 = vector.load %arg14[%c0_23, %c0_24, %c240] : memref<2x40x1536xbf16, #tpu.memory_space<vmem>>, vector<2x40x48xbf16>
    tpu.vector_store %arg14[%c0_23, %c0_24, %c240], %16 {strides = array<i32>} : memref<2x40x1536xbf16, #tpu.memory_space<vmem>>, vector<2x40x48xbf16>,
    %c0_25 = arith.constant 0 : index
    %c6 = arith.constant 6 : index
    %c0_26 = arith.constant 0 : index
    %18 = vector.load %arg0[%c0_25, %c6, %c0_26] : memref<2x71x48xf32, #tpu.memory_space<vmem>>, vector<2x40x48xf32>
    %19 = arith.truncf %18 : vector<2x40x48xf32> to vector<2x40x48xbf16>
    %c0_27 = arith.constant 0 : index
    %c0_28 = arith.constant 0 : index
    %c288 = arith.constant 288 : index
    %20 = vector.load %arg14[%c0_27, %c0_28, %c288] : memref<2x40x1536xbf16, #tpu.memory_space<vmem>>, vector<2x40x48xbf16>
    tpu.vector_store %arg14[%c0_27, %c0_28, %c288], %19 {strides = array<i32>} : memref<2x40x1536xbf16, #tpu.memory_space<vmem>>, vector<2x40x48xbf16>,
    %c0_29 = arith.constant 0 : index
    %c7 = arith.constant 7 : index
    %c0_30 = arith.constant 0 : index
    %21 = vector.load %arg0[%c0_29, %c7, %c0_30] : memref<2x71x48xf32, #tpu.memory_space<vmem>>, vector<2x40x48xf32>
    %22 = arith.truncf %21 : vector<2x40x48xf32> to vector<2x40x48xbf16>
    %c0_31 = arith.constant 0 : index
    %c0_32 = arith.constant 0 : index
    %c336 = arith.constant 336 : index
    %23 = vector.load %arg14[%c0_31, %c0_32, %c336] : memref<2x40x1536xbf16, #tpu.memory_space<vmem>>, vector<2x40x48xbf16>
    tpu.vector_store %arg14[%c0_31, %c0_32, %c336], %22 {strides = array<i32>} : memref<2x40x1536xbf16, #tpu.memory_space<vmem>>, vector<2x40x48xbf16>,
    %c0_33 = arith.constant 0 : index
    %c8 = arith.constant 8 : index
    %c0_34 = arith.constant 0 : index
    %24 = vector.load %arg0[%c0_33, %c8, %c0_34] : memref<2x71x48xf32, #tpu.memory_space<vmem>>, vector<2x40x48xf32>
    %25 = arith.truncf %24 : vector<2x40x48xf32> to vector<2x40x48xbf16>
    %c0_35 = arith.constant 0 : index
    %c0_36 = arith.constant 0 : index
    %c384 = arith.constant 384 : index
    %26 = vector.load %arg14[%c0_35, %c0_36, %c384] : memref<2x40x1536xbf16, #tpu.memory_space<vmem>>, vector<2x40x48xbf16>
    tpu.vector_store %arg14[%c0_35, %c0_36, %c384], %25 {strides = array<i32>} : memref<2x40x1536xbf16, #tpu.memory_space<vmem>>, vector<2x40x48xbf16>,
    %c0_37 = arith.constant 0 : index
    %c9 = arith.constant 9 : index
    %c0_38 = arith.constant 0 : index
    %27 = vector.load %arg0[%c0_37, %c9, %c0_38] : memref<2x71x48xf32, #tpu.memory_space<vmem>>, vector<2x40x48xf32>
    %28 = arith.truncf %27 : vector<2x40x48xf32> to vector<2x40x48xbf16>
    %c0_39 = arith.constant 0 : index
    %c0_40 = arith.constant 0 : index
    %c432 = arith.constant 432 : index
    %29 = vector.load %arg14[%c0_39, %c0_40, %c432] : memref<2x40x1536xbf16, #tpu.memory_space<vmem>>, vector<2x40x48xbf16>
    tpu.vector_store %arg14[%c0_39, %c0_40, %c432], %28 {strides = array<i32>} : memref<2x40x1536xbf16, #tpu.memory_space<vmem>>, vector<2x40x48xbf16>,
    %c0_41 = arith.constant 0 : index
    %c10 = arith.constant 10 : index
    %c0_42 = arith.constant 0 : index
    %30 = vector.load %arg0[%c0_41, %c10, %c0_42] : memref<2x71x48xf32, #tpu.memory_space<vmem>>, vector<2x40x48xf32>
    %31 = arith.truncf %30 : vector<2x40x48xf32> to vector<2x40x48xbf16>
    %c0_43 = arith.constant 0 : index
    %c0_44 = arith.constant 0 : index
    %c480 = arith.constant 480 : index
    %32 = vector.load %arg14[%c0_43, %c0_44, %c480] : memref<2x40x1536xbf16, #tpu.memory_space<vmem>>, vector<2x40x48xbf16>
    tpu.vector_store %arg14[%c0_43, %c0_44, %c480], %31 {strides = array<i32>} : memref<2x40x1536xbf16, #tpu.memory_space<vmem>>, vector<2x40x48xbf16>,
    %c0_45 = arith.constant 0 : index
    %c11 = arith.constant 11 : index
    %c0_46 = arith.constant 0 : index
    %33 = vector.load %arg0[%c0_45, %c11, %c0_46] : memref<2x71x48xf32, #tpu.memory_space<vmem>>, vector<2x40x48xf32>
    %34 = arith.truncf %33 : vector<2x40x48xf32> to vector<2x40x48xbf16>
    %c0_47 = arith.constant 0 : index
    %c0_48 = arith.constant 0 : index
    %c528 = arith.constant 528 : index
    %35 = vector.load %arg14[%c0_47, %c0_48, %c528] : memref<2x40x1536xbf16, #tpu.memory_space<vmem>>, vector<2x40x48xbf16>
    tpu.vector_store %arg14[%c0_47, %c0_48, %c528], %34 {strides = array<i32>} : memref<2x40x1536xbf16, #tpu.memory_space<vmem>>, vector<2x40x48xbf16>,
    %c0_49 = arith.constant 0 : index
    %c12 = arith.constant 12 : index
    %c0_50 = arith.constant 0 : index
    %36 = vector.load %arg0[%c0_49, %c12, %c0_50] : memref<2x71x48xf32, #tpu.memory_space<vmem>>, vector<2x40x48xf32>
    %37 = arith.truncf %36 : vector<2x40x48xf32> to vector<2x40x48xbf16>
    %c0_51 = arith.constant 0 : index
    %c0_52 = arith.constant 0 : index
    %c576 = arith.constant 576 : index
    %38 = vector.load %arg14[%c0_51, %c0_52, %c576] : memref<2x40x1536xbf16, #tpu.memory_space<vmem>>, vector<2x40x48xbf16>
    tpu.vector_store %arg14[%c0_51, %c0_52, %c576], %37 {strides = array<i32>} : memref<2x40x1536xbf16, #tpu.memory_space<vmem>>, vector<2x40x48xbf16>,
    %c0_53 = arith.constant 0 : index
    %c13 = arith.constant 13 : index
    %c0_54 = arith.constant 0 : index
    %39 = vector.load %arg0[%c0_53, %c13, %c0_54] : memref<2x71x48xf32, #tpu.memory_space<vmem>>, vector<2x40x48xf32>
    %40 = arith.truncf %39 : vector<2x40x48xf32> to vector<2x40x48xbf16>
    %c0_55 = arith.constant 0 : index
    %c0_56 = arith.constant 0 : index
    %c624 = arith.constant 624 : index
    %41 = vector.load %arg14[%c0_55, %c0_56, %c624] : memref<2x40x1536xbf16, #tpu.memory_space<vmem>>, vector<2x40x48xbf16>
    tpu.vector_store %arg14[%c0_55, %c0_56, %c624], %40 {strides = array<i32>} : memref<2x40x1536xbf16, #tpu.memory_space<vmem>>, vector<2x40x48xbf16>,
    %c0_57 = arith.constant 0 : index
    %c14 = arith.constant 14 : index
    %c0_58 = arith.constant 0 : index
    %42 = vector.load %arg0[%c0_57, %c14, %c0_58] : memref<2x71x48xf32, #tpu.memory_space<vmem>>, vector<2x40x48xf32>
    %43 = arith.truncf %42 : vector<2x40x48xf32> to vector<2x40x48xbf16>
    %c0_59 = arith.constant 0 : index
    %c0_60 = arith.constant 0 : index
    %c672 = arith.constant 672 : index
    %44 = vector.load %arg14[%c0_59, %c0_60, %c672] : memref<2x40x1536xbf16, #tpu.memory_space<vmem>>, vector<2x40x48xbf16>
    tpu.vector_store %arg14[%c0_59, %c0_60, %c672], %43 {strides = array<i32>} : memref<2x40x1536xbf16, #tpu.memory_space<vmem>>, vector<2x40x48xbf16>,
    %c0_61 = arith.constant 0 : index
    %c15 = arith.constant 15 : index
    %c0_62 = arith.constant 0 : index
    %45 = vector.load %arg0[%c0_61, %c15, %c0_62] : memref<2x71x48xf32, #tpu.memory_space<vmem>>, vector<2x40x48xf32>
    %46 = arith.truncf %45 : vector<2x40x48xf32> to vector<2x40x48xbf16>
    %c0_63 = arith.constant 0 : index
    %c0_64 = arith.constant 0 : index
    %c720 = arith.constant 720 : index
    %47 = vector.load %arg14[%c0_63, %c0_64, %c720] : memref<2x40x1536xbf16, #tpu.memory_space<vmem>>, vector<2x40x48xbf16>
    tpu.vector_store %arg14[%c0_63, %c0_64, %c720], %46 {strides = array<i32>} : memref<2x40x1536xbf16, #tpu.memory_space<vmem>>, vector<2x40x48xbf16>,
    %c0_65 = arith.constant 0 : index
    %c16 = arith.constant 16 : index
    %c0_66 = arith.constant 0 : index
    %48 = vector.load %arg0[%c0_65, %c16, %c0_66] : memref<2x71x48xf32, #tpu.memory_space<vmem>>, vector<2x40x48xf32>
    %49 = arith.truncf %48 : vector<2x40x48xf32> to vector<2x40x48xbf16>
    %c0_67 = arith.constant 0 : index
    %c0_68 = arith.constant 0 : index
    %c768 = arith.constant 768 : index
    %50 = vector.load %arg14[%c0_67, %c0_68, %c768] : memref<2x40x1536xbf16, #tpu.memory_space<vmem>>, vector<2x40x48xbf16>
    tpu.vector_store %arg14[%c0_67, %c0_68, %c768], %49 {strides = array<i32>} : memref<2x40x1536xbf16, #tpu.memory_space<vmem>>, vector<2x40x48xbf16>,
    %c0_69 = arith.constant 0 : index
    %c17 = arith.constant 17 : index
    %c0_70 = arith.constant 0 : index
    %51 = vector.load %arg0[%c0_69, %c17, %c0_70] : memref<2x71x48xf32, #tpu.memory_space<vmem>>, vector<2x40x48xf32>
    %52 = arith.truncf %51 : vector<2x40x48xf32> to vector<2x40x48xbf16>
    %c0_71 = arith.constant 0 : index
    %c0_72 = arith.constant 0 : index
    %c816 = arith.constant 816 : index
    %53 = vector.load %arg14[%c0_71, %c0_72, %c816] : memref<2x40x1536xbf16, #tpu.memory_space<vmem>>, vector<2x40x48xbf16>
    tpu.vector_store %arg14[%c0_71, %c0_72, %c816], %52 {strides = array<i32>} : memref<2x40x1536xbf16, #tpu.memory_space<vmem>>, vector<2x40x48xbf16>,
    %c0_73 = arith.constant 0 : index
    %c18 = arith.constant 18 : index
    %c0_74 = arith.constant 0 : index
    %54 = vector.load %arg0[%c0_73, %c18, %c0_74] : memref<2x71x48xf32, #tpu.memory_space<vmem>>, vector<2x40x48xf32>
    %55 = arith.truncf %54 : vector<2x40x48xf32> to vector<2x40x48xbf16>
    %c0_75 = arith.constant 0 : index
    %c0_76 = arith.constant 0 : index
    %c864 = arith.constant 864 : index
    %56 = vector.load %arg14[%c0_75, %c0_76, %c864] : memref<2x40x1536xbf16, #tpu.memory_space<vmem>>, vector<2x40x48xbf16>
    tpu.vector_store %arg14[%c0_75, %c0_76, %c864], %55 {strides = array<i32>} : memref<2x40x1536xbf16, #tpu.memory_space<vmem>>, vector<2x40x48xbf16>,
    %c0_77 = arith.constant 0 : index
    %c19 = arith.constant 19 : index
    %c0_78 = arith.constant 0 : index
    %57 = vector.load %arg0[%c0_77, %c19, %c0_78] : memref<2x71x48xf32, #tpu.memory_space<vmem>>, vector<2x40x48xf32>
    %58 = arith.truncf %57 : vector<2x40x48xf32> to vector<2x40x48xbf16>
    %c0_79 = arith.constant 0 : index
    %c0_80 = arith.constant 0 : index
    %c912 = arith.constant 912 : index
    %59 = vector.load %arg14[%c0_79, %c0_80, %c912] : memref<2x40x1536xbf16, #tpu.memory_space<vmem>>, vector<2x40x48xbf16>
    tpu.vector_store %arg14[%c0_79, %c0_80, %c912], %58 {strides = array<i32>} : memref<2x40x1536xbf16, #tpu.memory_space<vmem>>, vector<2x40x48xbf16>,
    %c0_81 = arith.constant 0 : index
    %c20 = arith.constant 20 : index
    %c0_82 = arith.constant 0 : index
    %60 = vector.load %arg0[%c0_81, %c20, %c0_82] : memref<2x71x48xf32, #tpu.memory_space<vmem>>, vector<2x40x48xf32>
    %61 = arith.truncf %60 : vector<2x40x48xf32> to vector<2x40x48xbf16>
    %c0_83 = arith.constant 0 : index
    %c0_84 = arith.constant 0 : index
    %c960 = arith.constant 960 : index
    %62 = vector.load %arg14[%c0_83, %c0_84, %c960] : memref<2x40x1536xbf16, #tpu.memory_space<vmem>>, vector<2x40x48xbf16>
    tpu.vector_store %arg14[%c0_83, %c0_84, %c960], %61 {strides = array<i32>} : memref<2x40x1536xbf16, #tpu.memory_space<vmem>>, vector<2x40x48xbf16>,
    %c0_85 = arith.constant 0 : index
    %c21 = arith.constant 21 : index
    %c0_86 = arith.constant 0 : index
    %63 = vector.load %arg0[%c0_85, %c21, %c0_86] : memref<2x71x48xf32, #tpu.memory_space<vmem>>, vector<2x40x48xf32>
    %64 = arith.truncf %63 : vector<2x40x48xf32> to vector<2x40x48xbf16>
    %c0_87 = arith.constant 0 : index
    %c0_88 = arith.constant 0 : index
    %c1008 = arith.constant 1008 : index
    %65 = vector.load %arg14[%c0_87, %c0_88, %c1008] : memref<2x40x1536xbf16, #tpu.memory_space<vmem>>, vector<2x40x48xbf16>
    tpu.vector_store %arg14[%c0_87, %c0_88, %c1008], %64 {strides = array<i32>} : memref<2x40x1536xbf16, #tpu.memory_space<vmem>>, vector<2x40x48xbf16>,
    %c0_89 = arith.constant 0 : index
    %c22 = arith.constant 22 : index
    %c0_90 = arith.constant 0 : index
    %66 = vector.load %arg0[%c0_89, %c22, %c0_90] : memref<2x71x48xf32, #tpu.memory_space<vmem>>, vector<2x40x48xf32>
    %67 = arith.truncf %66 : vector<2x40x48xf32> to vector<2x40x48xbf16>
    %c0_91 = arith.constant 0 : index
    %c0_92 = arith.constant 0 : index
    %c1056 = arith.constant 1056 : index
    %68 = vector.load %arg14[%c0_91, %c0_92, %c1056] : memref<2x40x1536xbf16, #tpu.memory_space<vmem>>, vector<2x40x48xbf16>
    tpu.vector_store %arg14[%c0_91, %c0_92, %c1056], %67 {strides = array<i32>} : memref<2x40x1536xbf16, #tpu.memory_space<vmem>>, vector<2x40x48xbf16>,
    %c0_93 = arith.constant 0 : index
    %c23 = arith.constant 23 : index
    %c0_94 = arith.constant 0 : index
    %69 = vector.load %arg0[%c0_93, %c23, %c0_94] : memref<2x71x48xf32, #tpu.memory_space<vmem>>, vector<2x40x48xf32>
    %70 = arith.truncf %69 : vector<2x40x48xf32> to vector<2x40x48xbf16>
    %c0_95 = arith.constant 0 : index
    %c0_96 = arith.constant 0 : index
    %c1104 = arith.constant 1104 : index
    %71 = vector.load %arg14[%c0_95, %c0_96, %c1104] : memref<2x40x1536xbf16, #tpu.memory_space<vmem>>, vector<2x40x48xbf16>
    tpu.vector_store %arg14[%c0_95, %c0_96, %c1104], %70 {strides = array<i32>} : memref<2x40x1536xbf16, #tpu.memory_space<vmem>>, vector<2x40x48xbf16>,
    %c0_97 = arith.constant 0 : index
    %c24 = arith.constant 24 : index
    %c0_98 = arith.constant 0 : index
    %72 = vector.load %arg0[%c0_97, %c24, %c0_98] : memref<2x71x48xf32, #tpu.memory_space<vmem>>, vector<2x40x48xf32>
    %73 = arith.truncf %72 : vector<2x40x48xf32> to vector<2x40x48xbf16>
    %c0_99 = arith.constant 0 : index
    %c0_100 = arith.constant 0 : index
    %c1152 = arith.constant 1152 : index
    %74 = vector.load %arg14[%c0_99, %c0_100, %c1152] : memref<2x40x1536xbf16, #tpu.memory_space<vmem>>, vector<2x40x48xbf16>
    tpu.vector_store %arg14[%c0_99, %c0_100, %c1152], %73 {strides = array<i32>} : memref<2x40x1536xbf16, #tpu.memory_space<vmem>>, vector<2x40x48xbf16>,
    %c0_101 = arith.constant 0 : index
    %c25 = arith.constant 25 : index
    %c0_102 = arith.constant 0 : index
    %75 = vector.load %arg0[%c0_101, %c25, %c0_102] : memref<2x71x48xf32, #tpu.memory_space<vmem>>, vector<2x40x48xf32>
    %76 = arith.truncf %75 : vector<2x40x48xf32> to vector<2x40x48xbf16>
    %c0_103 = arith.constant 0 : index
    %c0_104 = arith.constant 0 : index
    %c1200 = arith.constant 1200 : index
    %77 = vector.load %arg14[%c0_103, %c0_104, %c1200] : memref<2x40x1536xbf16, #tpu.memory_space<vmem>>, vector<2x40x48xbf16>
    tpu.vector_store %arg14[%c0_103, %c0_104, %c1200], %76 {strides = array<i32>} : memref<2x40x1536xbf16, #tpu.memory_space<vmem>>, vector<2x40x48xbf16>,
    %c0_105 = arith.constant 0 : index
    %c26 = arith.constant 26 : index
    %c0_106 = arith.constant 0 : index
    %78 = vector.load %arg0[%c0_105, %c26, %c0_106] : memref<2x71x48xf32, #tpu.memory_space<vmem>>, vector<2x40x48xf32>
    %79 = arith.truncf %78 : vector<2x40x48xf32> to vector<2x40x48xbf16>
    %c0_107 = arith.constant 0 : index
    %c0_108 = arith.constant 0 : index
    %c1248 = arith.constant 1248 : index
    %80 = vector.load %arg14[%c0_107, %c0_108, %c1248] : memref<2x40x1536xbf16, #tpu.memory_space<vmem>>, vector<2x40x48xbf16>
    tpu.vector_store %arg14[%c0_107, %c0_108, %c1248], %79 {strides = array<i32>} : memref<2x40x1536xbf16, #tpu.memory_space<vmem>>, vector<2x40x48xbf16>,
    %c0_109 = arith.constant 0 : index
    %c27 = arith.constant 27 : index
    %c0_110 = arith.constant 0 : index
    %81 = vector.load %arg0[%c0_109, %c27, %c0_110] : memref<2x71x48xf32, #tpu.memory_space<vmem>>, vector<2x40x48xf32>
    %82 = arith.truncf %81 : vector<2x40x48xf32> to vector<2x40x48xbf16>
    %c0_111 = arith.constant 0 : index
    %c0_112 = arith.constant 0 : index
    %c1296 = arith.constant 1296 : index
    %83 = vector.load %arg14[%c0_111, %c0_112, %c1296] : memref<2x40x1536xbf16, #tpu.memory_space<vmem>>, vector<2x40x48xbf16>
    tpu.vector_store %arg14[%c0_111, %c0_112, %c1296], %82 {strides = array<i32>} : memref<2x40x1536xbf16, #tpu.memory_space<vmem>>, vector<2x40x48xbf16>,
    %c0_113 = arith.constant 0 : index
    %c28 = arith.constant 28 : index
    %c0_114 = arith.constant 0 : index
    %84 = vector.load %arg0[%c0_113, %c28, %c0_114] : memref<2x71x48xf32, #tpu.memory_space<vmem>>, vector<2x40x48xf32>
    %85 = arith.truncf %84 : vector<2x40x48xf32> to vector<2x40x48xbf16>
    %c0_115 = arith.constant 0 : index
    %c0_116 = arith.constant 0 : index
    %c1344 = arith.constant 1344 : index
    %86 = vector.load %arg14[%c0_115, %c0_116, %c1344] : memref<2x40x1536xbf16, #tpu.memory_space<vmem>>, vector<2x40x48xbf16>
    tpu.vector_store %arg14[%c0_115, %c0_116, %c1344], %85 {strides = array<i32>} : memref<2x40x1536xbf16, #tpu.memory_space<vmem>>, vector<2x40x48xbf16>,
    %c0_117 = arith.constant 0 : index
    %c29 = arith.constant 29 : index
    %c0_118 = arith.constant 0 : index
    %87 = vector.load %arg0[%c0_117, %c29, %c0_118] : memref<2x71x48xf32, #tpu.memory_space<vmem>>, vector<2x40x48xf32>
    %88 = arith.truncf %87 : vector<2x40x48xf32> to vector<2x40x48xbf16>
    %c0_119 = arith.constant 0 : index
    %c0_120 = arith.constant 0 : index
    %c1392 = arith.constant 1392 : index
    %89 = vector.load %arg14[%c0_119, %c0_120, %c1392] : memref<2x40x1536xbf16, #tpu.memory_space<vmem>>, vector<2x40x48xbf16>
    tpu.vector_store %arg14[%c0_119, %c0_120, %c1392], %88 {strides = array<i32>} : memref<2x40x1536xbf16, #tpu.memory_space<vmem>>, vector<2x40x48xbf16>,
    %c0_121 = arith.constant 0 : index
    %c30 = arith.constant 30 : index
    %c0_122 = arith.constant 0 : index
    %90 = vector.load %arg0[%c0_121, %c30, %c0_122] : memref<2x71x48xf32, #tpu.memory_space<vmem>>, vector<2x40x48xf32>
    %91 = arith.truncf %90 : vector<2x40x48xf32> to vector<2x40x48xbf16>
    %c0_123 = arith.constant 0 : index
    %c0_124 = arith.constant 0 : index
    %c1440 = arith.constant 1440 : index
    %92 = vector.load %arg14[%c0_123, %c0_124, %c1440] : memref<2x40x1536xbf16, #tpu.memory_space<vmem>>, vector<2x40x48xbf16>
    tpu.vector_store %arg14[%c0_123, %c0_124, %c1440], %91 {strides = array<i32>} : memref<2x40x1536xbf16, #tpu.memory_space<vmem>>, vector<2x40x48xbf16>,
    %c0_125 = arith.constant 0 : index
    %c31 = arith.constant 31 : index
    %c0_126 = arith.constant 0 : index
    %93 = vector.load %arg0[%c0_125, %c31, %c0_126] : memref<2x71x48xf32, #tpu.memory_space<vmem>>, vector<2x40x48xf32>
    %94 = arith.truncf %93 : vector<2x40x48xf32> to vector<2x40x48xbf16>
    %c0_127 = arith.constant 0 : index
    %c0_128 = arith.constant 0 : index
    %c1488 = arith.constant 1488 : index
    %95 = vector.load %arg14[%c0_127, %c0_128, %c1488] : memref<2x40x1536xbf16, #tpu.memory_space<vmem>>, vector<2x40x48xbf16>
    tpu.vector_store %arg14[%c0_127, %c0_128, %c1488], %94 {strides = array<i32>} : memref<2x40x1536xbf16, #tpu.memory_space<vmem>>, vector<2x40x48xbf16>,
    %c0_129 = arith.constant 0 : index
    %c0_130 = arith.constant 0 : index
    %c0_131 = arith.constant 0 : index
    %96 = vector.load %arg14[%c0_129, %c0_130, %c0_131] : memref<2x40x1536xbf16, #tpu.memory_space<vmem>>, vector<2x40x1536xbf16>
    %97 = vector.shape_cast %96 : vector<2x40x1536xbf16> to vector<80x1536xbf16>
    %98 = vector.extract_strided_slice %97 {offsets = [0, 0], sizes = [80, 256], strides = [1, 1]} : vector<80x1536xbf16> to vector<80x256xbf16>
    %c0_132 = arith.constant 0 : index
    %c0_133 = arith.constant 0 : index
    %99 = vector.load %arg2[%c0_132, %c0_133] : memref<256x256xbf16, #tpu.memory_space<vmem>>, vector<256x256xbf16>
    %cst = arith.constant dense<0.000000e+00> : vector<80x256xf32>
    %100 = tpu.matmul %98, %99, %cst {dimension_numbers = #tpu.dot_dimension_numbers<[1], [0], [0], [1], [0, 0, 1, 1], [], []>} : vector<80x256xbf16>, vector<256x256xbf16>, vector<80x256xf32> -> vector<80x256xf32>
    %101 = vector.extract_strided_slice %97 {offsets = [0, 0], sizes = [80, 384], strides = [1, 1]} : vector<80x1536xbf16> to vector<80x384xbf16>
    %c0_134 = arith.constant 0 : index
    %c0_135 = arith.constant 0 : index
    %102 = vector.load %arg3[%c0_134, %c0_135] : memref<384x128xbf16, #tpu.memory_space<vmem>>, vector<384x128xbf16>
    %cst_136 = arith.constant dense<0.000000e+00> : vector<80x128xf32>
    %103 = tpu.matmul %101, %102, %cst_136 {dimension_numbers = #tpu.dot_dimension_numbers<[1], [0], [0], [1], [0, 0, 1, 1], [], []>} : vector<80x384xbf16>, vector<384x128xbf16>, vector<80x128xf32> -> vector<80x128xf32>
    %104 = vector.extract_strided_slice %97 {offsets = [0, 0], sizes = [80, 768], strides = [1, 1]} : vector<80x1536xbf16> to vector<80x768xbf16>
    %c0_137 = arith.constant 0 : index
    %c0_138 = arith.constant 0 : index
    %105 = vector.load %arg4[%c0_137, %c0_138] : memref<768x64xbf16, #tpu.memory_space<vmem>>, vector<768x64xbf16>
    %cst_139 = arith.constant dense<0.000000e+00> : vector<80x64xf32>
    %106 = tpu.matmul %104, %105, %cst_139 {dimension_numbers = #tpu.dot_dimension_numbers<[1], [0], [0], [1], [0, 0, 1, 1], [], []>} : vector<80x768xbf16>, vector<768x64xbf16>, vector<80x64xf32> -> vector<80x64xf32>
    %c0_140 = arith.constant 0 : index
    %c0_141 = arith.constant 0 : index
    %107 = vector.load %arg5[%c0_140, %c0_141] : memref<1536x64xbf16, #tpu.memory_space<vmem>>, vector<1536x64xbf16>
    %cst_142 = arith.constant dense<0.000000e+00> : vector<80x64xf32>
    %108 = tpu.matmul %97, %107, %cst_142 {dimension_numbers = #tpu.dot_dimension_numbers<[1], [0], [0], [1], [0, 0, 1, 1], [], []>} : vector<80x1536xbf16>, vector<1536x64xbf16>, vector<80x64xf32> -> vector<80x64xf32>
    %109 = tpu.concatenate %100, %103, %106, %108 in 1 : vector<80x256xf32>, vector<80x128xf32>, vector<80x64xf32>, vector<80x64xf32> -> vector<80x512xf32>
    %c0_143 = arith.constant 0 : index
    %c0_144 = arith.constant 0 : index
    %110 = vector.load %arg6[%c0_143, %c0_144] : memref<1x512xf32, #tpu.memory_space<vmem>>, vector<1x512xf32>
    %111 = vector.broadcast %110 : vector<1x512xf32> to vector<80x512xf32>
    %112 = arith.addf %109, %111 : vector<80x512xf32>
    %cst_145 = arith.constant 0.000000e+00 : f32
    %113 = vector.broadcast %cst_145 : f32 to vector<80x512xf32>
    %114 = arith.maximumf %112, %113 : vector<80x512xf32>
    %115 = vector.shape_cast %114 : vector<80x512xf32> to vector<2x40x512xf32>
    %116 = tpu.iota {dimensions = array<i32: 0>} : vector<40x512xi32>
    %117 = vector.shape_cast %116 : vector<40x512xi32> to vector<1x40x512xi32>
    %c0_146 = arith.constant 0 : index
    %c0_147 = arith.constant 0 : index
    %118 = vector.load %arg1[%c0_146, %c0_147] : memref<1x512xi32, #tpu.memory_space<vmem>>, vector<1x512xi32>
    %119 = vector.shape_cast %118 : vector<1x512xi32> to vector<1x1x512xi32>
    %120 = vector.broadcast %119 : vector<1x1x512xi32> to vector<1x40x512xi32>
    %121 = arith.cmpi sle, %117, %120 : vector<1x40x512xi32>
    %cst_148 = arith.constant 0.000000e+00 : f32
    %122 = vector.shape_cast %121 : vector<1x40x512xi1> to vector<1x40x512xi1>
    %123 = vector.broadcast %122 : vector<1x40x512xi1> to vector<2x40x512xi1>
    %124 = vector.broadcast %cst_148 : f32 to vector<2x40x512xf32>
    %125 = arith.select %123, %115, %124 : vector<2x40x512xi1>, vector<2x40x512xf32>
    %cst_149 = arith.constant dense<0xFF800000> : vector<2x512xf32>
    %126 = vector.multi_reduction <maximumf>, %125, %cst_149 [1] : vector<2x40x512xf32> to vector<2x512xf32>
    %127 = arith.truncf %126 : vector<2x512xf32> to vector<2x512xbf16>
    %c0_150 = arith.constant 0 : index
    %c0_151 = arith.constant 0 : index
    %128 = vector.load %arg7[%c0_150, %c0_151] : memref<512x768xbf16, #tpu.memory_space<vmem>>, vector<512x768xbf16>
    %cst_152 = arith.constant dense<0.000000e+00> : vector<2x768xf32>
    %129 = tpu.matmul %127, %128, %cst_152 {dimension_numbers = #tpu.dot_dimension_numbers<[1], [0], [0], [1], [0, 0, 1, 1], [], []>} : vector<2x512xbf16>, vector<512x768xbf16>, vector<2x768xf32> -> vector<2x768xf32>
    %c0_153 = arith.constant 0 : index
    %c0_154 = arith.constant 0 : index
    %130 = vector.load %arg8[%c0_153, %c0_154] : memref<1x768xf32, #tpu.memory_space<vmem>>, vector<1x768xf32>
    %131 = vector.broadcast %130 : vector<1x768xf32> to vector<2x768xf32>
    %132 = arith.addf %129, %131 : vector<2x768xf32>
    %133 = vector.extract_strided_slice %132 {offsets = [0, 0], sizes = [2, 256], strides = [1, 1]} : vector<2x768xf32> to vector<2x256xf32>
    %cst_155 = arith.constant 5.000000e-01 : f32
    %134 = vector.broadcast %cst_155 : f32 to vector<2x256xf32>
    %135 = arith.mulf %134, %133 : vector<2x256xf32>
    %136 = math.tanh %135 : vector<2x256xf32>
    %cst_156 = arith.constant 1.000000e+00 : f32
    %137 = vector.broadcast %cst_156 : f32 to vector<2x256xf32>
    %138 = arith.addf %136, %137 : vector<2x256xf32>
    %cst_157 = arith.constant 5.000000e-01 : f32
    %139 = vector.broadcast %cst_157 : f32 to vector<2x256xf32>
    %140 = arith.mulf %139, %138 : vector<2x256xf32>
    %141 = vector.extract_strided_slice %132 {offsets = [0, 256], sizes = [2, 256], strides = [1, 1]} : vector<2x768xf32> to vector<2x256xf32>
    %142 = math.tanh %141 : vector<2x256xf32>
    %143 = vector.extract_strided_slice %132 {offsets = [0, 512], sizes = [2, 256], strides = [1, 1]} : vector<2x768xf32> to vector<2x256xf32>
    %cst_158 = arith.constant 5.000000e-01 : f32
    %144 = vector.broadcast %cst_158 : f32 to vector<2x256xf32>
    %145 = arith.mulf %144, %143 : vector<2x256xf32>
    %146 = math.tanh %145 : vector<2x256xf32>
    %cst_159 = arith.constant 1.000000e+00 : f32
    %147 = vector.broadcast %cst_159 : f32 to vector<2x256xf32>
    %148 = arith.addf %146, %147 : vector<2x256xf32>
    %cst_160 = arith.constant 5.000000e-01 : f32
    %149 = vector.broadcast %cst_160 : f32 to vector<2x256xf32>
    %150 = arith.mulf %149, %148 : vector<2x256xf32>
    %151 = arith.mulf %140, %142 : vector<2x256xf32>
    %152 = math.tanh %151 : vector<2x256xf32>
    %153 = arith.mulf %150, %152 : vector<2x256xf32>
    %154 = arith.truncf %153 : vector<2x256xf32> to vector<2x256xbf16>
    %c0_161 = arith.constant 0 : index
    %c0_162 = arith.constant 0 : index
    %155 = vector.load %arg9[%c0_161, %c0_162] : memref<256x256xbf16, #tpu.memory_space<vmem>>, vector<256x256xbf16>
    %cst_163 = arith.constant dense<0.000000e+00> : vector<2x256xf32>
    %156 = tpu.matmul %154, %155, %cst_163 {dimension_numbers = #tpu.dot_dimension_numbers<[1], [0], [0], [1], [0, 0, 1, 1], [], []>} : vector<2x256xbf16>, vector<256x256xbf16>, vector<2x256xf32> -> vector<2x256xf32>
    %c0_164 = arith.constant 0 : index
    %c0_165 = arith.constant 0 : index
    %157 = vector.load %arg10[%c0_164, %c0_165] : memref<1x256xf32, #tpu.memory_space<vmem>>, vector<1x256xf32>
    %158 = vector.broadcast %157 : vector<1x256xf32> to vector<2x256xf32>
    %159 = arith.addf %156, %158 : vector<2x256xf32>
    %cst_166 = arith.constant 0.000000e+00 : f32
    %160 = vector.broadcast %cst_166 : f32 to vector<2x256xf32>
    %161 = arith.cmpf oge, %159, %160 : vector<2x256xf32>
    %cst_167 = arith.constant 0.00999999977 : f32
    %162 = vector.broadcast %cst_167 : f32 to vector<2x256xf32>
    %163 = arith.mulf %162, %159 : vector<2x256xf32>
    %164 = arith.select %161, %159, %163 : vector<2x256xi1>, vector<2x256xf32>
    %165 = arith.truncf %164 : vector<2x256xf32> to vector<2x256xbf16>
    %c0_168 = arith.constant 0 : index
    %c0_169 = arith.constant 0 : index
    %166 = vector.load %arg11[%c0_168, %c0_169] : memref<256x128xbf16, #tpu.memory_space<vmem>>, vector<256x128xbf16>
    %cst_170 = arith.constant dense<0.000000e+00> : vector<2x128xf32>
    %167 = tpu.matmul %165, %166, %cst_170 {dimension_numbers = #tpu.dot_dimension_numbers<[1], [0], [0], [1], [0, 0, 1, 1], [], []>} : vector<2x256xbf16>, vector<256x128xbf16>, vector<2x128xf32> -> vector<2x128xf32>
    %c0_171 = arith.constant 0 : index
    %c0_172 = arith.constant 0 : index
    %168 = vector.load %arg12[%c0_171, %c0_172] : memref<1x128xf32, #tpu.memory_space<vmem>>, vector<1x128xf32>
    %169 = vector.broadcast %168 : vector<1x128xf32> to vector<2x128xf32>
    %170 = arith.addf %167, %169 : vector<2x128xf32>
    %c0_173 = arith.constant 0 : index
    %c0_174 = arith.constant 0 : index
    %171 = vector.load %arg13[%c0_173, %c0_174] : memref<2x128xf32, #tpu.memory_space<vmem>>, vector<2x128xf32>
    tpu.vector_store %arg13[%c0_173, %c0_174], %170 {strides = array<i32>} : memref<2x128xf32, #tpu.memory_space<vmem>>, vector<2x128xf32>,
    return
  }
}

</mosaic_0001>

<llo_original>
// kernel: new_model_forward.1
$region0: #{new_model_forward.1}
  #allocation0 [shape = 'u32[]', space=smem, size = 0x4, offset = 0x4, fixed_abs, tag = 'smem constant byte address 0x4 - core index']
  #allocation1 [shape = 'u32[144,128]{1,0:T(1,128)}', space=vmem, size = 0x12000, scoped, tag = 'internal scratch']
  #allocation2 [shape = 'bf16[2,40,1536]{2,1,0:T(8,128)(2,1)}', space=vmem, size = 0x3c000, scoped, tag = 'scratch operand']
  %s0 = inlined_call_operand.vmem [shape: f32[2,71,48], index: 0, kind: input, shape index: {}]
  %s1 = inlined_call_operand.vmem [shape: s32[1,512], index: 1, kind: input, shape index: {}]
  %s2 = inlined_call_operand.hbm [shape: bf16[256,256], index: 2, kind: input, shape index: {}]
  %s3 = inlined_call_operand.hbm [shape: bf16[384,128], index: 3, kind: input, shape index: {}]
  %s4 = inlined_call_operand.vmem [shape: bf16[768,64], index: 4, kind: input, shape index: {}]
  %s5 = inlined_call_operand.vmem [shape: bf16[1536,64], index: 5, kind: input, shape index: {}]
  %s6 = inlined_call_operand.vmem [shape: f32[1,512], index: 6, kind: input, shape index: {}]
  %s7 = inlined_call_operand.vmem [shape: bf16[512,768], index: 7, kind: input, shape index: {}]
  %s8 = inlined_call_operand.vmem [shape: f32[1,768], index: 8, kind: input, shape index: {}]
  %s9 = inlined_call_operand.hbm [shape: bf16[256,256], index: 9, kind: input, shape index: {}]
  %s10 = inlined_call_operand.vmem [shape: f32[1,256], index: 10, kind: input, shape index: {}]
  %s11 = inlined_call_operand.hbm [shape: bf16[256,128], index: 11, kind: input, shape index: {}]
  %s12 = inlined_call_operand.vmem [shape: f32[1,128], index: 12, kind: input, shape index: {}]
  %s13 = inlined_call_operand.hbm [shape: f32[2,128], index: 13, kind: output, shape index: {}]
  %s14 = sld [smem:[#allocation0]]
  $region78: #{new_model_forward.1} parent=0
    _
  %s16 = ssub.s32 1, %s14
  %s17 = scalar_select 0, %s16, %s14
  $region1: #{new_model_forward.1} parent=0
    #allocation3 [shape = 'u8[131072]{0}', space=vmem, size = 0x20000, scoped, tag = 'input window, operand 2, single buffered']
    #allocation4 [shape = 's32[1]{0}', space=sflag, size = 0x4, scoped, tag = 'scoped memory for new_model_forward.1']
    #allocation5 [shape = 's32[1]{0}', space=sflag, size = 0x4, scoped, tag = 'scoped memory for new_model_forward.1']
    #allocation6 [shape = 'u8[98304]{0}', space=vmem, size = 0x18000, scoped, tag = 'input window, operand 3, single buffered']
    #allocation7 [shape = 's32[1]{0}', space=sflag, size = 0x4, scoped, tag = 'scoped memory for new_model_forward.1']
    #allocation8 [shape = 'u8[131072]{0}', space=vmem, size = 0x20000, scoped, tag = 'input window, operand 9, single buffered']
    #allocation9 [shape = 'u8[65536]{0}', space=vmem, size = 0x10000, scoped, tag = 'input window, operand 11, single buffered']
    #allocation10 [shape = 's32[1]{0}', space=sflag, size = 0x4, scoped, tag = 'scoped memory for new_model_forward.1']
    #allocation11 [shape = 'u8[1024]{0}', space=vmem, size = 0x400, scoped, tag = 'output window, operand 0, single buffered']
    %18 = vsyncpa [#allocation4], 0
    %19 = vsyncpa [#allocation7], 0
    %20 = vsyncpa [#allocation10], 0
    %21 = vsyncpa [#allocation5], 0
    // Predicated region
    $region2: #{new_model_forward.1} parent=1 // pred_check
      _
    $region3: #{new_model_forward.1} parent=1 // pred_check_branch
      %23 = sbr.rel (0) target = $region5
    $region4: #{new_model_forward.1} parent=1 // pred_region
      _
    $region5: #{new_model_forward.1} parent=1 // pred_fallthru
      _
    // Predicated region
    $region6: #{new_model_forward.1} parent=1 // pred_check
      _
    $region7: #{new_model_forward.1} parent=1 // pred_check_branch
      %25 = sbr.rel (0) target = $region9
    $region8: #{new_model_forward.1} parent=1 // pred_region
      _
    $region9: #{new_model_forward.1} parent=1 // pred_fallthru
      _
    // Predicated region
    $region10: #{new_model_forward.1} parent=1 // pred_check
      _
    $region11: #{new_model_forward.1} parent=1 // pred_check_branch
      %27 = sbr.rel (0) target = $region13
    $region12: #{new_model_forward.1} parent=1 // pred_region
      %s29 = ssub.s32 4096, 4096
      %30 = vsyncadd [#allocation4], %s29
      %s31 = sshll.u32 [#allocation3], 4
      %s32 = int_to_ptr.vmem [resolvable:$true] %s31
      %37 = dma.hbm_to_vmem [thread:$0]  %s2, 4096, %s32, [#allocation4], 128, 128, 8
    $region13: #{new_model_forward.1} parent=1 // pred_fallthru
      _
    // Predicated region
    $region14: #{new_model_forward.1} parent=1 // pred_check
      _
    $region15: #{new_model_forward.1} parent=1 // pred_check_branch
      %39 = sbr.rel (0) target = $region17
    $region16: #{new_model_forward.1} parent=1 // pred_region
      %s41 = ssub.s32 3072, 3072
      %42 = vsyncadd [#allocation7], %s41
      %s43 = sshll.u32 [#allocation6], 4
      %s44 = int_to_ptr.vmem [resolvable:$true] %s43
      %49 = dma.hbm_to_vmem [thread:$0]  %s3, 3072, %s44, [#allocation7], 64, 64, 4
    $region17: #{new_model_forward.1} parent=1 // pred_fallthru
      _
    // Predicated region
    $region18: #{new_model_forward.1} parent=1 // pred_check
      _
    $region19: #{new_model_forward.1} parent=1 // pred_check_branch
      %51 = sbr.rel (0) target = $region21
    $region20: #{new_model_forward.1} parent=1 // pred_region
      _
    $region21: #{new_model_forward.1} parent=1 // pred_fallthru
      _
    // Predicated region
    $region22: #{new_model_forward.1} parent=1 // pred_check
      _
    $region23: #{new_model_forward.1} parent=1 // pred_check_branch
      %53 = sbr.rel (0) target = $region25
    $region24: #{new_model_forward.1} parent=1 // pred_region
      _
    $region25: #{new_model_forward.1} parent=1 // pred_fallthru
      _
    // Predicated region
    $region26: #{new_model_forward.1} parent=1 // pred_check
      _
    $region27: #{new_model_forward.1} parent=1 // pred_check_branch
      %55 = sbr.rel (0) target = $region29
    $region28: #{new_model_forward.1} parent=1 // pred_region
      _
    $region29: #{new_model_forward.1} parent=1 // pred_fallthru
      _
    // Predicated region
    $region30: #{new_model_forward.1} parent=1 // pred_check
      _
    $region31: #{new_model_forward.1} parent=1 // pred_check_branch
      %57 = sbr.rel (0) target = $region33
    $region32: #{new_model_forward.1} parent=1 // pred_region
      _
    $region33: #{new_model_forward.1} parent=1 // pred_fallthru
      _
    // Predicated region
    $region34: #{new_model_forward.1} parent=1 // pred_check
      _
    $region35: #{new_model_forward.1} parent=1 // pred_check_branch
      %59 = sbr.rel (0) target = $region37
    $region36: #{new_model_forward.1} parent=1 // pred_region
      _
    $region37: #{new_model_forward.1} parent=1 // pred_fallthru
      _
    // Predicated region
    $region38: #{new_model_forward.1} parent=1 // pred_check
      _
    $region39: #{new_model_forward.1} parent=1 // pred_check_branch
      %61 = sbr.rel (0) target = $region41
    $region40: #{new_model_forward.1} parent=1 // pred_region
      %s63 = ssub.s32 4096, 4096
      %64 = vsyncadd [#allocation7], %s63
      %s65 = sshll.u32 [#allocation8], 4
      %s66 = int_to_ptr.vmem [resolvable:$true] %s65
      %71 = dma.hbm_to_vmem [thread:$0]  %s9, 4096, %s66, [#allocation7], 128, 128, 8
    $region41: #{new_model_forward.1} parent=1 // pred_fallthru
      _
    // Predicated region
    $region42: #{new_model_forward.1} parent=1 // pred_check
      _
    $region43: #{new_model_forward.1} parent=1 // pred_check_branch
      %73 = sbr.rel (0) target = $region45
    $region44: #{new_model_forward.1} parent=1 // pred_region
      _
    $region45: #{new_model_forward.1} parent=1 // pred_fallthru
      _
    // Predicated region
    $region46: #{new_model_forward.1} parent=1 // pred_check
      _
    $region47: #{new_model_forward.1} parent=1 // pred_check_branch
      %75 = sbr.rel (0) target = $region49
    $region48: #{new_model_forward.1} parent=1 // pred_region
      %s77 = ssub.s32 2048, 2048
      %78 = vsyncadd [#allocation10], %s77
      %s79 = sshll.u32 [#allocation9], 4
      %s80 = int_to_ptr.vmem [resolvable:$true] %s79
      %85 = dma.hbm_to_vmem [thread:$0]  %s11, 2048, %s80, [#allocation10], 64, 64, 4
    $region49: #{new_model_forward.1} parent=1 // pred_fallthru
      _
    // Predicated region
    $region50: #{new_model_forward.1} parent=1 // pred_check
      _
    $region51: #{new_model_forward.1} parent=1 // pred_check_branch
      %87 = sbr.rel (0) target = $region53
    $region52: #{new_model_forward.1} parent=1 // pred_region
      _
    $region53: #{new_model_forward.1} parent=1 // pred_fallthru
      _
    // Predicated region
    $region54: #{new_model_forward.1} parent=1 // pred_check
      _
    $region55: #{new_model_forward.1} parent=1 // pred_check_branch
      %89 = sbr.rel (0) target = $region57
    $region56: #{new_model_forward.1} parent=1 // pred_region
      %90 = dma.done [#allocation4], 4096
    $region57: #{new_model_forward.1} parent=1 // pred_fallthru
      _
    // Predicated region
    $region58: #{new_model_forward.1} parent=1 // pred_check
      _
    $region59: #{new_model_forward.1} parent=1 // pred_check_branch
      %92 = sbr.rel (0) target = $region61
    $region60: #{new_model_forward.1} parent=1 // pred_region
      %93 = dma.done [#allocation7], 3072
    $region61: #{new_model_forward.1} parent=1 // pred_fallthru
      _
    // Predicated region
    $region62: #{new_model_forward.1} parent=1 // pred_check
      _
    $region63: #{new_model_forward.1} parent=1 // pred_check_branch
      %95 = sbr.rel (0) target = $region65
    $region64: #{new_model_forward.1} parent=1 // pred_region
      %96 = dma.done [#allocation7], 4096
    $region65: #{new_model_forward.1} parent=1 // pred_fallthru
      _
    // Predicated region
    $region66: #{new_model_forward.1} parent=1 // pred_check
      _
    $region67: #{new_model_forward.1} parent=1 // pred_check_branch
      %98 = sbr.rel (0) target = $region69
    $region68: #{new_model_forward.1} parent=1 // pred_region
      %99 = dma.done [#allocation10], 2048
    $region69: #{new_model_forward.1} parent=1 // pred_fallthru
      _
    %v101 = vld [vmem:[%s0] sm:$0xff]
    %v102 = vld [vmem:[%s0 + $0x8] sm:$0xff]
    %v103 = vld [vmem:[%s0 + $0x10] sm:$0xff]
    %v104 = vld [vmem:[%s0 + $0x18] sm:$0xff]
    %v105 = vld [vmem:[%s0 + $0x20] sm:$0xff]
    %v106 = vld [vmem:[%s0 + $0x48] sm:$0xff]
    %v107 = vld [vmem:[%s0 + $0x50] sm:$0xff]
    %v108 = vld [vmem:[%s0 + $0x58] sm:$0xff]
    %v109 = vld [vmem:[%s0 + $0x60] sm:$0xff]
    %v110 = vld [vmem:[%s0 + $0x68] sm:$0xff]
    %v111 = vpack.c.bf16 %v102, %v101
    %v112 = vpack.c.bf16 %v104, %v103
    %v113 = vpack.c.bf16 %v105, %v105
    %v114 = vpack.c.bf16 %v107, %v106
    %v115 = vpack.c.bf16 %v109, %v108
    %v116 = vpack.c.bf16 %v110, %v110
    %v123 = vunpack.c.l.b16 %v111
    %v124 = vunpack.c.h.b16 %v111
    %v125 = vunpack.c.l.b16 %v112
    %v126 = vunpack.c.h.b16 %v112
    %v127 = vunpack.c.l.b16 %v113
    %v128 = vunpack.c.l.b16 %v114
    %v129 = vunpack.c.h.b16 %v114
    %v130 = vunpack.c.l.b16 %v115
    %v131 = vunpack.c.h.b16 %v115
    %v132 = vunpack.c.l.b16 %v116
    %v133 = vpack.c.b16 %v123, %v123
    %v134 = vpack.c.b16 %v124, %v124
    %v135 = vpack.c.b16 %v125, %v125
    %v136 = vpack.c.b16 %v126, %v126
    %v137 = vpack.c.b16 %v127, %v127
    %v138 = vpack.c.b16 %v128, %v128
    %v139 = vpack.c.b16 %v129, %v129
    %v140 = vpack.c.b16 %v130, %v130
    %v141 = vpack.c.b16 %v131, %v131
    %v142 = vpack.c.b16 %v132, %v132
    %vm153 = vcmask 388096
    %154 = vst.msk [vmem:[#allocation2] sm:$0xf] %vm153, %v133
    %155 = vst.msk [vmem:[#allocation2 + $0x30] sm:$0xf] %vm153, %v134
    %156 = vst.msk [vmem:[#allocation2 + $0x60] sm:$0xf] %vm153, %v135
    %157 = vst.msk [vmem:[#allocation2 + $0x90] sm:$0xf] %vm153, %v136
    %158 = vst.msk [vmem:[#allocation2 + $0xc0] sm:$0xf] %vm153, %v137
    %159 = vst.msk [vmem:[#allocation2 + $0xf0] sm:$0xf] %vm153, %v138
    %160 = vst.msk [vmem:[#allocation2 + $0x120] sm:$0xf] %vm153, %v139
    %161 = vst.msk [vmem:[#allocation2 + $0x150] sm:$0xf] %vm153, %v140
    %162 = vst.msk [vmem:[#allocation2 + $0x180] sm:$0xf] %vm153, %v141
    %163 = vst.msk [vmem:[#allocation2 + $0x1b0] sm:$0xf] %vm153, %v142
    %v164 = vld [vmem:[%s0 + $0x1] sm:$0xff]
    %v165 = vld [vmem:[%s0 + $0x9] sm:$0xff]
    %v166 = vld [vmem:[%s0 + $0x11] sm:$0xff]
    %v167 = vld [vmem:[%s0 + $0x19] sm:$0xff]
    %v168 = vld [vmem:[%s0 + $0x21] sm:$0xff]
    %v169 = vld [vmem:[%s0 + $0x49] sm:$0xff]
    %v170 = vld [vmem:[%s0 + $0x51] sm:$0xff]
    %v171 = vld [vmem:[%s0 + $0x59] sm:$0xff]
    %v172 = vld [vmem:[%s0 + $0x61] sm:$0xff]
    %v173 = vld [vmem:[%s0 + $0x69] sm:$0xff]
    %v174 = vpack.c.bf16 %v165, %v164
    %v175 = vpack.c.bf16 %v167, %v166
    %v176 = vpack.c.bf16 %v168, %v168
    %v177 = vpack.c.bf16 %v170, %v169
    %v178 = vpack.c.bf16 %v172, %v171
    %v179 = vpack.c.bf16 %v173, %v173
    %v186 = vunpack.c.l.b16 %v174
    %v187 = vunpack.c.h.b16 %v174
    %v188 = vunpack.c.l.b16 %v175
    %v189 = vunpack.c.h.b16 %v175
    %v190 = vunpack.c.l.b16 %v176
    %v191 = vunpack.c.l.b16 %v177
    %v192 = vunpack.c.h.b16 %v177
    %v193 = vunpack.c.l.b16 %v178
    %v194 = vunpack.c.h.b16 %v178
    %v195 = vunpack.c.l.b16 %v179
    %v196 = vpack.c.b16 %v186, %v186
    %v197 = vpack.c.b16 %v187, %v187
    %v198 = vpack.c.b16 %v188, %v188
    %v199 = vpack.c.b16 %v189, %v189
    %v200 = vpack.c.b16 %v190, %v190
    %v201 = vpack.c.b16 %v191, %v191
    %v202 = vpack.c.b16 %v192, %v192
    %v203 = vpack.c.b16 %v193, %v193
    %v204 = vpack.c.b16 %v194, %v194
    %v205 = vpack.c.b16 %v195, %v195
    %206 = vrot.lane.b32.xlu0 %v196, 48
    %v207 = vpop.permute.xlu0 %206
    %208 = vrot.lane.b32.xlu0 %v197, 48
    %v209 = vpop.permute.xlu0 %208
    %210 = vrot.lane.b32.xlu0 %v198, 48
    %v211 = vpop.permute.xlu0 %210
    %212 = vrot.lane.b32.xlu0 %v199, 48
    %v213 = vpop.permute.xlu0 %212
    %214 = vrot.lane.b32.xlu0 %v200, 48
    %v215 = vpop.permute.xlu0 %214
    %216 = vrot.lane.b32.xlu0 %v201, 48
    %v217 = vpop.permute.xlu0 %216
    %218 = vrot.lane.b32.xlu0 %v202, 48
    %v219 = vpop.permute.xlu0 %218
    %220 = vrot.lane.b32.xlu0 %v203, 48
    %v221 = vpop.permute.xlu0 %220
    %222 = vrot.lane.b32.xlu0 %v204, 48
    %v223 = vpop.permute.xlu0 %222
    %224 = vrot.lane.b32.xlu0 %v205, 48
    %v225 = vpop.permute.xlu0 %224
    %vm236 = vcmask 781696
    %237 = vst.msk [vmem:[#allocation2] sm:$0xf] %vm236, %v207
    %238 = vst.msk [vmem:[#allocation2 + $0x30] sm:$0xf] %vm236, %v209
    %239 = vst.msk [vmem:[#allocation2 + $0x60] sm:$0xf] %vm236, %v211
    %240 = vst.msk [vmem:[#allocation2 + $0x90] sm:$0xf] %vm236, %v213
    %241 = vst.msk [vmem:[#allocation2 + $0xc0] sm:$0xf] %vm236, %v215
    %242 = vst.msk [vmem:[#allocation2 + $0xf0] sm:$0xf] %vm236, %v217
    %243 = vst.msk [vmem:[#allocation2 + $0x120] sm:$0xf] %vm236, %v219
    %244 = vst.msk [vmem:[#allocation2 + $0x150] sm:$0xf] %vm236, %v221
    %245 = vst.msk [vmem:[#allocation2 + $0x180] sm:$0xf] %vm236, %v223
    %246 = vst.msk [vmem:[#allocation2 + $0x1b0] sm:$0xf] %vm236, %v225
    %v247 = vld [vmem:[%s0 + $0x2] sm:$0xff]
    %v248 = vld [vmem:[%s0 + $0xa] sm:$0xff]
    %v249 = vld [vmem:[%s0 + $0x12] sm:$0xff]
    %v250 = vld [vmem:[%s0 + $0x1a] sm:$0xff]
    %v251 = vld [vmem:[%s0 + $0x22] sm:$0xff]
    %v252 = vld [vmem:[%s0 + $0x4a] sm:$0xff]
    %v253 = vld [vmem:[%s0 + $0x52] sm:$0xff]
    %v254 = vld [vmem:[%s0 + $0x5a] sm:$0xff]
    %v255 = vld [vmem:[%s0 + $0x62] sm:$0xff]
    %v256 = vld [vmem:[%s0 + $0x6a] sm:$0xff]
    %v257 = vpack.c.bf16 %v248, %v247
    %v258 = vpack.c.bf16 %v250, %v249
    %v259 = vpack.c.bf16 %v251, %v251
    %v260 = vpack.c.bf16 %v253, %v252
    %v261 = vpack.c.bf16 %v255, %v254
    %v262 = vpack.c.bf16 %v256, %v256
    %v269 = vunpack.c.l.b16 %v257
    %v270 = vunpack.c.h.b16 %v257
    %v271 = vunpack.c.l.b16 %v258
    %v272 = vunpack.c.h.b16 %v258
    %v273 = vunpack.c.l.b16 %v259
    %v274 = vunpack.c.l.b16 %v260
    %v275 = vunpack.c.h.b16 %v260
    %v276 = vunpack.c.l.b16 %v261
    %v277 = vunpack.c.h.b16 %v261
    %v278 = vunpack.c.l.b16 %v262
    %v279 = vpack.c.b16 %v269, %v269
    %v280 = vpack.c.b16 %v270, %v270
    %v281 = vpack.c.b16 %v271, %v271
    %v282 = vpack.c.b16 %v272, %v272
    %v283 = vpack.c.b16 %v273, %v273
    %v284 = vpack.c.b16 %v274, %v274
    %v285 = vpack.c.b16 %v275, %v275
    %v286 = vpack.c.b16 %v276, %v276
    %v287 = vpack.c.b16 %v277, %v277
    %v288 = vpack.c.b16 %v278, %v278
    %289 = vrot.lane.b32.xlu0 %v279, 96
    %v290 = vpop.permute.xlu0 %289
    %291 = vrot.lane.b32.xlu0 %v280, 96
    %v292 = vpop.permute.xlu0 %291
    %293 = vrot.lane.b32.xlu0 %v281, 96
    %v294 = vpop.permute.xlu0 %293
    %295 = vrot.lane.b32.xlu0 %v282, 96
    %v296 = vpop.permute.xlu0 %295
    %297 = vrot.lane.b32.xlu0 %v283, 96
    %v298 = vpop.permute.xlu0 %297
    %299 = vrot.lane.b32.xlu0 %v284, 96
    %v300 = vpop.permute.xlu0 %299
    %301 = vrot.lane.b32.xlu0 %v285, 96
    %v302 = vpop.permute.xlu0 %301
    %303 = vrot.lane.b32.xlu0 %v286, 96
    %v304 = vpop.permute.xlu0 %303
    %305 = vrot.lane.b32.xlu0 %v287, 96
    %v306 = vpop.permute.xlu0 %305
    %307 = vrot.lane.b32.xlu0 %v288, 96
    %v308 = vpop.permute.xlu0 %307
    %v309 = vrot.slane %v290, 4
    %v310 = vrot.slane %v292, 4
    %v311 = vrot.slane %v294, 4
    %v312 = vrot.slane %v296, 4
    %v313 = vrot.slane %v298, 4
    %v314 = vrot.slane %v300, 4
    %v315 = vrot.slane %v302, 4
    %v316 = vrot.slane %v304, 4
    %v317 = vrot.slane %v306, 4
    %v318 = vrot.slane %v308, 4
    %vm319 = vcmask 785408
    %v320 = vsel %vm319, %v309, %v290
    %v321 = vsel %vm319, %v310, %v292
    %v322 = vsel %vm319, %v311, %v294
    %v323 = vsel %vm319, %v312, %v296
    %v324 = vsel %vm319, %v313, %v298
    %v325 = vsel %vm319, %v314, %v300
    %v326 = vsel %vm319, %v315, %v302
    %v327 = vsel %vm319, %v316, %v304
    %v328 = vsel %vm319, %v317, %v306
    %v329 = vsel %vm319, %v318, %v308
    %vm340 = vcmask 1044224
    %vm341 = vcmask 130052
    %vm342 = vmor %vm341, %vm340
    %343 = vst.msk [vmem:[#allocation2] sm:$0xff] %vm342, %v320
    %344 = vst.msk [vmem:[#allocation2 + $0x30] sm:$0xff] %vm342, %v321
    %345 = vst.msk [vmem:[#allocation2 + $0x60] sm:$0xff] %vm342, %v322
    %346 = vst.msk [vmem:[#allocation2 + $0x90] sm:$0xff] %vm342, %v323
    %347 = vst.msk [vmem:[#allocation2 + $0xc0] sm:$0xff] %vm342, %v324
    %348 = vst.msk [vmem:[#allocation2 + $0xf0] sm:$0xff] %vm342, %v325
    %349 = vst.msk [vmem:[#allocation2 + $0x120] sm:$0xff] %vm342, %v326
    %350 = vst.msk [vmem:[#allocation2 + $0x150] sm:$0xff] %vm342, %v327
    %351 = vst.msk [vmem:[#allocation2 + $0x180] sm:$0xff] %vm342, %v328
    %352 = vst.msk [vmem:[#allocation2 + $0x1b0] sm:$0xff] %vm342, %v329
    %v353 = vld [vmem:[%s0 + $0x3] sm:$0xff]
    %v354 = vld [vmem:[%s0 + $0xb] sm:$0xff]
    %v355 = vld [vmem:[%s0 + $0x13] sm:$0xff]
    %v356 = vld [vmem:[%s0 + $0x1b] sm:$0xff]
    %v357 = vld [vmem:[%s0 + $0x23] sm:$0xff]
    %v358 = vld [vmem:[%s0 + $0x4b] sm:$0xff]
    %v359 = vld [vmem:[%s0 + $0x53] sm:$0xff]
    %v360 = vld [vmem:[%s0 + $0x5b] sm:$0xff]
    %v361 = vld [vmem:[%s0 + $0x63] sm:$0xff]
    %v362 = vld [vmem:[%s0 + $0x6b] sm:$0xff]
    %v363 = vpack.c.bf16 %v354, %v353
    %v364 = vpack.c.bf16 %v356, %v355
    %v365 = vpack.c.bf16 %v357, %v357
    %v366 = vpack.c.bf16 %v359, %v358
    %v367 = vpack.c.bf16 %v361, %v360
    %v368 = vpack.c.bf16 %v362, %v362
    %v375 = vunpack.c.l.b16 %v363
    %v376 = vunpack.c.h.b16 %v363
    %v377 = vunpack.c.l.b16 %v364
    %v378 = vunpack.c.h.b16 %v364
    %v379 = vunpack.c.l.b16 %v365
    %v380 = vunpack.c.l.b16 %v366
    %v381 = vunpack.c.h.b16 %v366
    %v382 = vunpack.c.l.b16 %v367
    %v383 = vunpack.c.h.b16 %v367
    %v384 = vunpack.c.l.b16 %v368
    %v385 = vpack.c.b16 %v375, %v375
    %v386 = vpack.c.b16 %v376, %v376
    %v387 = vpack.c.b16 %v377, %v377
    %v388 = vpack.c.b16 %v378, %v378
    %v389 = vpack.c.b16 %v379, %v379
    %v390 = vpack.c.b16 %v380, %v380
    %v391 = vpack.c.b16 %v381, %v381
    %v392 = vpack.c.b16 %v382, %v382
    %v393 = vpack.c.b16 %v383, %v383
    %v394 = vpack.c.b16 %v384, %v384
    %395 = vrot.lane.b32.xlu0 %v385, 16
    %v396 = vpop.permute.xlu0 %395
    %397 = vrot.lane.b32.xlu0 %v386, 16
    %v398 = vpop.permute.xlu0 %397
    %399 = vrot.lane.b32.xlu0 %v387, 16
    %v400 = vpop.permute.xlu0 %399
    %401 = vrot.lane.b32.xlu0 %v388, 16
    %v402 = vpop.permute.xlu0 %401
    %403 = vrot.lane.b32.xlu0 %v389, 16
    %v404 = vpop.permute.xlu0 %403
    %405 = vrot.lane.b32.xlu0 %v390, 16
    %v406 = vpop.permute.xlu0 %405
    %407 = vrot.lane.b32.xlu0 %v391, 16
    %v408 = vpop.permute.xlu0 %407
    %409 = vrot.lane.b32.xlu0 %v392, 16
    %v410 = vpop.permute.xlu0 %409
    %411 = vrot.lane.b32.xlu0 %v393, 16
    %v412 = vpop.permute.xlu0 %411
    %413 = vrot.lane.b32.xlu0 %v394, 16
    %v414 = vpop.permute.xlu0 %413
    %vm425 = vcmask 519296
    %426 = vst.msk [vmem:[#allocation2 + $0x4] sm:$0xf] %vm425, %v396
    %427 = vst.msk [vmem:[#allocation2 + $0x34] sm:$0xf] %vm425, %v398
    %428 = vst.msk [vmem:[#allocation2 + $0x64] sm:$0xf] %vm425, %v400
    %429 = vst.msk [vmem:[#allocation2 + $0x94] sm:$0xf] %vm425, %v402
    %430 = vst.msk [vmem:[#allocation2 + $0xc4] sm:$0xf] %vm425, %v404
    %431 = vst.msk [vmem:[#allocation2 + $0xf4] sm:$0xf] %vm425, %v406
    %432 = vst.msk [vmem:[#allocation2 + $0x124] sm:$0xf] %vm425, %v408
    %433 = vst.msk [vmem:[#allocation2 + $0x154] sm:$0xf] %vm425, %v410
    %434 = vst.msk [vmem:[#allocation2 + $0x184] sm:$0xf] %vm425, %v412
    %435 = vst.msk [vmem:[#allocation2 + $0x1b4] sm:$0xf] %vm425, %v414
    %v436 = vld [vmem:[%s0 + $0x4] sm:$0xff]
    %v437 = vld [vmem:[%s0 + $0xc] sm:$0xff]
    %v438 = vld [vmem:[%s0 + $0x14] sm:$0xff]
    %v439 = vld [vmem:[%s0 + $0x1c] sm:$0xff]
    %v440 = vld [vmem:[%s0 + $0x24] sm:$0xff]
    %v441 = vld [vmem:[%s0 + $0x4c] sm:$0xff]
    %v442 = vld [vmem:[%s0 + $0x54] sm:$0xff]
    %v443 = vld [vmem:[%s0 + $0x5c] sm:$0xff]
    %v444 = vld [vmem:[%s0 + $0x64] sm:$0xff]
    %v445 = vld [vmem:[%s0 + $0x6c] sm:$0xff]
    %v446 = vpack.c.bf16 %v437, %v436
    %v447 = vpack.c.bf16 %v439, %v438
    %v448 = vpack.c.bf16 %v440, %v440
    %v449 = vpack.c.bf16 %v442, %v441
    %v450 = vpack.c.bf16 %v444, %v443
    %v451 = vpack.c.bf16 %v445, %v445
    %v458 = vunpack.c.l.b16 %v446
    %v459 = vunpack.c.h.b16 %v446
    %v460 = vunpack.c.l.b16 %v447
    %v461 = vunpack.c.h.b16 %v447
    %v462 = vunpack.c.l.b16 %v448
    %v463 = vunpack.c.l.b16 %v449
    %v464 = vunpack.c.h.b16 %v449
    %v465 = vunpack.c.l.b16 %v450
    %v466 = vunpack.c.h.b16 %v450
    %v467 = vunpack.c.l.b16 %v451
    %v468 = vpack.c.b16 %v458, %v458
    %v469 = vpack.c.b16 %v459, %v459
    %v470 = vpack.c.b16 %v460, %v460
    %v471 = vpack.c.b16 %v461, %v461
    %v472 = vpack.c.b16 %v462, %v462
    %v473 = vpack.c.b16 %v463, %v463
    %v474 = vpack.c.b16 %v464, %v464
    %v475 = vpack.c.b16 %v465, %v465
    %v476 = vpack.c.b16 %v466, %v466
    %v477 = vpack.c.b16 %v467, %v467
    %478 = vrot.lane.b32.xlu0 %v468, 64
    %v479 = vpop.permute.xlu0 %478
    %480 = vrot.lane.b32.xlu0 %v469, 64
    %v481 = vpop.permute.xlu0 %480
    %482 = vrot.lane.b32.xlu0 %v470, 64
    %v483 = vpop.permute.xlu0 %482
    %484 = vrot.lane.b32.xlu0 %v471, 64
    %v485 = vpop.permute.xlu0 %484
    %486 = vrot.lane.b32.xlu0 %v472, 64
    %v487 = vpop.permute.xlu0 %486
    %488 = vrot.lane.b32.xlu0 %v473, 64
    %v489 = vpop.permute.xlu0 %488
    %490 = vrot.lane.b32.xlu0 %v474, 64
    %v491 = vpop.permute.xlu0 %490
    %492 = vrot.lane.b32.xlu0 %v475, 64
    %v493 = vpop.permute.xlu0 %492
    %494 = vrot.lane.b32.xlu0 %v476, 64
    %v495 = vpop.permute.xlu0 %494
    %496 = vrot.lane.b32.xlu0 %v477, 64
    %v497 = vpop.permute.xlu0 %496
    %vm508 = vcmask 912896
    %509 = vst.msk [vmem:[#allocation2 + $0x4] sm:$0xf] %vm508, %v479
    %510 = vst.msk [vmem:[#allocation2 + $0x34] sm:$0xf] %vm508, %v481
    %511 = vst.msk [vmem:[#allocation2 + $0x64] sm:$0xf] %vm508, %v483
    %512 = vst.msk [vmem:[#allocation2 + $0x94] sm:$0xf] %vm508, %v485
    %513 = vst.msk [vmem:[#allocation2 + $0xc4] sm:$0xf] %vm508, %v487
    %514 = vst.msk [vmem:[#allocation2 + $0xf4] sm:$0xf] %vm508, %v489
    %515 = vst.msk [vmem:[#allocation2 + $0x124] sm:$0xf] %vm508, %v491
    %516 = vst.msk [vmem:[#allocation2 + $0x154] sm:$0xf] %vm508, %v493
    %517 = vst.msk [vmem:[#allocation2 + $0x184] sm:$0xf] %vm508, %v495
    %518 = vst.msk [vmem:[#allocation2 + $0x1b4] sm:$0xf] %vm508, %v497
    %v519 = vld [vmem:[%s0 + $0x5] sm:$0xff]
    %v520 = vld [vmem:[%s0 + $0xd] sm:$0xff]
    %v521 = vld [vmem:[%s0 + $0x15] sm:$0xff]
    %v522 = vld [vmem:[%s0 + $0x1d] sm:$0xff]
    %v523 = vld [vmem:[%s0 + $0x25] sm:$0xff]
    %v524 = vld [vmem:[%s0 + $0x4d] sm:$0xff]
    %v525 = vld [vmem:[%s0 + $0x55] sm:$0xff]
    %v526 = vld [vmem:[%s0 + $0x5d] sm:$0xff]
    %v527 = vld [vmem:[%s0 + $0x65] sm:$0xff]
    %v528 = vld [vmem:[%s0 + $0x6d] sm:$0xff]
    %v529 = vpack.c.bf16 %v520, %v519
    %v530 = vpack.c.bf16 %v522, %v521
    %v531 = vpack.c.bf16 %v523, %v523
    %v532 = vpack.c.bf16 %v525, %v524
    %v533 = vpack.c.bf16 %v527, %v526
    %v534 = vpack.c.bf16 %v528, %v528
    %v541 = vunpack.c.l.b16 %v529
    %v542 = vunpack.c.h.b16 %v529
    %v543 = vunpack.c.l.b16 %v530
    %v544 = vunpack.c.h.b16 %v530
    %v545 = vunpack.c.l.b16 %v531
    %v546 = vunpack.c.l.b16 %v532
    %v547 = vunpack.c.h.b16 %v532
    %v548 = vunpack.c.l.b16 %v533
    %v549 = vunpack.c.h.b16 %v533
    %v550 = vunpack.c.l.b16 %v534
    %v551 = vpack.c.b16 %v541, %v541
    %v552 = vpack.c.b16 %v542, %v542
    %v553 = vpack.c.b16 %v543, %v543
    %v554 = vpack.c.b16 %v544, %v544
    %v555 = vpack.c.b16 %v545, %v545
    %v556 = vpack.c.b16 %v546, %v546
    %v557 = vpack.c.b16 %v547, %v547
    %v558 = vpack.c.b16 %v548, %v548
    %v559 = vpack.c.b16 %v549, %v549
    %v560 = vpack.c.b16 %v550, %v550
    %561 = vrot.lane.b32.xlu0 %v551, 112
    %v562 = vpop.permute.xlu0 %561
    %563 = vrot.lane.b32.xlu0 %v552, 112
    %v564 = vpop.permute.xlu0 %563
    %565 = vrot.lane.b32.xlu0 %v553, 112
    %v566 = vpop.permute.xlu0 %565
    %567 = vrot.lane.b32.xlu0 %v554, 112
    %v568 = vpop.permute.xlu0 %567
    %569 = vrot.lane.b32.xlu0 %v555, 112
    %v570 = vpop.permute.xlu0 %569
    %571 = vrot.lane.b32.xlu0 %v556, 112
    %v572 = vpop.permute.xlu0 %571
    %573 = vrot.lane.b32.xlu0 %v557, 112
    %v574 = vpop.permute.xlu0 %573
    %575 = vrot.lane.b32.xlu0 %v558, 112
    %v576 = vpop.permute.xlu0 %575
    %577 = vrot.lane.b32.xlu0 %v559, 112
    %v578 = vpop.permute.xlu0 %577
    %579 = vrot.lane.b32.xlu0 %v560, 112
    %v580 = vpop.permute.xlu0 %579
    %v581 = vrot.slane %v562, 4
    %v582 = vrot.slane %v564, 4
    %v583 = vrot.slane %v566, 4
    %v584 = vrot.slane %v568, 4
    %v585 = vrot.slane %v570, 4
    %v586 = vrot.slane %v572, 4
    %v587 = vrot.slane %v574, 4
    %v588 = vrot.slane %v576, 4
    %v589 = vrot.slane %v578, 4
    %v590 = vrot.slane %v580, 4
    %vm591 = vcmask 916480
    %v592 = vsel %vm591, %v581, %v562
    %v593 = vsel %vm591, %v582, %v564
    %v594 = vsel %vm591, %v583, %v566
    %v595 = vsel %vm591, %v584, %v568
    %v596 = vsel %vm591, %v585, %v570
    %v597 = vsel %vm591, %v586, %v572
    %v598 = vsel %vm591, %v587, %v574
    %v599 = vsel %vm591, %v588, %v576
    %v600 = vsel %vm591, %v589, %v578
    %v601 = vsel %vm591, %v590, %v580
    %vm612 = vcmask 1044352
    %vm613 = vcmask 261124
    %vm614 = vmor %vm613, %vm612
    %615 = vst.msk [vmem:[#allocation2 + $0x4] sm:$0xff] %vm614, %v592
    %616 = vst.msk [vmem:[#allocation2 + $0x34] sm:$0xff] %vm614, %v593
    %617 = vst.msk [vmem:[#allocation2 + $0x64] sm:$0xff] %vm614, %v594
    %618 = vst.msk [vmem:[#allocation2 + $0x94] sm:$0xff] %vm614, %v595
    %619 = vst.msk [vmem:[#allocation2 + $0xc4] sm:$0xff] %vm614, %v596
    %620 = vst.msk [vmem:[#allocation2 + $0xf4] sm:$0xff] %vm614, %v597
    %621 = vst.msk [vmem:[#allocation2 + $0x124] sm:$0xff] %vm614, %v598
    %622 = vst.msk [vmem:[#allocation2 + $0x154] sm:$0xff] %vm614, %v599
    %623 = vst.msk [vmem:[#allocation2 + $0x184] sm:$0xff] %vm614, %v600
    %624 = vst.msk [vmem:[#allocation2 + $0x1b4] sm:$0xff] %vm614, %v601
    %v625 = vld [vmem:[%s0 + $0x6] sm:$0xff]
    %v626 = vld [vmem:[%s0 + $0xe] sm:$0xff]
    %v627 = vld [vmem:[%s0 + $0x16] sm:$0xff]
    %v628 = vld [vmem:[%s0 + $0x1e] sm:$0xff]
    %v629 = vld [vmem:[%s0 + $0x26] sm:$0xff]
    %v630 = vld [vmem:[%s0 + $0x4e] sm:$0xff]
    %v631 = vld [vmem:[%s0 + $0x56] sm:$0xff]
    %v632 = vld [vmem:[%s0 + $0x5e] sm:$0xff]
    %v633 = vld [vmem:[%s0 + $0x66] sm:$0xff]
    %v634 = vld [vmem:[%s0 + $0x6e] sm:$0xff]
    %v635 = vpack.c.bf16 %v626, %v625
    %v636 = vpack.c.bf16 %v628, %v627
    %v637 = vpack.c.bf16 %v629, %v629
    %v638 = vpack.c.bf16 %v631, %v630
    %v639 = vpack.c.bf16 %v633, %v632
    %v640 = vpack.c.bf16 %v634, %v634
    %v647 = vunpack.c.l.b16 %v635
    %v648 = vunpack.c.h.b16 %v635
    %v649 = vunpack.c.l.b16 %v636
    %v650 = vunpack.c.h.b16 %v636
    %v651 = vunpack.c.l.b16 %v637
    %v652 = vunpack.c.l.b16 %v638
    %v653 = vunpack.c.h.b16 %v638
    %v654 = vunpack.c.l.b16 %v639
    %v655 = vunpack.c.h.b16 %v639
    %v656 = vunpack.c.l.b16 %v640
    %v657 = vpack.c.b16 %v647, %v647
    %v658 = vpack.c.b16 %v648, %v648
    %v659 = vpack.c.b16 %v649, %v649
    %v660 = vpack.c.b16 %v650, %v650
    %v661 = vpack.c.b16 %v651, %v651
    %v662 = vpack.c.b16 %v652, %v652
    %v663 = vpack.c.b16 %v653, %v653
    %v664 = vpack.c.b16 %v654, %v654
    %v665 = vpack.c.b16 %v655, %v655
    %v666 = vpack.c.b16 %v656, %v656
    %667 = vrot.lane.b32.xlu0 %v657, 32
    %v668 = vpop.permute.xlu0 %667
    %669 = vrot.lane.b32.xlu0 %v658, 32
    %v670 = vpop.permute.xlu0 %669
    %671 = vrot.lane.b32.xlu0 %v659, 32
    %v672 = vpop.permute.xlu0 %671
    %673 = vrot.lane.b32.xlu0 %v660, 32
    %v674 = vpop.permute.xlu0 %673
    %675 = vrot.lane.b32.xlu0 %v661, 32
    %v676 = vpop.permute.xlu0 %675
    %677 = vrot.lane.b32.xlu0 %v662, 32
    %v678 = vpop.permute.xlu0 %677
    %679 = vrot.lane.b32.xlu0 %v663, 32
    %v680 = vpop.permute.xlu0 %679
    %681 = vrot.lane.b32.xlu0 %v664, 32
    %v682 = vpop.permute.xlu0 %681
    %683 = vrot.lane.b32.xlu0 %v665, 32
    %v684 = vpop.permute.xlu0 %683
    %685 = vrot.lane.b32.xlu0 %v666, 32
    %v686 = vpop.permute.xlu0 %685
    %vm697 = vcmask 650496
    %698 = vst.msk [vmem:[#allocation2 + $0x8] sm:$0xf] %vm697, %v668
    %699 = vst.msk [vmem:[#allocation2 + $0x38] sm:$0xf] %vm697, %v670
    %700 = vst.msk [vmem:[#allocation2 + $0x68] sm:$0xf] %vm697, %v672
    %701 = vst.msk [vmem:[#allocation2 + $0x98] sm:$0xf] %vm697, %v674
    %702 = vst.msk [vmem:[#allocation2 + $0xc8] sm:$0xf] %vm697, %v676
    %703 = vst.msk [vmem:[#allocation2 + $0xf8] sm:$0xf] %vm697, %v678
    %704 = vst.msk [vmem:[#allocation2 + $0x128] sm:$0xf] %vm697, %v680
    %705 = vst.msk [vmem:[#allocation2 + $0x158] sm:$0xf] %vm697, %v682
    %706 = vst.msk [vmem:[#allocation2 + $0x188] sm:$0xf] %vm697, %v684
    %707 = vst.msk [vmem:[#allocation2 + $0x1b8] sm:$0xf] %vm697, %v686
    %v708 = vld [vmem:[%s0 + $0x7] sm:$0xff]
    %v709 = vld [vmem:[%s0 + $0xf] sm:$0xff]
    %v710 = vld [vmem:[%s0 + $0x17] sm:$0xff]
    %v711 = vld [vmem:[%s0 + $0x1f] sm:$0xff]
    %v712 = vld [vmem:[%s0 + $0x27] sm:$0xff]
    %v713 = vld [vmem:[%s0 + $0x4f] sm:$0xff]
    %v714 = vld [vmem:[%s0 + $0x57] sm:$0xff]
    %v715 = vld [vmem:[%s0 + $0x5f] sm:$0xff]
    %v716 = vld [vmem:[%s0 + $0x67] sm:$0xff]
    %v717 = vld [vmem:[%s0 + $0x6f] sm:$0xff]
    %v718 = vpack.c.bf16 %v709, %v708
    %v719 = vpack.c.bf16 %v711, %v710
    %v720 = vpack.c.bf16 %v712, %v712
    %v721 = vpack.c.bf16 %v714, %v713
    %v722 = vpack.c.bf16 %v716, %v715
    %v723 = vpack.c.bf16 %v717, %v717
    %v730 = vunpack.c.l.b16 %v718
    %v731 = vunpack.c.h.b16 %v718
    %v732 = vunpack.c.l.b16 %v719
    %v733 = vunpack.c.h.b16 %v719
    %v734 = vunpack.c.l.b16 %v720
    %v735 = vunpack.c.l.b16 %v721
    %v736 = vunpack.c.h.b16 %v721
    %v737 = vunpack.c.l.b16 %v722
    %v738 = vunpack.c.h.b16 %v722
    %v739 = vunpack.c.l.b16 %v723
    %v740 = vpack.c.b16 %v730, %v730
    %v741 = vpack.c.b16 %v731, %v731
    %v742 = vpack.c.b16 %v732, %v732
    %v743 = vpack.c.b16 %v733, %v733
    %v744 = vpack.c.b16 %v734, %v734
    %v745 = vpack.c.b16 %v735, %v735
    %v746 = vpack.c.b16 %v736, %v736
    %v747 = vpack.c.b16 %v737, %v737
    %v748 = vpack.c.b16 %v738, %v738
    %v749 = vpack.c.b16 %v739, %v739
    %750 = vrot.lane.b32.xlu0 %v740, 80
    %v751 = vpop.permute.xlu0 %750
    %752 = vrot.lane.b32.xlu0 %v741, 80
    %v753 = vpop.permute.xlu0 %752
    %754 = vrot.lane.b32.xlu0 %v742, 80
    %v755 = vpop.permute.xlu0 %754
    %756 = vrot.lane.b32.xlu0 %v743, 80
    %v757 = vpop.permute.xlu0 %756
    %758 = vrot.lane.b32.xlu0 %v744, 80
    %v759 = vpop.permute.xlu0 %758
    %760 = vrot.lane.b32.xlu0 %v745, 80
    %v761 = vpop.permute.xlu0 %760
    %762 = vrot.lane.b32.xlu0 %v746, 80
    %v763 = vpop.permute.xlu0 %762
    %764 = vrot.lane.b32.xlu0 %v747, 80
    %v765 = vpop.permute.xlu0 %764
    %766 = vrot.lane.b32.xlu0 %v748, 80
    %v767 = vpop.permute.xlu0 %766
    %768 = vrot.lane.b32.xlu0 %v749, 80
    %v769 = vpop.permute.xlu0 %768
    %vm780 = vcmask 1044096
    %781 = vst.msk [vmem:[#allocation2 + $0x8] sm:$0xf] %vm780, %v751
    %782 = vst.msk [vmem:[#allocation2 + $0x38] sm:$0xf] %vm780, %v753
    %783 = vst.msk [vmem:[#allocation2 + $0x68] sm:$0xf] %vm780, %v755
    %784 = vst.msk [vmem:[#allocation2 + $0x98] sm:$0xf] %vm780, %v757
    %785 = vst.msk [vmem:[#allocation2 + $0xc8] sm:$0xf] %vm780, %v759
    %786 = vst.msk [vmem:[#allocation2 + $0xf8] sm:$0xf] %vm780, %v761
    %787 = vst.msk [vmem:[#allocation2 + $0x128] sm:$0xf] %vm780, %v763
    %788 = vst.msk [vmem:[#allocation2 + $0x158] sm:$0xf] %vm780, %v765
    %789 = vst.msk [vmem:[#allocation2 + $0x188] sm:$0xf] %vm780, %v767
    %790 = vst.msk [vmem:[#allocation2 + $0x1b8] sm:$0xf] %vm780, %v769
    %v791 = vld [vmem:[%s0 + $0x8] sm:$0xff]
    %v792 = vld [vmem:[%s0 + $0x10] sm:$0xff]
    %v793 = vld [vmem:[%s0 + $0x18] sm:$0xff]
    %v794 = vld [vmem:[%s0 + $0x20] sm:$0xff]
    %v795 = vld [vmem:[%s0 + $0x28] sm:$0xff]
    %v796 = vld [vmem:[%s0 + $0x50] sm:$0xff]
    %v797 = vld [vmem:[%s0 + $0x58] sm:$0xff]
    %v798 = vld [vmem:[%s0 + $0x60] sm:$0xff]
    %v799 = vld [vmem:[%s0 + $0x68] sm:$0xff]
    %v800 = vld [vmem:[%s0 + $0x70] sm:$0xff]
    %v801 = vpack.c.bf16 %v792, %v791
    %v802 = vpack.c.bf16 %v794, %v793
    %v803 = vpack.c.bf16 %v795, %v795
    %v804 = vpack.c.bf16 %v797, %v796
    %v805 = vpack.c.bf16 %v799, %v798
    %v806 = vpack.c.bf16 %v800, %v800
    %v813 = vunpack.c.l.b16 %v801
    %v814 = vunpack.c.h.b16 %v801
    %v815 = vunpack.c.l.b16 %v802
    %v816 = vunpack.c.h.b16 %v802
    %v817 = vunpack.c.l.b16 %v803
    %v818 = vunpack.c.l.b16 %v804
    %v819 = vunpack.c.h.b16 %v804
    %v820 = vunpack.c.l.b16 %v805
    %v821 = vunpack.c.h.b16 %v805
    %v822 = vunpack.c.l.b16 %v806
    %v823 = vpack.c.b16 %v813, %v813
    %v824 = vpack.c.b16 %v814, %v814
    %v825 = vpack.c.b16 %v815, %v815
    %v826 = vpack.c.b16 %v816, %v816
    %v827 = vpack.c.b16 %v817, %v817
    %v828 = vpack.c.b16 %v818, %v818
    %v829 = vpack.c.b16 %v819, %v819
    %v830 = vpack.c.b16 %v820, %v820
    %v831 = vpack.c.b16 %v821, %v821
    %v832 = vpack.c.b16 %v822, %v822
    %843 = vst.msk [vmem:[#allocation2 + $0xc] sm:$0xf] %vm153, %v823
    %844 = vst.msk [vmem:[#allocation2 + $0x3c] sm:$0xf] %vm153, %v824
    %845 = vst.msk [vmem:[#allocation2 + $0x6c] sm:$0xf] %vm153, %v825
    %846 = vst.msk [vmem:[#allocation2 + $0x9c] sm:$0xf] %vm153, %v826
    %847 = vst.msk [vmem:[#allocation2 + $0xcc] sm:$0xf] %vm153, %v827
    %848 = vst.msk [vmem:[#allocation2 + $0xfc] sm:$0xf] %vm153, %v828
    %849 = vst.msk [vmem:[#allocation2 + $0x12c] sm:$0xf] %vm153, %v829
    %850 = vst.msk [vmem:[#allocation2 + $0x15c] sm:$0xf] %vm153, %v830
    %851 = vst.msk [vmem:[#allocation2 + $0x18c] sm:$0xf] %vm153, %v831
    %852 = vst.msk [vmem:[#allocation2 + $0x1bc] sm:$0xf] %vm153, %v832
    %v853 = vld [vmem:[%s0 + $0x9] sm:$0xff]
    %v854 = vld [vmem:[%s0 + $0x11] sm:$0xff]
    %v855 = vld [vmem:[%s0 + $0x19] sm:$0xff]
    %v856 = vld [vmem:[%s0 + $0x21] sm:$0xff]
    %v857 = vld [vmem:[%s0 + $0x29] sm:$0xff]
    %v858 = vld [vmem:[%s0 + $0x51] sm:$0xff]
    %v859 = vld [vmem:[%s0 + $0x59] sm:$0xff]
    %v860 = vld [vmem:[%s0 + $0x61] sm:$0xff]
    %v861 = vld [vmem:[%s0 + $0x69] sm:$0xff]
    %v862 = vld [vmem:[%s0 + $0x71] sm:$0xff]
    %v863 = vpack.c.bf16 %v854, %v853
    %v864 = vpack.c.bf16 %v856, %v855
    %v865 = vpack.c.bf16 %v857, %v857
    %v866 = vpack.c.bf16 %v859, %v858
    %v867 = vpack.c.bf16 %v861, %v860
    %v868 = vpack.c.bf16 %v862, %v862
    %v875 = vunpack.c.l.b16 %v863
    %v876 = vunpack.c.h.b16 %v863
    %v877 = vunpack.c.l.b16 %v864
    %v878 = vunpack.c.h.b16 %v864
    %v879 = vunpack.c.l.b16 %v865
    %v880 = vunpack.c.l.b16 %v866
    %v881 = vunpack.c.h.b16 %v866
    %v882 = vunpack.c.l.b16 %v867
    %v883 = vunpack.c.h.b16 %v867
    %v884 = vunpack.c.l.b16 %v868
    %v885 = vpack.c.b16 %v875, %v875
    %v886 = vpack.c.b16 %v876, %v876
    %v887 = vpack.c.b16 %v877, %v877
    %v888 = vpack.c.b16 %v878, %v878
    %v889 = vpack.c.b16 %v879, %v879
    %v890 = vpack.c.b16 %v880, %v880
    %v891 = vpack.c.b16 %v881, %v881
    %v892 = vpack.c.b16 %v882, %v882
    %v893 = vpack.c.b16 %v883, %v883
    %v894 = vpack.c.b16 %v884, %v884
    %895 = vrot.lane.b32.xlu0 %v885, 48
    %v896 = vpop.permute.xlu0 %895
    %897 = vrot.lane.b32.xlu0 %v886, 48
    %v898 = vpop.permute.xlu0 %897
    %899 = vrot.lane.b32.xlu0 %v887, 48
    %v900 = vpop.permute.xlu0 %899
    %901 = vrot.lane.b32.xlu0 %v888, 48
    %v902 = vpop.permute.xlu0 %901
    %903 = vrot.lane.b32.xlu0 %v889, 48
    %v904 = vpop.permute.xlu0 %903
    %905 = vrot.lane.b32.xlu0 %v890, 48
    %v906 = vpop.permute.xlu0 %905
    %907 = vrot.lane.b32.xlu0 %v891, 48
    %v908 = vpop.permute.xlu0 %907
    %909 = vrot.lane.b32.xlu0 %v892, 48
    %v910 = vpop.permute.xlu0 %909
    %911 = vrot.lane.b32.xlu0 %v893, 48
    %v912 = vpop.permute.xlu0 %911
    %913 = vrot.lane.b32.xlu0 %v894, 48
    %v914 = vpop.permute.xlu0 %913
    %925 = vst.msk [vmem:[#allocation2 + $0xc] sm:$0xf] %vm236, %v896
    %926 = vst.msk [vmem:[#allocation2 + $0x3c] sm:$0xf] %vm236, %v898
    %927 = vst.msk [vmem:[#allocation2 + $0x6c] sm:$0xf] %vm236, %v900
    %928 = vst.msk [vmem:[#allocation2 + $0x9c] sm:$0xf] %vm236, %v902
    %929 = vst.msk [vmem:[#allocation2 + $0xcc] sm:$0xf] %vm236, %v904
    %930 = vst.msk [vmem:[#allocation2 + $0xfc] sm:$0xf] %vm236, %v906
    %931 = vst.msk [vmem:[#allocation2 + $0x12c] sm:$0xf] %vm236, %v908
    %932 = vst.msk [vmem:[#allocation2 + $0x15c] sm:$0xf] %vm236, %v910
    %933 = vst.msk [vmem:[#allocation2 + $0x18c] sm:$0xf] %vm236, %v912
    %934 = vst.msk [vmem:[#allocation2 + $0x1bc] sm:$0xf] %vm236, %v914
    %v935 = vld [vmem:[%s0 + $0xa] sm:$0xff]
    %v936 = vld [vmem:[%s0 + $0x12] sm:$0xff]
    %v937 = vld [vmem:[%s0 + $0x1a] sm:$0xff]
    %v938 = vld [vmem:[%s0 + $0x22] sm:$0xff]
    %v939 = vld [vmem:[%s0 + $0x2a] sm:$0xff]
    %v940 = vld [vmem:[%s0 + $0x52] sm:$0xff]
    %v941 = vld [vmem:[%s0 + $0x5a] sm:$0xff]
    %v942 = vld [vmem:[%s0 + $0x62] sm:$0xff]
    %v943 = vld [vmem:[%s0 + $0x6a] sm:$0xff]
    %v944 = vld [vmem:[%s0 + $0x72] sm:$0xff]
    %v945 = vpack.c.bf16 %v936, %v935
    %v946 = vpack.c.bf16 %v938, %v937
    %v947 = vpack.c.bf16 %v939, %v939
    %v948 = vpack.c.bf16 %v941, %v940
    %v949 = vpack.c.bf16 %v943, %v942
    %v950 = vpack.c.bf16 %v944, %v944
    %v957 = vunpack.c.l.b16 %v945
    %v958 = vunpack.c.h.b16 %v945
    %v959 = vunpack.c.l.b16 %v946
    %v960 = vunpack.c.h.b16 %v946
    %v961 = vunpack.c.l.b16 %v947
    %v962 = vunpack.c.l.b16 %v948
    %v963 = vunpack.c.h.b16 %v948
    %v964 = vunpack.c.l.b16 %v949
    %v965 = vunpack.c.h.b16 %v949
    %v966 = vunpack.c.l.b16 %v950
    %v967 = vpack.c.b16 %v957, %v957
    %v968 = vpack.c.b16 %v958, %v958
    %v969 = vpack.c.b16 %v959, %v959
    %v970 = vpack.c.b16 %v960, %v960
    %v971 = vpack.c.b16 %v961, %v961
    %v972 = vpack.c.b16 %v962, %v962
    %v973 = vpack.c.b16 %v963, %v963
    %v974 = vpack.c.b16 %v964, %v964
    %v975 = vpack.c.b16 %v965, %v965
    %v976 = vpack.c.b16 %v966, %v966
    %977 = vrot.lane.b32.xlu0 %v967, 96
    %v978 = vpop.permute.xlu0 %977
    %979 = vrot.lane.b32.xlu0 %v968, 96
    %v980 = vpop.permute.xlu0 %979
    %981 = vrot.lane.b32.xlu0 %v969, 96
    %v982 = vpop.permute.xlu0 %981
    %983 = vrot.lane.b32.xlu0 %v970, 96
    %v984 = vpop.permute.xlu0 %983
    %985 = vrot.lane.b32.xlu0 %v971, 96
    %v986 = vpop.permute.xlu0 %985
    %987 = vrot.lane.b32.xlu0 %v972, 96
    %v988 = vpop.permute.xlu0 %987
    %989 = vrot.lane.b32.xlu0 %v973, 96
    %v990 = vpop.permute.xlu0 %989
    %991 = vrot.lane.b32.xlu0 %v974, 96
    %v992 = vpop.permute.xlu0 %991
    %993 = vrot.lane.b32.xlu0 %v975, 96
    %v994 = vpop.permute.xlu0 %993
    %995 = vrot.lane.b32.xlu0 %v976, 96
    %v996 = vpop.permute.xlu0 %995
    %v997 = vrot.slane %v978, 4
    %v998 = vrot.slane %v980, 4
    %v999 = vrot.slane %v982, 4
    %v1000 = vrot.slane %v984, 4
    %v1001 = vrot.slane %v986, 4
    %v1002 = vrot.slane %v988, 4
    %v1003 = vrot.slane %v990, 4
    %v1004 = vrot.slane %v992, 4
    %v1005 = vrot.slane %v994, 4
    %v1006 = vrot.slane %v996, 4
    %v1007 = vsel %vm319, %v997, %v978
    %v1008 = vsel %vm319, %v998, %v980
    %v1009 = vsel %vm319, %v999, %v982
    %v1010 = vsel %vm319, %v1000, %v984
    %v1011 = vsel %vm319, %v1001, %v986
    %v1012 = vsel %vm319, %v1002, %v988
    %v1013 = vsel %vm319, %v1003, %v990
    %v1014 = vsel %vm319, %v1004, %v992
    %v1015 = vsel %vm319, %v1005, %v994
    %v1016 = vsel %vm319, %v1006, %v996
    %1027 = vst.msk [vmem:[#allocation2 + $0xc] sm:$0xff] %vm342, %v1007
    %1028 = vst.msk [vmem:[#allocation2 + $0x3c] sm:$0xff] %vm342, %v1008
    %1029 = vst.msk [vmem:[#allocation2 + $0x6c] sm:$0xff] %vm342, %v1009
    %1030 = vst.msk [vmem:[#allocation2 + $0x9c] sm:$0xff] %vm342, %v1010
    %1031 = vst.msk [vmem:[#allocation2 + $0xcc] sm:$0xff] %vm342, %v1011
    %1032 = vst.msk [vmem:[#allocation2 + $0xfc] sm:$0xff] %vm342, %v1012
    %1033 = vst.msk [vmem:[#allocation2 + $0x12c] sm:$0xff] %vm342, %v1013
    %1034 = vst.msk [vmem:[#allocation2 + $0x15c] sm:$0xff] %vm342, %v1014
    %1035 = vst.msk [vmem:[#allocation2 + $0x18c] sm:$0xff] %vm342, %v1015
    %1036 = vst.msk [vmem:[#allocation2 + $0x1bc] sm:$0xff] %vm342, %v1016
    %v1037 = vld [vmem:[%s0 + $0xb] sm:$0xff]
    %v1038 = vld [vmem:[%s0 + $0x13] sm:$0xff]
    %v1039 = vld [vmem:[%s0 + $0x1b] sm:$0xff]
    %v1040 = vld [vmem:[%s0 + $0x23] sm:$0xff]
    %v1041 = vld [vmem:[%s0 + $0x2b] sm:$0xff]
    %v1042 = vld [vmem:[%s0 + $0x53] sm:$0xff]
    %v1043 = vld [vmem:[%s0 + $0x5b] sm:$0xff]
    %v1044 = vld [vmem:[%s0 + $0x63] sm:$0xff]
    %v1045 = vld [vmem:[%s0 + $0x6b] sm:$0xff]
    %v1046 = vld [vmem:[%s0 + $0x73] sm:$0xff]
    %v1047 = vpack.c.bf16 %v1038, %v1037
    %v1048 = vpack.c.bf16 %v1040, %v1039
    %v1049 = vpack.c.bf16 %v1041, %v1041
    %v1050 = vpack.c.bf16 %v1043, %v1042
    %v1051 = vpack.c.bf16 %v1045, %v1044
    %v1052 = vpack.c.bf16 %v1046, %v1046
    %v1059 = vunpack.c.l.b16 %v1047
    %v1060 = vunpack.c.h.b16 %v1047
    %v1061 = vunpack.c.l.b16 %v1048
    %v1062 = vunpack.c.h.b16 %v1048
    %v1063 = vunpack.c.l.b16 %v1049
    %v1064 = vunpack.c.l.b16 %v1050
    %v1065 = vunpack.c.h.b16 %v1050
    %v1066 = vunpack.c.l.b16 %v1051
    %v1067 = vunpack.c.h.b16 %v1051
    %v1068 = vunpack.c.l.b16 %v1052
    %v1069 = vpack.c.b16 %v1059, %v1059
    %v1070 = vpack.c.b16 %v1060, %v1060
    %v1071 = vpack.c.b16 %v1061, %v1061
    %v1072 = vpack.c.b16 %v1062, %v1062
    %v1073 = vpack.c.b16 %v1063, %v1063
    %v1074 = vpack.c.b16 %v1064, %v1064
    %v1075 = vpack.c.b16 %v1065, %v1065
    %v1076 = vpack.c.b16 %v1066, %v1066
    %v1077 = vpack.c.b16 %v1067, %v1067
    %v1078 = vpack.c.b16 %v1068, %v1068
    %1079 = vrot.lane.b32.xlu0 %v1069, 16
    %v1080 = vpop.permute.xlu0 %1079
    %1081 = vrot.lane.b32.xlu0 %v1070, 16
    %v1082 = vpop.permute.xlu0 %1081
    %1083 = vrot.lane.b32.xlu0 %v1071, 16
    %v1084 = vpop.permute.xlu0 %1083
    %1085 = vrot.lane.b32.xlu0 %v1072, 16
    %v1086 = vpop.permute.xlu0 %1085
    %1087 = vrot.lane.b32.xlu0 %v1073, 16
    %v1088 = vpop.permute.xlu0 %1087
    %1089 = vrot.lane.b32.xlu0 %v1074, 16
    %v1090 = vpop.permute.xlu0 %1089
    %1091 = vrot.lane.b32.xlu0 %v1075, 16
    %v1092 = vpop.permute.xlu0 %1091
    %1093 = vrot.lane.b32.xlu0 %v1076, 16
    %v1094 = vpop.permute.xlu0 %1093
    %1095 = vrot.lane.b32.xlu0 %v1077, 16
    %v1096 = vpop.permute.xlu0 %1095
    %1097 = vrot.lane.b32.xlu0 %v1078, 16
    %v1098 = vpop.permute.xlu0 %1097
    %1109 = vst.msk [vmem:[#allocation2 + $0x10] sm:$0xf] %vm425, %v1080
    %1110 = vst.msk [vmem:[#allocation2 + $0x40] sm:$0xf] %vm425, %v1082
    %1111 = vst.msk [vmem:[#allocation2 + $0x70] sm:$0xf] %vm425, %v1084
    %1112 = vst.msk [vmem:[#allocation2 + $0xa0] sm:$0xf] %vm425, %v1086
    %1113 = vst.msk [vmem:[#allocation2 + $0xd0] sm:$0xf] %vm425, %v1088
    %1114 = vst.msk [vmem:[#allocation2 + $0x100] sm:$0xf] %vm425, %v1090
    %1115 = vst.msk [vmem:[#allocation2 + $0x130] sm:$0xf] %vm425, %v1092
    %1116 = vst.msk [vmem:[#allocation2 + $0x160] sm:$0xf] %vm425, %v1094
    %1117 = vst.msk [vmem:[#allocation2 + $0x190] sm:$0xf] %vm425, %v1096
    %1118 = vst.msk [vmem:[#allocation2 + $0x1c0] sm:$0xf] %vm425, %v1098
    %v1119 = vld [vmem:[%s0 + $0xc] sm:$0xff]
    %v1120 = vld [vmem:[%s0 + $0x14] sm:$0xff]
    %v1121 = vld [vmem:[%s0 + $0x1c] sm:$0xff]
    %v1122 = vld [vmem:[%s0 + $0x24] sm:$0xff]
    %v1123 = vld [vmem:[%s0 + $0x2c] sm:$0xff]
    %v1124 = vld [vmem:[%s0 + $0x54] sm:$0xff]
    %v1125 = vld [vmem:[%s0 + $0x5c] sm:$0xff]
    %v1126 = vld [vmem:[%s0 + $0x64] sm:$0xff]
    %v1127 = vld [vmem:[%s0 + $0x6c] sm:$0xff]
    %v1128 = vld [vmem:[%s0 + $0x74] sm:$0xff]
    %v1129 = vpack.c.bf16 %v1120, %v1119
    %v1130 = vpack.c.bf16 %v1122, %v1121
    %v1131 = vpack.c.bf16 %v1123, %v1123
    %v1132 = vpack.c.bf16 %v1125, %v1124
    %v1133 = vpack.c.bf16 %v1127, %v1126
    %v1134 = vpack.c.bf16 %v1128, %v1128
    %v1141 = vunpack.c.l.b16 %v1129
    %v1142 = vunpack.c.h.b16 %v1129
    %v1143 = vunpack.c.l.b16 %v1130
    %v1144 = vunpack.c.h.b16 %v1130
    %v1145 = vunpack.c.l.b16 %v1131
    %v1146 = vunpack.c.l.b16 %v1132
    %v1147 = vunpack.c.h.b16 %v1132
    %v1148 = vunpack.c.l.b16 %v1133
    %v1149 = vunpack.c.h.b16 %v1133
    %v1150 = vunpack.c.l.b16 %v1134
    %v1151 = vpack.c.b16 %v1141, %v1141
    %v1152 = vpack.c.b16 %v1142, %v1142
    %v1153 = vpack.c.b16 %v1143, %v1143
    %v1154 = vpack.c.b16 %v1144, %v1144
    %v1155 = vpack.c.b16 %v1145, %v1145
    %v1156 = vpack.c.b16 %v1146, %v1146
    %v1157 = vpack.c.b16 %v1147, %v1147
    %v1158 = vpack.c.b16 %v1148, %v1148
    %v1159 = vpack.c.b16 %v1149, %v1149
    %v1160 = vpack.c.b16 %v1150, %v1150
    %1161 = vrot.lane.b32.xlu0 %v1151, 64
    %v1162 = vpop.permute.xlu0 %1161
    %1163 = vrot.lane.b32.xlu0 %v1152, 64
    %v1164 = vpop.permute.xlu0 %1163
    %1165 = vrot.lane.b32.xlu0 %v1153, 64
    %v1166 = vpop.permute.xlu0 %1165
    %1167 = vrot.lane.b32.xlu0 %v1154, 64
    %v1168 = vpop.permute.xlu0 %1167
    %1169 = vrot.lane.b32.xlu0 %v1155, 64
    %v1170 = vpop.permute.xlu0 %1169
    %1171 = vrot.lane.b32.xlu0 %v1156, 64
    %v1172 = vpop.permute.xlu0 %1171
    %1173 = vrot.lane.b32.xlu0 %v1157, 64
    %v1174 = vpop.permute.xlu0 %1173
    %1175 = vrot.lane.b32.xlu0 %v1158, 64
    %v1176 = vpop.permute.xlu0 %1175
    %1177 = vrot.lane.b32.xlu0 %v1159, 64
    %v1178 = vpop.permute.xlu0 %1177
    %1179 = vrot.lane.b32.xlu0 %v1160, 64
    %v1180 = vpop.permute.xlu0 %1179
    %1191 = vst.msk [vmem:[#allocation2 + $0x10] sm:$0xf] %vm508, %v1162
    %1192 = vst.msk [vmem:[#allocation2 + $0x40] sm:$0xf] %vm508, %v1164
    %1193 = vst.msk [vmem:[#allocation2 + $0x70] sm:$0xf] %vm508, %v1166
    %1194 = vst.msk [vmem:[#allocation2 + $0xa0] sm:$0xf] %vm508, %v1168
    %1195 = vst.msk [vmem:[#allocation2 + $0xd0] sm:$0xf] %vm508, %v1170
    %1196 = vst.msk [vmem:[#allocation2 + $0x100] sm:$0xf] %vm508, %v1172
    %1197 = vst.msk [vmem:[#allocation2 + $0x130] sm:$0xf] %vm508, %v1174
    %1198 = vst.msk [vmem:[#allocation2 + $0x160] sm:$0xf] %vm508, %v1176
    %1199 = vst.msk [vmem:[#allocation2 + $0x190] sm:$0xf] %vm508, %v1178
    %1200 = vst.msk [vmem:[#allocation2 + $0x1c0] sm:$0xf] %vm508, %v1180
    %v1201 = vld [vmem:[%s0 + $0xd] sm:$0xff]
    %v1202 = vld [vmem:[%s0 + $0x15] sm:$0xff]
    %v1203 = vld [vmem:[%s0 + $0x1d] sm:$0xff]
    %v1204 = vld [vmem:[%s0 + $0x25] sm:$0xff]
    %v1205 = vld [vmem:[%s0 + $0x2d] sm:$0xff]
    %v1206 = vld [vmem:[%s0 + $0x55] sm:$0xff]
    %v1207 = vld [vmem:[%s0 + $0x5d] sm:$0xff]
    %v1208 = vld [vmem:[%s0 + $0x65] sm:$0xff]
    %v1209 = vld [vmem:[%s0 + $0x6d] sm:$0xff]
    %v1210 = vld [vmem:[%s0 + $0x75] sm:$0xff]
    %v1211 = vpack.c.bf16 %v1202, %v1201
    %v1212 = vpack.c.bf16 %v1204, %v1203
    %v1213 = vpack.c.bf16 %v1205, %v1205
    %v1214 = vpack.c.bf16 %v1207, %v1206
    %v1215 = vpack.c.bf16 %v1209, %v1208
    %v1216 = vpack.c.bf16 %v1210, %v1210
    %v1223 = vunpack.c.l.b16 %v1211
    %v1224 = vunpack.c.h.b16 %v1211
    %v1225 = vunpack.c.l.b16 %v1212
    %v1226 = vunpack.c.h.b16 %v1212
    %v1227 = vunpack.c.l.b16 %v1213
    %v1228 = vunpack.c.l.b16 %v1214
    %v1229 = vunpack.c.h.b16 %v1214
    %v1230 = vunpack.c.l.b16 %v1215
    %v1231 = vunpack.c.h.b16 %v1215
    %v1232 = vunpack.c.l.b16 %v1216
    %v1233 = vpack.c.b16 %v1223, %v1223
    %v1234 = vpack.c.b16 %v1224, %v1224
    %v1235 = vpack.c.b16 %v1225, %v1225
    %v1236 = vpack.c.b16 %v1226, %v1226
    %v1237 = vpack.c.b16 %v1227, %v1227
    %v1238 = vpack.c.b16 %v1228, %v1228
    %v1239 = vpack.c.b16 %v1229, %v1229
    %v1240 = vpack.c.b16 %v1230, %v1230
    %v1241 = vpack.c.b16 %v1231, %v1231
    %v1242 = vpack.c.b16 %v1232, %v1232
    %1243 = vrot.lane.b32.xlu0 %v1233, 112
    %v1244 = vpop.permute.xlu0 %1243
    %1245 = vrot.lane.b32.xlu0 %v1234, 112
    %v1246 = vpop.permute.xlu0 %1245
    %1247 = vrot.lane.b32.xlu0 %v1235, 112
    %v1248 = vpop.permute.xlu0 %1247
    %1249 = vrot.lane.b32.xlu0 %v1236, 112
    %v1250 = vpop.permute.xlu0 %1249
    %1251 = vrot.lane.b32.xlu0 %v1237, 112
    %v1252 = vpop.permute.xlu0 %1251
    %1253 = vrot.lane.b32.xlu0 %v1238, 112
    %v1254 = vpop.permute.xlu0 %1253
    %1255 = vrot.lane.b32.xlu0 %v1239, 112
    %v1256 = vpop.permute.xlu0 %1255
    %1257 = vrot.lane.b32.xlu0 %v1240, 112
    %v1258 = vpop.permute.xlu0 %1257
    %1259 = vrot.lane.b32.xlu0 %v1241, 112
    %v1260 = vpop.permute.xlu0 %1259
    %1261 = vrot.lane.b32.xlu0 %v1242, 112
    %v1262 = vpop.permute.xlu0 %1261
    %v1263 = vrot.slane %v1244, 4
    %v1264 = vrot.slane %v1246, 4
    %v1265 = vrot.slane %v1248, 4
    %v1266 = vrot.slane %v1250, 4
    %v1267 = vrot.slane %v1252, 4
    %v1268 = vrot.slane %v1254, 4
    %v1269 = vrot.slane %v1256, 4
    %v1270 = vrot.slane %v1258, 4
    %v1271 = vrot.slane %v1260, 4
    %v1272 = vrot.slane %v1262, 4
    %v1273 = vsel %vm591, %v1263, %v1244
    %v1274 = vsel %vm591, %v1264, %v1246
    %v1275 = vsel %vm591, %v1265, %v1248
    %v1276 = vsel %vm591, %v1266, %v1250
    %v1277 = vsel %vm591, %v1267, %v1252
    %v1278 = vsel %vm591, %v1268, %v1254
    %v1279 = vsel %vm591, %v1269, %v1256
    %v1280 = vsel %vm591, %v1270, %v1258
    %v1281 = vsel %vm591, %v1271, %v1260
    %v1282 = vsel %vm591, %v1272, %v1262
    %1293 = vst.msk [vmem:[#allocation2 + $0x10] sm:$0xff] %vm614, %v1273
    %1294 = vst.msk [vmem:[#allocation2 + $0x40] sm:$0xff] %vm614, %v1274
    %1295 = vst.msk [vmem:[#allocation2 + $0x70] sm:$0xff] %vm614, %v1275
    %1296 = vst.msk [vmem:[#allocation2 + $0xa0] sm:$0xff] %vm614, %v1276
    %1297 = vst.msk [vmem:[#allocation2 + $0xd0] sm:$0xff] %vm614, %v1277
    %1298 = vst.msk [vmem:[#allocation2 + $0x100] sm:$0xff] %vm614, %v1278
    %1299 = vst.msk [vmem:[#allocation2 + $0x130] sm:$0xff] %vm614, %v1279
    %1300 = vst.msk [vmem:[#allocation2 + $0x160] sm:$0xff] %vm614, %v1280
    %1301 = vst.msk [vmem:[#allocation2 + $0x190] sm:$0xff] %vm614, %v1281
    %1302 = vst.msk [vmem:[#allocation2 + $0x1c0] sm:$0xff] %vm614, %v1282
    %v1303 = vld [vmem:[%s0 + $0xe] sm:$0xff]
    %v1304 = vld [vmem:[%s0 + $0x16] sm:$0xff]
    %v1305 = vld [vmem:[%s0 + $0x1e] sm:$0xff]
    %v1306 = vld [vmem:[%s0 + $0x26] sm:$0xff]
    %v1307 = vld [vmem:[%s0 + $0x2e] sm:$0xff]
    %v1308 = vld [vmem:[%s0 + $0x56] sm:$0xff]
    %v1309 = vld [vmem:[%s0 + $0x5e] sm:$0xff]
    %v1310 = vld [vmem:[%s0 + $0x66] sm:$0xff]
    %v1311 = vld [vmem:[%s0 + $0x6e] sm:$0xff]
    %v1312 = vld [vmem:[%s0 + $0x76] sm:$0xff]
    %v1313 = vpack.c.bf16 %v1304, %v1303
    %v1314 = vpack.c.bf16 %v1306, %v1305
    %v1315 = vpack.c.bf16 %v1307, %v1307
    %v1316 = vpack.c.bf16 %v1309, %v1308
    %v1317 = vpack.c.bf16 %v1311, %v1310
    %v1318 = vpack.c.bf16 %v1312, %v1312
    %v1325 = vunpack.c.l.b16 %v1313
    %v1326 = vunpack.c.h.b16 %v1313
    %v1327 = vunpack.c.l.b16 %v1314
    %v1328 = vunpack.c.h.b16 %v1314
    %v1329 = vunpack.c.l.b16 %v1315
    %v1330 = vunpack.c.l.b16 %v1316
    %v1331 = vunpack.c.h.b16 %v1316
    %v1332 = vunpack.c.l.b16 %v1317
    %v1333 = vunpack.c.h.b16 %v1317
    %v1334 = vunpack.c.l.b16 %v1318
    %v1335 = vpack.c.b16 %v1325, %v1325
    %v1336 = vpack.c.b16 %v1326, %v1326
    %v1337 = vpack.c.b16 %v1327, %v1327
    %v1338 = vpack.c.b16 %v1328, %v1328
    %v1339 = vpack.c.b16 %v1329, %v1329
    %v1340 = vpack.c.b16 %v1330, %v1330
    %v1341 = vpack.c.b16 %v1331, %v1331
    %v1342 = vpack.c.b16 %v1332, %v1332
    %v1343 = vpack.c.b16 %v1333, %v1333
    %v1344 = vpack.c.b16 %v1334, %v1334
    %1345 = vrot.lane.b32.xlu0 %v1335, 32
    %v1346 = vpop.permute.xlu0 %1345
    %1347 = vrot.lane.b32.xlu0 %v1336, 32
    %v1348 = vpop.permute.xlu0 %1347
    %1349 = vrot.lane.b32.xlu0 %v1337, 32
    %v1350 = vpop.permute.xlu0 %1349
    %1351 = vrot.lane.b32.xlu0 %v1338, 32
    %v1352 = vpop.permute.xlu0 %1351
    %1353 = vrot.lane.b32.xlu0 %v1339, 32
    %v1354 = vpop.permute.xlu0 %1353
    %1355 = vrot.lane.b32.xlu0 %v1340, 32
    %v1356 = vpop.permute.xlu0 %1355
    %1357 = vrot.lane.b32.xlu0 %v1341, 32
    %v1358 = vpop.permute.xlu0 %1357
    %1359 = vrot.lane.b32.xlu0 %v1342, 32
    %v1360 = vpop.permute.xlu0 %1359
    %1361 = vrot.lane.b32.xlu0 %v1343, 32
    %v1362 = vpop.permute.xlu0 %1361
    %1363 = vrot.lane.b32.xlu0 %v1344, 32
    %v1364 = vpop.permute.xlu0 %1363
    %1375 = vst.msk [vmem:[#allocation2 + $0x14] sm:$0xf] %vm697, %v1346
    %1376 = vst.msk [vmem:[#allocation2 + $0x44] sm:$0xf] %vm697, %v1348
    %1377 = vst.msk [vmem:[#allocation2 + $0x74] sm:$0xf] %vm697, %v1350
    %1378 = vst.msk [vmem:[#allocation2 + $0xa4] sm:$0xf] %vm697, %v1352
    %1379 = vst.msk [vmem:[#allocation2 + $0xd4] sm:$0xf] %vm697, %v1354
    %1380 = vst.msk [vmem:[#allocation2 + $0x104] sm:$0xf] %vm697, %v1356
    %1381 = vst.msk [vmem:[#allocation2 + $0x134] sm:$0xf] %vm697, %v1358
    %1382 = vst.msk [vmem:[#allocation2 + $0x164] sm:$0xf] %vm697, %v1360
    %1383 = vst.msk [vmem:[#allocation2 + $0x194] sm:$0xf] %vm697, %v1362
    %1384 = vst.msk [vmem:[#allocation2 + $0x1c4] sm:$0xf] %vm697, %v1364
    %v1385 = vld [vmem:[%s0 + $0xf] sm:$0xff]
    %v1386 = vld [vmem:[%s0 + $0x17] sm:$0xff]
    %v1387 = vld [vmem:[%s0 + $0x1f] sm:$0xff]
    %v1388 = vld [vmem:[%s0 + $0x27] sm:$0xff]
    %v1389 = vld [vmem:[%s0 + $0x2f] sm:$0xff]
    %v1390 = vld [vmem:[%s0 + $0x57] sm:$0xff]
    %v1391 = vld [vmem:[%s0 + $0x5f] sm:$0xff]
    %v1392 = vld [vmem:[%s0 + $0x67] sm:$0xff]
    %v1393 = vld [vmem:[%s0 + $0x6f] sm:$0xff]
    %v1394 = vld [vmem:[%s0 + $0x77] sm:$0xff]
    %v1395 = vpack.c.bf16 %v1386, %v1385
    %v1396 = vpack.c.bf16 %v1388, %v1387
    %v1397 = vpack.c.bf16 %v1389, %v1389
    %v1398 = vpack.c.bf16 %v1391, %v1390
    %v1399 = vpack.c.bf16 %v1393, %v1392
    %v1400 = vpack.c.bf16 %v1394, %v1394
    %v1407 = vunpack.c.l.b16 %v1395
    %v1408 = vunpack.c.h.b16 %v1395
    %v1409 = vunpack.c.l.b16 %v1396
    %v1410 = vunpack.c.h.b16 %v1396
    %v1411 = vunpack.c.l.b16 %v1397
    %v1412 = vunpack.c.l.b16 %v1398
    %v1413 = vunpack.c.h.b16 %v1398
    %v1414 = vunpack.c.l.b16 %v1399
    %v1415 = vunpack.c.h.b16 %v1399
    %v1416 = vunpack.c.l.b16 %v1400
    %v1417 = vpack.c.b16 %v1407, %v1407
    %v1418 = vpack.c.b16 %v1408, %v1408
    %v1419 = vpack.c.b16 %v1409, %v1409
    %v1420 = vpack.c.b16 %v1410, %v1410
    %v1421 = vpack.c.b16 %v1411, %v1411
    %v1422 = vpack.c.b16 %v1412, %v1412
    %v1423 = vpack.c.b16 %v1413, %v1413
    %v1424 = vpack.c.b16 %v1414, %v1414
    %v1425 = vpack.c.b16 %v1415, %v1415
    %v1426 = vpack.c.b16 %v1416, %v1416
    %1427 = vrot.lane.b32.xlu0 %v1417, 80
    %v1428 = vpop.permute.xlu0 %1427
    %1429 = vrot.lane.b32.xlu0 %v1418, 80
    %v1430 = vpop.permute.xlu0 %1429
    %1431 = vrot.lane.b32.xlu0 %v1419, 80
    %v1432 = vpop.permute.xlu0 %1431
    %1433 = vrot.lane.b32.xlu0 %v1420, 80
    %v1434 = vpop.permute.xlu0 %1433
    %1435 = vrot.lane.b32.xlu0 %v1421, 80
    %v1436 = vpop.permute.xlu0 %1435
    %1437 = vrot.lane.b32.xlu0 %v1422, 80
    %v1438 = vpop.permute.xlu0 %1437
    %1439 = vrot.lane.b32.xlu0 %v1423, 80
    %v1440 = vpop.permute.xlu0 %1439
    %1441 = vrot.lane.b32.xlu0 %v1424, 80
    %v1442 = vpop.permute.xlu0 %1441
    %1443 = vrot.lane.b32.xlu0 %v1425, 80
    %v1444 = vpop.permute.xlu0 %1443
    %1445 = vrot.lane.b32.xlu0 %v1426, 80
    %v1446 = vpop.permute.xlu0 %1445
    %1457 = vst.msk [vmem:[#allocation2 + $0x14] sm:$0xf] %vm780, %v1428
    %1458 = vst.msk [vmem:[#allocation2 + $0x44] sm:$0xf] %vm780, %v1430
    %1459 = vst.msk [vmem:[#allocation2 + $0x74] sm:$0xf] %vm780, %v1432
    %1460 = vst.msk [vmem:[#allocation2 + $0xa4] sm:$0xf] %vm780, %v1434
    %1461 = vst.msk [vmem:[#allocation2 + $0xd4] sm:$0xf] %vm780, %v1436
    %1462 = vst.msk [vmem:[#allocation2 + $0x104] sm:$0xf] %vm780, %v1438
    %1463 = vst.msk [vmem:[#allocation2 + $0x134] sm:$0xf] %vm780, %v1440
    %1464 = vst.msk [vmem:[#allocation2 + $0x164] sm:$0xf] %vm780, %v1442
    %1465 = vst.msk [vmem:[#allocation2 + $0x194] sm:$0xf] %vm780, %v1444
    %1466 = vst.msk [vmem:[#allocation2 + $0x1c4] sm:$0xf] %vm780, %v1446
    %v1467 = vld [vmem:[%s0 + $0x10] sm:$0xff]
    %v1468 = vld [vmem:[%s0 + $0x18] sm:$0xff]
    %v1469 = vld [vmem:[%s0 + $0x20] sm:$0xff]
    %v1470 = vld [vmem:[%s0 + $0x28] sm:$0xff]
    %v1471 = vld [vmem:[%s0 + $0x30] sm:$0xff]
    %v1472 = vld [vmem:[%s0 + $0x58] sm:$0xff]
    %v1473 = vld [vmem:[%s0 + $0x60] sm:$0xff]
    %v1474 = vld [vmem:[%s0 + $0x68] sm:$0xff]
    %v1475 = vld [vmem:[%s0 + $0x70] sm:$0xff]
    %v1476 = vld [vmem:[%s0 + $0x78] sm:$0xff]
    %v1477 = vpack.c.bf16 %v1468, %v1467
    %v1478 = vpack.c.bf16 %v1470, %v1469
    %v1479 = vpack.c.bf16 %v1471, %v1471
    %v1480 = vpack.c.bf16 %v1473, %v1472
    %v1481 = vpack.c.bf16 %v1475, %v1474
    %v1482 = vpack.c.bf16 %v1476, %v1476
    %v1489 = vunpack.c.l.b16 %v1477
    %v1490 = vunpack.c.h.b16 %v1477
    %v1491 = vunpack.c.l.b16 %v1478
    %v1492 = vunpack.c.h.b16 %v1478
    %v1493 = vunpack.c.l.b16 %v1479
    %v1494 = vunpack.c.l.b16 %v1480
    %v1495 = vunpack.c.h.b16 %v1480
    %v1496 = vunpack.c.l.b16 %v1481
    %v1497 = vunpack.c.h.b16 %v1481
    %v1498 = vunpack.c.l.b16 %v1482
    %v1499 = vpack.c.b16 %v1489, %v1489
    %v1500 = vpack.c.b16 %v1490, %v1490
    %v1501 = vpack.c.b16 %v1491, %v1491
    %v1502 = vpack.c.b16 %v1492, %v1492
    %v1503 = vpack.c.b16 %v1493, %v1493
    %v1504 = vpack.c.b16 %v1494, %v1494
    %v1505 = vpack.c.b16 %v1495, %v1495
    %v1506 = vpack.c.b16 %v1496, %v1496
    %v1507 = vpack.c.b16 %v1497, %v1497
    %v1508 = vpack.c.b16 %v1498, %v1498
    %1519 = vst.msk [vmem:[#allocation2 + $0x18] sm:$0xf] %vm153, %v1499
    %1520 = vst.msk [vmem:[#allocation2 + $0x48] sm:$0xf] %vm153, %v1500
    %1521 = vst.msk [vmem:[#allocation2 + $0x78] sm:$0xf] %vm153, %v1501
    %1522 = vst.msk [vmem:[#allocation2 + $0xa8] sm:$0xf] %vm153, %v1502
    %1523 = vst.msk [vmem:[#allocation2 + $0xd8] sm:$0xf] %vm153, %v1503
    %1524 = vst.msk [vmem:[#allocation2 + $0x108] sm:$0xf] %vm153, %v1504
    %1525 = vst.msk [vmem:[#allocation2 + $0x138] sm:$0xf] %vm153, %v1505
    %1526 = vst.msk [vmem:[#allocation2 + $0x168] sm:$0xf] %vm153, %v1506
    %1527 = vst.msk [vmem:[#allocation2 + $0x198] sm:$0xf] %vm153, %v1507
    %1528 = vst.msk [vmem:[#allocation2 + $0x1c8] sm:$0xf] %vm153, %v1508
    %v1529 = vld [vmem:[%s0 + $0x11] sm:$0xff]
    %v1530 = vld [vmem:[%s0 + $0x19] sm:$0xff]
    %v1531 = vld [vmem:[%s0 + $0x21] sm:$0xff]
    %v1532 = vld [vmem:[%s0 + $0x29] sm:$0xff]
    %v1533 = vld [vmem:[%s0 + $0x31] sm:$0xff]
    %v1534 = vld [vmem:[%s0 + $0x59] sm:$0xff]
    %v1535 = vld [vmem:[%s0 + $0x61] sm:$0xff]
    %v1536 = vld [vmem:[%s0 + $0x69] sm:$0xff]
    %v1537 = vld [vmem:[%s0 + $0x71] sm:$0xff]
    %v1538 = vld [vmem:[%s0 + $0x79] sm:$0xff]
    %v1539 = vpack.c.bf16 %v1530, %v1529
    %v1540 = vpack.c.bf16 %v1532, %v1531
    %v1541 = vpack.c.bf16 %v1533, %v1533
    %v1542 = vpack.c.bf16 %v1535, %v1534
    %v1543 = vpack.c.bf16 %v1537, %v1536
    %v1544 = vpack.c.bf16 %v1538, %v1538
    %v1551 = vunpack.c.l.b16 %v1539
    %v1552 = vunpack.c.h.b16 %v1539
    %v1553 = vunpack.c.l.b16 %v1540
    %v1554 = vunpack.c.h.b16 %v1540
    %v1555 = vunpack.c.l.b16 %v1541
    %v1556 = vunpack.c.l.b16 %v1542
    %v1557 = vunpack.c.h.b16 %v1542
    %v1558 = vunpack.c.l.b16 %v1543
    %v1559 = vunpack.c.h.b16 %v1543
    %v1560 = vunpack.c.l.b16 %v1544
    %v1561 = vpack.c.b16 %v1551, %v1551
    %v1562 = vpack.c.b16 %v1552, %v1552
    %v1563 = vpack.c.b16 %v1553, %v1553
    %v1564 = vpack.c.b16 %v1554, %v1554
    %v1565 = vpack.c.b16 %v1555, %v1555
    %v1566 = vpack.c.b16 %v1556, %v1556
    %v1567 = vpack.c.b16 %v1557, %v1557
    %v1568 = vpack.c.b16 %v1558, %v1558
    %v1569 = vpack.c.b16 %v1559, %v1559
    %v1570 = vpack.c.b16 %v1560, %v1560
    %1571 = vrot.lane.b32.xlu0 %v1561, 48
    %v1572 = vpop.permute.xlu0 %1571
    %1573 = vrot.lane.b32.xlu0 %v1562, 48
    %v1574 = vpop.permute.xlu0 %1573
    %1575 = vrot.lane.b32.xlu0 %v1563, 48
    %v1576 = vpop.permute.xlu0 %1575
    %1577 = vrot.lane.b32.xlu0 %v1564, 48
    %v1578 = vpop.permute.xlu0 %1577
    %1579 = vrot.lane.b32.xlu0 %v1565, 48
    %v1580 = vpop.permute.xlu0 %1579
    %1581 = vrot.lane.b32.xlu0 %v1566, 48
    %v1582 = vpop.permute.xlu0 %1581
    %1583 = vrot.lane.b32.xlu0 %v1567, 48
    %v1584 = vpop.permute.xlu0 %1583
    %1585 = vrot.lane.b32.xlu0 %v1568, 48
    %v1586 = vpop.permute.xlu0 %1585
    %1587 = vrot.lane.b32.xlu0 %v1569, 48
    %v1588 = vpop.permute.xlu0 %1587
    %1589 = vrot.lane.b32.xlu0 %v1570, 48
    %v1590 = vpop.permute.xlu0 %1589
    %1601 = vst.msk [vmem:[#allocation2 + $0x18] sm:$0xf] %vm236, %v1572
    %1602 = vst.msk [vmem:[#allocation2 + $0x48] sm:$0xf] %vm236, %v1574
    %1603 = vst.msk [vmem:[#allocation2 + $0x78] sm:$0xf] %vm236, %v1576
    %1604 = vst.msk [vmem:[#allocation2 + $0xa8] sm:$0xf] %vm236, %v1578
    %1605 = vst.msk [vmem:[#allocation2 + $0xd8] sm:$0xf] %vm236, %v1580
    %1606 = vst.msk [vmem:[#allocation2 + $0x108] sm:$0xf] %vm236, %v1582
    %1607 = vst.msk [vmem:[#allocation2 + $0x138] sm:$0xf] %vm236, %v1584
    %1608 = vst.msk [vmem:[#allocation2 + $0x168] sm:$0xf] %vm236, %v1586
    %1609 = vst.msk [vmem:[#allocation2 + $0x198] sm:$0xf] %vm236, %v1588
    %1610 = vst.msk [vmem:[#allocation2 + $0x1c8] sm:$0xf] %vm236, %v1590
    %v1611 = vld [vmem:[%s0 + $0x12] sm:$0xff]
    %v1612 = vld [vmem:[%s0 + $0x1a] sm:$0xff]
    %v1613 = vld [vmem:[%s0 + $0x22] sm:$0xff]
    %v1614 = vld [vmem:[%s0 + $0x2a] sm:$0xff]
    %v1615 = vld [vmem:[%s0 + $0x32] sm:$0xff]
    %v1616 = vld [vmem:[%s0 + $0x5a] sm:$0xff]
    %v1617 = vld [vmem:[%s0 + $0x62] sm:$0xff]
    %v1618 = vld [vmem:[%s0 + $0x6a] sm:$0xff]
    %v1619 = vld [vmem:[%s0 + $0x72] sm:$0xff]
    %v1620 = vld [vmem:[%s0 + $0x7a] sm:$0xff]
    %v1621 = vpack.c.bf16 %v1612, %v1611
    %v1622 = vpack.c.bf16 %v1614, %v1613
    %v1623 = vpack.c.bf16 %v1615, %v1615
    %v1624 = vpack.c.bf16 %v1617, %v1616
    %v1625 = vpack.c.bf16 %v1619, %v1618
    %v1626 = vpack.c.bf16 %v1620, %v1620
    %v1633 = vunpack.c.l.b16 %v1621
    %v1634 = vunpack.c.h.b16 %v1621
    %v1635 = vunpack.c.l.b16 %v1622
    %v1636 = vunpack.c.h.b16 %v1622
    %v1637 = vunpack.c.l.b16 %v1623
    %v1638 = vunpack.c.l.b16 %v1624
    %v1639 = vunpack.c.h.b16 %v1624
    %v1640 = vunpack.c.l.b16 %v1625
    %v1641 = vunpack.c.h.b16 %v1625
    %v1642 = vunpack.c.l.b16 %v1626
    %v1643 = vpack.c.b16 %v1633, %v1633
    %v1644 = vpack.c.b16 %v1634, %v1634
    %v1645 = vpack.c.b16 %v1635, %v1635
    %v1646 = vpack.c.b16 %v1636, %v1636
    %v1647 = vpack.c.b16 %v1637, %v1637
    %v1648 = vpack.c.b16 %v1638, %v1638
    %v1649 = vpack.c.b16 %v1639, %v1639
    %v1650 = vpack.c.b16 %v1640, %v1640
    %v1651 = vpack.c.b16 %v1641, %v1641
    %v1652 = vpack.c.b16 %v1642, %v1642
    %1653 = vrot.lane.b32.xlu0 %v1643, 96
    %v1654 = vpop.permute.xlu0 %1653
    %1655 = vrot.lane.b32.xlu0 %v1644, 96
    %v1656 = vpop.permute.xlu0 %1655
    %1657 = vrot.lane.b32.xlu0 %v1645, 96
    %v1658 = vpop.permute.xlu0 %1657
    %1659 = vrot.lane.b32.xlu0 %v1646, 96
    %v1660 = vpop.permute.xlu0 %1659
    %1661 = vrot.lane.b32.xlu0 %v1647, 96
    %v1662 = vpop.permute.xlu0 %1661
    %1663 = vrot.lane.b32.xlu0 %v1648, 96
    %v1664 = vpop.permute.xlu0 %1663
    %1665 = vrot.lane.b32.xlu0 %v1649, 96
    %v1666 = vpop.permute.xlu0 %1665
    %1667 = vrot.lane.b32.xlu0 %v1650, 96
    %v1668 = vpop.permute.xlu0 %1667
    %1669 = vrot.lane.b32.xlu0 %v1651, 96
    %v1670 = vpop.permute.xlu0 %1669
    %1671 = vrot.lane.b32.xlu0 %v1652, 96
    %v1672 = vpop.permute.xlu0 %1671
    %v1673 = vrot.slane %v1654, 4
    %v1674 = vrot.slane %v1656, 4
    %v1675 = vrot.slane %v1658, 4
    %v1676 = vrot.slane %v1660, 4
    %v1677 = vrot.slane %v1662, 4
    %v1678 = vrot.slane %v1664, 4
    %v1679 = vrot.slane %v1666, 4
    %v1680 = vrot.slane %v1668, 4
    %v1681 = vrot.slane %v1670, 4
    %v1682 = vrot.slane %v1672, 4
    %v1683 = vsel %vm319, %v1673, %v1654
    %v1684 = vsel %vm319, %v1674, %v1656
    %v1685 = vsel %vm319, %v1675, %v1658
    %v1686 = vsel %vm319, %v1676, %v1660
    %v1687 = vsel %vm319, %v1677, %v1662
    %v1688 = vsel %vm319, %v1678, %v1664
    %v1689 = vsel %vm319, %v1679, %v1666
    %v1690 = vsel %vm319, %v1680, %v1668
    %v1691 = vsel %vm319, %v1681, %v1670
    %v1692 = vsel %vm319, %v1682, %v1672
    %1703 = vst.msk [vmem:[#allocation2 + $0x18] sm:$0xff] %vm342, %v1683
    %1704 = vst.msk [vmem:[#allocation2 + $0x48] sm:$0xff] %vm342, %v1684
    %1705 = vst.msk [vmem:[#allocation2 + $0x78] sm:$0xff] %vm342, %v1685
    %1706 = vst.msk [vmem:[#allocation2 + $0xa8] sm:$0xff] %vm342, %v1686
    %1707 = vst.msk [vmem:[#allocation2 + $0xd8] sm:$0xff] %vm342, %v1687
    %1708 = vst.msk [vmem:[#allocation2 + $0x108] sm:$0xff] %vm342, %v1688
    %1709 = vst.msk [vmem:[#allocation2 + $0x138] sm:$0xff] %vm342, %v1689
    %1710 = vst.msk [vmem:[#allocation2 + $0x168] sm:$0xff] %vm342, %v1690
    %1711 = vst.msk [vmem:[#allocation2 + $0x198] sm:$0xff] %vm342, %v1691
    %1712 = vst.msk [vmem:[#allocation2 + $0x1c8] sm:$0xff] %vm342, %v1692
    %v1713 = vld [vmem:[%s0 + $0x13] sm:$0xff]
    %v1714 = vld [vmem:[%s0 + $0x1b] sm:$0xff]
    %v1715 = vld [vmem:[%s0 + $0x23] sm:$0xff]
    %v1716 = vld [vmem:[%s0 + $0x2b] sm:$0xff]
    %v1717 = vld [vmem:[%s0 + $0x33] sm:$0xff]
    %v1718 = vld [vmem:[%s0 + $0x5b] sm:$0xff]
    %v1719 = vld [vmem:[%s0 + $0x63] sm:$0xff]
    %v1720 = vld [vmem:[%s0 + $0x6b] sm:$0xff]
    %v1721 = vld [vmem:[%s0 + $0x73] sm:$0xff]
    %v1722 = vld [vmem:[%s0 + $0x7b] sm:$0xff]
    %v1723 = vpack.c.bf16 %v1714, %v1713
    %v1724 = vpack.c.bf16 %v1716, %v1715
    %v1725 = vpack.c.bf16 %v1717, %v1717
    %v1726 = vpack.c.bf16 %v1719, %v1718
    %v1727 = vpack.c.bf16 %v1721, %v1720
    %v1728 = vpack.c.bf16 %v1722, %v1722
    %v1735 = vunpack.c.l.b16 %v1723
    %v1736 = vunpack.c.h.b16 %v1723
    %v1737 = vunpack.c.l.b16 %v1724
    %v1738 = vunpack.c.h.b16 %v1724
    %v1739 = vunpack.c.l.b16 %v1725
    %v1740 = vunpack.c.l.b16 %v1726
    %v1741 = vunpack.c.h.b16 %v1726
    %v1742 = vunpack.c.l.b16 %v1727
    %v1743 = vunpack.c.h.b16 %v1727
    %v1744 = vunpack.c.l.b16 %v1728
    %v1745 = vpack.c.b16 %v1735, %v1735
    %v1746 = vpack.c.b16 %v1736, %v1736
    %v1747 = vpack.c.b16 %v1737, %v1737
    %v1748 = vpack.c.b16 %v1738, %v1738
    %v1749 = vpack.c.b16 %v1739, %v1739
    %v1750 = vpack.c.b16 %v1740, %v1740
    %v1751 = vpack.c.b16 %v1741, %v1741
    %v1752 = vpack.c.b16 %v1742, %v1742
    %v1753 = vpack.c.b16 %v1743, %v1743
    %v1754 = vpack.c.b16 %v1744, %v1744
    %1755 = vrot.lane.b32.xlu0 %v1745, 16
    %v1756 = vpop.permute.xlu0 %1755
    %1757 = vrot.lane.b32.xlu0 %v1746, 16
    %v1758 = vpop.permute.xlu0 %1757
    %1759 = vrot.lane.b32.xlu0 %v1747, 16
    %v1760 = vpop.permute.xlu0 %1759
    %1761 = vrot.lane.b32.xlu0 %v1748, 16
    %v1762 = vpop.permute.xlu0 %1761
    %1763 = vrot.lane.b32.xlu0 %v1749, 16
    %v1764 = vpop.permute.xlu0 %1763
    %1765 = vrot.lane.b32.xlu0 %v1750, 16
    %v1766 = vpop.permute.xlu0 %1765
    %1767 = vrot.lane.b32.xlu0 %v1751, 16
    %v1768 = vpop.permute.xlu0 %1767
    %1769 = vrot.lane.b32.xlu0 %v1752, 16
    %v1770 = vpop.permute.xlu0 %1769
    %1771 = vrot.lane.b32.xlu0 %v1753, 16
    %v1772 = vpop.permute.xlu0 %1771
    %1773 = vrot.lane.b32.xlu0 %v1754, 16
    %v1774 = vpop.permute.xlu0 %1773
    %1785 = vst.msk [vmem:[#allocation2 + $0x1c] sm:$0xf] %vm425, %v1756
    %1786 = vst.msk [vmem:[#allocation2 + $0x4c] sm:$0xf] %vm425, %v1758
    %1787 = vst.msk [vmem:[#allocation2 + $0x7c] sm:$0xf] %vm425, %v1760
    %1788 = vst.msk [vmem:[#allocation2 + $0xac] sm:$0xf] %vm425, %v1762
    %1789 = vst.msk [vmem:[#allocation2 + $0xdc] sm:$0xf] %vm425, %v1764
    %1790 = vst.msk [vmem:[#allocation2 + $0x10c] sm:$0xf] %vm425, %v1766
    %1791 = vst.msk [vmem:[#allocation2 + $0x13c] sm:$0xf] %vm425, %v1768
    %1792 = vst.msk [vmem:[#allocation2 + $0x16c] sm:$0xf] %vm425, %v1770
    %1793 = vst.msk [vmem:[#allocation2 + $0x19c] sm:$0xf] %vm425, %v1772
    %1794 = vst.msk [vmem:[#allocation2 + $0x1cc] sm:$0xf] %vm425, %v1774
    %v1795 = vld [vmem:[%s0 + $0x14] sm:$0xff]
    %v1796 = vld [vmem:[%s0 + $0x1c] sm:$0xff]
    %v1797 = vld [vmem:[%s0 + $0x24] sm:$0xff]
    %v1798 = vld [vmem:[%s0 + $0x2c] sm:$0xff]
    %v1799 = vld [vmem:[%s0 + $0x34] sm:$0xff]
    %v1800 = vld [vmem:[%s0 + $0x5c] sm:$0xff]
    %v1801 = vld [vmem:[%s0 + $0x64] sm:$0xff]
    %v1802 = vld [vmem:[%s0 + $0x6c] sm:$0xff]
    %v1803 = vld [vmem:[%s0 + $0x74] sm:$0xff]
    %v1804 = vld [vmem:[%s0 + $0x7c] sm:$0xff]
    %v1805 = vpack.c.bf16 %v1796, %v1795
    %v1806 = vpack.c.bf16 %v1798, %v1797
    %v1807 = vpack.c.bf16 %v1799, %v1799
    %v1808 = vpack.c.bf16 %v1801, %v1800
    %v1809 = vpack.c.bf16 %v1803, %v1802
    %v1810 = vpack.c.bf16 %v1804, %v1804
    %v1817 = vunpack.c.l.b16 %v1805
    %v1818 = vunpack.c.h.b16 %v1805
    %v1819 = vunpack.c.l.b16 %v1806
    %v1820 = vunpack.c.h.b16 %v1806
    %v1821 = vunpack.c.l.b16 %v1807
    %v1822 = vunpack.c.l.b16 %v1808
    %v1823 = vunpack.c.h.b16 %v1808
    %v1824 = vunpack.c.l.b16 %v1809
    %v1825 = vunpack.c.h.b16 %v1809
    %v1826 = vunpack.c.l.b16 %v1810
    %v1827 = vpack.c.b16 %v1817, %v1817
    %v1828 = vpack.c.b16 %v1818, %v1818
    %v1829 = vpack.c.b16 %v1819, %v1819
    %v1830 = vpack.c.b16 %v1820, %v1820
    %v1831 = vpack.c.b16 %v1821, %v1821
    %v1832 = vpack.c.b16 %v1822, %v1822
    %v1833 = vpack.c.b16 %v1823, %v1823
    %v1834 = vpack.c.b16 %v1824, %v1824
    %v1835 = vpack.c.b16 %v1825, %v1825
    %v1836 = vpack.c.b16 %v1826, %v1826
    %1837 = vrot.lane.b32.xlu0 %v1827, 64
    %v1838 = vpop.permute.xlu0 %1837
    %1839 = vrot.lane.b32.xlu0 %v1828, 64
    %v1840 = vpop.permute.xlu0 %1839
    %1841 = vrot.lane.b32.xlu0 %v1829, 64
    %v1842 = vpop.permute.xlu0 %1841
    %1843 = vrot.lane.b32.xlu0 %v1830, 64
    %v1844 = vpop.permute.xlu0 %1843
    %1845 = vrot.lane.b32.xlu0 %v1831, 64
    %v1846 = vpop.permute.xlu0 %1845
    %1847 = vrot.lane.b32.xlu0 %v1832, 64
    %v1848 = vpop.permute.xlu0 %1847
    %1849 = vrot.lane.b32.xlu0 %v1833, 64
    %v1850 = vpop.permute.xlu0 %1849
    %1851 = vrot.lane.b32.xlu0 %v1834, 64
    %v1852 = vpop.permute.xlu0 %1851
    %1853 = vrot.lane.b32.xlu0 %v1835, 64
    %v1854 = vpop.permute.xlu0 %1853
    %1855 = vrot.lane.b32.xlu0 %v1836, 64
    %v1856 = vpop.permute.xlu0 %1855
    %1867 = vst.msk [vmem:[#allocation2 + $0x1c] sm:$0xf] %vm508, %v1838
    %1868 = vst.msk [vmem:[#allocation2 + $0x4c] sm:$0xf] %vm508, %v1840
    %1869 = vst.msk [vmem:[#allocation2 + $0x7c] sm:$0xf] %vm508, %v1842
    %1870 = vst.msk [vmem:[#allocation2 + $0xac] sm:$0xf] %vm508, %v1844
    %1871 = vst.msk [vmem:[#allocation2 + $0xdc] sm:$0xf] %vm508, %v1846
    %1872 = vst.msk [vmem:[#allocation2 + $0x10c] sm:$0xf] %vm508, %v1848
    %1873 = vst.msk [vmem:[#allocation2 + $0x13c] sm:$0xf] %vm508, %v1850
    %1874 = vst.msk [vmem:[#allocation2 + $0x16c] sm:$0xf] %vm508, %v1852
    %1875 = vst.msk [vmem:[#allocation2 + $0x19c] sm:$0xf] %vm508, %v1854
    %1876 = vst.msk [vmem:[#allocation2 + $0x1cc] sm:$0xf] %vm508, %v1856
    %v1877 = vld [vmem:[%s0 + $0x15] sm:$0xff]
    %v1878 = vld [vmem:[%s0 + $0x1d] sm:$0xff]
    %v1879 = vld [vmem:[%s0 + $0x25] sm:$0xff]
    %v1880 = vld [vmem:[%s0 + $0x2d] sm:$0xff]
    %v1881 = vld [vmem:[%s0 + $0x35] sm:$0xff]
    %v1882 = vld [vmem:[%s0 + $0x5d] sm:$0xff]
    %v1883 = vld [vmem:[%s0 + $0x65] sm:$0xff]
    %v1884 = vld [vmem:[%s0 + $0x6d] sm:$0xff]
    %v1885 = vld [vmem:[%s0 + $0x75] sm:$0xff]
    %v1886 = vld [vmem:[%s0 + $0x7d] sm:$0xff]
    %v1887 = vpack.c.bf16 %v1878, %v1877
    %v1888 = vpack.c.bf16 %v1880, %v1879
    %v1889 = vpack.c.bf16 %v1881, %v1881
    %v1890 = vpack.c.bf16 %v1883, %v1882
    %v1891 = vpack.c.bf16 %v1885, %v1884
    %v1892 = vpack.c.bf16 %v1886, %v1886
    %v1899 = vunpack.c.l.b16 %v1887
    %v1900 = vunpack.c.h.b16 %v1887
    %v1901 = vunpack.c.l.b16 %v1888
    %v1902 = vunpack.c.h.b16 %v1888
    %v1903 = vunpack.c.l.b16 %v1889
    %v1904 = vunpack.c.l.b16 %v1890
    %v1905 = vunpack.c.h.b16 %v1890
    %v1906 = vunpack.c.l.b16 %v1891
    %v1907 = vunpack.c.h.b16 %v1891
    %v1908 = vunpack.c.l.b16 %v1892
    %v1909 = vpack.c.b16 %v1899, %v1899
    %v1910 = vpack.c.b16 %v1900, %v1900
    %v1911 = vpack.c.b16 %v1901, %v1901
    %v1912 = vpack.c.b16 %v1902, %v1902
    %v1913 = vpack.c.b16 %v1903, %v1903
    %v1914 = vpack.c.b16 %v1904, %v1904
    %v1915 = vpack.c.b16 %v1905, %v1905
    %v1916 = vpack.c.b16 %v1906, %v1906
    %v1917 = vpack.c.b16 %v1907, %v1907
    %v1918 = vpack.c.b16 %v1908, %v1908
    %1919 = vrot.lane.b32.xlu0 %v1909, 112
    %v1920 = vpop.permute.xlu0 %1919
    %1921 = vrot.lane.b32.xlu0 %v1910, 112
    %v1922 = vpop.permute.xlu0 %1921
    %1923 = vrot.lane.b32.xlu0 %v1911, 112
    %v1924 = vpop.permute.xlu0 %1923
    %1925 = vrot.lane.b32.xlu0 %v1912, 112
    %v1926 = vpop.permute.xlu0 %1925
    %1927 = vrot.lane.b32.xlu0 %v1913, 112
    %v1928 = vpop.permute.xlu0 %1927
    %1929 = vrot.lane.b32.xlu0 %v1914, 112
    %v1930 = vpop.permute.xlu0 %1929
    %1931 = vrot.lane.b32.xlu0 %v1915, 112
    %v1932 = vpop.permute.xlu0 %1931
    %1933 = vrot.lane.b32.xlu0 %v1916, 112
    %v1934 = vpop.permute.xlu0 %1933
    %1935 = vrot.lane.b32.xlu0 %v1917, 112
    %v1936 = vpop.permute.xlu0 %1935
    %1937 = vrot.lane.b32.xlu0 %v1918, 112
    %v1938 = vpop.permute.xlu0 %1937
    %v1939 = vrot.slane %v1920, 4
    %v1940 = vrot.slane %v1922, 4
    %v1941 = vrot.slane %v1924, 4
    %v1942 = vrot.slane %v1926, 4
    %v1943 = vrot.slane %v1928, 4
    %v1944 = vrot.slane %v1930, 4
    %v1945 = vrot.slane %v1932, 4
    %v1946 = vrot.slane %v1934, 4
    %v1947 = vrot.slane %v1936, 4
    %v1948 = vrot.slane %v1938, 4
    %v1949 = vsel %vm591, %v1939, %v1920
    %v1950 = vsel %vm591, %v1940, %v1922
    %v1951 = vsel %vm591, %v1941, %v1924
    %v1952 = vsel %vm591, %v1942, %v1926
    %v1953 = vsel %vm591, %v1943, %v1928
    %v1954 = vsel %vm591, %v1944, %v1930
    %v1955 = vsel %vm591, %v1945, %v1932
    %v1956 = vsel %vm591, %v1946, %v1934
    %v1957 = vsel %vm591, %v1947, %v1936
    %v1958 = vsel %vm591, %v1948, %v1938
    %1969 = vst.msk [vmem:[#allocation2 + $0x1c] sm:$0xff] %vm614, %v1949
    %1970 = vst.msk [vmem:[#allocation2 + $0x4c] sm:$0xff] %vm614, %v1950
    %1971 = vst.msk [vmem:[#allocation2 + $0x7c] sm:$0xff] %vm614, %v1951
    %1972 = vst.msk [vmem:[#allocation2 + $0xac] sm:$0xff] %vm614, %v1952
    %1973 = vst.msk [vmem:[#allocation2 + $0xdc] sm:$0xff] %vm614, %v1953
    %1974 = vst.msk [vmem:[#allocation2 + $0x10c] sm:$0xff] %vm614, %v1954
    %1975 = vst.msk [vmem:[#allocation2 + $0x13c] sm:$0xff] %vm614, %v1955
    %1976 = vst.msk [vmem:[#allocation2 + $0x16c] sm:$0xff] %vm614, %v1956
    %1977 = vst.msk [vmem:[#allocation2 + $0x19c] sm:$0xff] %vm614, %v1957
    %1978 = vst.msk [vmem:[#allocation2 + $0x1cc] sm:$0xff] %vm614, %v1958
    %v1979 = vld [vmem:[%s0 + $0x16] sm:$0xff]
    %v1980 = vld [vmem:[%s0 + $0x1e] sm:$0xff]
    %v1981 = vld [vmem:[%s0 + $0x26] sm:$0xff]
    %v1982 = vld [vmem:[%s0 + $0x2e] sm:$0xff]
    %v1983 = vld [vmem:[%s0 + $0x36] sm:$0xff]
    %v1984 = vld [vmem:[%s0 + $0x5e] sm:$0xff]
    %v1985 = vld [vmem:[%s0 + $0x66] sm:$0xff]
    %v1986 = vld [vmem:[%s0 + $0x6e] sm:$0xff]
    %v1987 = vld [vmem:[%s0 + $0x76] sm:$0xff]
    %v1988 = vld [vmem:[%s0 + $0x7e] sm:$0xff]
    %v1989 = vpack.c.bf16 %v1980, %v1979
    %v1990 = vpack.c.bf16 %v1982, %v1981
    %v1991 = vpack.c.bf16 %v1983, %v1983
    %v1992 = vpack.c.bf16 %v1985, %v1984
    %v1993 = vpack.c.bf16 %v1987, %v1986
    %v1994 = vpack.c.bf16 %v1988, %v1988
    %v2001 = vunpack.c.l.b16 %v1989
    %v2002 = vunpack.c.h.b16 %v1989
    %v2003 = vunpack.c.l.b16 %v1990
    %v2004 = vunpack.c.h.b16 %v1990
    %v2005 = vunpack.c.l.b16 %v1991
    %v2006 = vunpack.c.l.b16 %v1992
    %v2007 = vunpack.c.h.b16 %v1992
    %v2008 = vunpack.c.l.b16 %v1993
    %v2009 = vunpack.c.h.b16 %v1993
    %v2010 = vunpack.c.l.b16 %v1994
    %v2011 = vpack.c.b16 %v2001, %v2001
    %v2012 = vpack.c.b16 %v2002, %v2002
    %v2013 = vpack.c.b16 %v2003, %v2003
    %v2014 = vpack.c.b16 %v2004, %v2004
    %v2015 = vpack.c.b16 %v2005, %v2005
    %v2016 = vpack.c.b16 %v2006, %v2006
    %v2017 = vpack.c.b16 %v2007, %v2007
    %v2018 = vpack.c.b16 %v2008, %v2008
    %v2019 = vpack.c.b16 %v2009, %v2009
    %v2020 = vpack.c.b16 %v2010, %v2010
    %2021 = vrot.lane.b32.xlu0 %v2011, 32
    %v2022 = vpop.permute.xlu0 %2021
    %2023 = vrot.lane.b32.xlu0 %v2012, 32
    %v2024 = vpop.permute.xlu0 %2023
    %2025 = vrot.lane.b32.xlu0 %v2013, 32
    %v2026 = vpop.permute.xlu0 %2025
    %2027 = vrot.lane.b32.xlu0 %v2014, 32
    %v2028 = vpop.permute.xlu0 %2027
    %2029 = vrot.lane.b32.xlu0 %v2015, 32
    %v2030 = vpop.permute.xlu0 %2029
    %2031 = vrot.lane.b32.xlu0 %v2016, 32
    %v2032 = vpop.permute.xlu0 %2031
    %2033 = vrot.lane.b32.xlu0 %v2017, 32
    %v2034 = vpop.permute.xlu0 %2033
    %2035 = vrot.lane.b32.xlu0 %v2018, 32
    %v2036 = vpop.permute.xlu0 %2035
    %2037 = vrot.lane.b32.xlu0 %v2019, 32
    %v2038 = vpop.permute.xlu0 %2037
    %2039 = vrot.lane.b32.xlu0 %v2020, 32
    %v2040 = vpop.permute.xlu0 %2039
    %2051 = vst.msk [vmem:[#allocation2 + $0x20] sm:$0xf] %vm697, %v2022
    %2052 = vst.msk [vmem:[#allocation2 + $0x50] sm:$0xf] %vm697, %v2024
    %2053 = vst.msk [vmem:[#allocation2 + $0x80] sm:$0xf] %vm697, %v2026
    %2054 = vst.msk [vmem:[#allocation2 + $0xb0] sm:$0xf] %vm697, %v2028
    %2055 = vst.msk [vmem:[#allocation2 + $0xe0] sm:$0xf] %vm697, %v2030
    %2056 = vst.msk [vmem:[#allocation2 + $0x110] sm:$0xf] %vm697, %v2032
    %2057 = vst.msk [vmem:[#allocation2 + $0x140] sm:$0xf] %vm697, %v2034
    %2058 = vst.msk [vmem:[#allocation2 + $0x170] sm:$0xf] %vm697, %v2036
    %2059 = vst.msk [vmem:[#allocation2 + $0x1a0] sm:$0xf] %vm697, %v2038
    %2060 = vst.msk [vmem:[#allocation2 + $0x1d0] sm:$0xf] %vm697, %v2040
    %v2061 = vld [vmem:[%s0 + $0x17] sm:$0xff]
    %v2062 = vld [vmem:[%s0 + $0x1f] sm:$0xff]
    %v2063 = vld [vmem:[%s0 + $0x27] sm:$0xff]
    %v2064 = vld [vmem:[%s0 + $0x2f] sm:$0xff]
    %v2065 = vld [vmem:[%s0 + $0x37] sm:$0xff]
    %v2066 = vld [vmem:[%s0 + $0x5f] sm:$0xff]
    %v2067 = vld [vmem:[%s0 + $0x67] sm:$0xff]
    %v2068 = vld [vmem:[%s0 + $0x6f] sm:$0xff]
    %v2069 = vld [vmem:[%s0 + $0x77] sm:$0xff]
    %v2070 = vld [vmem:[%s0 + $0x7f] sm:$0xff]
    %v2071 = vpack.c.bf16 %v2062, %v2061
    %v2072 = vpack.c.bf16 %v2064, %v2063
    %v2073 = vpack.c.bf16 %v2065, %v2065
    %v2074 = vpack.c.bf16 %v2067, %v2066
    %v2075 = vpack.c.bf16 %v2069, %v2068
    %v2076 = vpack.c.bf16 %v2070, %v2070
    %v2083 = vunpack.c.l.b16 %v2071
    %v2084 = vunpack.c.h.b16 %v2071
    %v2085 = vunpack.c.l.b16 %v2072
    %v2086 = vunpack.c.h.b16 %v2072
    %v2087 = vunpack.c.l.b16 %v2073
    %v2088 = vunpack.c.l.b16 %v2074
    %v2089 = vunpack.c.h.b16 %v2074
    %v2090 = vunpack.c.l.b16 %v2075
    %v2091 = vunpack.c.h.b16 %v2075
    %v2092 = vunpack.c.l.b16 %v2076
    %v2093 = vpack.c.b16 %v2083, %v2083
    %v2094 = vpack.c.b16 %v2084, %v2084
    %v2095 = vpack.c.b16 %v2085, %v2085
    %v2096 = vpack.c.b16 %v2086, %v2086
    %v2097 = vpack.c.b16 %v2087, %v2087
    %v2098 = vpack.c.b16 %v2088, %v2088
    %v2099 = vpack.c.b16 %v2089, %v2089
    %v2100 = vpack.c.b16 %v2090, %v2090
    %v2101 = vpack.c.b16 %v2091, %v2091
    %v2102 = vpack.c.b16 %v2092, %v2092
    %2103 = vrot.lane.b32.xlu0 %v2093, 80
    %v2104 = vpop.permute.xlu0 %2103
    %2105 = vrot.lane.b32.xlu0 %v2094, 80
    %v2106 = vpop.permute.xlu0 %2105
    %2107 = vrot.lane.b32.xlu0 %v2095, 80
    %v2108 = vpop.permute.xlu0 %2107
    %2109 = vrot.lane.b32.xlu0 %v2096, 80
    %v2110 = vpop.permute.xlu0 %2109
    %2111 = vrot.lane.b32.xlu0 %v2097, 80
    %v2112 = vpop.permute.xlu0 %2111
    %2113 = vrot.lane.b32.xlu0 %v2098, 80
    %v2114 = vpop.permute.xlu0 %2113
    %2115 = vrot.lane.b32.xlu0 %v2099, 80
    %v2116 = vpop.permute.xlu0 %2115
    %2117 = vrot.lane.b32.xlu0 %v2100, 80
    %v2118 = vpop.permute.xlu0 %2117
    %2119 = vrot.lane.b32.xlu0 %v2101, 80
    %v2120 = vpop.permute.xlu0 %2119
    %2121 = vrot.lane.b32.xlu0 %v2102, 80
    %v2122 = vpop.permute.xlu0 %2121
    %2133 = vst.msk [vmem:[#allocation2 + $0x20] sm:$0xf] %vm780, %v2104
    %2134 = vst.msk [vmem:[#allocation2 + $0x50] sm:$0xf] %vm780, %v2106
    %2135 = vst.msk [vmem:[#allocation2 + $0x80] sm:$0xf] %vm780, %v2108
    %2136 = vst.msk [vmem:[#allocation2 + $0xb0] sm:$0xf] %vm780, %v2110
    %2137 = vst.msk [vmem:[#allocation2 + $0xe0] sm:$0xf] %vm780, %v2112
    %2138 = vst.msk [vmem:[#allocation2 + $0x110] sm:$0xf] %vm780, %v2114
    %2139 = vst.msk [vmem:[#allocation2 + $0x140] sm:$0xf] %vm780, %v2116
    %2140 = vst.msk [vmem:[#allocation2 + $0x170] sm:$0xf] %vm780, %v2118
    %2141 = vst.msk [vmem:[#allocation2 + $0x1a0] sm:$0xf] %vm780, %v2120
    %2142 = vst.msk [vmem:[#allocation2 + $0x1d0] sm:$0xf] %vm780, %v2122
    %v2143 = vld [vmem:[%s0 + $0x18] sm:$0xff]
    %v2144 = vld [vmem:[%s0 + $0x20] sm:$0xff]
    %v2145 = vld [vmem:[%s0 + $0x28] sm:$0xff]
    %v2146 = vld [vmem:[%s0 + $0x30] sm:$0xff]
    %v2147 = vld [vmem:[%s0 + $0x38] sm:$0xff]
    %v2148 = vld [vmem:[%s0 + $0x60] sm:$0xff]
    %v2149 = vld [vmem:[%s0 + $0x68] sm:$0xff]
    %v2150 = vld [vmem:[%s0 + $0x70] sm:$0xff]
    %v2151 = vld [vmem:[%s0 + $0x78] sm:$0xff]
    %v2152 = vld [vmem:[%s0 + $0x80] sm:$0xff]
    %v2153 = vpack.c.bf16 %v2144, %v2143
    %v2154 = vpack.c.bf16 %v2146, %v2145
    %v2155 = vpack.c.bf16 %v2147, %v2147
    %v2156 = vpack.c.bf16 %v2149, %v2148
    %v2157 = vpack.c.bf16 %v2151, %v2150
    %v2158 = vpack.c.bf16 %v2152, %v2152
    %v2165 = vunpack.c.l.b16 %v2153
    %v2166 = vunpack.c.h.b16 %v2153
    %v2167 = vunpack.c.l.b16 %v2154
    %v2168 = vunpack.c.h.b16 %v2154
    %v2169 = vunpack.c.l.b16 %v2155
    %v2170 = vunpack.c.l.b16 %v2156
    %v2171 = vunpack.c.h.b16 %v2156
    %v2172 = vunpack.c.l.b16 %v2157
    %v2173 = vunpack.c.h.b16 %v2157
    %v2174 = vunpack.c.l.b16 %v2158
    %v2175 = vpack.c.b16 %v2165, %v2165
    %v2176 = vpack.c.b16 %v2166, %v2166
    %v2177 = vpack.c.b16 %v2167, %v2167
    %v2178 = vpack.c.b16 %v2168, %v2168
    %v2179 = vpack.c.b16 %v2169, %v2169
    %v2180 = vpack.c.b16 %v2170, %v2170
    %v2181 = vpack.c.b16 %v2171, %v2171
    %v2182 = vpack.c.b16 %v2172, %v2172
    %v2183 = vpack.c.b16 %v2173, %v2173
    %v2184 = vpack.c.b16 %v2174, %v2174
    %2195 = vst.msk [vmem:[#allocation2 + $0x24] sm:$0xf] %vm153, %v2175
    %2196 = vst.msk [vmem:[#allocation2 + $0x54] sm:$0xf] %vm153, %v2176
    %2197 = vst.msk [vmem:[#allocation2 + $0x84] sm:$0xf] %vm153, %v2177
    %2198 = vst.msk [vmem:[#allocation2 + $0xb4] sm:$0xf] %vm153, %v2178
    %2199 = vst.msk [vmem:[#allocation2 + $0xe4] sm:$0xf] %vm153, %v2179
    %2200 = vst.msk [vmem:[#allocation2 + $0x114] sm:$0xf] %vm153, %v2180
    %2201 = vst.msk [vmem:[#allocation2 + $0x144] sm:$0xf] %vm153, %v2181
    %2202 = vst.msk [vmem:[#allocation2 + $0x174] sm:$0xf] %vm153, %v2182
    %2203 = vst.msk [vmem:[#allocation2 + $0x1a4] sm:$0xf] %vm153, %v2183
    %2204 = vst.msk [vmem:[#allocation2 + $0x1d4] sm:$0xf] %vm153, %v2184
    %v2205 = vld [vmem:[%s0 + $0x19] sm:$0xff]
    %v2206 = vld [vmem:[%s0 + $0x21] sm:$0xff]
    %v2207 = vld [vmem:[%s0 + $0x29] sm:$0xff]
    %v2208 = vld [vmem:[%s0 + $0x31] sm:$0xff]
    %v2209 = vld [vmem:[%s0 + $0x39] sm:$0xff]
    %v2210 = vld [vmem:[%s0 + $0x61] sm:$0xff]
    %v2211 = vld [vmem:[%s0 + $0x69] sm:$0xff]
    %v2212 = vld [vmem:[%s0 + $0x71] sm:$0xff]
    %v2213 = vld [vmem:[%s0 + $0x79] sm:$0xff]
    %v2214 = vld [vmem:[%s0 + $0x81] sm:$0xff]
    %v2215 = vpack.c.bf16 %v2206, %v2205
    %v2216 = vpack.c.bf16 %v2208, %v2207
    %v2217 = vpack.c.bf16 %v2209, %v2209
    %v2218 = vpack.c.bf16 %v2211, %v2210
    %v2219 = vpack.c.bf16 %v2213, %v2212
    %v2220 = vpack.c.bf16 %v2214, %v2214
    %v2227 = vunpack.c.l.b16 %v2215
    %v2228 = vunpack.c.h.b16 %v2215
    %v2229 = vunpack.c.l.b16 %v2216
    %v2230 = vunpack.c.h.b16 %v2216
    %v2231 = vunpack.c.l.b16 %v2217
    %v2232 = vunpack.c.l.b16 %v2218
    %v2233 = vunpack.c.h.b16 %v2218
    %v2234 = vunpack.c.l.b16 %v2219
    %v2235 = vunpack.c.h.b16 %v2219
    %v2236 = vunpack.c.l.b16 %v2220
    %v2237 = vpack.c.b16 %v2227, %v2227
    %v2238 = vpack.c.b16 %v2228, %v2228
    %v2239 = vpack.c.b16 %v2229, %v2229
    %v2240 = vpack.c.b16 %v2230, %v2230
    %v2241 = vpack.c.b16 %v2231, %v2231
    %v2242 = vpack.c.b16 %v2232, %v2232
    %v2243 = vpack.c.b16 %v2233, %v2233
    %v2244 = vpack.c.b16 %v2234, %v2234
    %v2245 = vpack.c.b16 %v2235, %v2235
    %v2246 = vpack.c.b16 %v2236, %v2236
    %2247 = vrot.lane.b32.xlu0 %v2237, 48
    %v2248 = vpop.permute.xlu0 %2247
    %2249 = vrot.lane.b32.xlu0 %v2238, 48
    %v2250 = vpop.permute.xlu0 %2249
    %2251 = vrot.lane.b32.xlu0 %v2239, 48
    %v2252 = vpop.permute.xlu0 %2251
    %2253 = vrot.lane.b32.xlu0 %v2240, 48
    %v2254 = vpop.permute.xlu0 %2253
    %2255 = vrot.lane.b32.xlu0 %v2241, 48
    %v2256 = vpop.permute.xlu0 %2255
    %2257 = vrot.lane.b32.xlu0 %v2242, 48
    %v2258 = vpop.permute.xlu0 %2257
    %2259 = vrot.lane.b32.xlu0 %v2243, 48
    %v2260 = vpop.permute.xlu0 %2259
    %2261 = vrot.lane.b32.xlu0 %v2244, 48
    %v2262 = vpop.permute.xlu0 %2261
    %2263 = vrot.lane.b32.xlu0 %v2245, 48
    %v2264 = vpop.permute.xlu0 %2263
    %2265 = vrot.lane.b32.xlu0 %v2246, 48
    %v2266 = vpop.permute.xlu0 %2265
    %2277 = vst.msk [vmem:[#allocation2 + $0x24] sm:$0xf] %vm236, %v2248
    %2278 = vst.msk [vmem:[#allocation2 + $0x54] sm:$0xf] %vm236, %v2250
    %2279 = vst.msk [vmem:[#allocation2 + $0x84] sm:$0xf] %vm236, %v2252
    %2280 = vst.msk [vmem:[#allocation2 + $0xb4] sm:$0xf] %vm236, %v2254
    %2281 = vst.msk [vmem:[#allocation2 + $0xe4] sm:$0xf] %vm236, %v2256
    %2282 = vst.msk [vmem:[#allocation2 + $0x114] sm:$0xf] %vm236, %v2258
    %2283 = vst.msk [vmem:[#allocation2 + $0x144] sm:$0xf] %vm236, %v2260
    %2284 = vst.msk [vmem:[#allocation2 + $0x174] sm:$0xf] %vm236, %v2262
    %2285 = vst.msk [vmem:[#allocation2 + $0x1a4] sm:$0xf] %vm236, %v2264
    %2286 = vst.msk [vmem:[#allocation2 + $0x1d4] sm:$0xf] %vm236, %v2266
    %v2287 = vld [vmem:[%s0 + $0x1a] sm:$0xff]
    %v2288 = vld [vmem:[%s0 + $0x22] sm:$0xff]
    %v2289 = vld [vmem:[%s0 + $0x2a] sm:$0xff]
    %v2290 = vld [vmem:[%s0 + $0x32] sm:$0xff]
    %v2291 = vld [vmem:[%s0 + $0x3a] sm:$0xff]
    %v2292 = vld [vmem:[%s0 + $0x62] sm:$0xff]
    %v2293 = vld [vmem:[%s0 + $0x6a] sm:$0xff]
    %v2294 = vld [vmem:[%s0 + $0x72] sm:$0xff]
    %v2295 = vld [vmem:[%s0 + $0x7a] sm:$0xff]
    %v2296 = vld [vmem:[%s0 + $0x82] sm:$0xff]
    %v2297 = vpack.c.bf16 %v2288, %v2287
    %v2298 = vpack.c.bf16 %v2290, %v2289
    %v2299 = vpack.c.bf16 %v2291, %v2291
    %v2300 = vpack.c.bf16 %v2293, %v2292
    %v2301 = vpack.c.bf16 %v2295, %v2294
    %v2302 = vpack.c.bf16 %v2296, %v2296
    %v2309 = vunpack.c.l.b16 %v2297
    %v2310 = vunpack.c.h.b16 %v2297
    %v2311 = vunpack.c.l.b16 %v2298
    %v2312 = vunpack.c.h.b16 %v2298
    %v2313 = vunpack.c.l.b16 %v2299
    %v2314 = vunpack.c.l.b16 %v2300
    %v2315 = vunpack.c.h.b16 %v2300
    %v2316 = vunpack.c.l.b16 %v2301
    %v2317 = vunpack.c.h.b16 %v2301
    %v2318 = vunpack.c.l.b16 %v2302
    %v2319 = vpack.c.b16 %v2309, %v2309
    %v2320 = vpack.c.b16 %v2310, %v2310
    %v2321 = vpack.c.b16 %v2311, %v2311
    %v2322 = vpack.c.b16 %v2312, %v2312
    %v2323 = vpack.c.b16 %v2313, %v2313
    %v2324 = vpack.c.b16 %v2314, %v2314
    %v2325 = vpack.c.b16 %v2315, %v2315
    %v2326 = vpack.c.b16 %v2316, %v2316
    %v2327 = vpack.c.b16 %v2317, %v2317
    %v2328 = vpack.c.b16 %v2318, %v2318
    %2329 = vrot.lane.b32.xlu0 %v2319, 96
    %v2330 = vpop.permute.xlu0 %2329
    %2331 = vrot.lane.b32.xlu0 %v2320, 96
    %v2332 = vpop.permute.xlu0 %2331
    %2333 = vrot.lane.b32.xlu0 %v2321, 96
    %v2334 = vpop.permute.xlu0 %2333
    %2335 = vrot.lane.b32.xlu0 %v2322, 96
    %v2336 = vpop.permute.xlu0 %2335
    %2337 = vrot.lane.b32.xlu0 %v2323, 96
    %v2338 = vpop.permute.xlu0 %2337
    %2339 = vrot.lane.b32.xlu0 %v2324, 96
    %v2340 = vpop.permute.xlu0 %2339
    %2341 = vrot.lane.b32.xlu0 %v2325, 96
    %v2342 = vpop.permute.xlu0 %2341
    %2343 = vrot.lane.b32.xlu0 %v2326, 96
    %v2344 = vpop.permute.xlu0 %2343
    %2345 = vrot.lane.b32.xlu0 %v2327, 96
    %v2346 = vpop.permute.xlu0 %2345
    %2347 = vrot.lane.b32.xlu0 %v2328, 96
    %v2348 = vpop.permute.xlu0 %2347
    %v2349 = vrot.slane %v2330, 4
    %v2350 = vrot.slane %v2332, 4
    %v2351 = vrot.slane %v2334, 4
    %v2352 = vrot.slane %v2336, 4
    %v2353 = vrot.slane %v2338, 4
    %v2354 = vrot.slane %v2340, 4
    %v2355 = vrot.slane %v2342, 4
    %v2356 = vrot.slane %v2344, 4
    %v2357 = vrot.slane %v2346, 4
    %v2358 = vrot.slane %v2348, 4
    %v2359 = vsel %vm319, %v2349, %v2330
    %v2360 = vsel %vm319, %v2350, %v2332
    %v2361 = vsel %vm319, %v2351, %v2334
    %v2362 = vsel %vm319, %v2352, %v2336
    %v2363 = vsel %vm319, %v2353, %v2338
    %v2364 = vsel %vm319, %v2354, %v2340
    %v2365 = vsel %vm319, %v2355, %v2342
    %v2366 = vsel %vm319, %v2356, %v2344
    %v2367 = vsel %vm319, %v2357, %v2346
    %v2368 = vsel %vm319, %v2358, %v2348
    %2379 = vst.msk [vmem:[#allocation2 + $0x24] sm:$0xff] %vm342, %v2359
    %2380 = vst.msk [vmem:[#allocation2 + $0x54] sm:$0xff] %vm342, %v2360
    %2381 = vst.msk [vmem:[#allocation2 + $0x84] sm:$0xff] %vm342, %v2361
    %2382 = vst.msk [vmem:[#allocation2 + $0xb4] sm:$0xff] %vm342, %v2362
    %2383 = vst.msk [vmem:[#allocation2 + $0xe4] sm:$0xff] %vm342, %v2363
    %2384 = vst.msk [vmem:[#allocation2 + $0x114] sm:$0xff] %vm342, %v2364
    %2385 = vst.msk [vmem:[#allocation2 + $0x144] sm:$0xff] %vm342, %v2365
    %2386 = vst.msk [vmem:[#allocation2 + $0x174] sm:$0xff] %vm342, %v2366
    %2387 = vst.msk [vmem:[#allocation2 + $0x1a4] sm:$0xff] %vm342, %v2367
    %2388 = vst.msk [vmem:[#allocation2 + $0x1d4] sm:$0xff] %vm342, %v2368
    %v2389 = vld [vmem:[%s0 + $0x1b] sm:$0xff]
    %v2390 = vld [vmem:[%s0 + $0x23] sm:$0xff]
    %v2391 = vld [vmem:[%s0 + $0x2b] sm:$0xff]
    %v2392 = vld [vmem:[%s0 + $0x33] sm:$0xff]
    %v2393 = vld [vmem:[%s0 + $0x3b] sm:$0xff]
    %v2394 = vld [vmem:[%s0 + $0x63] sm:$0xff]
    %v2395 = vld [vmem:[%s0 + $0x6b] sm:$0xff]
    %v2396 = vld [vmem:[%s0 + $0x73] sm:$0xff]
    %v2397 = vld [vmem:[%s0 + $0x7b] sm:$0xff]
    %v2398 = vld [vmem:[%s0 + $0x83] sm:$0xff]
    %v2399 = vpack.c.bf16 %v2390, %v2389
    %v2400 = vpack.c.bf16 %v2392, %v2391
    %v2401 = vpack.c.bf16 %v2393, %v2393
    %v2402 = vpack.c.bf16 %v2395, %v2394
    %v2403 = vpack.c.bf16 %v2397, %v2396
    %v2404 = vpack.c.bf16 %v2398, %v2398
    %v2411 = vunpack.c.l.b16 %v2399
    %v2412 = vunpack.c.h.b16 %v2399
    %v2413 = vunpack.c.l.b16 %v2400
    %v2414 = vunpack.c.h.b16 %v2400
    %v2415 = vunpack.c.l.b16 %v2401
    %v2416 = vunpack.c.l.b16 %v2402
    %v2417 = vunpack.c.h.b16 %v2402
    %v2418 = vunpack.c.l.b16 %v2403
    %v2419 = vunpack.c.h.b16 %v2403
    %v2420 = vunpack.c.l.b16 %v2404
    %v2421 = vpack.c.b16 %v2411, %v2411
    %v2422 = vpack.c.b16 %v2412, %v2412
    %v2423 = vpack.c.b16 %v2413, %v2413
    %v2424 = vpack.c.b16 %v2414, %v2414
    %v2425 = vpack.c.b16 %v2415, %v2415
    %v2426 = vpack.c.b16 %v2416, %v2416
    %v2427 = vpack.c.b16 %v2417, %v2417
    %v2428 = vpack.c.b16 %v2418, %v2418
    %v2429 = vpack.c.b16 %v2419, %v2419
    %v2430 = vpack.c.b16 %v2420, %v2420
    %2431 = vrot.lane.b32.xlu0 %v2421, 16
    %v2432 = vpop.permute.xlu0 %2431
    %2433 = vrot.lane.b32.xlu0 %v2422, 16
    %v2434 = vpop.permute.xlu0 %2433
    %2435 = vrot.lane.b32.xlu0 %v2423, 16
    %v2436 = vpop.permute.xlu0 %2435
    %2437 = vrot.lane.b32.xlu0 %v2424, 16
    %v2438 = vpop.permute.xlu0 %2437
    %2439 = vrot.lane.b32.xlu0 %v2425, 16
    %v2440 = vpop.permute.xlu0 %2439
    %2441 = vrot.lane.b32.xlu0 %v2426, 16
    %v2442 = vpop.permute.xlu0 %2441
    %2443 = vrot.lane.b32.xlu0 %v2427, 16
    %v2444 = vpop.permute.xlu0 %2443
    %2445 = vrot.lane.b32.xlu0 %v2428, 16
    %v2446 = vpop.permute.xlu0 %2445
    %2447 = vrot.lane.b32.xlu0 %v2429, 16
    %v2448 = vpop.permute.xlu0 %2447
    %2449 = vrot.lane.b32.xlu0 %v2430, 16
    %v2450 = vpop.permute.xlu0 %2449
    %2461 = vst.msk [vmem:[#allocation2 + $0x28] sm:$0xf] %vm425, %v2432
    %2462 = vst.msk [vmem:[#allocation2 + $0x58] sm:$0xf] %vm425, %v2434
    %2463 = vst.msk [vmem:[#allocation2 + $0x88] sm:$0xf] %vm425, %v2436
    %2464 = vst.msk [vmem:[#allocation2 + $0xb8] sm:$0xf] %vm425, %v2438
    %2465 = vst.msk [vmem:[#allocation2 + $0xe8] sm:$0xf] %vm425, %v2440
    %2466 = vst.msk [vmem:[#allocation2 + $0x118] sm:$0xf] %vm425, %v2442
    %2467 = vst.msk [vmem:[#allocation2 + $0x148] sm:$0xf] %vm425, %v2444
    %2468 = vst.msk [vmem:[#allocation2 + $0x178] sm:$0xf] %vm425, %v2446
    %2469 = vst.msk [vmem:[#allocation2 + $0x1a8] sm:$0xf] %vm425, %v2448
    %2470 = vst.msk [vmem:[#allocation2 + $0x1d8] sm:$0xf] %vm425, %v2450
    %v2471 = vld [vmem:[%s0 + $0x1c] sm:$0xff]
    %v2472 = vld [vmem:[%s0 + $0x24] sm:$0xff]
    %v2473 = vld [vmem:[%s0 + $0x2c] sm:$0xff]
    %v2474 = vld [vmem:[%s0 + $0x34] sm:$0xff]
    %v2475 = vld [vmem:[%s0 + $0x3c] sm:$0xff]
    %v2476 = vld [vmem:[%s0 + $0x64] sm:$0xff]
    %v2477 = vld [vmem:[%s0 + $0x6c] sm:$0xff]
    %v2478 = vld [vmem:[%s0 + $0x74] sm:$0xff]
    %v2479 = vld [vmem:[%s0 + $0x7c] sm:$0xff]
    %v2480 = vld [vmem:[%s0 + $0x84] sm:$0xff]
    %v2481 = vpack.c.bf16 %v2472, %v2471
    %v2482 = vpack.c.bf16 %v2474, %v2473
    %v2483 = vpack.c.bf16 %v2475, %v2475
    %v2484 = vpack.c.bf16 %v2477, %v2476
    %v2485 = vpack.c.bf16 %v2479, %v2478
    %v2486 = vpack.c.bf16 %v2480, %v2480
    %v2493 = vunpack.c.l.b16 %v2481
    %v2494 = vunpack.c.h.b16 %v2481
    %v2495 = vunpack.c.l.b16 %v2482
    %v2496 = vunpack.c.h.b16 %v2482
    %v2497 = vunpack.c.l.b16 %v2483
    %v2498 = vunpack.c.l.b16 %v2484
    %v2499 = vunpack.c.h.b16 %v2484
    %v2500 = vunpack.c.l.b16 %v2485
    %v2501 = vunpack.c.h.b16 %v2485
    %v2502 = vunpack.c.l.b16 %v2486
    %v2503 = vpack.c.b16 %v2493, %v2493
    %v2504 = vpack.c.b16 %v2494, %v2494
    %v2505 = vpack.c.b16 %v2495, %v2495
    %v2506 = vpack.c.b16 %v2496, %v2496
    %v2507 = vpack.c.b16 %v2497, %v2497
    %v2508 = vpack.c.b16 %v2498, %v2498
    %v2509 = vpack.c.b16 %v2499, %v2499
    %v2510 = vpack.c.b16 %v2500, %v2500
    %v2511 = vpack.c.b16 %v2501, %v2501
    %v2512 = vpack.c.b16 %v2502, %v2502
    %2513 = vrot.lane.b32.xlu0 %v2503, 64
    %v2514 = vpop.permute.xlu0 %2513
    %2515 = vrot.lane.b32.xlu0 %v2504, 64
    %v2516 = vpop.permute.xlu0 %2515
    %2517 = vrot.lane.b32.xlu0 %v2505, 64
    %v2518 = vpop.permute.xlu0 %2517
    %2519 = vrot.lane.b32.xlu0 %v2506, 64
    %v2520 = vpop.permute.xlu0 %2519
    %2521 = vrot.lane.b32.xlu0 %v2507, 64
    %v2522 = vpop.permute.xlu0 %2521
    %2523 = vrot.lane.b32.xlu0 %v2508, 64
    %v2524 = vpop.permute.xlu0 %2523
    %2525 = vrot.lane.b32.xlu0 %v2509, 64
    %v2526 = vpop.permute.xlu0 %2525
    %2527 = vrot.lane.b32.xlu0 %v2510, 64
    %v2528 = vpop.permute.xlu0 %2527
    %2529 = vrot.lane.b32.xlu0 %v2511, 64
    %v2530 = vpop.permute.xlu0 %2529
    %2531 = vrot.lane.b32.xlu0 %v2512, 64
    %v2532 = vpop.permute.xlu0 %2531
    %2543 = vst.msk [vmem:[#allocation2 + $0x28] sm:$0xf] %vm508, %v2514
    %2544 = vst.msk [vmem:[#allocation2 + $0x58] sm:$0xf] %vm508, %v2516
    %2545 = vst.msk [vmem:[#allocation2 + $0x88] sm:$0xf] %vm508, %v2518
    %2546 = vst.msk [vmem:[#allocation2 + $0xb8] sm:$0xf] %vm508, %v2520
    %2547 = vst.msk [vmem:[#allocation2 + $0xe8] sm:$0xf] %vm508, %v2522
    %2548 = vst.msk [vmem:[#allocation2 + $0x118] sm:$0xf] %vm508, %v2524
    %2549 = vst.msk [vmem:[#allocation2 + $0x148] sm:$0xf] %vm508, %v2526
    %2550 = vst.msk [vmem:[#allocation2 + $0x178] sm:$0xf] %vm508, %v2528
    %2551 = vst.msk [vmem:[#allocation2 + $0x1a8] sm:$0xf] %vm508, %v2530
    %2552 = vst.msk [vmem:[#allocation2 + $0x1d8] sm:$0xf] %vm508, %v2532
    %v2553 = vld [vmem:[%s0 + $0x1d] sm:$0xff]
    %v2554 = vld [vmem:[%s0 + $0x25] sm:$0xff]
    %v2555 = vld [vmem:[%s0 + $0x2d] sm:$0xff]
    %v2556 = vld [vmem:[%s0 + $0x35] sm:$0xff]
    %v2557 = vld [vmem:[%s0 + $0x3d] sm:$0xff]
    %v2558 = vld [vmem:[%s0 + $0x65] sm:$0xff]
    %v2559 = vld [vmem:[%s0 + $0x6d] sm:$0xff]
    %v2560 = vld [vmem:[%s0 + $0x75] sm:$0xff]
    %v2561 = vld [vmem:[%s0 + $0x7d] sm:$0xff]
    %v2562 = vld [vmem:[%s0 + $0x85] sm:$0xff]
    %v2563 = vpack.c.bf16 %v2554, %v2553
    %v2564 = vpack.c.bf16 %v2556, %v2555
    %v2565 = vpack.c.bf16 %v2557, %v2557
    %v2566 = vpack.c.bf16 %v2559, %v2558
    %v2567 = vpack.c.bf16 %v2561, %v2560
    %v2568 = vpack.c.bf16 %v2562, %v2562
    %v2575 = vunpack.c.l.b16 %v2563
    %v2576 = vunpack.c.h.b16 %v2563
    %v2577 = vunpack.c.l.b16 %v2564
    %v2578 = vunpack.c.h.b16 %v2564
    %v2579 = vunpack.c.l.b16 %v2565
    %v2580 = vunpack.c.l.b16 %v2566
    %v2581 = vunpack.c.h.b16 %v2566
    %v2582 = vunpack.c.l.b16 %v2567
    %v2583 = vunpack.c.h.b16 %v2567
    %v2584 = vunpack.c.l.b16 %v2568
    %v2585 = vpack.c.b16 %v2575, %v2575
    %v2586 = vpack.c.b16 %v2576, %v2576
    %v2587 = vpack.c.b16 %v2577, %v2577
    %v2588 = vpack.c.b16 %v2578, %v2578
    %v2589 = vpack.c.b16 %v2579, %v2579
    %v2590 = vpack.c.b16 %v2580, %v2580
    %v2591 = vpack.c.b16 %v2581, %v2581
    %v2592 = vpack.c.b16 %v2582, %v2582
    %v2593 = vpack.c.b16 %v2583, %v2583
    %v2594 = vpack.c.b16 %v2584, %v2584
    %2595 = vrot.lane.b32.xlu0 %v2585, 112
    %v2596 = vpop.permute.xlu0 %2595
    %2597 = vrot.lane.b32.xlu0 %v2586, 112
    %v2598 = vpop.permute.xlu0 %2597
    %2599 = vrot.lane.b32.xlu0 %v2587, 112
    %v2600 = vpop.permute.xlu0 %2599
    %2601 = vrot.lane.b32.xlu0 %v2588, 112
    %v2602 = vpop.permute.xlu0 %2601
    %2603 = vrot.lane.b32.xlu0 %v2589, 112
    %v2604 = vpop.permute.xlu0 %2603
    %2605 = vrot.lane.b32.xlu0 %v2590, 112
    %v2606 = vpop.permute.xlu0 %2605
    %2607 = vrot.lane.b32.xlu0 %v2591, 112
    %v2608 = vpop.permute.xlu0 %2607
    %2609 = vrot.lane.b32.xlu0 %v2592, 112
    %v2610 = vpop.permute.xlu0 %2609
    %2611 = vrot.lane.b32.xlu0 %v2593, 112
    %v2612 = vpop.permute.xlu0 %2611
    %2613 = vrot.lane.b32.xlu0 %v2594, 112
    %v2614 = vpop.permute.xlu0 %2613
    %v2615 = vrot.slane %v2596, 4
    %v2616 = vrot.slane %v2598, 4
    %v2617 = vrot.slane %v2600, 4
    %v2618 = vrot.slane %v2602, 4
    %v2619 = vrot.slane %v2604, 4
    %v2620 = vrot.slane %v2606, 4
    %v2621 = vrot.slane %v2608, 4
    %v2622 = vrot.slane %v2610, 4
    %v2623 = vrot.slane %v2612, 4
    %v2624 = vrot.slane %v2614, 4
    %v2625 = vsel %vm591, %v2615, %v2596
    %v2626 = vsel %vm591, %v2616, %v2598
    %v2627 = vsel %vm591, %v2617, %v2600
    %v2628 = vsel %vm591, %v2618, %v2602
    %v2629 = vsel %vm591, %v2619, %v2604
    %v2630 = vsel %vm591, %v2620, %v2606
    %v2631 = vsel %vm591, %v2621, %v2608
    %v2632 = vsel %vm591, %v2622, %v2610
    %v2633 = vsel %vm591, %v2623, %v2612
    %v2634 = vsel %vm591, %v2624, %v2614
    %2645 = vst.msk [vmem:[#allocation2 + $0x28] sm:$0xff] %vm614, %v2625
    %2646 = vst.msk [vmem:[#allocation2 + $0x58] sm:$0xff] %vm614, %v2626
    %2647 = vst.msk [vmem:[#allocation2 + $0x88] sm:$0xff] %vm614, %v2627
    %2648 = vst.msk [vmem:[#allocation2 + $0xb8] sm:$0xff] %vm614, %v2628
    %2649 = vst.msk [vmem:[#allocation2 + $0xe8] sm:$0xff] %vm614, %v2629
    %2650 = vst.msk [vmem:[#allocation2 + $0x118] sm:$0xff] %vm614, %v2630
    %2651 = vst.msk [vmem:[#allocation2 + $0x148] sm:$0xff] %vm614, %v2631
    %2652 = vst.msk [vmem:[#allocation2 + $0x178] sm:$0xff] %vm614, %v2632
    %2653 = vst.msk [vmem:[#allocation2 + $0x1a8] sm:$0xff] %vm614, %v2633
    %2654 = vst.msk [vmem:[#allocation2 + $0x1d8] sm:$0xff] %vm614, %v2634
    %v2655 = vld [vmem:[%s0 + $0x1e] sm:$0xff]
    %v2656 = vld [vmem:[%s0 + $0x26] sm:$0xff]
    %v2657 = vld [vmem:[%s0 + $0x2e] sm:$0xff]
    %v2658 = vld [vmem:[%s0 + $0x36] sm:$0xff]
    %v2659 = vld [vmem:[%s0 + $0x3e] sm:$0xff]
    %v2660 = vld [vmem:[%s0 + $0x66] sm:$0xff]
    %v2661 = vld [vmem:[%s0 + $0x6e] sm:$0xff]
    %v2662 = vld [vmem:[%s0 + $0x76] sm:$0xff]
    %v2663 = vld [vmem:[%s0 + $0x7e] sm:$0xff]
    %v2664 = vld [vmem:[%s0 + $0x86] sm:$0xff]
    %v2665 = vpack.c.bf16 %v2656, %v2655
    %v2666 = vpack.c.bf16 %v2658, %v2657
    %v2667 = vpack.c.bf16 %v2659, %v2659
    %v2668 = vpack.c.bf16 %v2661, %v2660
    %v2669 = vpack.c.bf16 %v2663, %v2662
    %v2670 = vpack.c.bf16 %v2664, %v2664
    %v2677 = vunpack.c.l.b16 %v2665
    %v2678 = vunpack.c.h.b16 %v2665
    %v2679 = vunpack.c.l.b16 %v2666
    %v2680 = vunpack.c.h.b16 %v2666
    %v2681 = vunpack.c.l.b16 %v2667
    %v2682 = vunpack.c.l.b16 %v2668
    %v2683 = vunpack.c.h.b16 %v2668
    %v2684 = vunpack.c.l.b16 %v2669
    %v2685 = vunpack.c.h.b16 %v2669
    %v2686 = vunpack.c.l.b16 %v2670
    %v2687 = vpack.c.b16 %v2677, %v2677
    %v2688 = vpack.c.b16 %v2678, %v2678
    %v2689 = vpack.c.b16 %v2679, %v2679
    %v2690 = vpack.c.b16 %v2680, %v2680
    %v2691 = vpack.c.b16 %v2681, %v2681
    %v2692 = vpack.c.b16 %v2682, %v2682
    %v2693 = vpack.c.b16 %v2683, %v2683
    %v2694 = vpack.c.b16 %v2684, %v2684
    %v2695 = vpack.c.b16 %v2685, %v2685
    %v2696 = vpack.c.b16 %v2686, %v2686
    %2697 = vrot.lane.b32.xlu0 %v2687, 32
    %v2698 = vpop.permute.xlu0 %2697
    %2699 = vrot.lane.b32.xlu0 %v2688, 32
    %v2700 = vpop.permute.xlu0 %2699
    %2701 = vrot.lane.b32.xlu0 %v2689, 32
    %v2702 = vpop.permute.xlu0 %2701
    %2703 = vrot.lane.b32.xlu0 %v2690, 32
    %v2704 = vpop.permute.xlu0 %2703
    %2705 = vrot.lane.b32.xlu0 %v2691, 32
    %v2706 = vpop.permute.xlu0 %2705
    %2707 = vrot.lane.b32.xlu0 %v2692, 32
    %v2708 = vpop.permute.xlu0 %2707
    %2709 = vrot.lane.b32.xlu0 %v2693, 32
    %v2710 = vpop.permute.xlu0 %2709
    %2711 = vrot.lane.b32.xlu0 %v2694, 32
    %v2712 = vpop.permute.xlu0 %2711
    %2713 = vrot.lane.b32.xlu0 %v2695, 32
    %v2714 = vpop.permute.xlu0 %2713
    %2715 = vrot.lane.b32.xlu0 %v2696, 32
    %v2716 = vpop.permute.xlu0 %2715
    %2727 = vst.msk [vmem:[#allocation2 + $0x2c] sm:$0xf] %vm697, %v2698
    %2728 = vst.msk [vmem:[#allocation2 + $0x5c] sm:$0xf] %vm697, %v2700
    %2729 = vst.msk [vmem:[#allocation2 + $0x8c] sm:$0xf] %vm697, %v2702
    %2730 = vst.msk [vmem:[#allocation2 + $0xbc] sm:$0xf] %vm697, %v2704
    %2731 = vst.msk [vmem:[#allocation2 + $0xec] sm:$0xf] %vm697, %v2706
    %2732 = vst.msk [vmem:[#allocation2 + $0x11c] sm:$0xf] %vm697, %v2708
    %2733 = vst.msk [vmem:[#allocation2 + $0x14c] sm:$0xf] %vm697, %v2710
    %2734 = vst.msk [vmem:[#allocation2 + $0x17c] sm:$0xf] %vm697, %v2712
    %2735 = vst.msk [vmem:[#allocation2 + $0x1ac] sm:$0xf] %vm697, %v2714
    %2736 = vst.msk [vmem:[#allocation2 + $0x1dc] sm:$0xf] %vm697, %v2716
    %v2737 = vld [vmem:[%s0 + $0x1f] sm:$0xff]
    %v2738 = vld [vmem:[%s0 + $0x27] sm:$0xff]
    %v2739 = vld [vmem:[%s0 + $0x2f] sm:$0xff]
    %v2740 = vld [vmem:[%s0 + $0x37] sm:$0xff]
    %v2741 = vld [vmem:[%s0 + $0x3f] sm:$0xff]
    %v2742 = vld [vmem:[%s0 + $0x67] sm:$0xff]
    %v2743 = vld [vmem:[%s0 + $0x6f] sm:$0xff]
    %v2744 = vld [vmem:[%s0 + $0x77] sm:$0xff]
    %v2745 = vld [vmem:[%s0 + $0x7f] sm:$0xff]
    %v2746 = vld [vmem:[%s0 + $0x87] sm:$0xff]
    %v2747 = vpack.c.bf16 %v2738, %v2737
    %v2748 = vpack.c.bf16 %v2740, %v2739
    %v2749 = vpack.c.bf16 %v2741, %v2741
    %v2750 = vpack.c.bf16 %v2743, %v2742
    %v2751 = vpack.c.bf16 %v2745, %v2744
    %v2752 = vpack.c.bf16 %v2746, %v2746
    %v2759 = vunpack.c.l.b16 %v2747
    %v2760 = vunpack.c.h.b16 %v2747
    %v2761 = vunpack.c.l.b16 %v2748
    %v2762 = vunpack.c.h.b16 %v2748
    %v2763 = vunpack.c.l.b16 %v2749
    %v2764 = vunpack.c.l.b16 %v2750
    %v2765 = vunpack.c.h.b16 %v2750
    %v2766 = vunpack.c.l.b16 %v2751
    %v2767 = vunpack.c.h.b16 %v2751
    %v2768 = vunpack.c.l.b16 %v2752
    %v2769 = vpack.c.b16 %v2759, %v2759
    %v2770 = vpack.c.b16 %v2760, %v2760
    %v2771 = vpack.c.b16 %v2761, %v2761
    %v2772 = vpack.c.b16 %v2762, %v2762
    %v2773 = vpack.c.b16 %v2763, %v2763
    %v2774 = vpack.c.b16 %v2764, %v2764
    %v2775 = vpack.c.b16 %v2765, %v2765
    %v2776 = vpack.c.b16 %v2766, %v2766
    %v2777 = vpack.c.b16 %v2767, %v2767
    %v2778 = vpack.c.b16 %v2768, %v2768
    %2779 = vrot.lane.b32.xlu0 %v2769, 80
    %v2780 = vpop.permute.xlu0 %2779
    %2781 = vrot.lane.b32.xlu0 %v2770, 80
    %v2782 = vpop.permute.xlu0 %2781
    %2783 = vrot.lane.b32.xlu0 %v2771, 80
    %v2784 = vpop.permute.xlu0 %2783
    %2785 = vrot.lane.b32.xlu0 %v2772, 80
    %v2786 = vpop.permute.xlu0 %2785
    %2787 = vrot.lane.b32.xlu0 %v2773, 80
    %v2788 = vpop.permute.xlu0 %2787
    %2789 = vrot.lane.b32.xlu0 %v2774, 80
    %v2790 = vpop.permute.xlu0 %2789
    %2791 = vrot.lane.b32.xlu0 %v2775, 80
    %v2792 = vpop.permute.xlu0 %2791
    %2793 = vrot.lane.b32.xlu0 %v2776, 80
    %v2794 = vpop.permute.xlu0 %2793
    %2795 = vrot.lane.b32.xlu0 %v2777, 80
    %v2796 = vpop.permute.xlu0 %2795
    %2797 = vrot.lane.b32.xlu0 %v2778, 80
    %v2798 = vpop.permute.xlu0 %2797
    %2809 = vst.msk [vmem:[#allocation2 + $0x2c] sm:$0xf] %vm780, %v2780
    %2810 = vst.msk [vmem:[#allocation2 + $0x5c] sm:$0xf] %vm780, %v2782
    %2811 = vst.msk [vmem:[#allocation2 + $0x8c] sm:$0xf] %vm780, %v2784
    %2812 = vst.msk [vmem:[#allocation2 + $0xbc] sm:$0xf] %vm780, %v2786
    %2813 = vst.msk [vmem:[#allocation2 + $0xec] sm:$0xf] %vm780, %v2788
    %2814 = vst.msk [vmem:[#allocation2 + $0x11c] sm:$0xf] %vm780, %v2790
    %2815 = vst.msk [vmem:[#allocation2 + $0x14c] sm:$0xf] %vm780, %v2792
    %2816 = vst.msk [vmem:[#allocation2 + $0x17c] sm:$0xf] %vm780, %v2794
    %2817 = vst.msk [vmem:[#allocation2 + $0x1ac] sm:$0xf] %vm780, %v2796
    %2818 = vst.msk [vmem:[#allocation2 + $0x1dc] sm:$0xf] %vm780, %v2798
    %v2819 = vld [vmem:[#allocation2] sm:$0xff]
    %v2820 = vld [vmem:[#allocation2 + $0x8] sm:$0xff]
    %v2821 = vld [vmem:[#allocation2 + $0x10] sm:$0xff]
    %v2822 = vld [vmem:[#allocation2 + $0x18] sm:$0xff]
    %v2823 = vld [vmem:[#allocation2 + $0x20] sm:$0xff]
    %v2824 = vld [vmem:[#allocation2 + $0x28] sm:$0xff]
    %v2825 = vld [vmem:[#allocation2 + $0x30] sm:$0xff]
    %v2826 = vld [vmem:[#allocation2 + $0x38] sm:$0xff]
    %v2827 = vld [vmem:[#allocation2 + $0x40] sm:$0xff]
    %v2828 = vld [vmem:[#allocation2 + $0x48] sm:$0xff]
    %v2829 = vld [vmem:[#allocation2 + $0x50] sm:$0xff]
    %v2830 = vld [vmem:[#allocation2 + $0x58] sm:$0xff]
    %v2831 = vld [vmem:[#allocation2 + $0x60] sm:$0xff]
    %v2832 = vld [vmem:[#allocation2 + $0x68] sm:$0xff]
    %v2833 = vld [vmem:[#allocation2 + $0x70] sm:$0xff]
    %v2834 = vld [vmem:[#allocation2 + $0x78] sm:$0xff]
    %v2835 = vld [vmem:[#allocation2 + $0x80] sm:$0xff]
    %v2836 = vld [vmem:[#allocation2 + $0x88] sm:$0xff]
    %v2837 = vld [vmem:[#allocation2 + $0x90] sm:$0xff]
    %v2838 = vld [vmem:[#allocation2 + $0x98] sm:$0xff]
    %v2839 = vld [vmem:[#allocation2 + $0xa0] sm:$0xff]
    %v2840 = vld [vmem:[#allocation2 + $0xa8] sm:$0xff]
    %v2841 = vld [vmem:[#allocation2 + $0xb0] sm:$0xff]
    %v2842 = vld [vmem:[#allocation2 + $0xb8] sm:$0xff]
    %v2843 = vld [vmem:[#allocation2 + $0xc0] sm:$0xff]
    %v2844 = vld [vmem:[#allocation2 + $0xc8] sm:$0xff]
    %v2845 = vld [vmem:[#allocation2 + $0xd0] sm:$0xff]
    %v2846 = vld [vmem:[#allocation2 + $0xd8] sm:$0xff]
    %v2847 = vld [vmem:[#allocation2 + $0xe0] sm:$0xff]
    %v2848 = vld [vmem:[#allocation2 + $0xe8] sm:$0xff]
    %v2849 = vld [vmem:[#allocation2 + $0xf0] sm:$0xff]
    %v2850 = vld [vmem:[#allocation2 + $0xf8] sm:$0xff]
    %v2851 = vld [vmem:[#allocation2 + $0x100] sm:$0xff]
    %v2852 = vld [vmem:[#allocation2 + $0x108] sm:$0xff]
    %v2853 = vld [vmem:[#allocation2 + $0x110] sm:$0xff]
    %v2854 = vld [vmem:[#allocation2 + $0x118] sm:$0xff]
    %v2855 = vld [vmem:[#allocation2 + $0x120] sm:$0xff]
    %v2856 = vld [vmem:[#allocation2 + $0x128] sm:$0xff]
    %v2857 = vld [vmem:[#allocation2 + $0x130] sm:$0xff]
    %v2858 = vld [vmem:[#allocation2 + $0x138] sm:$0xff]
    %v2859 = vld [vmem:[#allocation2 + $0x140] sm:$0xff]
    %v2860 = vld [vmem:[#allocation2 + $0x148] sm:$0xff]
    %v2861 = vld [vmem:[#allocation2 + $0x150] sm:$0xff]
    %v2862 = vld [vmem:[#allocation2 + $0x158] sm:$0xff]
    %v2863 = vld [vmem:[#allocation2 + $0x160] sm:$0xff]
    %v2864 = vld [vmem:[#allocation2 + $0x168] sm:$0xff]
    %v2865 = vld [vmem:[#allocation2 + $0x170] sm:$0xff]
    %v2866 = vld [vmem:[#allocation2 + $0x178] sm:$0xff]
    %v2867 = vld [vmem:[#allocation2 + $0x180] sm:$0xff]
    %v2868 = vld [vmem:[#allocation2 + $0x188] sm:$0xff]
    %v2869 = vld [vmem:[#allocation2 + $0x190] sm:$0xff]
    %v2870 = vld [vmem:[#allocation2 + $0x198] sm:$0xff]
    %v2871 = vld [vmem:[#allocation2 + $0x1a0] sm:$0xff]
    %v2872 = vld [vmem:[#allocation2 + $0x1a8] sm:$0xff]
    %v2873 = vld [vmem:[#allocation2 + $0x1b0] sm:$0xff]
    %v2874 = vld [vmem:[#allocation2 + $0x1b8] sm:$0xff]
    %v2875 = vld [vmem:[#allocation2 + $0x1c0] sm:$0xff]
    %v2876 = vld [vmem:[#allocation2 + $0x1c8] sm:$0xff]
    %v2877 = vld [vmem:[#allocation2 + $0x1d0] sm:$0xff]
    %v2878 = vld [vmem:[#allocation2 + $0x1d8] sm:$0xff]
    %v2879 = vld [vmem:[#allocation3] sm:$0xff]
    %v2880 = vld [vmem:[#allocation3 + $0x8] sm:$0xff]
    %v2881 = vld [vmem:[#allocation3 + $0x10] sm:$0xff]
    %v2882 = vld [vmem:[#allocation3 + $0x18] sm:$0xff]
    %v2883 = vld [vmem:[#allocation3 + $0x20] sm:$0xff]
    %v2884 = vld [vmem:[#allocation3 + $0x28] sm:$0xff]
    %v2885 = vld [vmem:[#allocation3 + $0x30] sm:$0xff]
    %v2886 = vld [vmem:[#allocation3 + $0x38] sm:$0xff]
    %v2887 = vld [vmem:[#allocation3 + $0x40] sm:$0xff]
    %v2888 = vld [vmem:[#allocation3 + $0x48] sm:$0xff]
    %v2889 = vld [vmem:[#allocation3 + $0x50] sm:$0xff]
    %v2890 = vld [vmem:[#allocation3 + $0x58] sm:$0xff]
    %v2891 = vld [vmem:[#allocation3 + $0x60] sm:$0xff]
    %v2892 = vld [vmem:[#allocation3 + $0x68] sm:$0xff]
    %v2893 = vld [vmem:[#allocation3 + $0x70] sm:$0xff]
    %v2894 = vld [vmem:[#allocation3 + $0x78] sm:$0xff]
    %v2895 = vld [vmem:[#allocation3 + $0x80] sm:$0xff]
    %v2896 = vld [vmem:[#allocation3 + $0x88] sm:$0xff]
    %v2897 = vld [vmem:[#allocation3 + $0x90] sm:$0xff]
    %v2898 = vld [vmem:[#allocation3 + $0x98] sm:$0xff]
    %v2899 = vld [vmem:[#allocation3 + $0xa0] sm:$0xff]
    %v2900 = vld [vmem:[#allocation3 + $0xa8] sm:$0xff]
    %v2901 = vld [vmem:[#allocation3 + $0xb0] sm:$0xff]
    %v2902 = vld [vmem:[#allocation3 + $0xb8] sm:$0xff]
    %v2903 = vld [vmem:[#allocation3 + $0xc0] sm:$0xff]
    %v2904 = vld [vmem:[#allocation3 + $0xc8] sm:$0xff]
    %v2905 = vld [vmem:[#allocation3 + $0xd0] sm:$0xff]
    %v2906 = vld [vmem:[#allocation3 + $0xd8] sm:$0xff]
    %v2907 = vld [vmem:[#allocation3 + $0xe0] sm:$0xff]
    %v2908 = vld [vmem:[#allocation3 + $0xe8] sm:$0xff]
    %v2909 = vld [vmem:[#allocation3 + $0xf0] sm:$0xff]
    %v2910 = vld [vmem:[#allocation3 + $0xf8] sm:$0xff]
    %v2921 = vunpack.c.l.b16 %v2819
    %v2922 = vunpack.c.h.b16 %v2819
    %v2923 = vunpack.c.l.b16 %v2825
    %v2924 = vunpack.c.h.b16 %v2825
    %v2925 = vunpack.c.l.b16 %v2831
    %v2926 = vunpack.c.h.b16 %v2831
    %v2927 = vunpack.c.l.b16 %v2837
    %v2928 = vunpack.c.h.b16 %v2837
    %v2929 = vunpack.c.l.b16 %v2843
    %v2930 = vunpack.c.h.b16 %v2843
    %v2931 = vunpack.c.l.b16 %v2849
    %v2932 = vunpack.c.h.b16 %v2849
    %v2933 = vunpack.c.l.b16 %v2855
    %v2934 = vunpack.c.h.b16 %v2855
    %v2935 = vunpack.c.l.b16 %v2861
    %v2936 = vunpack.c.h.b16 %v2861
    %v2937 = vunpack.c.l.b16 %v2867
    %v2938 = vunpack.c.h.b16 %v2867
    %v2939 = vunpack.c.l.b16 %v2873
    %v2940 = vunpack.c.h.b16 %v2873
    %v2941 = vpack.c.b16 %v2923, %v2921
    %v2942 = vpack.c.b16 %v2924, %v2922
    %v2943 = vpack.c.b16 %v2927, %v2925
    %v2944 = vpack.c.b16 %v2928, %v2926
    %v2945 = vpack.c.b16 %v2931, %v2929
    %v2946 = vpack.c.b16 %v2932, %v2930
    %v2947 = vpack.c.b16 %v2935, %v2933
    %v2948 = vpack.c.b16 %v2936, %v2934
    %v2949 = vpack.c.b16 %v2939, %v2937
    %v2950 = vpack.c.b16 %v2940, %v2938
    %v2993 = vunpack.c.l.b16 %v2879
    %v2994 = vunpack.c.h.b16 %v2879
    %v2995 = vunpack.c.l.b16 %v2880
    %v2996 = vunpack.c.h.b16 %v2880
    %v2997 = vunpack.c.l.b16 %v2881
    %v2998 = vunpack.c.h.b16 %v2881
    %v2999 = vunpack.c.l.b16 %v2882
    %v3000 = vunpack.c.h.b16 %v2882
    %v3001 = vunpack.c.l.b16 %v2883
    %v3002 = vunpack.c.h.b16 %v2883
    %v3003 = vunpack.c.l.b16 %v2884
    %v3004 = vunpack.c.h.b16 %v2884
    %v3005 = vunpack.c.l.b16 %v2885
    %v3006 = vunpack.c.h.b16 %v2885
    %v3007 = vunpack.c.l.b16 %v2886
    %v3008 = vunpack.c.h.b16 %v2886
    %v3009 = vunpack.c.l.b16 %v2887
    %v3010 = vunpack.c.h.b16 %v2887
    %v3011 = vunpack.c.l.b16 %v2888
    %v3012 = vunpack.c.h.b16 %v2888
    %v3013 = vunpack.c.l.b16 %v2889
    %v3014 = vunpack.c.h.b16 %v2889
    %v3015 = vunpack.c.l.b16 %v2890
    %v3016 = vunpack.c.h.b16 %v2890
    %v3017 = vunpack.c.l.b16 %v2891
    %v3018 = vunpack.c.h.b16 %v2891
    %v3019 = vunpack.c.l.b16 %v2892
    %v3020 = vunpack.c.h.b16 %v2892
    %v3021 = vunpack.c.l.b16 %v2893
    %v3022 = vunpack.c.h.b16 %v2893
    %v3023 = vunpack.c.l.b16 %v2894
    %v3024 = vunpack.c.h.b16 %v2894
    %v3025 = vunpack.c.l.b16 %v2895
    %v3026 = vunpack.c.h.b16 %v2895
    %v3027 = vunpack.c.l.b16 %v2896
    %v3028 = vunpack.c.h.b16 %v2896
    %v3029 = vunpack.c.l.b16 %v2897
    %v3030 = vunpack.c.h.b16 %v2897
    %v3031 = vunpack.c.l.b16 %v2898
    %v3032 = vunpack.c.h.b16 %v2898
    %v3033 = vunpack.c.l.b16 %v2899
    %v3034 = vunpack.c.h.b16 %v2899
    %v3035 = vunpack.c.l.b16 %v2900
    %v3036 = vunpack.c.h.b16 %v2900
    %v3037 = vunpack.c.l.b16 %v2901
    %v3038 = vunpack.c.h.b16 %v2901
    %v3039 = vunpack.c.l.b16 %v2902
    %v3040 = vunpack.c.h.b16 %v2902
    %v3041 = vunpack.c.l.b16 %v2903
    %v3042 = vunpack.c.h.b16 %v2903
    %v3043 = vunpack.c.l.b16 %v2904
    %v3044 = vunpack.c.h.b16 %v2904
    %v3045 = vunpack.c.l.b16 %v2905
    %v3046 = vunpack.c.h.b16 %v2905
    %v3047 = vunpack.c.l.b16 %v2906
    %v3048 = vunpack.c.h.b16 %v2906
    %v3049 = vunpack.c.l.b16 %v2907
    %v3050 = vunpack.c.h.b16 %v2907
    %v3051 = vunpack.c.l.b16 %v2908
    %v3052 = vunpack.c.h.b16 %v2908
    %v3053 = vunpack.c.l.b16 %v2909
    %v3054 = vunpack.c.h.b16 %v2909
    %v3055 = vunpack.c.l.b16 %v2910
    %v3056 = vunpack.c.h.b16 %v2910
    %v3057 = vpack.c.b16 %v2995, %v2993
    %v3058 = vpack.c.b16 %v2996, %v2994
    %v3059 = vpack.c.b16 %v2999, %v2997
    %v3060 = vpack.c.b16 %v3000, %v2998
    %v3061 = vpack.c.b16 %v3003, %v3001
    %v3062 = vpack.c.b16 %v3004, %v3002
    %v3063 = vpack.c.b16 %v3007, %v3005
    %v3064 = vpack.c.b16 %v3008, %v3006
    %v3065 = vpack.c.b16 %v3011, %v3009
    %v3066 = vpack.c.b16 %v3012, %v3010
    %v3067 = vpack.c.b16 %v3015, %v3013
    %v3068 = vpack.c.b16 %v3016, %v3014
    %v3069 = vpack.c.b16 %v3019, %v3017
    %v3070 = vpack.c.b16 %v3020, %v3018
    %v3071 = vpack.c.b16 %v3023, %v3021
    %v3072 = vpack.c.b16 %v3024, %v3022
    %v3073 = vpack.c.b16 %v3027, %v3025
    %v3074 = vpack.c.b16 %v3028, %v3026
    %v3075 = vpack.c.b16 %v3031, %v3029
    %v3076 = vpack.c.b16 %v3032, %v3030
    %v3077 = vpack.c.b16 %v3035, %v3033
    %v3078 = vpack.c.b16 %v3036, %v3034
    %v3079 = vpack.c.b16 %v3039, %v3037
    %v3080 = vpack.c.b16 %v3040, %v3038
    %v3081 = vpack.c.b16 %v3043, %v3041
    %v3082 = vpack.c.b16 %v3044, %v3042
    %v3083 = vpack.c.b16 %v3047, %v3045
    %v3084 = vpack.c.b16 %v3048, %v3046
    %v3085 = vpack.c.b16 %v3051, %v3049
    %v3086 = vpack.c.b16 %v3052, %v3050
    %v3087 = vpack.c.b16 %v3055, %v3053
    %v3088 = vpack.c.b16 %v3056, %v3054
    %3121 = vmatprep.subr.bf16.mxu0 %v3058
    %3122 = vmatpush1.bf16.msra.mxu0 %v3057
    %3123 = vmatprep.subr.bf16.mxu0 %v3060
    %3124 = vmatpush1.bf16.msra.mxu0 %v3059
    %3125 = vmatprep.subr.bf16.mxu0 %v3062
    %3126 = vmatpush1.bf16.msra.mxu0 %v3061
    %3127 = vmatprep.subr.bf16.mxu0 %v3064
    %3128 = vmatpush1.bf16.msra.mxu0 %v3063
    %3129 = vmatprep.subr.bf16.mxu0 %v3066
    %3130 = vmatpush1.bf16.msra.mxu0 %v3065
    %3131 = vmatprep.subr.bf16.mxu0 %v3068
    %3132 = vmatpush1.bf16.msra.mxu0 %v3067
    %3133 = vmatprep.subr.bf16.mxu0 %v3070
    %3134 = vmatpush1.bf16.msra.mxu0 %v3069
    %3135 = vmatprep.subr.bf16.mxu0 %v3072
    %3136 = vmatpush1.bf16.msra.mxu0 %v3071
    %3137 = vmatprep.subr.bf16.mxu0 %v3074
    %3138 = vmatpush1.bf16.msra.mxu0 %v3073
    %3139 = vmatprep.subr.bf16.mxu0 %v3076
    %3140 = vmatpush1.bf16.msra.mxu0 %v3075
    %3141 = vmatprep.subr.bf16.mxu0 %v3078
    %3142 = vmatpush1.bf16.msra.mxu0 %v3077
    %3143 = vmatprep.subr.bf16.mxu0 %v3080
    %3144 = vmatpush1.bf16.msra.mxu0 %v3079
    %3145 = vmatprep.subr.bf16.mxu0 %v3082
    %3146 = vmatpush1.bf16.msra.mxu0 %v3081
    %3147 = vmatprep.subr.bf16.mxu0 %v3084
    %3148 = vmatpush1.bf16.msra.mxu0 %v3083
    %3149 = vmatprep.subr.bf16.mxu0 %v3086
    %3150 = vmatpush1.bf16.msra.mxu0 %v3085
    %3151 = vmatprep.subr.bf16.mxu0 %v3088
    %3152 = vmatpush1.bf16.msra.mxu0 %v3087
    %3153 = vmatprep.mubr.bf16.mxu0 %v2942
    %3154 = vmatmul.mubr.bf16.gmra.mrb[0].mxu0 %v2941
    %v3155 = vpop.f32.mrb[0].mxu0
    %v3156 = vadd.f32 0.0, %v3155
    %v3157 = vpop.f32.mrb[0].mxu0
    %v3158 = vadd.f32 0.0, %v3157
    %v3159 = vpop.f32.mrb[0].mxu0
    %v3160 = vadd.f32 0.0, %v3159
    %v3161 = vpop.f32.mrb[0].mxu0
    %v3162 = vadd.f32 0.0, %v3161
    %3163 = vmatprep.mubr.bf16.mxu0 %v2944
    %3164 = vmatmul.mubr.bf16.gmra.mrb[0].mxu0 %v2943
    %v3165 = vpop.f32.mrb[0].mxu0
    %v3166 = vadd.f32 0.0, %v3165
    %v3167 = vpop.f32.mrb[0].mxu0
    %v3168 = vadd.f32 0.0, %v3167
    %v3169 = vpop.f32.mrb[0].mxu0
    %v3170 = vadd.f32 0.0, %v3169
    %v3171 = vpop.f32.mrb[0].mxu0
    %v3172 = vadd.f32 0.0, %v3171
    %3173 = vmatprep.mubr.bf16.mxu0 %v2946
    %3174 = vmatmul.mubr.bf16.gmra.mrb[0].mxu0 %v2945
    %v3175 = vpop.f32.mrb[0].mxu0
    %v3176 = vadd.f32 0.0, %v3175
    %v3177 = vpop.f32.mrb[0].mxu0
    %v3178 = vadd.f32 0.0, %v3177
    %v3179 = vpop.f32.mrb[0].mxu0
    %v3180 = vadd.f32 0.0, %v3179
    %v3181 = vpop.f32.mrb[0].mxu0
    %v3182 = vadd.f32 0.0, %v3181
    %3183 = vmatprep.mubr.bf16.mxu0 %v2948
    %3184 = vmatmul.mubr.bf16.gmra.mrb[0].mxu0 %v2947
    %v3185 = vpop.f32.mrb[0].mxu0
    %v3186 = vadd.f32 0.0, %v3185
    %v3187 = vpop.f32.mrb[0].mxu0
    %v3188 = vadd.f32 0.0, %v3187
    %v3189 = vpop.f32.mrb[0].mxu0
    %v3190 = vadd.f32 0.0, %v3189
    %v3191 = vpop.f32.mrb[0].mxu0
    %v3192 = vadd.f32 0.0, %v3191
    %3193 = vmatprep.mubr.bf16.mxu0 %v2950
    %3194 = vmatmul.mubr.bf16.gmra.mrb[0].mxu0 %v2949
    %v3195 = vpop.f32.mrb[0].mxu0
    %v3196 = vadd.f32 0.0, %v3195
    %v3197 = vpop.f32.mrb[0].mxu0
    %v3198 = vadd.f32 0.0, %v3197
    %v3199 = vpop.f32.mrb[0].mxu0
    %v3200 = vadd.f32 0.0, %v3199
    %v3201 = vpop.f32.mrb[0].mxu0
    %v3202 = vadd.f32 0.0, %v3201
    %3203 = vdwg.mxu0
    %v3204 = vld [vmem:[#allocation6] sm:$0xf]
    %v3205 = vld [vmem:[#allocation6 + $0x4] sm:$0xf]
    %v3206 = vld [vmem:[#allocation6 + $0x8] sm:$0xf]
    %v3207 = vld [vmem:[#allocation6 + $0xc] sm:$0xf]
    %v3208 = vld [vmem:[#allocation6 + $0x10] sm:$0xf]
    %v3209 = vld [vmem:[#allocation6 + $0x14] sm:$0xf]
    %v3210 = vld [vmem:[#allocation6 + $0x18] sm:$0xf]
    %v3211 = vld [vmem:[#allocation6 + $0x1c] sm:$0xf]
    %v3212 = vld [vmem:[#allocation6 + $0x20] sm:$0xf]
    %v3213 = vld [vmem:[#allocation6 + $0x24] sm:$0xf]
    %v3214 = vld [vmem:[#allocation6 + $0x28] sm:$0xf]
    %v3215 = vld [vmem:[#allocation6 + $0x2c] sm:$0xf]
    %v3216 = vld [vmem:[#allocation6 + $0x30] sm:$0xf]
    %v3217 = vld [vmem:[#allocation6 + $0x34] sm:$0xf]
    %v3218 = vld [vmem:[#allocation6 + $0x38] sm:$0xf]
    %v3219 = vld [vmem:[#allocation6 + $0x3c] sm:$0xf]
    %v3220 = vld [vmem:[#allocation6 + $0x40] sm:$0xf]
    %v3221 = vld [vmem:[#allocation6 + $0x44] sm:$0xf]
    %v3222 = vld [vmem:[#allocation6 + $0x48] sm:$0xf]
    %v3223 = vld [vmem:[#allocation6 + $0x4c] sm:$0xf]
    %v3224 = vld [vmem:[#allocation6 + $0x50] sm:$0xf]
    %v3225 = vld [vmem:[#allocation6 + $0x54] sm:$0xf]
    %v3226 = vld [vmem:[#allocation6 + $0x58] sm:$0xf]
    %v3227 = vld [vmem:[#allocation6 + $0x5c] sm:$0xf]
    %v3228 = vld [vmem:[#allocation6 + $0x60] sm:$0xf]
    %v3229 = vld [vmem:[#allocation6 + $0x64] sm:$0xf]
    %v3230 = vld [vmem:[#allocation6 + $0x68] sm:$0xf]
    %v3231 = vld [vmem:[#allocation6 + $0x6c] sm:$0xf]
    %v3232 = vld [vmem:[#allocation6 + $0x70] sm:$0xf]
    %v3233 = vld [vmem:[#allocation6 + $0x74] sm:$0xf]
    %v3234 = vld [vmem:[#allocation6 + $0x78] sm:$0xf]
    %v3235 = vld [vmem:[#allocation6 + $0x7c] sm:$0xf]
    %v3236 = vld [vmem:[#allocation6 + $0x80] sm:$0xf]
    %v3237 = vld [vmem:[#allocation6 + $0x84] sm:$0xf]
    %v3238 = vld [vmem:[#allocation6 + $0x88] sm:$0xf]
    %v3239 = vld [vmem:[#allocation6 + $0x8c] sm:$0xf]
    %v3240 = vld [vmem:[#allocation6 + $0x90] sm:$0xf]
    %v3241 = vld [vmem:[#allocation6 + $0x94] sm:$0xf]
    %v3242 = vld [vmem:[#allocation6 + $0x98] sm:$0xf]
    %v3243 = vld [vmem:[#allocation6 + $0x9c] sm:$0xf]
    %v3244 = vld [vmem:[#allocation6 + $0xa0] sm:$0xf]
    %v3245 = vld [vmem:[#allocation6 + $0xa4] sm:$0xf]
    %v3246 = vld [vmem:[#allocation6 + $0xa8] sm:$0xf]
    %v3247 = vld [vmem:[#allocation6 + $0xac] sm:$0xf]
    %v3248 = vld [vmem:[#allocation6 + $0xb0] sm:$0xf]
    %v3249 = vld [vmem:[#allocation6 + $0xb4] sm:$0xf]
    %v3250 = vld [vmem:[#allocation6 + $0xb8] sm:$0xf]
    %v3251 = vld [vmem:[#allocation6 + $0xbc] sm:$0xf]
    %v3262 = vunpack.c.l.b16 %v2820
    %v3263 = vunpack.c.l.b16 %v2826
    %v3264 = vunpack.c.l.b16 %v2832
    %v3265 = vunpack.c.l.b16 %v2838
    %v3266 = vunpack.c.l.b16 %v2844
    %v3267 = vunpack.c.l.b16 %v2850
    %v3268 = vunpack.c.l.b16 %v2856
    %v3269 = vunpack.c.l.b16 %v2862
    %v3270 = vunpack.c.l.b16 %v2868
    %v3271 = vunpack.c.l.b16 %v2874
    %v3272 = vpack.c.b16 %v3263, %v3262
    %v3273 = vpack.c.b16 %v3265, %v3264
    %v3274 = vpack.c.b16 %v3267, %v3266
    %v3275 = vpack.c.b16 %v3269, %v3268
    %v3276 = vpack.c.b16 %v3271, %v3270
    %v3330 = vunpack.c.l.b16 %v3204
    %v3331 = vunpack.c.l.b16 %v3205
    %v3332 = vunpack.c.l.b16 %v3206
    %v3333 = vunpack.c.l.b16 %v3207
    %v3334 = vunpack.c.l.b16 %v3208
    %v3335 = vunpack.c.l.b16 %v3209
    %v3336 = vunpack.c.l.b16 %v3210
    %v3337 = vunpack.c.l.b16 %v3211
    %v3338 = vunpack.c.l.b16 %v3212
    %v3339 = vunpack.c.l.b16 %v3213
    %v3340 = vunpack.c.l.b16 %v3214
    %v3341 = vunpack.c.l.b16 %v3215
    %v3342 = vunpack.c.l.b16 %v3216
    %v3343 = vunpack.c.l.b16 %v3217
    %v3344 = vunpack.c.l.b16 %v3218
    %v3345 = vunpack.c.l.b16 %v3219
    %v3346 = vunpack.c.l.b16 %v3220
    %v3347 = vunpack.c.l.b16 %v3221
    %v3348 = vunpack.c.l.b16 %v3222
    %v3349 = vunpack.c.l.b16 %v3223
    %v3350 = vunpack.c.l.b16 %v3224
    %v3351 = vunpack.c.l.b16 %v3225
    %v3352 = vunpack.c.l.b16 %v3226
    %v3353 = vunpack.c.l.b16 %v3227
    %v3354 = vunpack.c.l.b16 %v3228
    %v3355 = vunpack.c.l.b16 %v3229
    %v3356 = vunpack.c.l.b16 %v3230
    %v3357 = vunpack.c.l.b16 %v3231
    %v3358 = vunpack.c.l.b16 %v3232
    %v3359 = vunpack.c.l.b16 %v3233
    %v3360 = vunpack.c.l.b16 %v3234
    %v3361 = vunpack.c.l.b16 %v3235
    %v3362 = vunpack.c.l.b16 %v3236
    %v3363 = vunpack.c.l.b16 %v3237
    %v3364 = vunpack.c.l.b16 %v3238
    %v3365 = vunpack.c.l.b16 %v3239
    %v3366 = vunpack.c.l.b16 %v3240
    %v3367 = vunpack.c.l.b16 %v3241
    %v3368 = vunpack.c.l.b16 %v3242
    %v3369 = vunpack.c.l.b16 %v3243
    %v3370 = vunpack.c.l.b16 %v3244
    %v3371 = vunpack.c.l.b16 %v3245
    %v3372 = vunpack.c.l.b16 %v3246
    %v3373 = vunpack.c.l.b16 %v3247
    %v3374 = vunpack.c.l.b16 %v3248
    %v3375 = vunpack.c.l.b16 %v3249
    %v3376 = vunpack.c.l.b16 %v3250
    %v3377 = vunpack.c.l.b16 %v3251
    %v3378 = vpack.c.b16 %v3331, %v3330
    %v3379 = vpack.c.b16 %v3333, %v3332
    %v3380 = vpack.c.b16 %v3335, %v3334
    %v3381 = vpack.c.b16 %v3337, %v3336
    %v3382 = vpack.c.b16 %v3339, %v3338
    %v3383 = vpack.c.b16 %v3341, %v3340
    %v3384 = vpack.c.b16 %v3343, %v3342
    %v3385 = vpack.c.b16 %v3345, %v3344
    %v3386 = vpack.c.b16 %v3347, %v3346
    %v3387 = vpack.c.b16 %v3349, %v3348
    %v3388 = vpack.c.b16 %v3351, %v3350
    %v3389 = vpack.c.b16 %v3353, %v3352
    %v3390 = vpack.c.b16 %v3355, %v3354
    %v3391 = vpack.c.b16 %v3357, %v3356
    %v3392 = vpack.c.b16 %v3359, %v3358
    %v3393 = vpack.c.b16 %v3361, %v3360
    %v3394 = vpack.c.b16 %v3363, %v3362
    %v3395 = vpack.c.b16 %v3365, %v3364
    %v3396 = vpack.c.b16 %v3367, %v3366
    %v3397 = vpack.c.b16 %v3369, %v3368
    %v3398 = vpack.c.b16 %v3371, %v3370
    %v3399 = vpack.c.b16 %v3373, %v3372
    %v3400 = vpack.c.b16 %v3375, %v3374
    %v3401 = vpack.c.b16 %v3377, %v3376
    %3426 = vmatprep.subr.bf16.mxu0 0
    %3427 = vmatpush1.bf16.msra.mxu0 %v3378
    %3428 = vmatprep.subr.bf16.mxu0 0
    %3429 = vmatpush1.bf16.msra.mxu0 %v3379
    %3430 = vmatprep.subr.bf16.mxu0 0
    %3431 = vmatpush1.bf16.msra.mxu0 %v3380
    %3432 = vmatprep.subr.bf16.mxu0 0
    %3433 = vmatpush1.bf16.msra.mxu0 %v3381
    %3434 = vmatprep.subr.bf16.mxu0 0
    %3435 = vmatpush1.bf16.msra.mxu0 %v3382
    %3436 = vmatprep.subr.bf16.mxu0 0
    %3437 = vmatpush1.bf16.msra.mxu0 %v3383
    %3438 = vmatprep.subr.bf16.mxu0 0
    %3439 = vmatpush1.bf16.msra.mxu0 %v3384
    %3440 = vmatprep.subr.bf16.mxu0 0
    %3441 = vmatpush1.bf16.msra.mxu0 %v3385
    %3442 = vmatprep.subr.bf16.mxu0 0
    %3443 = vmatpush1.bf16.msra.mxu0 %v3386
    %3444 = vmatprep.subr.bf16.mxu0 0
    %3445 = vmatpush1.bf16.msra.mxu0 %v3387
    %3446 = vmatprep.subr.bf16.mxu0 0
    %3447 = vmatpush1.bf16.msra.mxu0 %v3388
    %3448 = vmatprep.subr.bf16.mxu0 0
    %3449 = vmatpush1.bf16.msra.mxu0 %v3389
    %3450 = vmatprep.subr.bf16.mxu0 0
    %3451 = vmatpush1.bf16.msra.mxu0 %v3390
    %3452 = vmatprep.subr.bf16.mxu0 0
    %3453 = vmatpush1.bf16.msra.mxu0 %v3391
    %3454 = vmatprep.subr.bf16.mxu0 0
    %3455 = vmatpush1.bf16.msra.mxu0 %v3392
    %3456 = vmatprep.subr.bf16.mxu0 0
    %3457 = vmatpush1.bf16.msra.mxu0 %v3393
    %3458 = vmatprep.mubr.bf16.mxu0 %v2942
    %3459 = vmatmul.mubr.bf16.gmra.mrb[0].mxu0 %v2941
    %v3460 = vpop.f32.mrb[0].mxu0
    %v3461 = vadd.f32 0.0, %v3460
    %v3462 = vpop.f32.mrb[0].mxu0
    %v3463 = vpop.f32.mrb[0].mxu0
    %v3464 = vadd.f32 0.0, %v3463
    %v3465 = vpop.f32.mrb[0].mxu0
    %3466 = vmatprep.mubr.bf16.mxu0 %v2944
    %3467 = vmatmul.mubr.bf16.gmra.mrb[0].mxu0 %v2943
    %v3468 = vpop.f32.mrb[0].mxu0
    %v3469 = vadd.f32 0.0, %v3468
    %v3470 = vpop.f32.mrb[0].mxu0
    %v3471 = vpop.f32.mrb[0].mxu0
    %v3472 = vadd.f32 0.0, %v3471
    %v3473 = vpop.f32.mrb[0].mxu0
    %3474 = vmatprep.mubr.bf16.mxu0 %v2946
    %3475 = vmatmul.mubr.bf16.gmra.mrb[0].mxu0 %v2945
    %v3476 = vpop.f32.mrb[0].mxu0
    %v3477 = vadd.f32 0.0, %v3476
    %v3478 = vpop.f32.mrb[0].mxu0
    %v3479 = vpop.f32.mrb[0].mxu0
    %v3480 = vadd.f32 0.0, %v3479
    %v3481 = vpop.f32.mrb[0].mxu0
    %3482 = vmatprep.mubr.bf16.mxu0 %v2948
    %3483 = vmatmul.mubr.bf16.gmra.mrb[0].mxu0 %v2947
    %v3484 = vpop.f32.mrb[0].mxu0
    %v3485 = vadd.f32 0.0, %v3484
    %v3486 = vpop.f32.mrb[0].mxu0
    %v3487 = vpop.f32.mrb[0].mxu0
    %v3488 = vadd.f32 0.0, %v3487
    %v3489 = vpop.f32.mrb[0].mxu0
    %3490 = vmatprep.mubr.bf16.mxu0 %v2950
    %3491 = vmatmul.mubr.bf16.gmra.mrb[0].mxu0 %v2949
    %v3492 = vpop.f32.mrb[0].mxu0
    %v3493 = vadd.f32 0.0, %v3492
    %v3494 = vpop.f32.mrb[0].mxu0
    %v3495 = vpop.f32.mrb[0].mxu0
    %v3496 = vadd.f32 0.0, %v3495
    %v3497 = vpop.f32.mrb[0].mxu0
    %3498 = vdwg.mxu0
    %3499 = vmatprep.subr.bf16.mxu0 0
    %3500 = vmatpush1.bf16.msra.mxu0 %v3394
    %3501 = vmatprep.subr.bf16.mxu0 0
    %3502 = vmatpush1.bf16.msra.mxu0 %v3395
    %3503 = vmatprep.subr.bf16.mxu0 0
    %3504 = vmatpush1.bf16.msra.mxu0 %v3396
    %3505 = vmatprep.subr.bf16.mxu0 0
    %3506 = vmatpush1.bf16.msra.mxu0 %v3397
    %3507 = vmatprep.subr.bf16.mxu0 0
    %3508 = vmatpush1.bf16.msra.mxu0 %v3398
    %3509 = vmatprep.subr.bf16.mxu0 0
    %3510 = vmatpush1.bf16.msra.mxu0 %v3399
    %3511 = vmatprep.subr.bf16.mxu0 0
    %3512 = vmatpush1.bf16.msra.mxu0 %v3400
    %3513 = vmatprep.subr.bf16.mxu0 0
    %3514 = vmatpush1.bf16.msra.mxu0 %v3401
    %3515 = vmatprep.subr.bf16.mxu0 0
    %3516 = vmatpush1.bf16.msra.mxu0 0
    %3517 = vmatprep.subr.bf16.mxu0 0
    %3518 = vmatpush1.bf16.msra.mxu0 0
    %3519 = vmatprep.subr.bf16.mxu0 0
    %3520 = vmatpush1.bf16.msra.mxu0 0
    %3521 = vmatprep.subr.bf16.mxu0 0
    %3522 = vmatpush1.bf16.msra.mxu0 0
    %3523 = vmatprep.subr.bf16.mxu0 0
    %3524 = vmatpush1.bf16.msra.mxu0 0
    %3525 = vmatprep.subr.bf16.mxu0 0
    %3526 = vmatpush1.bf16.msra.mxu0 0
    %3527 = vmatprep.subr.bf16.mxu0 0
    %3528 = vmatpush1.bf16.msra.mxu0 0
    %3529 = vmatprep.subr.bf16.mxu0 0
    %3530 = vmatpush1.bf16.msra.mxu0 0
    %3531 = vmatprep.mubr.bf16.mxu0 0
    %3532 = vmatmul.mubr.bf16.gmra.mrb[0].mxu0 %v3272
    %v3533 = vpop.f32.mrb[0].mxu0
    %v3534 = vadd.f32 %v3461, %v3533
    %v3535 = vpop.f32.mrb[0].mxu0
    %v3536 = vpop.f32.mrb[0].mxu0
    %v3537 = vadd.f32 %v3464, %v3536
    %v3538 = vpop.f32.mrb[0].mxu0
    %3539 = vmatprep.mubr.bf16.mxu0 0
    %3540 = vmatmul.mubr.bf16.gmra.mrb[0].mxu0 %v3273
    %v3541 = vpop.f32.mrb[0].mxu0
    %v3542 = vadd.f32 %v3469, %v3541
    %v3543 = vpop.f32.mrb[0].mxu0
    %v3544 = vpop.f32.mrb[0].mxu0
    %v3545 = vadd.f32 %v3472, %v3544
    %v3546 = vpop.f32.mrb[0].mxu0
    %3547 = vmatprep.mubr.bf16.mxu0 0
    %3548 = vmatmul.mubr.bf16.gmra.mrb[0].mxu0 %v3274
    %v3549 = vpop.f32.mrb[0].mxu0
    %v3550 = vadd.f32 %v3477, %v3549
    %v3551 = vpop.f32.mrb[0].mxu0
    %v3552 = vpop.f32.mrb[0].mxu0
    %v3553 = vadd.f32 %v3480, %v3552
    %v3554 = vpop.f32.mrb[0].mxu0
    %3555 = vmatprep.mubr.bf16.mxu0 0
    %3556 = vmatmul.mubr.bf16.gmra.mrb[0].mxu0 %v3275
    %v3557 = vpop.f32.mrb[0].mxu0
    %v3558 = vadd.f32 %v3485, %v3557
    %v3559 = vpop.f32.mrb[0].mxu0
    %v3560 = vpop.f32.mrb[0].mxu0
    %v3561 = vadd.f32 %v3488, %v3560
    %v3562 = vpop.f32.mrb[0].mxu0
    %3563 = vmatprep.mubr.bf16.mxu0 0
    %3564 = vmatmul.mubr.bf16.gmra.mrb[0].mxu0 %v3276
    %v3565 = vpop.f32.mrb[0].mxu0
    %v3566 = vadd.f32 %v3493, %v3565
    %v3567 = vpop.f32.mrb[0].mxu0
    %v3568 = vpop.f32.mrb[0].mxu0
    %v3569 = vadd.f32 %v3496, %v3568
    %v3570 = vpop.f32.mrb[0].mxu0
    %3571 = vdwg.mxu0
    %v3572 = vld [vmem:[%s4] sm:$0xf]
    %v3573 = vld [vmem:[%s4 + $0x4] sm:$0xf]
    %v3574 = vld [vmem:[%s4 + $0x8] sm:$0xf]
    %v3575 = vld [vmem:[%s4 + $0xc] sm:$0xf]
    %v3576 = vld [vmem:[%s4 + $0x10] sm:$0xf]
    %v3577 = vld [vmem:[%s4 + $0x14] sm:$0xf]
    %v3578 = vld [vmem:[%s4 + $0x18] sm:$0xf]
    %v3579 = vld [vmem:[%s4 + $0x1c] sm:$0xf]
    %v3580 = vld [vmem:[%s4 + $0x20] sm:$0xf]
    %v3581 = vld [vmem:[%s4 + $0x24] sm:$0xf]
    %v3582 = vld [vmem:[%s4 + $0x28] sm:$0xf]
    %v3583 = vld [vmem:[%s4 + $0x2c] sm:$0xf]
    %v3584 = vld [vmem:[%s4 + $0x30] sm:$0xf]
    %v3585 = vld [vmem:[%s4 + $0x34] sm:$0xf]
    %v3586 = vld [vmem:[%s4 + $0x38] sm:$0xf]
    %v3587 = vld [vmem:[%s4 + $0x3c] sm:$0xf]
    %v3588 = vld [vmem:[%s4 + $0x40] sm:$0xf]
    %v3589 = vld [vmem:[%s4 + $0x44] sm:$0xf]
    %v3590 = vld [vmem:[%s4 + $0x48] sm:$0xf]
    %v3591 = vld [vmem:[%s4 + $0x4c] sm:$0xf]
    %v3592 = vld [vmem:[%s4 + $0x50] sm:$0xf]
    %v3593 = vld [vmem:[%s4 + $0x54] sm:$0xf]
    %v3594 = vld [vmem:[%s4 + $0x58] sm:$0xf]
    %v3595 = vld [vmem:[%s4 + $0x5c] sm:$0xf]
    %v3596 = vld [vmem:[%s4 + $0x60] sm:$0xf]
    %v3597 = vld [vmem:[%s4 + $0x64] sm:$0xf]
    %v3598 = vld [vmem:[%s4 + $0x68] sm:$0xf]
    %v3599 = vld [vmem:[%s4 + $0x6c] sm:$0xf]
    %v3600 = vld [vmem:[%s4 + $0x70] sm:$0xf]
    %v3601 = vld [vmem:[%s4 + $0x74] sm:$0xf]
    %v3602 = vld [vmem:[%s4 + $0x78] sm:$0xf]
    %v3603 = vld [vmem:[%s4 + $0x7c] sm:$0xf]
    %v3604 = vld [vmem:[%s4 + $0x80] sm:$0xf]
    %v3605 = vld [vmem:[%s4 + $0x84] sm:$0xf]
    %v3606 = vld [vmem:[%s4 + $0x88] sm:$0xf]
    %v3607 = vld [vmem:[%s4 + $0x8c] sm:$0xf]
    %v3608 = vld [vmem:[%s4 + $0x90] sm:$0xf]
    %v3609 = vld [vmem:[%s4 + $0x94] sm:$0xf]
    %v3610 = vld [vmem:[%s4 + $0x98] sm:$0xf]
    %v3611 = vld [vmem:[%s4 + $0x9c] sm:$0xf]
    %v3612 = vld [vmem:[%s4 + $0xa0] sm:$0xf]
    %v3613 = vld [vmem:[%s4 + $0xa4] sm:$0xf]
    %v3614 = vld [vmem:[%s4 + $0xa8] sm:$0xf]
    %v3615 = vld [vmem:[%s4 + $0xac] sm:$0xf]
    %v3616 = vld [vmem:[%s4 + $0xb0] sm:$0xf]
    %v3617 = vld [vmem:[%s4 + $0xb4] sm:$0xf]
    %v3618 = vld [vmem:[%s4 + $0xb8] sm:$0xf]
    %v3619 = vld [vmem:[%s4 + $0xbc] sm:$0xf]
    %v3620 = vld [vmem:[%s4 + $0xc0] sm:$0xf]
    %v3621 = vld [vmem:[%s4 + $0xc4] sm:$0xf]
    %v3622 = vld [vmem:[%s4 + $0xc8] sm:$0xf]
    %v3623 = vld [vmem:[%s4 + $0xcc] sm:$0xf]
    %v3624 = vld [vmem:[%s4 + $0xd0] sm:$0xf]
    %v3625 = vld [vmem:[%s4 + $0xd4] sm:$0xf]
    %v3626 = vld [vmem:[%s4 + $0xd8] sm:$0xf]
    %v3627 = vld [vmem:[%s4 + $0xdc] sm:$0xf]
    %v3628 = vld [vmem:[%s4 + $0xe0] sm:$0xf]
    %v3629 = vld [vmem:[%s4 + $0xe4] sm:$0xf]
    %v3630 = vld [vmem:[%s4 + $0xe8] sm:$0xf]
    %v3631 = vld [vmem:[%s4 + $0xec] sm:$0xf]
    %v3632 = vld [vmem:[%s4 + $0xf0] sm:$0xf]
    %v3633 = vld [vmem:[%s4 + $0xf4] sm:$0xf]
    %v3634 = vld [vmem:[%s4 + $0xf8] sm:$0xf]
    %v3635 = vld [vmem:[%s4 + $0xfc] sm:$0xf]
    %v3636 = vld [vmem:[%s4 + $0x100] sm:$0xf]
    %v3637 = vld [vmem:[%s4 + $0x104] sm:$0xf]
    %v3638 = vld [vmem:[%s4 + $0x108] sm:$0xf]
    %v3639 = vld [vmem:[%s4 + $0x10c] sm:$0xf]
    %v3640 = vld [vmem:[%s4 + $0x110] sm:$0xf]
    %v3641 = vld [vmem:[%s4 + $0x114] sm:$0xf]
    %v3642 = vld [vmem:[%s4 + $0x118] sm:$0xf]
    %v3643 = vld [vmem:[%s4 + $0x11c] sm:$0xf]
    %v3644 = vld [vmem:[%s4 + $0x120] sm:$0xf]
    %v3645 = vld [vmem:[%s4 + $0x124] sm:$0xf]
    %v3646 = vld [vmem:[%s4 + $0x128] sm:$0xf]
    %v3647 = vld [vmem:[%s4 + $0x12c] sm:$0xf]
    %v3648 = vld [vmem:[%s4 + $0x130] sm:$0xf]
    %v3649 = vld [vmem:[%s4 + $0x134] sm:$0xf]
    %v3650 = vld [vmem:[%s4 + $0x138] sm:$0xf]
    %v3651 = vld [vmem:[%s4 + $0x13c] sm:$0xf]
    %v3652 = vld [vmem:[%s4 + $0x140] sm:$0xf]
    %v3653 = vld [vmem:[%s4 + $0x144] sm:$0xf]
    %v3654 = vld [vmem:[%s4 + $0x148] sm:$0xf]
    %v3655 = vld [vmem:[%s4 + $0x14c] sm:$0xf]
    %v3656 = vld [vmem:[%s4 + $0x150] sm:$0xf]
    %v3657 = vld [vmem:[%s4 + $0x154] sm:$0xf]
    %v3658 = vld [vmem:[%s4 + $0x158] sm:$0xf]
    %v3659 = vld [vmem:[%s4 + $0x15c] sm:$0xf]
    %v3660 = vld [vmem:[%s4 + $0x160] sm:$0xf]
    %v3661 = vld [vmem:[%s4 + $0x164] sm:$0xf]
    %v3662 = vld [vmem:[%s4 + $0x168] sm:$0xf]
    %v3663 = vld [vmem:[%s4 + $0x16c] sm:$0xf]
    %v3664 = vld [vmem:[%s4 + $0x170] sm:$0xf]
    %v3665 = vld [vmem:[%s4 + $0x174] sm:$0xf]
    %v3666 = vld [vmem:[%s4 + $0x178] sm:$0xf]
    %v3667 = vld [vmem:[%s4 + $0x17c] sm:$0xf]
    %v3678 = vunpack.c.h.b16 %v2820
    %v3679 = vunpack.c.l.b16 %v2821
    %v3680 = vunpack.c.h.b16 %v2821
    %v3681 = vunpack.c.h.b16 %v2826
    %v3682 = vunpack.c.l.b16 %v2827
    %v3683 = vunpack.c.h.b16 %v2827
    %v3684 = vunpack.c.h.b16 %v2832
    %v3685 = vunpack.c.l.b16 %v2833
    %v3686 = vunpack.c.h.b16 %v2833
    %v3687 = vunpack.c.h.b16 %v2838
    %v3688 = vunpack.c.l.b16 %v2839
    %v3689 = vunpack.c.h.b16 %v2839
    %v3690 = vunpack.c.h.b16 %v2844
    %v3691 = vunpack.c.l.b16 %v2845
    %v3692 = vunpack.c.h.b16 %v2845
    %v3693 = vunpack.c.h.b16 %v2850
    %v3694 = vunpack.c.l.b16 %v2851
    %v3695 = vunpack.c.h.b16 %v2851
    %v3696 = vunpack.c.h.b16 %v2856
    %v3697 = vunpack.c.l.b16 %v2857
    %v3698 = vunpack.c.h.b16 %v2857
    %v3699 = vunpack.c.h.b16 %v2862
    %v3700 = vunpack.c.l.b16 %v2863
    %v3701 = vunpack.c.h.b16 %v2863
    %v3702 = vunpack.c.h.b16 %v2868
    %v3703 = vunpack.c.l.b16 %v2869
    %v3704 = vunpack.c.h.b16 %v2869
    %v3705 = vunpack.c.h.b16 %v2874
    %v3706 = vunpack.c.l.b16 %v2875
    %v3707 = vunpack.c.h.b16 %v2875
    %v3708 = vpack.c.b16 %v3681, %v3678
    %v3709 = vpack.c.b16 %v3682, %v3679
    %v3710 = vpack.c.b16 %v3683, %v3680
    %v3711 = vpack.c.b16 %v3687, %v3684
    %v3712 = vpack.c.b16 %v3688, %v3685
    %v3713 = vpack.c.b16 %v3689, %v3686
    %v3714 = vpack.c.b16 %v3693, %v3690
    %v3715 = vpack.c.b16 %v3694, %v3691
    %v3716 = vpack.c.b16 %v3695, %v3692
    %v3717 = vpack.c.b16 %v3699, %v3696
    %v3718 = vpack.c.b16 %v3700, %v3697
    %v3719 = vpack.c.b16 %v3701, %v3698
    %v3720 = vpack.c.b16 %v3705, %v3702
    %v3721 = vpack.c.b16 %v3706, %v3703
    %v3722 = vpack.c.b16 %v3707, %v3704
    %v3834 = vunpack.c.l.b16 %v3572
    %v3835 = vunpack.c.l.b16 %v3573
    %v3836 = vunpack.c.l.b16 %v3574
    %v3837 = vunpack.c.l.b16 %v3575
    %v3838 = vunpack.c.l.b16 %v3576
    %v3839 = vunpack.c.l.b16 %v3577
    %v3840 = vunpack.c.l.b16 %v3578
    %v3841 = vunpack.c.l.b16 %v3579
    %v3842 = vunpack.c.l.b16 %v3580
    %v3843 = vunpack.c.l.b16 %v3581
    %v3844 = vunpack.c.l.b16 %v3582
    %v3845 = vunpack.c.l.b16 %v3583
    %v3846 = vunpack.c.l.b16 %v3584
    %v3847 = vunpack.c.l.b16 %v3585
    %v3848 = vunpack.c.l.b16 %v3586
    %v3849 = vunpack.c.l.b16 %v3587
    %v3850 = vunpack.c.l.b16 %v3588
    %v3851 = vunpack.c.l.b16 %v3589
    %v3852 = vunpack.c.l.b16 %v3590
    %v3853 = vunpack.c.l.b16 %v3591
    %v3854 = vunpack.c.l.b16 %v3592
    %v3855 = vunpack.c.l.b16 %v3593
    %v3856 = vunpack.c.l.b16 %v3594
    %v3857 = vunpack.c.l.b16 %v3595
    %v3858 = vunpack.c.l.b16 %v3596
    %v3859 = vunpack.c.l.b16 %v3597
    %v3860 = vunpack.c.l.b16 %v3598
    %v3861 = vunpack.c.l.b16 %v3599
    %v3862 = vunpack.c.l.b16 %v3600
    %v3863 = vunpack.c.l.b16 %v3601
    %v3864 = vunpack.c.l.b16 %v3602
    %v3865 = vunpack.c.l.b16 %v3603
    %v3866 = vunpack.c.l.b16 %v3604
    %v3867 = vunpack.c.l.b16 %v3605
    %v3868 = vunpack.c.l.b16 %v3606
    %v3869 = vunpack.c.l.b16 %v3607
    %v3870 = vunpack.c.l.b16 %v3608
    %v3871 = vunpack.c.l.b16 %v3609
    %v3872 = vunpack.c.l.b16 %v3610
    %v3873 = vunpack.c.l.b16 %v3611
    %v3874 = vunpack.c.l.b16 %v3612
    %v3875 = vunpack.c.l.b16 %v3613
    %v3876 = vunpack.c.l.b16 %v3614
    %v3877 = vunpack.c.l.b16 %v3615
    %v3878 = vunpack.c.l.b16 %v3616
    %v3879 = vunpack.c.l.b16 %v3617
    %v3880 = vunpack.c.l.b16 %v3618
    %v3881 = vunpack.c.l.b16 %v3619
    %v3882 = vunpack.c.l.b16 %v3620
    %v3883 = vunpack.c.l.b16 %v3621
    %v3884 = vunpack.c.l.b16 %v3622
    %v3885 = vunpack.c.l.b16 %v3623
    %v3886 = vunpack.c.l.b16 %v3624
    %v3887 = vunpack.c.l.b16 %v3625
    %v3888 = vunpack.c.l.b16 %v3626
    %v3889 = vunpack.c.l.b16 %v3627
    %v3890 = vunpack.c.l.b16 %v3628
    %v3891 = vunpack.c.l.b16 %v3629
    %v3892 = vunpack.c.l.b16 %v3630
    %v3893 = vunpack.c.l.b16 %v3631
    %v3894 = vunpack.c.l.b16 %v3632
    %v3895 = vunpack.c.l.b16 %v3633
    %v3896 = vunpack.c.l.b16 %v3634
    %v3897 = vunpack.c.l.b16 %v3635
    %v3898 = vunpack.c.l.b16 %v3636
    %v3899 = vunpack.c.l.b16 %v3637
    %v3900 = vunpack.c.l.b16 %v3638
    %v3901 = vunpack.c.l.b16 %v3639
    %v3902 = vunpack.c.l.b16 %v3640
    %v3903 = vunpack.c.l.b16 %v3641
    %v3904 = vunpack.c.l.b16 %v3642
    %v3905 = vunpack.c.l.b16 %v3643
    %v3906 = vunpack.c.l.b16 %v3644
    %v3907 = vunpack.c.l.b16 %v3645
    %v3908 = vunpack.c.l.b16 %v3646
    %v3909 = vunpack.c.l.b16 %v3647
    %v3910 = vunpack.c.l.b16 %v3648
    %v3911 = vunpack.c.l.b16 %v3649
    %v3912 = vunpack.c.l.b16 %v3650
    %v3913 = vunpack.c.l.b16 %v3651
    %v3914 = vunpack.c.l.b16 %v3652
    %v3915 = vunpack.c.l.b16 %v3653
    %v3916 = vunpack.c.l.b16 %v3654
    %v3917 = vunpack.c.l.b16 %v3655
    %v3918 = vunpack.c.l.b16 %v3656
    %v3919 = vunpack.c.l.b16 %v3657
    %v3920 = vunpack.c.l.b16 %v3658
    %v3921 = vunpack.c.l.b16 %v3659
    %v3922 = vunpack.c.l.b16 %v3660
    %v3923 = vunpack.c.l.b16 %v3661
    %v3924 = vunpack.c.l.b16 %v3662
    %v3925 = vunpack.c.l.b16 %v3663
    %v3926 = vunpack.c.l.b16 %v3664
    %v3927 = vunpack.c.l.b16 %v3665
    %v3928 = vunpack.c.l.b16 %v3666
    %v3929 = vunpack.c.l.b16 %v3667
    %v3930 = vpack.c.b16 %v3835, %v3834
    %v3931 = vpack.c.b16 %v3837, %v3836
    %v3932 = vpack.c.b16 %v3839, %v3838
    %v3933 = vpack.c.b16 %v3841, %v3840
    %v3934 = vpack.c.b16 %v3843, %v3842
    %v3935 = vpack.c.b16 %v3845, %v3844
    %v3936 = vpack.c.b16 %v3847, %v3846
    %v3937 = vpack.c.b16 %v3849, %v3848
    %v3938 = vpack.c.b16 %v3851, %v3850
    %v3939 = vpack.c.b16 %v3853, %v3852
    %v3940 = vpack.c.b16 %v3855, %v3854
    %v3941 = vpack.c.b16 %v3857, %v3856
    %v3942 = vpack.c.b16 %v3859, %v3858
    %v3943 = vpack.c.b16 %v3861, %v3860
    %v3944 = vpack.c.b16 %v3863, %v3862
    %v3945 = vpack.c.b16 %v3865, %v3864
    %v3946 = vpack.c.b16 %v3867, %v3866
    %v3947 = vpack.c.b16 %v3869, %v3868
    %v3948 = vpack.c.b16 %v3871, %v3870
    %v3949 = vpack.c.b16 %v3873, %v3872
    %v3950 = vpack.c.b16 %v3875, %v3874
    %v3951 = vpack.c.b16 %v3877, %v3876
    %v3952 = vpack.c.b16 %v3879, %v3878
    %v3953 = vpack.c.b16 %v3881, %v3880
    %v3954 = vpack.c.b16 %v3883, %v3882
    %v3955 = vpack.c.b16 %v3885, %v3884
    %v3956 = vpack.c.b16 %v3887, %v3886
    %v3957 = vpack.c.b16 %v3889, %v3888
    %v3958 = vpack.c.b16 %v3891, %v3890
    %v3959 = vpack.c.b16 %v3893, %v3892
    %v3960 = vpack.c.b16 %v3895, %v3894
    %v3961 = vpack.c.b16 %v3897, %v3896
    %v3962 = vpack.c.b16 %v3899, %v3898
    %v3963 = vpack.c.b16 %v3901, %v3900
    %v3964 = vpack.c.b16 %v3903, %v3902
    %v3965 = vpack.c.b16 %v3905, %v3904
    %v3966 = vpack.c.b16 %v3907, %v3906
    %v3967 = vpack.c.b16 %v3909, %v3908
    %v3968 = vpack.c.b16 %v3911, %v3910
    %v3969 = vpack.c.b16 %v3913, %v3912
    %v3970 = vpack.c.b16 %v3915, %v3914
    %v3971 = vpack.c.b16 %v3917, %v3916
    %v3972 = vpack.c.b16 %v3919, %v3918
    %v3973 = vpack.c.b16 %v3921, %v3920
    %v3974 = vpack.c.b16 %v3923, %v3922
    %v3975 = vpack.c.b16 %v3925, %v3924
    %v3976 = vpack.c.b16 %v3927, %v3926
    %v3977 = vpack.c.b16 %v3929, %v3928
    %4026 = vmatprep.subr.bf16.mxu0 0
    %4027 = vmatpush1.bf16.msra.mxu0 %v3930
    %4028 = vmatprep.subr.bf16.mxu0 0
    %4029 = vmatpush1.bf16.msra.mxu0 %v3931
    %4030 = vmatprep.subr.bf16.mxu0 0
    %4031 = vmatpush1.bf16.msra.mxu0 %v3932
    %4032 = vmatprep.subr.bf16.mxu0 0
    %4033 = vmatpush1.bf16.msra.mxu0 %v3933
    %4034 = vmatprep.subr.bf16.mxu0 0
    %4035 = vmatpush1.bf16.msra.mxu0 %v3934
    %4036 = vmatprep.subr.bf16.mxu0 0
    %4037 = vmatpush1.bf16.msra.mxu0 %v3935
    %4038 = vmatprep.subr.bf16.mxu0 0
    %4039 = vmatpush1.bf16.msra.mxu0 %v3936
    %4040 = vmatprep.subr.bf16.mxu0 0
    %4041 = vmatpush1.bf16.msra.mxu0 %v3937
    %4042 = vmatprep.subr.bf16.mxu0 0
    %4043 = vmatpush1.bf16.msra.mxu0 %v3938
    %4044 = vmatprep.subr.bf16.mxu0 0
    %4045 = vmatpush1.bf16.msra.mxu0 %v3939
    %4046 = vmatprep.subr.bf16.mxu0 0
    %4047 = vmatpush1.bf16.msra.mxu0 %v3940
    %4048 = vmatprep.subr.bf16.mxu0 0
    %4049 = vmatpush1.bf16.msra.mxu0 %v3941
    %4050 = vmatprep.subr.bf16.mxu0 0
    %4051 = vmatpush1.bf16.msra.mxu0 %v3942
    %4052 = vmatprep.subr.bf16.mxu0 0
    %4053 = vmatpush1.bf16.msra.mxu0 %v3943
    %4054 = vmatprep.subr.bf16.mxu0 0
    %4055 = vmatpush1.bf16.msra.mxu0 %v3944
    %4056 = vmatprep.subr.bf16.mxu0 0
    %4057 = vmatpush1.bf16.msra.mxu0 %v3945
    %4058 = vmatprep.mubr.bf16.mxu0 %v2942
    %4059 = vmatmul.mubr.bf16.gmra.mrb[0].mxu0 %v2941
    %v4060 = vpop.f32.mrb[0].mxu0
    %v4061 = vadd.f32 0.0, %v4060
    %v4062 = vpop.f32.mrb[0].mxu0
    %v4063 = vpop.f32.mrb[0].mxu0
    %v4064 = vadd.f32 0.0, %v4063
    %v4065 = vpop.f32.mrb[0].mxu0
    %4066 = vmatprep.mubr.bf16.mxu0 %v2944
    %4067 = vmatmul.mubr.bf16.gmra.mrb[0].mxu0 %v2943
    %v4068 = vpop.f32.mrb[0].mxu0
    %v4069 = vadd.f32 0.0, %v4068
    %v4070 = vpop.f32.mrb[0].mxu0
    %v4071 = vpop.f32.mrb[0].mxu0
    %v4072 = vadd.f32 0.0, %v4071
    %v4073 = vpop.f32.mrb[0].mxu0
    %4074 = vmatprep.mubr.bf16.mxu0 %v2946
    %4075 = vmatmul.mubr.bf16.gmra.mrb[0].mxu0 %v2945
    %v4076 = vpop.f32.mrb[0].mxu0
    %v4077 = vadd.f32 0.0, %v4076
    %v4078 = vpop.f32.mrb[0].mxu0
    %v4079 = vpop.f32.mrb[0].mxu0
    %v4080 = vadd.f32 0.0, %v4079
    %v4081 = vpop.f32.mrb[0].mxu0
    %4082 = vmatprep.mubr.bf16.mxu0 %v2948
    %4083 = vmatmul.mubr.bf16.gmra.mrb[0].mxu0 %v2947
    %v4084 = vpop.f32.mrb[0].mxu0
    %v4085 = vadd.f32 0.0, %v4084
    %v4086 = vpop.f32.mrb[0].mxu0
    %v4087 = vpop.f32.mrb[0].mxu0
    %v4088 = vadd.f32 0.0, %v4087
    %v4089 = vpop.f32.mrb[0].mxu0
    %4090 = vmatprep.mubr.bf16.mxu0 %v2950
    %4091 = vmatmul.mubr.bf16.gmra.mrb[0].mxu0 %v2949
    %v4092 = vpop.f32.mrb[0].mxu0
    %v4093 = vadd.f32 0.0, %v4092
    %v4094 = vpop.f32.mrb[0].mxu0
    %v4095 = vpop.f32.mrb[0].mxu0
    %v4096 = vadd.f32 0.0, %v4095
    %v4097 = vpop.f32.mrb[0].mxu0
    %4098 = vdwg.mxu0
    %4099 = vmatprep.subr.bf16.mxu0 0
    %4100 = vmatpush1.bf16.msra.mxu0 %v3946
    %4101 = vmatprep.subr.bf16.mxu0 0
    %4102 = vmatpush1.bf16.msra.mxu0 %v3947
    %4103 = vmatprep.subr.bf16.mxu0 0
    %4104 = vmatpush1.bf16.msra.mxu0 %v3948
    %4105 = vmatprep.subr.bf16.mxu0 0
    %4106 = vmatpush1.bf16.msra.mxu0 %v3949
    %4107 = vmatprep.subr.bf16.mxu0 0
    %4108 = vmatpush1.bf16.msra.mxu0 %v3950
    %4109 = vmatprep.subr.bf16.mxu0 0
    %4110 = vmatpush1.bf16.msra.mxu0 %v3951
    %4111 = vmatprep.subr.bf16.mxu0 0
    %4112 = vmatpush1.bf16.msra.mxu0 %v3952
    %4113 = vmatprep.subr.bf16.mxu0 0
    %4114 = vmatpush1.bf16.msra.mxu0 %v3953
    %4115 = vmatprep.subr.bf16.mxu0 0
    %4116 = vmatpush1.bf16.msra.mxu0 %v3954
    %4117 = vmatprep.subr.bf16.mxu0 0
    %4118 = vmatpush1.bf16.msra.mxu0 %v3955
    %4119 = vmatprep.subr.bf16.mxu0 0
    %4120 = vmatpush1.bf16.msra.mxu0 %v3956
    %4121 = vmatprep.subr.bf16.mxu0 0
    %4122 = vmatpush1.bf16.msra.mxu0 %v3957
    %4123 = vmatprep.subr.bf16.mxu0 0
    %4124 = vmatpush1.bf16.msra.mxu0 %v3958
    %4125 = vmatprep.subr.bf16.mxu0 0
    %4126 = vmatpush1.bf16.msra.mxu0 %v3959
    %4127 = vmatprep.subr.bf16.mxu0 0
    %4128 = vmatpush1.bf16.msra.mxu0 %v3960
    %4129 = vmatprep.subr.bf16.mxu0 0
    %4130 = vmatpush1.bf16.msra.mxu0 %v3961
    %4131 = vmatprep.mubr.bf16.mxu0 %v3708
    %4132 = vmatmul.mubr.bf16.gmra.mrb[0].mxu0 %v3272
    %v4133 = vpop.f32.mrb[0].mxu0
    %v4134 = vadd.f32 %v4061, %v4133
    %v4135 = vpop.f32.mrb[0].mxu0
    %v4136 = vpop.f32.mrb[0].mxu0
    %v4137 = vadd.f32 %v4064, %v4136
    %v4138 = vpop.f32.mrb[0].mxu0
    %4139 = vmatprep.mubr.bf16.mxu0 %v3711
    %4140 = vmatmul.mubr.bf16.gmra.mrb[0].mxu0 %v3273
    %v4141 = vpop.f32.mrb[0].mxu0
    %v4142 = vadd.f32 %v4069, %v4141
    %v4143 = vpop.f32.mrb[0].mxu0
    %v4144 = vpop.f32.mrb[0].mxu0
    %v4145 = vadd.f32 %v4072, %v4144
    %v4146 = vpop.f32.mrb[0].mxu0
    %4147 = vmatprep.mubr.bf16.mxu0 %v3714
    %4148 = vmatmul.mubr.bf16.gmra.mrb[0].mxu0 %v3274
    %v4149 = vpop.f32.mrb[0].mxu0
    %v4150 = vadd.f32 %v4077, %v4149
    %v4151 = vpop.f32.mrb[0].mxu0
    %v4152 = vpop.f32.mrb[0].mxu0
    %v4153 = vadd.f32 %v4080, %v4152
    %v4154 = vpop.f32.mrb[0].mxu0
    %4155 = vmatprep.mubr.bf16.mxu0 %v3717
    %4156 = vmatmul.mubr.bf16.gmra.mrb[0].mxu0 %v3275
    %v4157 = vpop.f32.mrb[0].mxu0
    %v4158 = vadd.f32 %v4085, %v4157
    %v4159 = vpop.f32.mrb[0].mxu0
    %v4160 = vpop.f32.mrb[0].mxu0
    %v4161 = vadd.f32 %v4088, %v4160
    %v4162 = vpop.f32.mrb[0].mxu0
    %4163 = vmatprep.mubr.bf16.mxu0 %v3720
    %4164 = vmatmul.mubr.bf16.gmra.mrb[0].mxu0 %v3276
    %v4165 = vpop.f32.mrb[0].mxu0
    %v4166 = vadd.f32 %v4093, %v4165
    %v4167 = vpop.f32.mrb[0].mxu0
    %v4168 = vpop.f32.mrb[0].mxu0
    %v4169 = vadd.f32 %v4096, %v4168
    %v4170 = vpop.f32.mrb[0].mxu0
    %4171 = vdwg.mxu0
    %4172 = vmatprep.subr.bf16.mxu0 0
    %4173 = vmatpush1.bf16.msra.mxu0 %v3962
    %4174 = vmatprep.subr.bf16.mxu0 0
    %4175 = vmatpush1.bf16.msra.mxu0 %v3963
    %4176 = vmatprep.subr.bf16.mxu0 0
    %4177 = vmatpush1.bf16.msra.mxu0 %v3964
    %4178 = vmatprep.subr.bf16.mxu0 0
    %4179 = vmatpush1.bf16.msra.mxu0 %v3965
    %4180 = vmatprep.subr.bf16.mxu0 0
    %4181 = vmatpush1.bf16.msra.mxu0 %v3966
    %4182 = vmatprep.subr.bf16.mxu0 0
    %4183 = vmatpush1.bf16.msra.mxu0 %v3967
    %4184 = vmatprep.subr.bf16.mxu0 0
    %4185 = vmatpush1.bf16.msra.mxu0 %v3968
    %4186 = vmatprep.subr.bf16.mxu0 0
    %4187 = vmatpush1.bf16.msra.mxu0 %v3969
    %4188 = vmatprep.subr.bf16.mxu0 0
    %4189 = vmatpush1.bf16.msra.mxu0 %v3970
    %4190 = vmatprep.subr.bf16.mxu0 0
    %4191 = vmatpush1.bf16.msra.mxu0 %v3971
    %4192 = vmatprep.subr.bf16.mxu0 0
    %4193 = vmatpush1.bf16.msra.mxu0 %v3972
    %4194 = vmatprep.subr.bf16.mxu0 0
    %4195 = vmatpush1.bf16.msra.mxu0 %v3973
    %4196 = vmatprep.subr.bf16.mxu0 0
    %4197 = vmatpush1.bf16.msra.mxu0 %v3974
    %4198 = vmatprep.subr.bf16.mxu0 0
    %4199 = vmatpush1.bf16.msra.mxu0 %v3975
    %4200 = vmatprep.subr.bf16.mxu0 0
    %4201 = vmatpush1.bf16.msra.mxu0 %v3976
    %4202 = vmatprep.subr.bf16.mxu0 0
    %4203 = vmatpush1.bf16.msra.mxu0 %v3977
    %4204 = vmatprep.mubr.bf16.mxu0 %v3710
    %4205 = vmatmul.mubr.bf16.gmra.mrb[0].mxu0 %v3709
    %v4206 = vpop.f32.mrb[0].mxu0
    %v4207 = vadd.f32 %v4134, %v4206
    %v4208 = vpop.f32.mrb[0].mxu0
    %v4209 = vpop.f32.mrb[0].mxu0
    %v4210 = vadd.f32 %v4137, %v4209
    %v4211 = vpop.f32.mrb[0].mxu0
    %4212 = vmatprep.mubr.bf16.mxu0 %v3713
    %4213 = vmatmul.mubr.bf16.gmra.mrb[0].mxu0 %v3712
    %v4214 = vpop.f32.mrb[0].mxu0
    %v4215 = vadd.f32 %v4142, %v4214
    %v4216 = vpop.f32.mrb[0].mxu0
    %v4217 = vpop.f32.mrb[0].mxu0
    %v4218 = vadd.f32 %v4145, %v4217
    %v4219 = vpop.f32.mrb[0].mxu0
    %4220 = vmatprep.mubr.bf16.mxu0 %v3716
    %4221 = vmatmul.mubr.bf16.gmra.mrb[0].mxu0 %v3715
    %v4222 = vpop.f32.mrb[0].mxu0
    %v4223 = vadd.f32 %v4150, %v4222
    %v4224 = vpop.f32.mrb[0].mxu0
    %v4225 = vpop.f32.mrb[0].mxu0
    %v4226 = vadd.f32 %v4153, %v4225
    %v4227 = vpop.f32.mrb[0].mxu0
    %4228 = vmatprep.mubr.bf16.mxu0 %v3719
    %4229 = vmatmul.mubr.bf16.gmra.mrb[0].mxu0 %v3718
    %v4230 = vpop.f32.mrb[0].mxu0
    %v4231 = vadd.f32 %v4158, %v4230
    %v4232 = vpop.f32.mrb[0].mxu0
    %v4233 = vpop.f32.mrb[0].mxu0
    %v4234 = vadd.f32 %v4161, %v4233
    %v4235 = vpop.f32.mrb[0].mxu0
    %4236 = vmatprep.mubr.bf16.mxu0 %v3722
    %4237 = vmatmul.mubr.bf16.gmra.mrb[0].mxu0 %v3721
    %v4238 = vpop.f32.mrb[0].mxu0
    %v4239 = vadd.f32 %v4166, %v4238
    %v4240 = vpop.f32.mrb[0].mxu0
    %v4241 = vpop.f32.mrb[0].mxu0
    %v4242 = vadd.f32 %v4169, %v4241
    %v4243 = vpop.f32.mrb[0].mxu0
    %4244 = vdwg.mxu0
    %v4245 = vld [vmem:[%s5] sm:$0xf]
    %v4246 = vld [vmem:[%s5 + $0x4] sm:$0xf]
    %v4247 = vld [vmem:[%s5 + $0x8] sm:$0xf]
    %v4248 = vld [vmem:[%s5 + $0xc] sm:$0xf]
    %v4249 = vld [vmem:[%s5 + $0x10] sm:$0xf]
    %v4250 = vld [vmem:[%s5 + $0x14] sm:$0xf]
    %v4251 = vld [vmem:[%s5 + $0x18] sm:$0xf]
    %v4252 = vld [vmem:[%s5 + $0x1c] sm:$0xf]
    %v4253 = vld [vmem:[%s5 + $0x20] sm:$0xf]
    %v4254 = vld [vmem:[%s5 + $0x24] sm:$0xf]
    %v4255 = vld [vmem:[%s5 + $0x28] sm:$0xf]
    %v4256 = vld [vmem:[%s5 + $0x2c] sm:$0xf]
    %v4257 = vld [vmem:[%s5 + $0x30] sm:$0xf]
    %v4258 = vld [vmem:[%s5 + $0x34] sm:$0xf]
    %v4259 = vld [vmem:[%s5 + $0x38] sm:$0xf]
    %v4260 = vld [vmem:[%s5 + $0x3c] sm:$0xf]
    %v4261 = vld [vmem:[%s5 + $0x40] sm:$0xf]
    %v4262 = vld [vmem:[%s5 + $0x44] sm:$0xf]
    %v4263 = vld [vmem:[%s5 + $0x48] sm:$0xf]
    %v4264 = vld [vmem:[%s5 + $0x4c] sm:$0xf]
    %v4265 = vld [vmem:[%s5 + $0x50] sm:$0xf]
    %v4266 = vld [vmem:[%s5 + $0x54] sm:$0xf]
    %v4267 = vld [vmem:[%s5 + $0x58] sm:$0xf]
    %v4268 = vld [vmem:[%s5 + $0x5c] sm:$0xf]
    %v4269 = vld [vmem:[%s5 + $0x60] sm:$0xf]
    %v4270 = vld [vmem:[%s5 + $0x64] sm:$0xf]
    %v4271 = vld [vmem:[%s5 + $0x68] sm:$0xf]
    %v4272 = vld [vmem:[%s5 + $0x6c] sm:$0xf]
    %v4273 = vld [vmem:[%s5 + $0x70] sm:$0xf]
    %v4274 = vld [vmem:[%s5 + $0x74] sm:$0xf]
    %v4275 = vld [vmem:[%s5 + $0x78] sm:$0xf]
    %v4276 = vld [vmem:[%s5 + $0x7c] sm:$0xf]
    %v4277 = vld [vmem:[%s5 + $0x80] sm:$0xf]
    %v4278 = vld [vmem:[%s5 + $0x84] sm:$0xf]
    %v4279 = vld [vmem:[%s5 + $0x88] sm:$0xf]
    %v4280 = vld [vmem:[%s5 + $0x8c] sm:$0xf]
    %v4281 = vld [vmem:[%s5 + $0x90] sm:$0xf]
    %v4282 = vld [vmem:[%s5 + $0x94] sm:$0xf]
    %v4283 = vld [vmem:[%s5 + $0x98] sm:$0xf]
    %v4284 = vld [vmem:[%s5 + $0x9c] sm:$0xf]
    %v4285 = vld [vmem:[%s5 + $0xa0] sm:$0xf]
    %v4286 = vld [vmem:[%s5 + $0xa4] sm:$0xf]
    %v4287 = vld [vmem:[%s5 + $0xa8] sm:$0xf]
    %v4288 = vld [vmem:[%s5 + $0xac] sm:$0xf]
    %v4289 = vld [vmem:[%s5 + $0xb0] sm:$0xf]
    %v4290 = vld [vmem:[%s5 + $0xb4] sm:$0xf]
    %v4291 = vld [vmem:[%s5 + $0xb8] sm:$0xf]
    %v4292 = vld [vmem:[%s5 + $0xbc] sm:$0xf]
    %v4293 = vld [vmem:[%s5 + $0xc0] sm:$0xf]
    %v4294 = vld [vmem:[%s5 + $0xc4] sm:$0xf]
    %v4295 = vld [vmem:[%s5 + $0xc8] sm:$0xf]
    %v4296 = vld [vmem:[%s5 + $0xcc] sm:$0xf]
    %v4297 = vld [vmem:[%s5 + $0xd0] sm:$0xf]
    %v4298 = vld [vmem:[%s5 + $0xd4] sm:$0xf]
    %v4299 = vld [vmem:[%s5 + $0xd8] sm:$0xf]
    %v4300 = vld [vmem:[%s5 + $0xdc] sm:$0xf]
    %v4301 = vld [vmem:[%s5 + $0xe0] sm:$0xf]
    %v4302 = vld [vmem:[%s5 + $0xe4] sm:$0xf]
    %v4303 = vld [vmem:[%s5 + $0xe8] sm:$0xf]
    %v4304 = vld [vmem:[%s5 + $0xec] sm:$0xf]
    %v4305 = vld [vmem:[%s5 + $0xf0] sm:$0xf]
    %v4306 = vld [vmem:[%s5 + $0xf4] sm:$0xf]
    %v4307 = vld [vmem:[%s5 + $0xf8] sm:$0xf]
    %v4308 = vld [vmem:[%s5 + $0xfc] sm:$0xf]
    %v4309 = vld [vmem:[%s5 + $0x100] sm:$0xf]
    %v4310 = vld [vmem:[%s5 + $0x104] sm:$0xf]
    %v4311 = vld [vmem:[%s5 + $0x108] sm:$0xf]
    %v4312 = vld [vmem:[%s5 + $0x10c] sm:$0xf]
    %v4313 = vld [vmem:[%s5 + $0x110] sm:$0xf]
    %v4314 = vld [vmem:[%s5 + $0x114] sm:$0xf]
    %v4315 = vld [vmem:[%s5 + $0x118] sm:$0xf]
    %v4316 = vld [vmem:[%s5 + $0x11c] sm:$0xf]
    %v4317 = vld [vmem:[%s5 + $0x120] sm:$0xf]
    %v4318 = vld [vmem:[%s5 + $0x124] sm:$0xf]
    %v4319 = vld [vmem:[%s5 + $0x128] sm:$0xf]
    %v4320 = vld [vmem:[%s5 + $0x12c] sm:$0xf]
    %v4321 = vld [vmem:[%s5 + $0x130] sm:$0xf]
    %v4322 = vld [vmem:[%s5 + $0x134] sm:$0xf]
    %v4323 = vld [vmem:[%s5 + $0x138] sm:$0xf]
    %v4324 = vld [vmem:[%s5 + $0x13c] sm:$0xf]
    %v4325 = vld [vmem:[%s5 + $0x140] sm:$0xf]
    %v4326 = vld [vmem:[%s5 + $0x144] sm:$0xf]
    %v4327 = vld [vmem:[%s5 + $0x148] sm:$0xf]
    %v4328 = vld [vmem:[%s5 + $0x14c] sm:$0xf]
    %v4329 = vld [vmem:[%s5 + $0x150] sm:$0xf]
    %v4330 = vld [vmem:[%s5 + $0x154] sm:$0xf]
    %v4331 = vld [vmem:[%s5 + $0x158] sm:$0xf]
    %v4332 = vld [vmem:[%s5 + $0x15c] sm:$0xf]
    %v4333 = vld [vmem:[%s5 + $0x160] sm:$0xf]
    %v4334 = vld [vmem:[%s5 + $0x164] sm:$0xf]
    %v4335 = vld [vmem:[%s5 + $0x168] sm:$0xf]
    %v4336 = vld [vmem:[%s5 + $0x16c] sm:$0xf]
    %v4337 = vld [vmem:[%s5 + $0x170] sm:$0xf]
    %v4338 = vld [vmem:[%s5 + $0x174] sm:$0xf]
    %v4339 = vld [vmem:[%s5 + $0x178] sm:$0xf]
    %v4340 = vld [vmem:[%s5 + $0x17c] sm:$0xf]
    %v4341 = vld [vmem:[%s5 + $0x180] sm:$0xf]
    %v4342 = vld [vmem:[%s5 + $0x184] sm:$0xf]
    %v4343 = vld [vmem:[%s5 + $0x188] sm:$0xf]
    %v4344 = vld [vmem:[%s5 + $0x18c] sm:$0xf]
    %v4345 = vld [vmem:[%s5 + $0x190] sm:$0xf]
    %v4346 = vld [vmem:[%s5 + $0x194] sm:$0xf]
    %v4347 = vld [vmem:[%s5 + $0x198] sm:$0xf]
    %v4348 = vld [vmem:[%s5 + $0x19c] sm:$0xf]
    %v4349 = vld [vmem:[%s5 + $0x1a0] sm:$0xf]
    %v4350 = vld [vmem:[%s5 + $0x1a4] sm:$0xf]
    %v4351 = vld [vmem:[%s5 + $0x1a8] sm:$0xf]
    %v4352 = vld [vmem:[%s5 + $0x1ac] sm:$0xf]
    %v4353 = vld [vmem:[%s5 + $0x1b0] sm:$0xf]
    %v4354 = vld [vmem:[%s5 + $0x1b4] sm:$0xf]
    %v4355 = vld [vmem:[%s5 + $0x1b8] sm:$0xf]
    %v4356 = vld [vmem:[%s5 + $0x1bc] sm:$0xf]
    %v4357 = vld [vmem:[%s5 + $0x1c0] sm:$0xf]
    %v4358 = vld [vmem:[%s5 + $0x1c4] sm:$0xf]
    %v4359 = vld [vmem:[%s5 + $0x1c8] sm:$0xf]
    %v4360 = vld [vmem:[%s5 + $0x1cc] sm:$0xf]
    %v4361 = vld [vmem:[%s5 + $0x1d0] sm:$0xf]
    %v4362 = vld [vmem:[%s5 + $0x1d4] sm:$0xf]
    %v4363 = vld [vmem:[%s5 + $0x1d8] sm:$0xf]
    %v4364 = vld [vmem:[%s5 + $0x1dc] sm:$0xf]
    %v4365 = vld [vmem:[%s5 + $0x1e0] sm:$0xf]
    %v4366 = vld [vmem:[%s5 + $0x1e4] sm:$0xf]
    %v4367 = vld [vmem:[%s5 + $0x1e8] sm:$0xf]
    %v4368 = vld [vmem:[%s5 + $0x1ec] sm:$0xf]
    %v4369 = vld [vmem:[%s5 + $0x1f0] sm:$0xf]
    %v4370 = vld [vmem:[%s5 + $0x1f4] sm:$0xf]
    %v4371 = vld [vmem:[%s5 + $0x1f8] sm:$0xf]
    %v4372 = vld [vmem:[%s5 + $0x1fc] sm:$0xf]
    %v4373 = vld [vmem:[%s5 + $0x200] sm:$0xf]
    %v4374 = vld [vmem:[%s5 + $0x204] sm:$0xf]
    %v4375 = vld [vmem:[%s5 + $0x208] sm:$0xf]
    %v4376 = vld [vmem:[%s5 + $0x20c] sm:$0xf]
    %v4377 = vld [vmem:[%s5 + $0x210] sm:$0xf]
    %v4378 = vld [vmem:[%s5 + $0x214] sm:$0xf]
    %v4379 = vld [vmem:[%s5 + $0x218] sm:$0xf]
    %v4380 = vld [vmem:[%s5 + $0x21c] sm:$0xf]
    %v4381 = vld [vmem:[%s5 + $0x220] sm:$0xf]
    %v4382 = vld [vmem:[%s5 + $0x224] sm:$0xf]
    %v4383 = vld [vmem:[%s5 + $0x228] sm:$0xf]
    %v4384 = vld [vmem:[%s5 + $0x22c] sm:$0xf]
    %v4385 = vld [vmem:[%s5 + $0x230] sm:$0xf]
    %v4386 = vld [vmem:[%s5 + $0x234] sm:$0xf]
    %v4387 = vld [vmem:[%s5 + $0x238] sm:$0xf]
    %v4388 = vld [vmem:[%s5 + $0x23c] sm:$0xf]
    %v4389 = vld [vmem:[%s5 + $0x240] sm:$0xf]
    %v4390 = vld [vmem:[%s5 + $0x244] sm:$0xf]
    %v4391 = vld [vmem:[%s5 + $0x248] sm:$0xf]
    %v4392 = vld [vmem:[%s5 + $0x24c] sm:$0xf]
    %v4393 = vld [vmem:[%s5 + $0x250] sm:$0xf]
    %v4394 = vld [vmem:[%s5 + $0x254] sm:$0xf]
    %v4395 = vld [vmem:[%s5 + $0x258] sm:$0xf]
    %v4396 = vld [vmem:[%s5 + $0x25c] sm:$0xf]
    %v4397 = vld [vmem:[%s5 + $0x260] sm:$0xf]
    %v4398 = vld [vmem:[%s5 + $0x264] sm:$0xf]
    %v4399 = vld [vmem:[%s5 + $0x268] sm:$0xf]
    %v4400 = vld [vmem:[%s5 + $0x26c] sm:$0xf]
    %v4401 = vld [vmem:[%s5 + $0x270] sm:$0xf]
    %v4402 = vld [vmem:[%s5 + $0x274] sm:$0xf]
    %v4403 = vld [vmem:[%s5 + $0x278] sm:$0xf]
    %v4404 = vld [vmem:[%s5 + $0x27c] sm:$0xf]
    %v4405 = vld [vmem:[%s5 + $0x280] sm:$0xf]
    %v4406 = vld [vmem:[%s5 + $0x284] sm:$0xf]
    %v4407 = vld [vmem:[%s5 + $0x288] sm:$0xf]
    %v4408 = vld [vmem:[%s5 + $0x28c] sm:$0xf]
    %v4409 = vld [vmem:[%s5 + $0x290] sm:$0xf]
    %v4410 = vld [vmem:[%s5 + $0x294] sm:$0xf]
    %v4411 = vld [vmem:[%s5 + $0x298] sm:$0xf]
    %v4412 = vld [vmem:[%s5 + $0x29c] sm:$0xf]
    %v4413 = vld [vmem:[%s5 + $0x2a0] sm:$0xf]
    %v4414 = vld [vmem:[%s5 + $0x2a4] sm:$0xf]
    %v4415 = vld [vmem:[%s5 + $0x2a8] sm:$0xf]
    %v4416 = vld [vmem:[%s5 + $0x2ac] sm:$0xf]
    %v4417 = vld [vmem:[%s5 + $0x2b0] sm:$0xf]
    %v4418 = vld [vmem:[%s5 + $0x2b4] sm:$0xf]
    %v4419 = vld [vmem:[%s5 + $0x2b8] sm:$0xf]
    %v4420 = vld [vmem:[%s5 + $0x2bc] sm:$0xf]
    %v4421 = vld [vmem:[%s5 + $0x2c0] sm:$0xf]
    %v4422 = vld [vmem:[%s5 + $0x2c4] sm:$0xf]
    %v4423 = vld [vmem:[%s5 + $0x2c8] sm:$0xf]
    %v4424 = vld [vmem:[%s5 + $0x2cc] sm:$0xf]
    %v4425 = vld [vmem:[%s5 + $0x2d0] sm:$0xf]
    %v4426 = vld [vmem:[%s5 + $0x2d4] sm:$0xf]
    %v4427 = vld [vmem:[%s5 + $0x2d8] sm:$0xf]
    %v4428 = vld [vmem:[%s5 + $0x2dc] sm:$0xf]
    %v4429 = vld [vmem:[%s5 + $0x2e0] sm:$0xf]
    %v4430 = vld [vmem:[%s5 + $0x2e4] sm:$0xf]
    %v4431 = vld [vmem:[%s5 + $0x2e8] sm:$0xf]
    %v4432 = vld [vmem:[%s5 + $0x2ec] sm:$0xf]
    %v4433 = vld [vmem:[%s5 + $0x2f0] sm:$0xf]
    %v4434 = vld [vmem:[%s5 + $0x2f4] sm:$0xf]
    %v4435 = vld [vmem:[%s5 + $0x2f8] sm:$0xf]
    %v4436 = vld [vmem:[%s5 + $0x2fc] sm:$0xf]
    %v4467 = vunpack.c.l.b16 %v2822
    %v4468 = vunpack.c.h.b16 %v2822
    %v4469 = vunpack.c.l.b16 %v2823
    %v4470 = vunpack.c.h.b16 %v2823
    %v4471 = vunpack.c.l.b16 %v2824
    %v4472 = vunpack.c.h.b16 %v2824
    %v4473 = vunpack.c.l.b16 %v2828
    %v4474 = vunpack.c.h.b16 %v2828
    %v4475 = vunpack.c.l.b16 %v2829
    %v4476 = vunpack.c.h.b16 %v2829
    %v4477 = vunpack.c.l.b16 %v2830
    %v4478 = vunpack.c.h.b16 %v2830
    %v4479 = vunpack.c.l.b16 %v2834
    %v4480 = vunpack.c.h.b16 %v2834
    %v4481 = vunpack.c.l.b16 %v2835
    %v4482 = vunpack.c.h.b16 %v2835
    %v4483 = vunpack.c.l.b16 %v2836
    %v4484 = vunpack.c.h.b16 %v2836
    %v4485 = vunpack.c.l.b16 %v2840
    %v4486 = vunpack.c.h.b16 %v2840
    %v4487 = vunpack.c.l.b16 %v2841
    %v4488 = vunpack.c.h.b16 %v2841
    %v4489 = vunpack.c.l.b16 %v2842
    %v4490 = vunpack.c.h.b16 %v2842
    %v4491 = vunpack.c.l.b16 %v2846
    %v4492 = vunpack.c.h.b16 %v2846
    %v4493 = vunpack.c.l.b16 %v2847
    %v4494 = vunpack.c.h.b16 %v2847
    %v4495 = vunpack.c.l.b16 %v2848
    %v4496 = vunpack.c.h.b16 %v2848
    %v4497 = vunpack.c.l.b16 %v2852
    %v4498 = vunpack.c.h.b16 %v2852
    %v4499 = vunpack.c.l.b16 %v2853
    %v4500 = vunpack.c.h.b16 %v2853
    %v4501 = vunpack.c.l.b16 %v2854
    %v4502 = vunpack.c.h.b16 %v2854
    %v4503 = vunpack.c.l.b16 %v2858
    %v4504 = vunpack.c.h.b16 %v2858
    %v4505 = vunpack.c.l.b16 %v2859
    %v4506 = vunpack.c.h.b16 %v2859
    %v4507 = vunpack.c.l.b16 %v2860
    %v4508 = vunpack.c.h.b16 %v2860
    %v4509 = vunpack.c.l.b16 %v2864
    %v4510 = vunpack.c.h.b16 %v2864
    %v4511 = vunpack.c.l.b16 %v2865
    %v4512 = vunpack.c.h.b16 %v2865
    %v4513 = vunpack.c.l.b16 %v2866
    %v4514 = vunpack.c.h.b16 %v2866
    %v4515 = vunpack.c.l.b16 %v2870
    %v4516 = vunpack.c.h.b16 %v2870
    %v4517 = vunpack.c.l.b16 %v2871
    %v4518 = vunpack.c.h.b16 %v2871
    %v4519 = vunpack.c.l.b16 %v2872
    %v4520 = vunpack.c.h.b16 %v2872
    %v4521 = vunpack.c.l.b16 %v2876
    %v4522 = vunpack.c.h.b16 %v2876
    %v4523 = vunpack.c.l.b16 %v2877
    %v4524 = vunpack.c.h.b16 %v2877
    %v4525 = vunpack.c.l.b16 %v2878
    %v4526 = vunpack.c.h.b16 %v2878
    %v4527 = vpack.c.b16 %v4473, %v4467
    %v4528 = vpack.c.b16 %v4474, %v4468
    %v4529 = vpack.c.b16 %v4475, %v4469
    %v4530 = vpack.c.b16 %v4476, %v4470
    %v4531 = vpack.c.b16 %v4477, %v4471
    %v4532 = vpack.c.b16 %v4478, %v4472
    %v4533 = vpack.c.b16 %v4485, %v4479
    %v4534 = vpack.c.b16 %v4486, %v4480
    %v4535 = vpack.c.b16 %v4487, %v4481
    %v4536 = vpack.c.b16 %v4488, %v4482
    %v4537 = vpack.c.b16 %v4489, %v4483
    %v4538 = vpack.c.b16 %v4490, %v4484
    %v4539 = vpack.c.b16 %v4497, %v4491
    %v4540 = vpack.c.b16 %v4498, %v4492
    %v4541 = vpack.c.b16 %v4499, %v4493
    %v4542 = vpack.c.b16 %v4500, %v4494
    %v4543 = vpack.c.b16 %v4501, %v4495
    %v4544 = vpack.c.b16 %v4502, %v4496
    %v4545 = vpack.c.b16 %v4509, %v4503
    %v4546 = vpack.c.b16 %v4510, %v4504
    %v4547 = vpack.c.b16 %v4511, %v4505
    %v4548 = vpack.c.b16 %v4512, %v4506
    %v4549 = vpack.c.b16 %v4513, %v4507
    %v4550 = vpack.c.b16 %v4514, %v4508
    %v4551 = vpack.c.b16 %v4521, %v4515
    %v4552 = vpack.c.b16 %v4522, %v4516
    %v4553 = vpack.c.b16 %v4523, %v4517
    %v4554 = vpack.c.b16 %v4524, %v4518
    %v4555 = vpack.c.b16 %v4525, %v4519
    %v4556 = vpack.c.b16 %v4526, %v4520
    %v4779 = vunpack.c.l.b16 %v4245
    %v4780 = vunpack.c.l.b16 %v4246
    %v4781 = vunpack.c.l.b16 %v4247
    %v4782 = vunpack.c.l.b16 %v4248
    %v4783 = vunpack.c.l.b16 %v4249
    %v4784 = vunpack.c.l.b16 %v4250
    %v4785 = vunpack.c.l.b16 %v4251
    %v4786 = vunpack.c.l.b16 %v4252
    %v4787 = vunpack.c.l.b16 %v4253
    %v4788 = vunpack.c.l.b16 %v4254
    %v4789 = vunpack.c.l.b16 %v4255
    %v4790 = vunpack.c.l.b16 %v4256
    %v4791 = vunpack.c.l.b16 %v4257
    %v4792 = vunpack.c.l.b16 %v4258
    %v4793 = vunpack.c.l.b16 %v4259
    %v4794 = vunpack.c.l.b16 %v4260
    %v4795 = vunpack.c.l.b16 %v4261
    %v4796 = vunpack.c.l.b16 %v4262
    %v4797 = vunpack.c.l.b16 %v4263
    %v4798 = vunpack.c.l.b16 %v4264
    %v4799 = vunpack.c.l.b16 %v4265
    %v4800 = vunpack.c.l.b16 %v4266
    %v4801 = vunpack.c.l.b16 %v4267
    %v4802 = vunpack.c.l.b16 %v4268
    %v4803 = vunpack.c.l.b16 %v4269
    %v4804 = vunpack.c.l.b16 %v4270
    %v4805 = vunpack.c.l.b16 %v4271
    %v4806 = vunpack.c.l.b16 %v4272
    %v4807 = vunpack.c.l.b16 %v4273
    %v4808 = vunpack.c.l.b16 %v4274
    %v4809 = vunpack.c.l.b16 %v4275
    %v4810 = vunpack.c.l.b16 %v4276
    %v4811 = vunpack.c.l.b16 %v4277
    %v4812 = vunpack.c.l.b16 %v4278
    %v4813 = vunpack.c.l.b16 %v4279
    %v4814 = vunpack.c.l.b16 %v4280
    %v4815 = vunpack.c.l.b16 %v4281
    %v4816 = vunpack.c.l.b16 %v4282
    %v4817 = vunpack.c.l.b16 %v4283
    %v4818 = vunpack.c.l.b16 %v4284
    %v4819 = vunpack.c.l.b16 %v4285
    %v4820 = vunpack.c.l.b16 %v4286
    %v4821 = vunpack.c.l.b16 %v4287
    %v4822 = vunpack.c.l.b16 %v4288
    %v4823 = vunpack.c.l.b16 %v4289
    %v4824 = vunpack.c.l.b16 %v4290
    %v4825 = vunpack.c.l.b16 %v4291
    %v4826 = vunpack.c.l.b16 %v4292
    %v4827 = vunpack.c.l.b16 %v4293
    %v4828 = vunpack.c.l.b16 %v4294
    %v4829 = vunpack.c.l.b16 %v4295
    %v4830 = vunpack.c.l.b16 %v4296
    %v4831 = vunpack.c.l.b16 %v4297
    %v4832 = vunpack.c.l.b16 %v4298
    %v4833 = vunpack.c.l.b16 %v4299
    %v4834 = vunpack.c.l.b16 %v4300
    %v4835 = vunpack.c.l.b16 %v4301
    %v4836 = vunpack.c.l.b16 %v4302
    %v4837 = vunpack.c.l.b16 %v4303
    %v4838 = vunpack.c.l.b16 %v4304
    %v4839 = vunpack.c.l.b16 %v4305
    %v4840 = vunpack.c.l.b16 %v4306
    %v4841 = vunpack.c.l.b16 %v4307
    %v4842 = vunpack.c.l.b16 %v4308
    %v4843 = vunpack.c.l.b16 %v4309
    %v4844 = vunpack.c.l.b16 %v4310
    %v4845 = vunpack.c.l.b16 %v4311
    %v4846 = vunpack.c.l.b16 %v4312
    %v4847 = vunpack.c.l.b16 %v4313
    %v4848 = vunpack.c.l.b16 %v4314
    %v4849 = vunpack.c.l.b16 %v4315
    %v4850 = vunpack.c.l.b16 %v4316
    %v4851 = vunpack.c.l.b16 %v4317
    %v4852 = vunpack.c.l.b16 %v4318
    %v4853 = vunpack.c.l.b16 %v4319
    %v4854 = vunpack.c.l.b16 %v4320
    %v4855 = vunpack.c.l.b16 %v4321
    %v4856 = vunpack.c.l.b16 %v4322
    %v4857 = vunpack.c.l.b16 %v4323
    %v4858 = vunpack.c.l.b16 %v4324
    %v4859 = vunpack.c.l.b16 %v4325
    %v4860 = vunpack.c.l.b16 %v4326
    %v4861 = vunpack.c.l.b16 %v4327
    %v4862 = vunpack.c.l.b16 %v4328
    %v4863 = vunpack.c.l.b16 %v4329
    %v4864 = vunpack.c.l.b16 %v4330
    %v4865 = vunpack.c.l.b16 %v4331
    %v4866 = vunpack.c.l.b16 %v4332
    %v4867 = vunpack.c.l.b16 %v4333
    %v4868 = vunpack.c.l.b16 %v4334
    %v4869 = vunpack.c.l.b16 %v4335
    %v4870 = vunpack.c.l.b16 %v4336
    %v4871 = vunpack.c.l.b16 %v4337
    %v4872 = vunpack.c.l.b16 %v4338
    %v4873 = vunpack.c.l.b16 %v4339
    %v4874 = vunpack.c.l.b16 %v4340
    %v4875 = vunpack.c.l.b16 %v4341
    %v4876 = vunpack.c.l.b16 %v4342
    %v4877 = vunpack.c.l.b16 %v4343
    %v4878 = vunpack.c.l.b16 %v4344
    %v4879 = vunpack.c.l.b16 %v4345
    %v4880 = vunpack.c.l.b16 %v4346
    %v4881 = vunpack.c.l.b16 %v4347
    %v4882 = vunpack.c.l.b16 %v4348
    %v4883 = vunpack.c.l.b16 %v4349
    %v4884 = vunpack.c.l.b16 %v4350
    %v4885 = vunpack.c.l.b16 %v4351
    %v4886 = vunpack.c.l.b16 %v4352
    %v4887 = vunpack.c.l.b16 %v4353
    %v4888 = vunpack.c.l.b16 %v4354
    %v4889 = vunpack.c.l.b16 %v4355
    %v4890 = vunpack.c.l.b16 %v4356
    %v4891 = vunpack.c.l.b16 %v4357
    %v4892 = vunpack.c.l.b16 %v4358
    %v4893 = vunpack.c.l.b16 %v4359
    %v4894 = vunpack.c.l.b16 %v4360
    %v4895 = vunpack.c.l.b16 %v4361
    %v4896 = vunpack.c.l.b16 %v4362
    %v4897 = vunpack.c.l.b16 %v4363
    %v4898 = vunpack.c.l.b16 %v4364
    %v4899 = vunpack.c.l.b16 %v4365
    %v4900 = vunpack.c.l.b16 %v4366
    %v4901 = vunpack.c.l.b16 %v4367
    %v4902 = vunpack.c.l.b16 %v4368
    %v4903 = vunpack.c.l.b16 %v4369
    %v4904 = vunpack.c.l.b16 %v4370
    %v4905 = vunpack.c.l.b16 %v4371
    %v4906 = vunpack.c.l.b16 %v4372
    %v4907 = vunpack.c.l.b16 %v4373
    %v4908 = vunpack.c.l.b16 %v4374
    %v4909 = vunpack.c.l.b16 %v4375
    %v4910 = vunpack.c.l.b16 %v4376
    %v4911 = vunpack.c.l.b16 %v4377
    %v4912 = vunpack.c.l.b16 %v4378
    %v4913 = vunpack.c.l.b16 %v4379
    %v4914 = vunpack.c.l.b16 %v4380
    %v4915 = vunpack.c.l.b16 %v4381
    %v4916 = vunpack.c.l.b16 %v4382
    %v4917 = vunpack.c.l.b16 %v4383
    %v4918 = vunpack.c.l.b16 %v4384
    %v4919 = vunpack.c.l.b16 %v4385
    %v4920 = vunpack.c.l.b16 %v4386
    %v4921 = vunpack.c.l.b16 %v4387
    %v4922 = vunpack.c.l.b16 %v4388
    %v4923 = vunpack.c.l.b16 %v4389
    %v4924 = vunpack.c.l.b16 %v4390
    %v4925 = vunpack.c.l.b16 %v4391
    %v4926 = vunpack.c.l.b16 %v4392
    %v4927 = vunpack.c.l.b16 %v4393
    %v4928 = vunpack.c.l.b16 %v4394
    %v4929 = vunpack.c.l.b16 %v4395
    %v4930 = vunpack.c.l.b16 %v4396
    %v4931 = vunpack.c.l.b16 %v4397
    %v4932 = vunpack.c.l.b16 %v4398
    %v4933 = vunpack.c.l.b16 %v4399
    %v4934 = vunpack.c.l.b16 %v4400
    %v4935 = vunpack.c.l.b16 %v4401
    %v4936 = vunpack.c.l.b16 %v4402
    %v4937 = vunpack.c.l.b16 %v4403
    %v4938 = vunpack.c.l.b16 %v4404
    %v4939 = vunpack.c.l.b16 %v4405
    %v4940 = vunpack.c.l.b16 %v4406
    %v4941 = vunpack.c.l.b16 %v4407
    %v4942 = vunpack.c.l.b16 %v4408
    %v4943 = vunpack.c.l.b16 %v4409
    %v4944 = vunpack.c.l.b16 %v4410
    %v4945 = vunpack.c.l.b16 %v4411
    %v4946 = vunpack.c.l.b16 %v4412
    %v4947 = vunpack.c.l.b16 %v4413
    %v4948 = vunpack.c.l.b16 %v4414
    %v4949 = vunpack.c.l.b16 %v4415
    %v4950 = vunpack.c.l.b16 %v4416
    %v4951 = vunpack.c.l.b16 %v4417
    %v4952 = vunpack.c.l.b16 %v4418
    %v4953 = vunpack.c.l.b16 %v4419
    %v4954 = vunpack.c.l.b16 %v4420
    %v4955 = vunpack.c.l.b16 %v4421
    %v4956 = vunpack.c.l.b16 %v4422
    %v4957 = vunpack.c.l.b16 %v4423
    %v4958 = vunpack.c.l.b16 %v4424
    %v4959 = vunpack.c.l.b16 %v4425
    %v4960 = vunpack.c.l.b16 %v4426
    %v4961 = vunpack.c.l.b16 %v4427
    %v4962 = vunpack.c.l.b16 %v4428
    %v4963 = vunpack.c.l.b16 %v4429
    %v4964 = vunpack.c.l.b16 %v4430
    %v4965 = vunpack.c.l.b16 %v4431
    %v4966 = vunpack.c.l.b16 %v4432
    %v4967 = vunpack.c.l.b16 %v4433
    %v4968 = vunpack.c.l.b16 %v4434
    %v4969 = vunpack.c.l.b16 %v4435
    %v4970 = vunpack.c.l.b16 %v4436
    %v4971 = vpack.c.b16 %v4780, %v4779
    %v4972 = vpack.c.b16 %v4782, %v4781
    %v4973 = vpack.c.b16 %v4784, %v4783
    %v4974 = vpack.c.b16 %v4786, %v4785
    %v4975 = vpack.c.b16 %v4788, %v4787
    %v4976 = vpack.c.b16 %v4790, %v4789
    %v4977 = vpack.c.b16 %v4792, %v4791
    %v4978 = vpack.c.b16 %v4794, %v4793
    %v4979 = vpack.c.b16 %v4796, %v4795
    %v4980 = vpack.c.b16 %v4798, %v4797
    %v4981 = vpack.c.b16 %v4800, %v4799
    %v4982 = vpack.c.b16 %v4802, %v4801
    %v4983 = vpack.c.b16 %v4804, %v4803
    %v4984 = vpack.c.b16 %v4806, %v4805
    %v4985 = vpack.c.b16 %v4808, %v4807
    %v4986 = vpack.c.b16 %v4810, %v4809
    %v4987 = vpack.c.b16 %v4812, %v4811
    %v4988 = vpack.c.b16 %v4814, %v4813
    %v4989 = vpack.c.b16 %v4816, %v4815
    %v4990 = vpack.c.b16 %v4818, %v4817
    %v4991 = vpack.c.b16 %v4820, %v4819
    %v4992 = vpack.c.b16 %v4822, %v4821
    %v4993 = vpack.c.b16 %v4824, %v4823
    %v4994 = vpack.c.b16 %v4826, %v4825
    %v4995 = vpack.c.b16 %v4828, %v4827
    %v4996 = vpack.c.b16 %v4830, %v4829
    %v4997 = vpack.c.b16 %v4832, %v4831
    %v4998 = vpack.c.b16 %v4834, %v4833
    %v4999 = vpack.c.b16 %v4836, %v4835
    %v5000 = vpack.c.b16 %v4838, %v4837
    %v5001 = vpack.c.b16 %v4840, %v4839
    %v5002 = vpack.c.b16 %v4842, %v4841
    %v5003 = vpack.c.b16 %v4844, %v4843
    %v5004 = vpack.c.b16 %v4846, %v4845
    %v5005 = vpack.c.b16 %v4848, %v4847
    %v5006 = vpack.c.b16 %v4850, %v4849
    %v5007 = vpack.c.b16 %v4852, %v4851
    %v5008 = vpack.c.b16 %v4854, %v4853
    %v5009 = vpack.c.b16 %v4856, %v4855
    %v5010 = vpack.c.b16 %v4858, %v4857
    %v5011 = vpack.c.b16 %v4860, %v4859
    %v5012 = vpack.c.b16 %v4862, %v4861
    %v5013 = vpack.c.b16 %v4864, %v4863
    %v5014 = vpack.c.b16 %v4866, %v4865
    %v5015 = vpack.c.b16 %v4868, %v4867
    %v5016 = vpack.c.b16 %v4870, %v4869
    %v5017 = vpack.c.b16 %v4872, %v4871
    %v5018 = vpack.c.b16 %v4874, %v4873
    %v5019 = vpack.c.b16 %v4876, %v4875
    %v5020 = vpack.c.b16 %v4878, %v4877
    %v5021 = vpack.c.b16 %v4880, %v4879
    %v5022 = vpack.c.b16 %v4882, %v4881
    %v5023 = vpack.c.b16 %v4884, %v4883
    %v5024 = vpack.c.b16 %v4886, %v4885
    %v5025 = vpack.c.b16 %v4888, %v4887
    %v5026 = vpack.c.b16 %v4890, %v4889
    %v5027 = vpack.c.b16 %v4892, %v4891
    %v5028 = vpack.c.b16 %v4894, %v4893
    %v5029 = vpack.c.b16 %v4896, %v4895
    %v5030 = vpack.c.b16 %v4898, %v4897
    %v5031 = vpack.c.b16 %v4900, %v4899
    %v5032 = vpack.c.b16 %v4902, %v4901
    %v5033 = vpack.c.b16 %v4904, %v4903
    %v5034 = vpack.c.b16 %v4906, %v4905
    %v5035 = vpack.c.b16 %v4908, %v4907
    %v5036 = vpack.c.b16 %v4910, %v4909
    %v5037 = vpack.c.b16 %v4912, %v4911
    %v5038 = vpack.c.b16 %v4914, %v4913
    %v5039 = vpack.c.b16 %v4916, %v4915
    %v5040 = vpack.c.b16 %v4918, %v4917
    %v5041 = vpack.c.b16 %v4920, %v4919
    %v5042 = vpack.c.b16 %v4922, %v4921
    %v5043 = vpack.c.b16 %v4924, %v4923
    %v5044 = vpack.c.b16 %v4926, %v4925
    %v5045 = vpack.c.b16 %v4928, %v4927
    %v5046 = vpack.c.b16 %v4930, %v4929
    %v5047 = vpack.c.b16 %v4932, %v4931
    %v5048 = vpack.c.b16 %v4934, %v4933
    %v5049 = vpack.c.b16 %v4936, %v4935
    %v5050 = vpack.c.b16 %v4938, %v4937
    %v5051 = vpack.c.b16 %v4940, %v4939
    %v5052 = vpack.c.b16 %v4942, %v4941
    %v5053 = vpack.c.b16 %v4944, %v4943
    %v5054 = vpack.c.b16 %v4946, %v4945
    %v5055 = vpack.c.b16 %v4948, %v4947
    %v5056 = vpack.c.b16 %v4950, %v4949
    %v5057 = vpack.c.b16 %v4952, %v4951
    %v5058 = vpack.c.b16 %v4954, %v4953
    %v5059 = vpack.c.b16 %v4956, %v4955
    %v5060 = vpack.c.b16 %v4958, %v4957
    %v5061 = vpack.c.b16 %v4960, %v4959
    %v5062 = vpack.c.b16 %v4962, %v4961
    %v5063 = vpack.c.b16 %v4964, %v4963
    %v5064 = vpack.c.b16 %v4966, %v4965
    %v5065 = vpack.c.b16 %v4968, %v4967
    %v5066 = vpack.c.b16 %v4970, %v4969
    %5163 = vmatprep.subr.bf16.mxu0 0
    %5164 = vmatpush1.bf16.msra.mxu0 %v4971
    %5165 = vmatprep.subr.bf16.mxu0 0
    %5166 = vmatpush1.bf16.msra.mxu0 %v4972
    %5167 = vmatprep.subr.bf16.mxu0 0
    %5168 = vmatpush1.bf16.msra.mxu0 %v4973
    %5169 = vmatprep.subr.bf16.mxu0 0
    %5170 = vmatpush1.bf16.msra.mxu0 %v4974
    %5171 = vmatprep.subr.bf16.mxu0 0
    %5172 = vmatpush1.bf16.msra.mxu0 %v4975
    %5173 = vmatprep.subr.bf16.mxu0 0
    %5174 = vmatpush1.bf16.msra.mxu0 %v4976
    %5175 = vmatprep.subr.bf16.mxu0 0
    %5176 = vmatpush1.bf16.msra.mxu0 %v4977
    %5177 = vmatprep.subr.bf16.mxu0 0
    %5178 = vmatpush1.bf16.msra.mxu0 %v4978
    %5179 = vmatprep.subr.bf16.mxu0 0
    %5180 = vmatpush1.bf16.msra.mxu0 %v4979
    %5181 = vmatprep.subr.bf16.mxu0 0
    %5182 = vmatpush1.bf16.msra.mxu0 %v4980
    %5183 = vmatprep.subr.bf16.mxu0 0
    %5184 = vmatpush1.bf16.msra.mxu0 %v4981
    %5185 = vmatprep.subr.bf16.mxu0 0
    %5186 = vmatpush1.bf16.msra.mxu0 %v4982
    %5187 = vmatprep.subr.bf16.mxu0 0
    %5188 = vmatpush1.bf16.msra.mxu0 %v4983
    %5189 = vmatprep.subr.bf16.mxu0 0
    %5190 = vmatpush1.bf16.msra.mxu0 %v4984
    %5191 = vmatprep.subr.bf16.mxu0 0
    %5192 = vmatpush1.bf16.msra.mxu0 %v4985
    %5193 = vmatprep.subr.bf16.mxu0 0
    %5194 = vmatpush1.bf16.msra.mxu0 %v4986
    %5195 = vmatprep.mubr.bf16.mxu0 %v2942
    %5196 = vmatmul.mubr.bf16.gmra.mrb[0].mxu0 %v2941
    %v5197 = vpop.f32.mrb[0].mxu0
    %v5198 = vadd.f32 0.0, %v5197
    %v5199 = vpop.f32.mrb[0].mxu0
    %v5200 = vpop.f32.mrb[0].mxu0
    %v5201 = vadd.f32 0.0, %v5200
    %v5202 = vpop.f32.mrb[0].mxu0
    %5203 = vmatprep.mubr.bf16.mxu0 %v2944
    %5204 = vmatmul.mubr.bf16.gmra.mrb[0].mxu0 %v2943
    %v5205 = vpop.f32.mrb[0].mxu0
    %v5206 = vadd.f32 0.0, %v5205
    %v5207 = vpop.f32.mrb[0].mxu0
    %v5208 = vpop.f32.mrb[0].mxu0
    %v5209 = vadd.f32 0.0, %v5208
    %v5210 = vpop.f32.mrb[0].mxu0
    %5211 = vmatprep.mubr.bf16.mxu0 %v2946
    %5212 = vmatmul.mubr.bf16.gmra.mrb[0].mxu0 %v2945
    %v5213 = vpop.f32.mrb[0].mxu0
    %v5214 = vadd.f32 0.0, %v5213
    %v5215 = vpop.f32.mrb[0].mxu0
    %v5216 = vpop.f32.mrb[0].mxu0
    %v5217 = vadd.f32 0.0, %v5216
    %v5218 = vpop.f32.mrb[0].mxu0
    %5219 = vmatprep.mubr.bf16.mxu0 %v2948
    %5220 = vmatmul.mubr.bf16.gmra.mrb[0].mxu0 %v2947
    %v5221 = vpop.f32.mrb[0].mxu0
    %v5222 = vadd.f32 0.0, %v5221
    %v5223 = vpop.f32.mrb[0].mxu0
    %v5224 = vpop.f32.mrb[0].mxu0
    %v5225 = vadd.f32 0.0, %v5224
    %v5226 = vpop.f32.mrb[0].mxu0
    %5227 = vmatprep.mubr.bf16.mxu0 %v2950
    %5228 = vmatmul.mubr.bf16.gmra.mrb[0].mxu0 %v2949
    %v5229 = vpop.f32.mrb[0].mxu0
    %v5230 = vadd.f32 0.0, %v5229
    %v5231 = vpop.f32.mrb[0].mxu0
    %v5232 = vpop.f32.mrb[0].mxu0
    %v5233 = vadd.f32 0.0, %v5232
    %v5234 = vpop.f32.mrb[0].mxu0
    %5235 = vdwg.mxu0
    %5236 = vmatprep.subr.bf16.mxu0 0
    %5237 = vmatpush1.bf16.msra.mxu0 %v4987
    %5238 = vmatprep.subr.bf16.mxu0 0
    %5239 = vmatpush1.bf16.msra.mxu0 %v4988
    %5240 = vmatprep.subr.bf16.mxu0 0
    %5241 = vmatpush1.bf16.msra.mxu0 %v4989
    %5242 = vmatprep.subr.bf16.mxu0 0
    %5243 = vmatpush1.bf16.msra.mxu0 %v4990
    %5244 = vmatprep.subr.bf16.mxu0 0
    %5245 = vmatpush1.bf16.msra.mxu0 %v4991
    %5246 = vmatprep.subr.bf16.mxu0 0
    %5247 = vmatpush1.bf16.msra.mxu0 %v4992
    %5248 = vmatprep.subr.bf16.mxu0 0
    %5249 = vmatpush1.bf16.msra.mxu0 %v4993
    %5250 = vmatprep.subr.bf16.mxu0 0
    %5251 = vmatpush1.bf16.msra.mxu0 %v4994
    %5252 = vmatprep.subr.bf16.mxu0 0
    %5253 = vmatpush1.bf16.msra.mxu0 %v4995
    %5254 = vmatprep.subr.bf16.mxu0 0
    %5255 = vmatpush1.bf16.msra.mxu0 %v4996
    %5256 = vmatprep.subr.bf16.mxu0 0
    %5257 = vmatpush1.bf16.msra.mxu0 %v4997
    %5258 = vmatprep.subr.bf16.mxu0 0
    %5259 = vmatpush1.bf16.msra.mxu0 %v4998
    %5260 = vmatprep.subr.bf16.mxu0 0
    %5261 = vmatpush1.bf16.msra.mxu0 %v4999
    %5262 = vmatprep.subr.bf16.mxu0 0
    %5263 = vmatpush1.bf16.msra.mxu0 %v5000
    %5264 = vmatprep.subr.bf16.mxu0 0
    %5265 = vmatpush1.bf16.msra.mxu0 %v5001
    %5266 = vmatprep.subr.bf16.mxu0 0
    %5267 = vmatpush1.bf16.msra.mxu0 %v5002
    %5268 = vmatprep.mubr.bf16.mxu0 %v3708
    %5269 = vmatmul.mubr.bf16.gmra.mrb[0].mxu0 %v3272
    %v5270 = vpop.f32.mrb[0].mxu0
    %v5271 = vadd.f32 %v5198, %v5270
    %v5272 = vpop.f32.mrb[0].mxu0
    %v5273 = vpop.f32.mrb[0].mxu0
    %v5274 = vadd.f32 %v5201, %v5273
    %v5275 = vpop.f32.mrb[0].mxu0
    %5276 = vmatprep.mubr.bf16.mxu0 %v3711
    %5277 = vmatmul.mubr.bf16.gmra.mrb[0].mxu0 %v3273
    %v5278 = vpop.f32.mrb[0].mxu0
    %v5279 = vadd.f32 %v5206, %v5278
    %v5280 = vpop.f32.mrb[0].mxu0
    %v5281 = vpop.f32.mrb[0].mxu0
    %v5282 = vadd.f32 %v5209, %v5281
    %v5283 = vpop.f32.mrb[0].mxu0
    %5284 = vmatprep.mubr.bf16.mxu0 %v3714
    %5285 = vmatmul.mubr.bf16.gmra.mrb[0].mxu0 %v3274
    %v5286 = vpop.f32.mrb[0].mxu0
    %v5287 = vadd.f32 %v5214, %v5286
    %v5288 = vpop.f32.mrb[0].mxu0
    %v5289 = vpop.f32.mrb[0].mxu0
    %v5290 = vadd.f32 %v5217, %v5289
    %v5291 = vpop.f32.mrb[0].mxu0
    %5292 = vmatprep.mubr.bf16.mxu0 %v3717
    %5293 = vmatmul.mubr.bf16.gmra.mrb[0].mxu0 %v3275
    %v5294 = vpop.f32.mrb[0].mxu0
    %v5295 = vadd.f32 %v5222, %v5294
    %v5296 = vpop.f32.mrb[0].mxu0
    %v5297 = vpop.f32.mrb[0].mxu0
    %v5298 = vadd.f32 %v5225, %v5297
    %v5299 = vpop.f32.mrb[0].mxu0
    %5300 = vmatprep.mubr.bf16.mxu0 %v3720
    %5301 = vmatmul.mubr.bf16.gmra.mrb[0].mxu0 %v3276
    %v5302 = vpop.f32.mrb[0].mxu0
    %v5303 = vadd.f32 %v5230, %v5302
    %v5304 = vpop.f32.mrb[0].mxu0
    %v5305 = vpop.f32.mrb[0].mxu0
    %v5306 = vadd.f32 %v5233, %v5305
    %v5307 = vpop.f32.mrb[0].mxu0
    %5308 = vdwg.mxu0
    %5309 = vmatprep.subr.bf16.mxu0 0
    %5310 = vmatpush1.bf16.msra.mxu0 %v5003
    %5311 = vmatprep.subr.bf16.mxu0 0
    %5312 = vmatpush1.bf16.msra.mxu0 %v5004
    %5313 = vmatprep.subr.bf16.mxu0 0
    %5314 = vmatpush1.bf16.msra.mxu0 %v5005
    %5315 = vmatprep.subr.bf16.mxu0 0
    %5316 = vmatpush1.bf16.msra.mxu0 %v5006
    %5317 = vmatprep.subr.bf16.mxu0 0
    %5318 = vmatpush1.bf16.msra.mxu0 %v5007
    %5319 = vmatprep.subr.bf16.mxu0 0
    %5320 = vmatpush1.bf16.msra.mxu0 %v5008
    %5321 = vmatprep.subr.bf16.mxu0 0
    %5322 = vmatpush1.bf16.msra.mxu0 %v5009
    %5323 = vmatprep.subr.bf16.mxu0 0
    %5324 = vmatpush1.bf16.msra.mxu0 %v5010
    %5325 = vmatprep.subr.bf16.mxu0 0
    %5326 = vmatpush1.bf16.msra.mxu0 %v5011
    %5327 = vmatprep.subr.bf16.mxu0 0
    %5328 = vmatpush1.bf16.msra.mxu0 %v5012
    %5329 = vmatprep.subr.bf16.mxu0 0
    %5330 = vmatpush1.bf16.msra.mxu0 %v5013
    %5331 = vmatprep.subr.bf16.mxu0 0
    %5332 = vmatpush1.bf16.msra.mxu0 %v5014
    %5333 = vmatprep.subr.bf16.mxu0 0
    %5334 = vmatpush1.bf16.msra.mxu0 %v5015
    %5335 = vmatprep.subr.bf16.mxu0 0
    %5336 = vmatpush1.bf16.msra.mxu0 %v5016
    %5337 = vmatprep.subr.bf16.mxu0 0
    %5338 = vmatpush1.bf16.msra.mxu0 %v5017
    %5339 = vmatprep.subr.bf16.mxu0 0
    %5340 = vmatpush1.bf16.msra.mxu0 %v5018
    %5341 = vmatprep.mubr.bf16.mxu0 %v3710
    %5342 = vmatmul.mubr.bf16.gmra.mrb[0].mxu0 %v3709
    %v5343 = vpop.f32.mrb[0].mxu0
    %v5344 = vadd.f32 %v5271, %v5343
    %v5345 = vpop.f32.mrb[0].mxu0
    %v5346 = vpop.f32.mrb[0].mxu0
    %v5347 = vadd.f32 %v5274, %v5346
    %v5348 = vpop.f32.mrb[0].mxu0
    %5349 = vmatprep.mubr.bf16.mxu0 %v3713
    %5350 = vmatmul.mubr.bf16.gmra.mrb[0].mxu0 %v3712
    %v5351 = vpop.f32.mrb[0].mxu0
    %v5352 = vadd.f32 %v5279, %v5351
    %v5353 = vpop.f32.mrb[0].mxu0
    %v5354 = vpop.f32.mrb[0].mxu0
    %v5355 = vadd.f32 %v5282, %v5354
    %v5356 = vpop.f32.mrb[0].mxu0
    %5357 = vmatprep.mubr.bf16.mxu0 %v3716
    %5358 = vmatmul.mubr.bf16.gmra.mrb[0].mxu0 %v3715
    %v5359 = vpop.f32.mrb[0].mxu0
    %v5360 = vadd.f32 %v5287, %v5359
    %v5361 = vpop.f32.mrb[0].mxu0
    %v5362 = vpop.f32.mrb[0].mxu0
    %v5363 = vadd.f32 %v5290, %v5362
    %v5364 = vpop.f32.mrb[0].mxu0
    %5365 = vmatprep.mubr.bf16.mxu0 %v3719
    %5366 = vmatmul.mubr.bf16.gmra.mrb[0].mxu0 %v3718
    %v5367 = vpop.f32.mrb[0].mxu0
    %v5368 = vadd.f32 %v5295, %v5367
    %v5369 = vpop.f32.mrb[0].mxu0
    %v5370 = vpop.f32.mrb[0].mxu0
    %v5371 = vadd.f32 %v5298, %v5370
    %v5372 = vpop.f32.mrb[0].mxu0
    %5373 = vmatprep.mubr.bf16.mxu0 %v3722
    %5374 = vmatmul.mubr.bf16.gmra.mrb[0].mxu0 %v3721
    %v5375 = vpop.f32.mrb[0].mxu0
    %v5376 = vadd.f32 %v5303, %v5375
    %v5377 = vpop.f32.mrb[0].mxu0
    %v5378 = vpop.f32.mrb[0].mxu0
    %v5379 = vadd.f32 %v5306, %v5378
    %v5380 = vpop.f32.mrb[0].mxu0
    %5381 = vdwg.mxu0
    %5382 = vmatprep.subr.bf16.mxu0 0
    %5383 = vmatpush1.bf16.msra.mxu0 %v5019
    %5384 = vmatprep.subr.bf16.mxu0 0
    %5385 = vmatpush1.bf16.msra.mxu0 %v5020
    %5386 = vmatprep.subr.bf16.mxu0 0
    %5387 = vmatpush1.bf16.msra.mxu0 %v5021
    %5388 = vmatprep.subr.bf16.mxu0 0
    %5389 = vmatpush1.bf16.msra.mxu0 %v5022
    %5390 = vmatprep.subr.bf16.mxu0 0
    %5391 = vmatpush1.bf16.msra.mxu0 %v5023
    %5392 = vmatprep.subr.bf16.mxu0 0
    %5393 = vmatpush1.bf16.msra.mxu0 %v5024
    %5394 = vmatprep.subr.bf16.mxu0 0
    %5395 = vmatpush1.bf16.msra.mxu0 %v5025
    %5396 = vmatprep.subr.bf16.mxu0 0
    %5397 = vmatpush1.bf16.msra.mxu0 %v5026
    %5398 = vmatprep.subr.bf16.mxu0 0
    %5399 = vmatpush1.bf16.msra.mxu0 %v5027
    %5400 = vmatprep.subr.bf16.mxu0 0
    %5401 = vmatpush1.bf16.msra.mxu0 %v5028
    %5402 = vmatprep.subr.bf16.mxu0 0
    %5403 = vmatpush1.bf16.msra.mxu0 %v5029
    %5404 = vmatprep.subr.bf16.mxu0 0
    %5405 = vmatpush1.bf16.msra.mxu0 %v5030
    %5406 = vmatprep.subr.bf16.mxu0 0
    %5407 = vmatpush1.bf16.msra.mxu0 %v5031
    %5408 = vmatprep.subr.bf16.mxu0 0
    %5409 = vmatpush1.bf16.msra.mxu0 %v5032
    %5410 = vmatprep.subr.bf16.mxu0 0
    %5411 = vmatpush1.bf16.msra.mxu0 %v5033
    %5412 = vmatprep.subr.bf16.mxu0 0
    %5413 = vmatpush1.bf16.msra.mxu0 %v5034
    %5414 = vmatprep.mubr.bf16.mxu0 %v4528
    %5415 = vmatmul.mubr.bf16.gmra.mrb[0].mxu0 %v4527
    %v5416 = vpop.f32.mrb[0].mxu0
    %v5417 = vadd.f32 %v5344, %v5416
    %v5418 = vpop.f32.mrb[0].mxu0
    %v5419 = vpop.f32.mrb[0].mxu0
    %v5420 = vadd.f32 %v5347, %v5419
    %v5421 = vpop.f32.mrb[0].mxu0
    %5422 = vmatprep.mubr.bf16.mxu0 %v4534
    %5423 = vmatmul.mubr.bf16.gmra.mrb[0].mxu0 %v4533
    %v5424 = vpop.f32.mrb[0].mxu0
    %v5425 = vadd.f32 %v5352, %v5424
    %v5426 = vpop.f32.mrb[0].mxu0
    %v5427 = vpop.f32.mrb[0].mxu0
    %v5428 = vadd.f32 %v5355, %v5427
    %v5429 = vpop.f32.mrb[0].mxu0
    %5430 = vmatprep.mubr.bf16.mxu0 %v4540
    %5431 = vmatmul.mubr.bf16.gmra.mrb[0].mxu0 %v4539
    %v5432 = vpop.f32.mrb[0].mxu0
    %v5433 = vadd.f32 %v5360, %v5432
    %v5434 = vpop.f32.mrb[0].mxu0
    %v5435 = vpop.f32.mrb[0].mxu0
    %v5436 = vadd.f32 %v5363, %v5435
    %v5437 = vpop.f32.mrb[0].mxu0
    %5438 = vmatprep.mubr.bf16.mxu0 %v4546
    %5439 = vmatmul.mubr.bf16.gmra.mrb[0].mxu0 %v4545
    %v5440 = vpop.f32.mrb[0].mxu0
    %v5441 = vadd.f32 %v5368, %v5440
    %v5442 = vpop.f32.mrb[0].mxu0
    %v5443 = vpop.f32.mrb[0].mxu0
    %v5444 = vadd.f32 %v5371, %v5443
    %v5445 = vpop.f32.mrb[0].mxu0
    %5446 = vmatprep.mubr.bf16.mxu0 %v4552
    %5447 = vmatmul.mubr.bf16.gmra.mrb[0].mxu0 %v4551
    %v5448 = vpop.f32.mrb[0].mxu0
    %v5449 = vadd.f32 %v5376, %v5448
    %v5450 = vpop.f32.mrb[0].mxu0
    %v5451 = vpop.f32.mrb[0].mxu0
    %v5452 = vadd.f32 %v5379, %v5451
    %v5453 = vpop.f32.mrb[0].mxu0
    %5454 = vdwg.mxu0
    %5455 = vmatprep.subr.bf16.mxu0 0
    %5456 = vmatpush1.bf16.msra.mxu0 %v5035
    %5457 = vmatprep.subr.bf16.mxu0 0
    %5458 = vmatpush1.bf16.msra.mxu0 %v5036
    %5459 = vmatprep.subr.bf16.mxu0 0
    %5460 = vmatpush1.bf16.msra.mxu0 %v5037
    %5461 = vmatprep.subr.bf16.mxu0 0
    %5462 = vmatpush1.bf16.msra.mxu0 %v5038
    %5463 = vmatprep.subr.bf16.mxu0 0
    %5464 = vmatpush1.bf16.msra.mxu0 %v5039
    %5465 = vmatprep.subr.bf16.mxu0 0
    %5466 = vmatpush1.bf16.msra.mxu0 %v5040
    %5467 = vmatprep.subr.bf16.mxu0 0
    %5468 = vmatpush1.bf16.msra.mxu0 %v5041
    %5469 = vmatprep.subr.bf16.mxu0 0
    %5470 = vmatpush1.bf16.msra.mxu0 %v5042
    %5471 = vmatprep.subr.bf16.mxu0 0
    %5472 = vmatpush1.bf16.msra.mxu0 %v5043
    %5473 = vmatprep.subr.bf16.mxu0 0
    %5474 = vmatpush1.bf16.msra.mxu0 %v5044
    %5475 = vmatprep.subr.bf16.mxu0 0
    %5476 = vmatpush1.bf16.msra.mxu0 %v5045
    %5477 = vmatprep.subr.bf16.mxu0 0
    %5478 = vmatpush1.bf16.msra.mxu0 %v5046
    %5479 = vmatprep.subr.bf16.mxu0 0
    %5480 = vmatpush1.bf16.msra.mxu0 %v5047
    %5481 = vmatprep.subr.bf16.mxu0 0
    %5482 = vmatpush1.bf16.msra.mxu0 %v5048
    %5483 = vmatprep.subr.bf16.mxu0 0
    %5484 = vmatpush1.bf16.msra.mxu0 %v5049
    %5485 = vmatprep.subr.bf16.mxu0 0
    %5486 = vmatpush1.bf16.msra.mxu0 %v5050
    %5487 = vmatprep.mubr.bf16.mxu0 %v4530
    %5488 = vmatmul.mubr.bf16.gmra.mrb[0].mxu0 %v4529
    %v5489 = vpop.f32.mrb[0].mxu0
    %v5490 = vadd.f32 %v5417, %v5489
    %v5491 = vpop.f32.mrb[0].mxu0
    %v5492 = vpop.f32.mrb[0].mxu0
    %v5493 = vadd.f32 %v5420, %v5492
    %v5494 = vpop.f32.mrb[0].mxu0
    %5495 = vmatprep.mubr.bf16.mxu0 %v4536
    %5496 = vmatmul.mubr.bf16.gmra.mrb[0].mxu0 %v4535
    %v5497 = vpop.f32.mrb[0].mxu0
    %v5498 = vadd.f32 %v5425, %v5497
    %v5499 = vpop.f32.mrb[0].mxu0
    %v5500 = vpop.f32.mrb[0].mxu0
    %v5501 = vadd.f32 %v5428, %v5500
    %v5502 = vpop.f32.mrb[0].mxu0
    %5503 = vmatprep.mubr.bf16.mxu0 %v4542
    %5504 = vmatmul.mubr.bf16.gmra.mrb[0].mxu0 %v4541
    %v5505 = vpop.f32.mrb[0].mxu0
    %v5506 = vadd.f32 %v5433, %v5505
    %v5507 = vpop.f32.mrb[0].mxu0
    %v5508 = vpop.f32.mrb[0].mxu0
    %v5509 = vadd.f32 %v5436, %v5508
    %v5510 = vpop.f32.mrb[0].mxu0
    %5511 = vmatprep.mubr.bf16.mxu0 %v4548
    %5512 = vmatmul.mubr.bf16.gmra.mrb[0].mxu0 %v4547
    %v5513 = vpop.f32.mrb[0].mxu0
    %v5514 = vadd.f32 %v5441, %v5513
    %v5515 = vpop.f32.mrb[0].mxu0
    %v5516 = vpop.f32.mrb[0].mxu0
    %v5517 = vadd.f32 %v5444, %v5516
    %v5518 = vpop.f32.mrb[0].mxu0
    %5519 = vmatprep.mubr.bf16.mxu0 %v4554
    %5520 = vmatmul.mubr.bf16.gmra.mrb[0].mxu0 %v4553
    %v5521 = vpop.f32.mrb[0].mxu0
    %v5522 = vadd.f32 %v5449, %v5521
    %v5523 = vpop.f32.mrb[0].mxu0
    %v5524 = vpop.f32.mrb[0].mxu0
    %v5525 = vadd.f32 %v5452, %v5524
    %v5526 = vpop.f32.mrb[0].mxu0
    %5527 = vdwg.mxu0
    %5528 = vmatprep.subr.bf16.mxu0 0
    %5529 = vmatpush1.bf16.msra.mxu0 %v5051
    %5530 = vmatprep.subr.bf16.mxu0 0
    %5531 = vmatpush1.bf16.msra.mxu0 %v5052
    %5532 = vmatprep.subr.bf16.mxu0 0
    %5533 = vmatpush1.bf16.msra.mxu0 %v5053
    %5534 = vmatprep.subr.bf16.mxu0 0
    %5535 = vmatpush1.bf16.msra.mxu0 %v5054
    %5536 = vmatprep.subr.bf16.mxu0 0
    %5537 = vmatpush1.bf16.msra.mxu0 %v5055
    %5538 = vmatprep.subr.bf16.mxu0 0
    %5539 = vmatpush1.bf16.msra.mxu0 %v5056
    %5540 = vmatprep.subr.bf16.mxu0 0
    %5541 = vmatpush1.bf16.msra.mxu0 %v5057
    %5542 = vmatprep.subr.bf16.mxu0 0
    %5543 = vmatpush1.bf16.msra.mxu0 %v5058
    %5544 = vmatprep.subr.bf16.mxu0 0
    %5545 = vmatpush1.bf16.msra.mxu0 %v5059
    %5546 = vmatprep.subr.bf16.mxu0 0
    %5547 = vmatpush1.bf16.msra.mxu0 %v5060
    %5548 = vmatprep.subr.bf16.mxu0 0
    %5549 = vmatpush1.bf16.msra.mxu0 %v5061
    %5550 = vmatprep.subr.bf16.mxu0 0
    %5551 = vmatpush1.bf16.msra.mxu0 %v5062
    %5552 = vmatprep.subr.bf16.mxu0 0
    %5553 = vmatpush1.bf16.msra.mxu0 %v5063
    %5554 = vmatprep.subr.bf16.mxu0 0
    %5555 = vmatpush1.bf16.msra.mxu0 %v5064
    %5556 = vmatprep.subr.bf16.mxu0 0
    %5557 = vmatpush1.bf16.msra.mxu0 %v5065
    %5558 = vmatprep.subr.bf16.mxu0 0
    %5559 = vmatpush1.bf16.msra.mxu0 %v5066
    %5560 = vmatprep.mubr.bf16.mxu0 %v4532
    %5561 = vmatmul.mubr.bf16.gmra.mrb[0].mxu0 %v4531
    %v5562 = vpop.f32.mrb[0].mxu0
    %v5563 = vadd.f32 %v5490, %v5562
    %v5564 = vpop.f32.mrb[0].mxu0
    %v5565 = vpop.f32.mrb[0].mxu0
    %v5566 = vadd.f32 %v5493, %v5565
    %v5567 = vpop.f32.mrb[0].mxu0
    %5568 = vmatprep.mubr.bf16.mxu0 %v4538
    %5569 = vmatmul.mubr.bf16.gmra.mrb[0].mxu0 %v4537
    %v5570 = vpop.f32.mrb[0].mxu0
    %v5571 = vadd.f32 %v5498, %v5570
    %v5572 = vpop.f32.mrb[0].mxu0
    %v5573 = vpop.f32.mrb[0].mxu0
    %v5574 = vadd.f32 %v5501, %v5573
    %v5575 = vpop.f32.mrb[0].mxu0
    %5576 = vmatprep.mubr.bf16.mxu0 %v4544
    %5577 = vmatmul.mubr.bf16.gmra.mrb[0].mxu0 %v4543
    %v5578 = vpop.f32.mrb[0].mxu0
    %v5579 = vadd.f32 %v5506, %v5578
    %v5580 = vpop.f32.mrb[0].mxu0
    %v5581 = vpop.f32.mrb[0].mxu0
    %v5582 = vadd.f32 %v5509, %v5581
    %v5583 = vpop.f32.mrb[0].mxu0
    %5584 = vmatprep.mubr.bf16.mxu0 %v4550
    %5585 = vmatmul.mubr.bf16.gmra.mrb[0].mxu0 %v4549
    %v5586 = vpop.f32.mrb[0].mxu0
    %v5587 = vadd.f32 %v5514, %v5586
    %v5588 = vpop.f32.mrb[0].mxu0
    %v5589 = vpop.f32.mrb[0].mxu0
    %v5590 = vadd.f32 %v5517, %v5589
    %v5591 = vpop.f32.mrb[0].mxu0
    %5592 = vmatprep.mubr.bf16.mxu0 %v4556
    %5593 = vmatmul.mubr.bf16.gmra.mrb[0].mxu0 %v4555
    %v5594 = vpop.f32.mrb[0].mxu0
    %v5595 = vadd.f32 %v5522, %v5594
    %v5596 = vpop.f32.mrb[0].mxu0
    %v5597 = vpop.f32.mrb[0].mxu0
    %v5598 = vadd.f32 %v5525, %v5597
    %v5599 = vpop.f32.mrb[0].mxu0
    %5600 = vdwg.mxu0
    %5611 = vrot.lane.b32.xlu0 %v5563, 64
    %v5612 = vpop.permute.xlu0 %5611
    %5613 = vrot.lane.b32.xlu0 %v5566, 64
    %v5614 = vpop.permute.xlu0 %5613
    %5615 = vrot.lane.b32.xlu0 %v5571, 64
    %v5616 = vpop.permute.xlu0 %5615
    %5617 = vrot.lane.b32.xlu0 %v5574, 64
    %v5618 = vpop.permute.xlu0 %5617
    %5619 = vrot.lane.b32.xlu0 %v5579, 64
    %v5620 = vpop.permute.xlu0 %5619
    %5621 = vrot.lane.b32.xlu0 %v5582, 64
    %v5622 = vpop.permute.xlu0 %5621
    %5623 = vrot.lane.b32.xlu0 %v5587, 64
    %v5624 = vpop.permute.xlu0 %5623
    %5625 = vrot.lane.b32.xlu0 %v5590, 64
    %v5626 = vpop.permute.xlu0 %5625
    %5627 = vrot.lane.b32.xlu0 %v5595, 64
    %v5628 = vpop.permute.xlu0 %5627
    %5629 = vrot.lane.b32.xlu0 %v5598, 64
    %v5630 = vpop.permute.xlu0 %5629
    %vm5641 = vcmask 523264
    %v5642 = vsel %vm5641, %v4207, %v5612
    %v5643 = vsel %vm5641, %v4210, %v5614
    %v5644 = vsel %vm5641, %v4215, %v5616
    %v5645 = vsel %vm5641, %v4218, %v5618
    %v5646 = vsel %vm5641, %v4223, %v5620
    %v5647 = vsel %vm5641, %v4226, %v5622
    %v5648 = vsel %vm5641, %v4231, %v5624
    %v5649 = vsel %vm5641, %v4234, %v5626
    %v5650 = vsel %vm5641, %v4239, %v5628
    %v5651 = vsel %vm5641, %v4242, %v5630
    %v5652 = vld [vmem:[%s6] sm:$0xf]
    %v5654 = vlaneseq
    %v5655 = vshrl.u32 %v5654, 7
    %v5656 = vsub.s32 0, %v5655
    %v5657 = vrot.slane %v5652, %v5656
    %v5658 = vlaneseq
    %v5659 = vshrl.u32 %v5658, 7
    %v5660 = vsub.s32 1, %v5659
    %v5661 = vrot.slane %v5652, %v5660
    %v5662 = vlaneseq
    %v5663 = vshrl.u32 %v5662, 7
    %v5664 = vsub.s32 2, %v5663
    %v5665 = vrot.slane %v5652, %v5664
    %v5666 = vlaneseq
    %v5667 = vshrl.u32 %v5666, 7
    %v5668 = vsub.s32 3, %v5667
    %v5669 = vrot.slane %v5652, %v5668
    %v5674 = vadd.f32 %v3156, %v5657
    %v5675 = vadd.f32 %v3158, %v5661
    %v5676 = vadd.f32 %v3534, %v5665
    %v5677 = vadd.f32 %v5642, %v5669
    %v5678 = vadd.f32 %v3160, %v5657
    %v5679 = vadd.f32 %v3162, %v5661
    %v5680 = vadd.f32 %v3537, %v5665
    %v5681 = vadd.f32 %v5643, %v5669
    %v5682 = vadd.f32 %v3166, %v5657
    %v5683 = vadd.f32 %v3168, %v5661
    %v5684 = vadd.f32 %v3542, %v5665
    %v5685 = vadd.f32 %v5644, %v5669
    %v5686 = vadd.f32 %v3170, %v5657
    %v5687 = vadd.f32 %v3172, %v5661
    %v5688 = vadd.f32 %v3545, %v5665
    %v5689 = vadd.f32 %v5645, %v5669
    %v5690 = vadd.f32 %v3176, %v5657
    %v5691 = vadd.f32 %v3178, %v5661
    %v5692 = vadd.f32 %v3550, %v5665
    %v5693 = vadd.f32 %v5646, %v5669
    %v5694 = vadd.f32 %v3180, %v5657
    %v5695 = vadd.f32 %v3182, %v5661
    %v5696 = vadd.f32 %v3553, %v5665
    %v5697 = vadd.f32 %v5647, %v5669
    %v5698 = vadd.f32 %v3186, %v5657
    %v5699 = vadd.f32 %v3188, %v5661
    %v5700 = vadd.f32 %v3558, %v5665
    %v5701 = vadd.f32 %v5648, %v5669
    %v5702 = vadd.f32 %v3190, %v5657
    %v5703 = vadd.f32 %v3192, %v5661
    %v5704 = vadd.f32 %v3561, %v5665
    %v5705 = vadd.f32 %v5649, %v5669
    %v5706 = vadd.f32 %v3196, %v5657
    %v5707 = vadd.f32 %v3198, %v5661
    %v5708 = vadd.f32 %v3566, %v5665
    %v5709 = vadd.f32 %v5650, %v5669
    %v5710 = vadd.f32 %v3200, %v5657
    %v5711 = vadd.f32 %v3202, %v5661
    %v5712 = vadd.f32 %v3569, %v5665
    %v5713 = vadd.f32 %v5651, %v5669
    %v5714 = vmax.f32 %v5674, 0.0
    %v5715 = vmax.f32 %v5675, 0.0
    %v5716 = vmax.f32 %v5676, 0.0
    %v5717 = vmax.f32 %v5677, 0.0
    %v5718 = vmax.f32 %v5678, 0.0
    %v5719 = vmax.f32 %v5679, 0.0
    %v5720 = vmax.f32 %v5680, 0.0
    %v5721 = vmax.f32 %v5681, 0.0
    %v5722 = vmax.f32 %v5682, 0.0
    %v5723 = vmax.f32 %v5683, 0.0
    %v5724 = vmax.f32 %v5684, 0.0
    %v5725 = vmax.f32 %v5685, 0.0
    %v5726 = vmax.f32 %v5686, 0.0
    %v5727 = vmax.f32 %v5687, 0.0
    %v5728 = vmax.f32 %v5688, 0.0
    %v5729 = vmax.f32 %v5689, 0.0
    %v5730 = vmax.f32 %v5690, 0.0
    %v5731 = vmax.f32 %v5691, 0.0
    %v5732 = vmax.f32 %v5692, 0.0
    %v5733 = vmax.f32 %v5693, 0.0
    %v5734 = vmax.f32 %v5694, 0.0
    %v5735 = vmax.f32 %v5695, 0.0
    %v5736 = vmax.f32 %v5696, 0.0
    %v5737 = vmax.f32 %v5697, 0.0
    %v5738 = vmax.f32 %v5698, 0.0
    %v5739 = vmax.f32 %v5699, 0.0
    %v5740 = vmax.f32 %v5700, 0.0
    %v5741 = vmax.f32 %v5701, 0.0
    %v5742 = vmax.f32 %v5702, 0.0
    %v5743 = vmax.f32 %v5703, 0.0
    %v5744 = vmax.f32 %v5704, 0.0
    %v5745 = vmax.f32 %v5705, 0.0
    %v5746 = vmax.f32 %v5706, 0.0
    %v5747 = vmax.f32 %v5707, 0.0
    %v5748 = vmax.f32 %v5708, 0.0
    %v5749 = vmax.f32 %v5709, 0.0
    %v5750 = vmax.f32 %v5710, 0.0
    %v5751 = vmax.f32 %v5711, 0.0
    %v5752 = vmax.f32 %v5712, 0.0
    %v5753 = vmax.f32 %v5713, 0.0
    %v5754 = vlaneseq
    %v5755 = vshrl.u32 %v5754, 7
    %v5756 = vadd.s32 %v5755, 8
    %v5757 = vadd.s32 %v5755, 16
    %v5758 = vadd.s32 %v5755, 24
    %v5759 = vadd.s32 %v5755, 32
    %v5760 = vld [vmem:[%s1] sm:$0xf]
    %v5761 = vlaneseq
    %v5762 = vshrl.u32 %v5761, 7
    %v5763 = vsub.s32 0, %v5762
    %v5764 = vrot.slane %v5760, %v5763
    %v5765 = vlaneseq
    %v5766 = vshrl.u32 %v5765, 7
    %v5767 = vsub.s32 1, %v5766
    %v5768 = vrot.slane %v5760, %v5767
    %v5769 = vlaneseq
    %v5770 = vshrl.u32 %v5769, 7
    %v5771 = vsub.s32 2, %v5770
    %v5772 = vrot.slane %v5760, %v5771
    %v5773 = vlaneseq
    %v5774 = vshrl.u32 %v5773, 7
    %v5775 = vsub.s32 3, %v5774
    %v5776 = vrot.slane %v5760, %v5775
    %vm5777 = vcmp.le.s32.totalorder %v5755, %v5764
    %vm5778 = vcmp.le.s32.totalorder %v5755, %v5768
    %vm5779 = vcmp.le.s32.totalorder %v5755, %v5772
    %vm5780 = vcmp.le.s32.totalorder %v5755, %v5776
    %vm5781 = vcmp.le.s32.totalorder %v5756, %v5764
    %vm5782 = vcmp.le.s32.totalorder %v5756, %v5768
    %vm5783 = vcmp.le.s32.totalorder %v5756, %v5772
    %vm5784 = vcmp.le.s32.totalorder %v5756, %v5776
    %vm5785 = vcmp.le.s32.totalorder %v5757, %v5764
    %vm5786 = vcmp.le.s32.totalorder %v5757, %v5768
    %vm5787 = vcmp.le.s32.totalorder %v5757, %v5772
    %vm5788 = vcmp.le.s32.totalorder %v5757, %v5776
    %vm5789 = vcmp.le.s32.totalorder %v5758, %v5764
    %vm5790 = vcmp.le.s32.totalorder %v5758, %v5768
    %vm5791 = vcmp.le.s32.totalorder %v5758, %v5772
    %vm5792 = vcmp.le.s32.totalorder %v5758, %v5776
    %vm5793 = vcmp.le.s32.totalorder %v5759, %v5764
    %vm5794 = vcmp.le.s32.totalorder %v5759, %v5768
    %vm5795 = vcmp.le.s32.totalorder %v5759, %v5772
    %vm5796 = vcmp.le.s32.totalorder %v5759, %v5776
    %v5797 = vsel %vm5777, 1, 0
    %v5798 = vsel %vm5778, 1, 0
    %v5799 = vsel %vm5779, 1, 0
    %v5800 = vsel %vm5780, 1, 0
    %v5801 = vsel %vm5781, 1, 0
    %v5802 = vsel %vm5782, 1, 0
    %v5803 = vsel %vm5783, 1, 0
    %v5804 = vsel %vm5784, 1, 0
    %v5805 = vsel %vm5785, 1, 0
    %v5806 = vsel %vm5786, 1, 0
    %v5807 = vsel %vm5787, 1, 0
    %v5808 = vsel %vm5788, 1, 0
    %v5809 = vsel %vm5789, 1, 0
    %v5810 = vsel %vm5790, 1, 0
    %v5811 = vsel %vm5791, 1, 0
    %v5812 = vsel %vm5792, 1, 0
    %v5813 = vsel %vm5793, 1, 0
    %v5814 = vsel %vm5794, 1, 0
    %v5815 = vsel %vm5795, 1, 0
    %v5816 = vsel %vm5796, 1, 0
    %vm5817 = vcmp.eq.s32.totalorder %v5797, 1
    %vm5818 = vcmp.eq.s32.totalorder %v5798, 1
    %vm5819 = vcmp.eq.s32.totalorder %v5799, 1
    %vm5820 = vcmp.eq.s32.totalorder %v5800, 1
    %vm5821 = vcmp.eq.s32.totalorder %v5801, 1
    %vm5822 = vcmp.eq.s32.totalorder %v5802, 1
    %vm5823 = vcmp.eq.s32.totalorder %v5803, 1
    %vm5824 = vcmp.eq.s32.totalorder %v5804, 1
    %vm5825 = vcmp.eq.s32.totalorder %v5805, 1
    %vm5826 = vcmp.eq.s32.totalorder %v5806, 1
    %vm5827 = vcmp.eq.s32.totalorder %v5807, 1
    %vm5828 = vcmp.eq.s32.totalorder %v5808, 1
    %vm5829 = vcmp.eq.s32.totalorder %v5809, 1
    %vm5830 = vcmp.eq.s32.totalorder %v5810, 1
    %vm5831 = vcmp.eq.s32.totalorder %v5811, 1
    %vm5832 = vcmp.eq.s32.totalorder %v5812, 1
    %vm5833 = vcmp.eq.s32.totalorder %v5813, 1
    %vm5834 = vcmp.eq.s32.totalorder %v5814, 1
    %vm5835 = vcmp.eq.s32.totalorder %v5815, 1
    %vm5836 = vcmp.eq.s32.totalorder %v5816, 1
    %v5837 = vsel %vm5817, %v5714, 0.0
    %v5838 = vsel %vm5818, %v5715, 0.0
    %v5839 = vsel %vm5819, %v5716, 0.0
    %v5840 = vsel %vm5820, %v5717, 0.0
    %v5841 = vsel %vm5821, %v5718, 0.0
    %v5842 = vsel %vm5822, %v5719, 0.0
    %v5843 = vsel %vm5823, %v5720, 0.0
    %v5844 = vsel %vm5824, %v5721, 0.0
    %v5845 = vsel %vm5825, %v5722, 0.0
    %v5846 = vsel %vm5826, %v5723, 0.0
    %v5847 = vsel %vm5827, %v5724, 0.0
    %v5848 = vsel %vm5828, %v5725, 0.0
    %v5849 = vsel %vm5829, %v5726, 0.0
    %v5850 = vsel %vm5830, %v5727, 0.0
    %v5851 = vsel %vm5831, %v5728, 0.0
    %v5852 = vsel %vm5832, %v5729, 0.0
    %v5853 = vsel %vm5833, %v5730, 0.0
    %v5854 = vsel %vm5834, %v5731, 0.0
    %v5855 = vsel %vm5835, %v5732, 0.0
    %v5856 = vsel %vm5836, %v5733, 0.0
    %v5857 = vsel %vm5817, %v5734, 0.0
    %v5858 = vsel %vm5818, %v5735, 0.0
    %v5859 = vsel %vm5819, %v5736, 0.0
    %v5860 = vsel %vm5820, %v5737, 0.0
    %v5861 = vsel %vm5821, %v5738, 0.0
    %v5862 = vsel %vm5822, %v5739, 0.0
    %v5863 = vsel %vm5823, %v5740, 0.0
    %v5864 = vsel %vm5824, %v5741, 0.0
    %v5865 = vsel %vm5825, %v5742, 0.0
    %v5866 = vsel %vm5826, %v5743, 0.0
    %v5867 = vsel %vm5827, %v5744, 0.0
    %v5868 = vsel %vm5828, %v5745, 0.0
    %v5869 = vsel %vm5829, %v5746, 0.0
    %v5870 = vsel %vm5830, %v5747, 0.0
    %v5871 = vsel %vm5831, %v5748, 0.0
    %v5872 = vsel %vm5832, %v5749, 0.0
    %v5873 = vsel %vm5833, %v5750, 0.0
    %v5874 = vsel %vm5834, %v5751, 0.0
    %v5875 = vsel %vm5835, %v5752, 0.0
    %v5876 = vsel %vm5836, %v5753, 0.0
    %v5877 = vmax.f32 %v5837, %v5841
    %v5878 = vmax.f32 %v5877, %v5845
    %v5879 = vmax.f32 %v5878, %v5849
    %v5880 = vmax.f32 %v5879, %v5853
    %v5881 = vrot.slane %v5880, 4
    %v5882 = vmax.f32 %v5880, %v5881
    %v5883 = vrot.slane %v5882, 2
    %v5884 = vmax.f32 %v5882, %v5883
    %v5885 = vrot.slane %v5884, 1
    %v5886 = vmax.f32 %v5884, %v5885
    %v5887 = vmax.f32 %v5838, %v5842
    %v5888 = vmax.f32 %v5887, %v5846
    %v5889 = vmax.f32 %v5888, %v5850
    %v5890 = vmax.f32 %v5889, %v5854
    %v5891 = vrot.slane %v5890, 4
    %v5892 = vmax.f32 %v5890, %v5891
    %v5893 = vrot.slane %v5892, 2
    %v5894 = vmax.f32 %v5892, %v5893
    %v5895 = vrot.slane %v5894, 1
    %v5896 = vmax.f32 %v5894, %v5895
    %v5897 = vmax.f32 %v5839, %v5843
    %v5898 = vmax.f32 %v5897, %v5847
    %v5899 = vmax.f32 %v5898, %v5851
    %v5900 = vmax.f32 %v5899, %v5855
    %v5901 = vrot.slane %v5900, 4
    %v5902 = vmax.f32 %v5900, %v5901
    %v5903 = vrot.slane %v5902, 2
    %v5904 = vmax.f32 %v5902, %v5903
    %v5905 = vrot.slane %v5904, 1
    %v5906 = vmax.f32 %v5904, %v5905
    %v5907 = vmax.f32 %v5840, %v5844
    %v5908 = vmax.f32 %v5907, %v5848
    %v5909 = vmax.f32 %v5908, %v5852
    %v5910 = vmax.f32 %v5909, %v5856
    %v5911 = vrot.slane %v5910, 4
    %v5912 = vmax.f32 %v5910, %v5911
    %v5913 = vrot.slane %v5912, 2
    %v5914 = vmax.f32 %v5912, %v5913
    %v5915 = vrot.slane %v5914, 1
    %v5916 = vmax.f32 %v5914, %v5915
    %v5917 = vmax.f32 %v5857, %v5861
    %v5918 = vmax.f32 %v5917, %v5865
    %v5919 = vmax.f32 %v5918, %v5869
    %v5920 = vmax.f32 %v5919, %v5873
    %v5921 = vrot.slane %v5920, 4
    %v5922 = vmax.f32 %v5920, %v5921
    %v5923 = vrot.slane %v5922, 2
    %v5924 = vmax.f32 %v5922, %v5923
    %v5925 = vrot.slane %v5924, 1
    %v5926 = vmax.f32 %v5924, %v5925
    %v5927 = vmax.f32 %v5858, %v5862
    %v5928 = vmax.f32 %v5927, %v5866
    %v5929 = vmax.f32 %v5928, %v5870
    %v5930 = vmax.f32 %v5929, %v5874
    %v5931 = vrot.slane %v5930, 4
    %v5932 = vmax.f32 %v5930, %v5931
    %v5933 = vrot.slane %v5932, 2
    %v5934 = vmax.f32 %v5932, %v5933
    %v5935 = vrot.slane %v5934, 1
    %v5936 = vmax.f32 %v5934, %v5935
    %v5937 = vmax.f32 %v5859, %v5863
    %v5938 = vmax.f32 %v5937, %v5867
    %v5939 = vmax.f32 %v5938, %v5871
    %v5940 = vmax.f32 %v5939, %v5875
    %v5941 = vrot.slane %v5940, 4
    %v5942 = vmax.f32 %v5940, %v5941
    %v5943 = vrot.slane %v5942, 2
    %v5944 = vmax.f32 %v5942, %v5943
    %v5945 = vrot.slane %v5944, 1
    %v5946 = vmax.f32 %v5944, %v5945
    %v5947 = vmax.f32 %v5860, %v5864
    %v5948 = vmax.f32 %v5947, %v5868
    %v5949 = vmax.f32 %v5948, %v5872
    %v5950 = vmax.f32 %v5949, %v5876
    %v5951 = vrot.slane %v5950, 4
    %v5952 = vmax.f32 %v5950, %v5951
    %v5953 = vrot.slane %v5952, 2
    %v5954 = vmax.f32 %v5952, %v5953
    %v5955 = vrot.slane %v5954, 1
    %v5956 = vmax.f32 %v5954, %v5955
    %v5957 = vpack.c.bf16 %v5886, %v5886
    %v5958 = vpack.c.bf16 %v5896, %v5896
    %v5959 = vpack.c.bf16 %v5906, %v5906
    %v5960 = vpack.c.bf16 %v5916, %v5916
    %v5961 = vpack.c.bf16 %v5926, %v5926
    %v5962 = vpack.c.bf16 %v5936, %v5936
    %v5963 = vpack.c.bf16 %v5946, %v5946
    %v5964 = vpack.c.bf16 %v5956, %v5956
    %v5965 = vld [vmem:[%s7] sm:$0xff]
    %v5966 = vld [vmem:[%s7 + $0x8] sm:$0xff]
    %v5967 = vld [vmem:[%s7 + $0x10] sm:$0xff]
    %v5968 = vld [vmem:[%s7 + $0x18] sm:$0xff]
    %v5969 = vld [vmem:[%s7 + $0x20] sm:$0xff]
    %v5970 = vld [vmem:[%s7 + $0x28] sm:$0xff]
    %v5971 = vld [vmem:[%s7 + $0x30] sm:$0xff]
    %v5972 = vld [vmem:[%s7 + $0x38] sm:$0xff]
    %v5973 = vld [vmem:[%s7 + $0x40] sm:$0xff]
    %v5974 = vld [vmem:[%s7 + $0x48] sm:$0xff]
    %v5975 = vld [vmem:[%s7 + $0x50] sm:$0xff]
    %v5976 = vld [vmem:[%s7 + $0x58] sm:$0xff]
    %v5977 = vld [vmem:[%s7 + $0x60] sm:$0xff]
    %v5978 = vld [vmem:[%s7 + $0x68] sm:$0xff]
    %v5979 = vld [vmem:[%s7 + $0x70] sm:$0xff]
    %v5980 = vld [vmem:[%s7 + $0x78] sm:$0xff]
    %v5981 = vld [vmem:[%s7 + $0x80] sm:$0xff]
    %v5982 = vld [vmem:[%s7 + $0x88] sm:$0xff]
    %v5983 = vld [vmem:[%s7 + $0x90] sm:$0xff]
    %v5984 = vld [vmem:[%s7 + $0x98] sm:$0xff]
    %v5985 = vld [vmem:[%s7 + $0xa0] sm:$0xff]
    %v5986 = vld [vmem:[%s7 + $0xa8] sm:$0xff]
    %v5987 = vld [vmem:[%s7 + $0xb0] sm:$0xff]
    %v5988 = vld [vmem:[%s7 + $0xb8] sm:$0xff]
    %v5989 = vld [vmem:[%s7 + $0xc0] sm:$0xff]
    %v5990 = vld [vmem:[%s7 + $0xc8] sm:$0xff]
    %v5991 = vld [vmem:[%s7 + $0xd0] sm:$0xff]
    %v5992 = vld [vmem:[%s7 + $0xd8] sm:$0xff]
    %v5993 = vld [vmem:[%s7 + $0xe0] sm:$0xff]
    %v5994 = vld [vmem:[%s7 + $0xe8] sm:$0xff]
    %v5995 = vld [vmem:[%s7 + $0xf0] sm:$0xff]
    %v5996 = vld [vmem:[%s7 + $0xf8] sm:$0xff]
    %v5997 = vld [vmem:[%s7 + $0x100] sm:$0xff]
    %v5998 = vld [vmem:[%s7 + $0x108] sm:$0xff]
    %v5999 = vld [vmem:[%s7 + $0x110] sm:$0xff]
    %v6000 = vld [vmem:[%s7 + $0x118] sm:$0xff]
    %v6001 = vld [vmem:[%s7 + $0x120] sm:$0xff]
    %v6002 = vld [vmem:[%s7 + $0x128] sm:$0xff]
    %v6003 = vld [vmem:[%s7 + $0x130] sm:$0xff]
    %v6004 = vld [vmem:[%s7 + $0x138] sm:$0xff]
    %v6005 = vld [vmem:[%s7 + $0x140] sm:$0xff]
    %v6006 = vld [vmem:[%s7 + $0x148] sm:$0xff]
    %v6007 = vld [vmem:[%s7 + $0x150] sm:$0xff]
    %v6008 = vld [vmem:[%s7 + $0x158] sm:$0xff]
    %v6009 = vld [vmem:[%s7 + $0x160] sm:$0xff]
    %v6010 = vld [vmem:[%s7 + $0x168] sm:$0xff]
    %v6011 = vld [vmem:[%s7 + $0x170] sm:$0xff]
    %v6012 = vld [vmem:[%s7 + $0x178] sm:$0xff]
    %v6013 = vld [vmem:[%s7 + $0x180] sm:$0xff]
    %v6014 = vld [vmem:[%s7 + $0x188] sm:$0xff]
    %v6015 = vld [vmem:[%s7 + $0x190] sm:$0xff]
    %v6016 = vld [vmem:[%s7 + $0x198] sm:$0xff]
    %v6017 = vld [vmem:[%s7 + $0x1a0] sm:$0xff]
    %v6018 = vld [vmem:[%s7 + $0x1a8] sm:$0xff]
    %v6019 = vld [vmem:[%s7 + $0x1b0] sm:$0xff]
    %v6020 = vld [vmem:[%s7 + $0x1b8] sm:$0xff]
    %v6021 = vld [vmem:[%s7 + $0x1c0] sm:$0xff]
    %v6022 = vld [vmem:[%s7 + $0x1c8] sm:$0xff]
    %v6023 = vld [vmem:[%s7 + $0x1d0] sm:$0xff]
    %v6024 = vld [vmem:[%s7 + $0x1d8] sm:$0xff]
    %v6025 = vld [vmem:[%s7 + $0x1e0] sm:$0xff]
    %v6026 = vld [vmem:[%s7 + $0x1e8] sm:$0xff]
    %v6027 = vld [vmem:[%s7 + $0x1f0] sm:$0xff]
    %v6028 = vld [vmem:[%s7 + $0x1f8] sm:$0xff]
    %v6029 = vld [vmem:[%s7 + $0x200] sm:$0xff]
    %v6030 = vld [vmem:[%s7 + $0x208] sm:$0xff]
    %v6031 = vld [vmem:[%s7 + $0x210] sm:$0xff]
    %v6032 = vld [vmem:[%s7 + $0x218] sm:$0xff]
    %v6033 = vld [vmem:[%s7 + $0x220] sm:$0xff]
    %v6034 = vld [vmem:[%s7 + $0x228] sm:$0xff]
    %v6035 = vld [vmem:[%s7 + $0x230] sm:$0xff]
    %v6036 = vld [vmem:[%s7 + $0x238] sm:$0xff]
    %v6037 = vld [vmem:[%s7 + $0x240] sm:$0xff]
    %v6038 = vld [vmem:[%s7 + $0x248] sm:$0xff]
    %v6039 = vld [vmem:[%s7 + $0x250] sm:$0xff]
    %v6040 = vld [vmem:[%s7 + $0x258] sm:$0xff]
    %v6041 = vld [vmem:[%s7 + $0x260] sm:$0xff]
    %v6042 = vld [vmem:[%s7 + $0x268] sm:$0xff]
    %v6043 = vld [vmem:[%s7 + $0x270] sm:$0xff]
    %v6044 = vld [vmem:[%s7 + $0x278] sm:$0xff]
    %v6045 = vld [vmem:[%s7 + $0x280] sm:$0xff]
    %v6046 = vld [vmem:[%s7 + $0x288] sm:$0xff]
    %v6047 = vld [vmem:[%s7 + $0x290] sm:$0xff]
    %v6048 = vld [vmem:[%s7 + $0x298] sm:$0xff]
    %v6049 = vld [vmem:[%s7 + $0x2a0] sm:$0xff]
    %v6050 = vld [vmem:[%s7 + $0x2a8] sm:$0xff]
    %v6051 = vld [vmem:[%s7 + $0x2b0] sm:$0xff]
    %v6052 = vld [vmem:[%s7 + $0x2b8] sm:$0xff]
    %v6053 = vld [vmem:[%s7 + $0x2c0] sm:$0xff]
    %v6054 = vld [vmem:[%s7 + $0x2c8] sm:$0xff]
    %v6055 = vld [vmem:[%s7 + $0x2d0] sm:$0xff]
    %v6056 = vld [vmem:[%s7 + $0x2d8] sm:$0xff]
    %v6057 = vld [vmem:[%s7 + $0x2e0] sm:$0xff]
    %v6058 = vld [vmem:[%s7 + $0x2e8] sm:$0xff]
    %v6059 = vld [vmem:[%s7 + $0x2f0] sm:$0xff]
    %v6060 = vld [vmem:[%s7 + $0x2f8] sm:$0xff]
    %v6061 = vld [vmem:[%s7 + $0x300] sm:$0xff]
    %v6062 = vld [vmem:[%s7 + $0x308] sm:$0xff]
    %v6063 = vld [vmem:[%s7 + $0x310] sm:$0xff]
    %v6064 = vld [vmem:[%s7 + $0x318] sm:$0xff]
    %v6065 = vld [vmem:[%s7 + $0x320] sm:$0xff]
    %v6066 = vld [vmem:[%s7 + $0x328] sm:$0xff]
    %v6067 = vld [vmem:[%s7 + $0x330] sm:$0xff]
    %v6068 = vld [vmem:[%s7 + $0x338] sm:$0xff]
    %v6069 = vld [vmem:[%s7 + $0x340] sm:$0xff]
    %v6070 = vld [vmem:[%s7 + $0x348] sm:$0xff]
    %v6071 = vld [vmem:[%s7 + $0x350] sm:$0xff]
    %v6072 = vld [vmem:[%s7 + $0x358] sm:$0xff]
    %v6073 = vld [vmem:[%s7 + $0x360] sm:$0xff]
    %v6074 = vld [vmem:[%s7 + $0x368] sm:$0xff]
    %v6075 = vld [vmem:[%s7 + $0x370] sm:$0xff]
    %v6076 = vld [vmem:[%s7 + $0x378] sm:$0xff]
    %v6077 = vld [vmem:[%s7 + $0x380] sm:$0xff]
    %v6078 = vld [vmem:[%s7 + $0x388] sm:$0xff]
    %v6079 = vld [vmem:[%s7 + $0x390] sm:$0xff]
    %v6080 = vld [vmem:[%s7 + $0x398] sm:$0xff]
    %v6081 = vld [vmem:[%s7 + $0x3a0] sm:$0xff]
    %v6082 = vld [vmem:[%s7 + $0x3a8] sm:$0xff]
    %v6083 = vld [vmem:[%s7 + $0x3b0] sm:$0xff]
    %v6084 = vld [vmem:[%s7 + $0x3b8] sm:$0xff]
    %v6085 = vld [vmem:[%s7 + $0x3c0] sm:$0xff]
    %v6086 = vld [vmem:[%s7 + $0x3c8] sm:$0xff]
    %v6087 = vld [vmem:[%s7 + $0x3d0] sm:$0xff]
    %v6088 = vld [vmem:[%s7 + $0x3d8] sm:$0xff]
    %v6089 = vld [vmem:[%s7 + $0x3e0] sm:$0xff]
    %v6090 = vld [vmem:[%s7 + $0x3e8] sm:$0xff]
    %v6091 = vld [vmem:[%s7 + $0x3f0] sm:$0xff]
    %v6092 = vld [vmem:[%s7 + $0x3f8] sm:$0xff]
    %v6093 = vld [vmem:[%s7 + $0x400] sm:$0xff]
    %v6094 = vld [vmem:[%s7 + $0x408] sm:$0xff]
    %v6095 = vld [vmem:[%s7 + $0x410] sm:$0xff]
    %v6096 = vld [vmem:[%s7 + $0x418] sm:$0xff]
    %v6097 = vld [vmem:[%s7 + $0x420] sm:$0xff]
    %v6098 = vld [vmem:[%s7 + $0x428] sm:$0xff]
    %v6099 = vld [vmem:[%s7 + $0x430] sm:$0xff]
    %v6100 = vld [vmem:[%s7 + $0x438] sm:$0xff]
    %v6101 = vld [vmem:[%s7 + $0x440] sm:$0xff]
    %v6102 = vld [vmem:[%s7 + $0x448] sm:$0xff]
    %v6103 = vld [vmem:[%s7 + $0x450] sm:$0xff]
    %v6104 = vld [vmem:[%s7 + $0x458] sm:$0xff]
    %v6105 = vld [vmem:[%s7 + $0x460] sm:$0xff]
    %v6106 = vld [vmem:[%s7 + $0x468] sm:$0xff]
    %v6107 = vld [vmem:[%s7 + $0x470] sm:$0xff]
    %v6108 = vld [vmem:[%s7 + $0x478] sm:$0xff]
    %v6109 = vld [vmem:[%s7 + $0x480] sm:$0xff]
    %v6110 = vld [vmem:[%s7 + $0x488] sm:$0xff]
    %v6111 = vld [vmem:[%s7 + $0x490] sm:$0xff]
    %v6112 = vld [vmem:[%s7 + $0x498] sm:$0xff]
    %v6113 = vld [vmem:[%s7 + $0x4a0] sm:$0xff]
    %v6114 = vld [vmem:[%s7 + $0x4a8] sm:$0xff]
    %v6115 = vld [vmem:[%s7 + $0x4b0] sm:$0xff]
    %v6116 = vld [vmem:[%s7 + $0x4b8] sm:$0xff]
    %v6117 = vld [vmem:[%s7 + $0x4c0] sm:$0xff]
    %v6118 = vld [vmem:[%s7 + $0x4c8] sm:$0xff]
    %v6119 = vld [vmem:[%s7 + $0x4d0] sm:$0xff]
    %v6120 = vld [vmem:[%s7 + $0x4d8] sm:$0xff]
    %v6121 = vld [vmem:[%s7 + $0x4e0] sm:$0xff]
    %v6122 = vld [vmem:[%s7 + $0x4e8] sm:$0xff]
    %v6123 = vld [vmem:[%s7 + $0x4f0] sm:$0xff]
    %v6124 = vld [vmem:[%s7 + $0x4f8] sm:$0xff]
    %v6125 = vld [vmem:[%s7 + $0x500] sm:$0xff]
    %v6126 = vld [vmem:[%s7 + $0x508] sm:$0xff]
    %v6127 = vld [vmem:[%s7 + $0x510] sm:$0xff]
    %v6128 = vld [vmem:[%s7 + $0x518] sm:$0xff]
    %v6129 = vld [vmem:[%s7 + $0x520] sm:$0xff]
    %v6130 = vld [vmem:[%s7 + $0x528] sm:$0xff]
    %v6131 = vld [vmem:[%s7 + $0x530] sm:$0xff]
    %v6132 = vld [vmem:[%s7 + $0x538] sm:$0xff]
    %v6133 = vld [vmem:[%s7 + $0x540] sm:$0xff]
    %v6134 = vld [vmem:[%s7 + $0x548] sm:$0xff]
    %v6135 = vld [vmem:[%s7 + $0x550] sm:$0xff]
    %v6136 = vld [vmem:[%s7 + $0x558] sm:$0xff]
    %v6137 = vld [vmem:[%s7 + $0x560] sm:$0xff]
    %v6138 = vld [vmem:[%s7 + $0x568] sm:$0xff]
    %v6139 = vld [vmem:[%s7 + $0x570] sm:$0xff]
    %v6140 = vld [vmem:[%s7 + $0x578] sm:$0xff]
    %v6141 = vld [vmem:[%s7 + $0x580] sm:$0xff]
    %v6142 = vld [vmem:[%s7 + $0x588] sm:$0xff]
    %v6143 = vld [vmem:[%s7 + $0x590] sm:$0xff]
    %v6144 = vld [vmem:[%s7 + $0x598] sm:$0xff]
    %v6145 = vld [vmem:[%s7 + $0x5a0] sm:$0xff]
    %v6146 = vld [vmem:[%s7 + $0x5a8] sm:$0xff]
    %v6147 = vld [vmem:[%s7 + $0x5b0] sm:$0xff]
    %v6148 = vld [vmem:[%s7 + $0x5b8] sm:$0xff]
    %v6149 = vld [vmem:[%s7 + $0x5c0] sm:$0xff]
    %v6150 = vld [vmem:[%s7 + $0x5c8] sm:$0xff]
    %v6151 = vld [vmem:[%s7 + $0x5d0] sm:$0xff]
    %v6152 = vld [vmem:[%s7 + $0x5d8] sm:$0xff]
    %v6153 = vld [vmem:[%s7 + $0x5e0] sm:$0xff]
    %v6154 = vld [vmem:[%s7 + $0x5e8] sm:$0xff]
    %v6155 = vld [vmem:[%s7 + $0x5f0] sm:$0xff]
    %v6156 = vld [vmem:[%s7 + $0x5f8] sm:$0xff]
    %v6157 = vld [vmem:[%s8] sm:$0x3f]
    %v6159 = vlaneseq
    %v6160 = vshrl.u32 %v6159, 7
    %v6161 = vsub.s32 0, %v6160
    %v6162 = vrot.slane %v6157, %v6161
    %v6163 = vlaneseq
    %v6164 = vshrl.u32 %v6163, 7
    %v6165 = vsub.s32 1, %v6164
    %v6166 = vrot.slane %v6157, %v6165
    %v6167 = vlaneseq
    %v6168 = vshrl.u32 %v6167, 7
    %v6169 = vsub.s32 2, %v6168
    %v6170 = vrot.slane %v6157, %v6169
    %v6171 = vlaneseq
    %v6172 = vshrl.u32 %v6171, 7
    %v6173 = vsub.s32 3, %v6172
    %v6174 = vrot.slane %v6157, %v6173
    %v6175 = vlaneseq
    %v6176 = vshrl.u32 %v6175, 7
    %v6177 = vsub.s32 4, %v6176
    %v6178 = vrot.slane %v6157, %v6177
    %v6179 = vlaneseq
    %v6180 = vshrl.u32 %v6179, 7
    %v6181 = vsub.s32 5, %v6180
    %v6182 = vrot.slane %v6157, %v6181
    %v6197 = vunpack.c.l.b16 %v5957
    %v6198 = vunpack.c.l.b16 %v5958
    %v6199 = vunpack.c.l.b16 %v5959
    %v6200 = vunpack.c.l.b16 %v5960
    %v6201 = vunpack.c.l.b16 %v5961
    %v6202 = vunpack.c.l.b16 %v5962
    %v6203 = vunpack.c.l.b16 %v5963
    %v6204 = vunpack.c.l.b16 %v5964
    %vm6205 = vcmask 1041409
    %v6206 = vsel %vm6205, %v6201, %v6197
    %v6207 = vsel %vm6205, %v6202, %v6198
    %v6208 = vsel %vm6205, %v6203, %v6199
    %v6209 = vsel %vm6205, %v6204, %v6200
    %v6210 = vpack.c.b16 %v6206, %v6206
    %v6211 = vpack.c.b16 %v6207, %v6207
    %v6212 = vpack.c.b16 %v6208, %v6208
    %v6213 = vpack.c.b16 %v6209, %v6209
    %v6410 = vunpack.c.l.b16 %v5965
    %v6411 = vunpack.c.h.b16 %v5965
    %v6412 = vunpack.c.l.b16 %v5966
    %v6413 = vunpack.c.h.b16 %v5966
    %v6414 = vunpack.c.l.b16 %v5967
    %v6415 = vunpack.c.h.b16 %v5967
    %v6416 = vunpack.c.l.b16 %v5968
    %v6417 = vunpack.c.h.b16 %v5968
    %v6418 = vunpack.c.l.b16 %v5969
    %v6419 = vunpack.c.h.b16 %v5969
    %v6420 = vunpack.c.l.b16 %v5970
    %v6421 = vunpack.c.h.b16 %v5970
    %v6422 = vunpack.c.l.b16 %v5971
    %v6423 = vunpack.c.h.b16 %v5971
    %v6424 = vunpack.c.l.b16 %v5972
    %v6425 = vunpack.c.h.b16 %v5972
    %v6426 = vunpack.c.l.b16 %v5973
    %v6427 = vunpack.c.h.b16 %v5973
    %v6428 = vunpack.c.l.b16 %v5974
    %v6429 = vunpack.c.h.b16 %v5974
    %v6430 = vunpack.c.l.b16 %v5975
    %v6431 = vunpack.c.h.b16 %v5975
    %v6432 = vunpack.c.l.b16 %v5976
    %v6433 = vunpack.c.h.b16 %v5976
    %v6434 = vunpack.c.l.b16 %v5977
    %v6435 = vunpack.c.h.b16 %v5977
    %v6436 = vunpack.c.l.b16 %v5978
    %v6437 = vunpack.c.h.b16 %v5978
    %v6438 = vunpack.c.l.b16 %v5979
    %v6439 = vunpack.c.h.b16 %v5979
    %v6440 = vunpack.c.l.b16 %v5980
    %v6441 = vunpack.c.h.b16 %v5980
    %v6442 = vunpack.c.l.b16 %v5981
    %v6443 = vunpack.c.h.b16 %v5981
    %v6444 = vunpack.c.l.b16 %v5982
    %v6445 = vunpack.c.h.b16 %v5982
    %v6446 = vunpack.c.l.b16 %v5983
    %v6447 = vunpack.c.h.b16 %v5983
    %v6448 = vunpack.c.l.b16 %v5984
    %v6449 = vunpack.c.h.b16 %v5984
    %v6450 = vunpack.c.l.b16 %v5985
    %v6451 = vunpack.c.h.b16 %v5985
    %v6452 = vunpack.c.l.b16 %v5986
    %v6453 = vunpack.c.h.b16 %v5986
    %v6454 = vunpack.c.l.b16 %v5987
    %v6455 = vunpack.c.h.b16 %v5987
    %v6456 = vunpack.c.l.b16 %v5988
    %v6457 = vunpack.c.h.b16 %v5988
    %v6458 = vunpack.c.l.b16 %v5989
    %v6459 = vunpack.c.h.b16 %v5989
    %v6460 = vunpack.c.l.b16 %v5990
    %v6461 = vunpack.c.h.b16 %v5990
    %v6462 = vunpack.c.l.b16 %v5991
    %v6463 = vunpack.c.h.b16 %v5991
    %v6464 = vunpack.c.l.b16 %v5992
    %v6465 = vunpack.c.h.b16 %v5992
    %v6466 = vunpack.c.l.b16 %v5993
    %v6467 = vunpack.c.h.b16 %v5993
    %v6468 = vunpack.c.l.b16 %v5994
    %v6469 = vunpack.c.h.b16 %v5994
    %v6470 = vunpack.c.l.b16 %v5995
    %v6471 = vunpack.c.h.b16 %v5995
    %v6472 = vunpack.c.l.b16 %v5996
    %v6473 = vunpack.c.h.b16 %v5996
    %v6474 = vunpack.c.l.b16 %v5997
    %v6475 = vunpack.c.h.b16 %v5997
    %v6476 = vunpack.c.l.b16 %v5998
    %v6477 = vunpack.c.h.b16 %v5998
    %v6478 = vunpack.c.l.b16 %v5999
    %v6479 = vunpack.c.h.b16 %v5999
    %v6480 = vunpack.c.l.b16 %v6000
    %v6481 = vunpack.c.h.b16 %v6000
    %v6482 = vunpack.c.l.b16 %v6001
    %v6483 = vunpack.c.h.b16 %v6001
    %v6484 = vunpack.c.l.b16 %v6002
    %v6485 = vunpack.c.h.b16 %v6002
    %v6486 = vunpack.c.l.b16 %v6003
    %v6487 = vunpack.c.h.b16 %v6003
    %v6488 = vunpack.c.l.b16 %v6004
    %v6489 = vunpack.c.h.b16 %v6004
    %v6490 = vunpack.c.l.b16 %v6005
    %v6491 = vunpack.c.h.b16 %v6005
    %v6492 = vunpack.c.l.b16 %v6006
    %v6493 = vunpack.c.h.b16 %v6006
    %v6494 = vunpack.c.l.b16 %v6007
    %v6495 = vunpack.c.h.b16 %v6007
    %v6496 = vunpack.c.l.b16 %v6008
    %v6497 = vunpack.c.h.b16 %v6008
    %v6498 = vunpack.c.l.b16 %v6009
    %v6499 = vunpack.c.h.b16 %v6009
    %v6500 = vunpack.c.l.b16 %v6010
    %v6501 = vunpack.c.h.b16 %v6010
    %v6502 = vunpack.c.l.b16 %v6011
    %v6503 = vunpack.c.h.b16 %v6011
    %v6504 = vunpack.c.l.b16 %v6012
    %v6505 = vunpack.c.h.b16 %v6012
    %v6506 = vunpack.c.l.b16 %v6013
    %v6507 = vunpack.c.h.b16 %v6013
    %v6508 = vunpack.c.l.b16 %v6014
    %v6509 = vunpack.c.h.b16 %v6014
    %v6510 = vunpack.c.l.b16 %v6015
    %v6511 = vunpack.c.h.b16 %v6015
    %v6512 = vunpack.c.l.b16 %v6016
    %v6513 = vunpack.c.h.b16 %v6016
    %v6514 = vunpack.c.l.b16 %v6017
    %v6515 = vunpack.c.h.b16 %v6017
    %v6516 = vunpack.c.l.b16 %v6018
    %v6517 = vunpack.c.h.b16 %v6018
    %v6518 = vunpack.c.l.b16 %v6019
    %v6519 = vunpack.c.h.b16 %v6019
    %v6520 = vunpack.c.l.b16 %v6020
    %v6521 = vunpack.c.h.b16 %v6020
    %v6522 = vunpack.c.l.b16 %v6021
    %v6523 = vunpack.c.h.b16 %v6021
    %v6524 = vunpack.c.l.b16 %v6022
    %v6525 = vunpack.c.h.b16 %v6022
    %v6526 = vunpack.c.l.b16 %v6023
    %v6527 = vunpack.c.h.b16 %v6023
    %v6528 = vunpack.c.l.b16 %v6024
    %v6529 = vunpack.c.h.b16 %v6024
    %v6530 = vunpack.c.l.b16 %v6025
    %v6531 = vunpack.c.h.b16 %v6025
    %v6532 = vunpack.c.l.b16 %v6026
    %v6533 = vunpack.c.h.b16 %v6026
    %v6534 = vunpack.c.l.b16 %v6027
    %v6535 = vunpack.c.h.b16 %v6027
    %v6536 = vunpack.c.l.b16 %v6028
    %v6537 = vunpack.c.h.b16 %v6028
    %v6538 = vunpack.c.l.b16 %v6029
    %v6539 = vunpack.c.h.b16 %v6029
    %v6540 = vunpack.c.l.b16 %v6030
    %v6541 = vunpack.c.h.b16 %v6030
    %v6542 = vunpack.c.l.b16 %v6031
    %v6543 = vunpack.c.h.b16 %v6031
    %v6544 = vunpack.c.l.b16 %v6032
    %v6545 = vunpack.c.h.b16 %v6032
    %v6546 = vunpack.c.l.b16 %v6033
    %v6547 = vunpack.c.h.b16 %v6033
    %v6548 = vunpack.c.l.b16 %v6034
    %v6549 = vunpack.c.h.b16 %v6034
    %v6550 = vunpack.c.l.b16 %v6035
    %v6551 = vunpack.c.h.b16 %v6035
    %v6552 = vunpack.c.l.b16 %v6036
    %v6553 = vunpack.c.h.b16 %v6036
    %v6554 = vunpack.c.l.b16 %v6037
    %v6555 = vunpack.c.h.b16 %v6037
    %v6556 = vunpack.c.l.b16 %v6038
    %v6557 = vunpack.c.h.b16 %v6038
    %v6558 = vunpack.c.l.b16 %v6039
    %v6559 = vunpack.c.h.b16 %v6039
    %v6560 = vunpack.c.l.b16 %v6040
    %v6561 = vunpack.c.h.b16 %v6040
    %v6562 = vunpack.c.l.b16 %v6041
    %v6563 = vunpack.c.h.b16 %v6041
    %v6564 = vunpack.c.l.b16 %v6042
    %v6565 = vunpack.c.h.b16 %v6042
    %v6566 = vunpack.c.l.b16 %v6043
    %v6567 = vunpack.c.h.b16 %v6043
    %v6568 = vunpack.c.l.b16 %v6044
    %v6569 = vunpack.c.h.b16 %v6044
    %v6570 = vunpack.c.l.b16 %v6045
    %v6571 = vunpack.c.h.b16 %v6045
    %v6572 = vunpack.c.l.b16 %v6046
    %v6573 = vunpack.c.h.b16 %v6046
    %v6574 = vunpack.c.l.b16 %v6047
    %v6575 = vunpack.c.h.b16 %v6047
    %v6576 = vunpack.c.l.b16 %v6048
    %v6577 = vunpack.c.h.b16 %v6048
    %v6578 = vunpack.c.l.b16 %v6049
    %v6579 = vunpack.c.h.b16 %v6049
    %v6580 = vunpack.c.l.b16 %v6050
    %v6581 = vunpack.c.h.b16 %v6050
    %v6582 = vunpack.c.l.b16 %v6051
    %v6583 = vunpack.c.h.b16 %v6051
    %v6584 = vunpack.c.l.b16 %v6052
    %v6585 = vunpack.c.h.b16 %v6052
    %v6586 = vunpack.c.l.b16 %v6053
    %v6587 = vunpack.c.h.b16 %v6053
    %v6588 = vunpack.c.l.b16 %v6054
    %v6589 = vunpack.c.h.b16 %v6054
    %v6590 = vunpack.c.l.b16 %v6055
    %v6591 = vunpack.c.h.b16 %v6055
    %v6592 = vunpack.c.l.b16 %v6056
    %v6593 = vunpack.c.h.b16 %v6056
    %v6594 = vunpack.c.l.b16 %v6057
    %v6595 = vunpack.c.h.b16 %v6057
    %v6596 = vunpack.c.l.b16 %v6058
    %v6597 = vunpack.c.h.b16 %v6058
    %v6598 = vunpack.c.l.b16 %v6059
    %v6599 = vunpack.c.h.b16 %v6059
    %v6600 = vunpack.c.l.b16 %v6060
    %v6601 = vunpack.c.h.b16 %v6060
    %v6602 = vunpack.c.l.b16 %v6061
    %v6603 = vunpack.c.h.b16 %v6061
    %v6604 = vunpack.c.l.b16 %v6062
    %v6605 = vunpack.c.h.b16 %v6062
    %v6606 = vunpack.c.l.b16 %v6063
    %v6607 = vunpack.c.h.b16 %v6063
    %v6608 = vunpack.c.l.b16 %v6064
    %v6609 = vunpack.c.h.b16 %v6064
    %v6610 = vunpack.c.l.b16 %v6065
    %v6611 = vunpack.c.h.b16 %v6065
    %v6612 = vunpack.c.l.b16 %v6066
    %v6613 = vunpack.c.h.b16 %v6066
    %v6614 = vunpack.c.l.b16 %v6067
    %v6615 = vunpack.c.h.b16 %v6067
    %v6616 = vunpack.c.l.b16 %v6068
    %v6617 = vunpack.c.h.b16 %v6068
    %v6618 = vunpack.c.l.b16 %v6069
    %v6619 = vunpack.c.h.b16 %v6069
    %v6620 = vunpack.c.l.b16 %v6070
    %v6621 = vunpack.c.h.b16 %v6070
    %v6622 = vunpack.c.l.b16 %v6071
    %v6623 = vunpack.c.h.b16 %v6071
    %v6624 = vunpack.c.l.b16 %v6072
    %v6625 = vunpack.c.h.b16 %v6072
    %v6626 = vunpack.c.l.b16 %v6073
    %v6627 = vunpack.c.h.b16 %v6073
    %v6628 = vunpack.c.l.b16 %v6074
    %v6629 = vunpack.c.h.b16 %v6074
    %v6630 = vunpack.c.l.b16 %v6075
    %v6631 = vunpack.c.h.b16 %v6075
    %v6632 = vunpack.c.l.b16 %v6076
    %v6633 = vunpack.c.h.b16 %v6076
    %v6634 = vunpack.c.l.b16 %v6077
    %v6635 = vunpack.c.h.b16 %v6077
    %v6636 = vunpack.c.l.b16 %v6078
    %v6637 = vunpack.c.h.b16 %v6078
    %v6638 = vunpack.c.l.b16 %v6079
    %v6639 = vunpack.c.h.b16 %v6079
    %v6640 = vunpack.c.l.b16 %v6080
    %v6641 = vunpack.c.h.b16 %v6080
    %v6642 = vunpack.c.l.b16 %v6081
    %v6643 = vunpack.c.h.b16 %v6081
    %v6644 = vunpack.c.l.b16 %v6082
    %v6645 = vunpack.c.h.b16 %v6082
    %v6646 = vunpack.c.l.b16 %v6083
    %v6647 = vunpack.c.h.b16 %v6083
    %v6648 = vunpack.c.l.b16 %v6084
    %v6649 = vunpack.c.h.b16 %v6084
    %v6650 = vunpack.c.l.b16 %v6085
    %v6651 = vunpack.c.h.b16 %v6085
    %v6652 = vunpack.c.l.b16 %v6086
    %v6653 = vunpack.c.h.b16 %v6086
    %v6654 = vunpack.c.l.b16 %v6087
    %v6655 = vunpack.c.h.b16 %v6087
    %v6656 = vunpack.c.l.b16 %v6088
    %v6657 = vunpack.c.h.b16 %v6088
    %v6658 = vunpack.c.l.b16 %v6089
    %v6659 = vunpack.c.h.b16 %v6089
    %v6660 = vunpack.c.l.b16 %v6090
    %v6661 = vunpack.c.h.b16 %v6090
    %v6662 = vunpack.c.l.b16 %v6091
    %v6663 = vunpack.c.h.b16 %v6091
    %v6664 = vunpack.c.l.b16 %v6092
    %v6665 = vunpack.c.h.b16 %v6092
    %v6666 = vunpack.c.l.b16 %v6093
    %v6667 = vunpack.c.h.b16 %v6093
    %v6668 = vunpack.c.l.b16 %v6094
    %v6669 = vunpack.c.h.b16 %v6094
    %v6670 = vunpack.c.l.b16 %v6095
    %v6671 = vunpack.c.h.b16 %v6095
    %v6672 = vunpack.c.l.b16 %v6096
    %v6673 = vunpack.c.h.b16 %v6096
    %v6674 = vunpack.c.l.b16 %v6097
    %v6675 = vunpack.c.h.b16 %v6097
    %v6676 = vunpack.c.l.b16 %v6098
    %v6677 = vunpack.c.h.b16 %v6098
    %v6678 = vunpack.c.l.b16 %v6099
    %v6679 = vunpack.c.h.b16 %v6099
    %v6680 = vunpack.c.l.b16 %v6100
    %v6681 = vunpack.c.h.b16 %v6100
    %v6682 = vunpack.c.l.b16 %v6101
    %v6683 = vunpack.c.h.b16 %v6101
    %v6684 = vunpack.c.l.b16 %v6102
    %v6685 = vunpack.c.h.b16 %v6102
    %v6686 = vunpack.c.l.b16 %v6103
    %v6687 = vunpack.c.h.b16 %v6103
    %v6688 = vunpack.c.l.b16 %v6104
    %v6689 = vunpack.c.h.b16 %v6104
    %v6690 = vunpack.c.l.b16 %v6105
    %v6691 = vunpack.c.h.b16 %v6105
    %v6692 = vunpack.c.l.b16 %v6106
    %v6693 = vunpack.c.h.b16 %v6106
    %v6694 = vunpack.c.l.b16 %v6107
    %v6695 = vunpack.c.h.b16 %v6107
    %v6696 = vunpack.c.l.b16 %v6108
    %v6697 = vunpack.c.h.b16 %v6108
    %v6698 = vunpack.c.l.b16 %v6109
    %v6699 = vunpack.c.h.b16 %v6109
    %v6700 = vunpack.c.l.b16 %v6110
    %v6701 = vunpack.c.h.b16 %v6110
    %v6702 = vunpack.c.l.b16 %v6111
    %v6703 = vunpack.c.h.b16 %v6111
    %v6704 = vunpack.c.l.b16 %v6112
    %v6705 = vunpack.c.h.b16 %v6112
    %v6706 = vunpack.c.l.b16 %v6113
    %v6707 = vunpack.c.h.b16 %v6113
    %v6708 = vunpack.c.l.b16 %v6114
    %v6709 = vunpack.c.h.b16 %v6114
    %v6710 = vunpack.c.l.b16 %v6115
    %v6711 = vunpack.c.h.b16 %v6115
    %v6712 = vunpack.c.l.b16 %v6116
    %v6713 = vunpack.c.h.b16 %v6116
    %v6714 = vunpack.c.l.b16 %v6117
    %v6715 = vunpack.c.h.b16 %v6117
    %v6716 = vunpack.c.l.b16 %v6118
    %v6717 = vunpack.c.h.b16 %v6118
    %v6718 = vunpack.c.l.b16 %v6119
    %v6719 = vunpack.c.h.b16 %v6119
    %v6720 = vunpack.c.l.b16 %v6120
    %v6721 = vunpack.c.h.b16 %v6120
    %v6722 = vunpack.c.l.b16 %v6121
    %v6723 = vunpack.c.h.b16 %v6121
    %v6724 = vunpack.c.l.b16 %v6122
    %v6725 = vunpack.c.h.b16 %v6122
    %v6726 = vunpack.c.l.b16 %v6123
    %v6727 = vunpack.c.h.b16 %v6123
    %v6728 = vunpack.c.l.b16 %v6124
    %v6729 = vunpack.c.h.b16 %v6124
    %v6730 = vunpack.c.l.b16 %v6125
    %v6731 = vunpack.c.h.b16 %v6125
    %v6732 = vunpack.c.l.b16 %v6126
    %v6733 = vunpack.c.h.b16 %v6126
    %v6734 = vunpack.c.l.b16 %v6127
    %v6735 = vunpack.c.h.b16 %v6127
    %v6736 = vunpack.c.l.b16 %v6128
    %v6737 = vunpack.c.h.b16 %v6128
    %v6738 = vunpack.c.l.b16 %v6129
    %v6739 = vunpack.c.h.b16 %v6129
    %v6740 = vunpack.c.l.b16 %v6130
    %v6741 = vunpack.c.h.b16 %v6130
    %v6742 = vunpack.c.l.b16 %v6131
    %v6743 = vunpack.c.h.b16 %v6131
    %v6744 = vunpack.c.l.b16 %v6132
    %v6745 = vunpack.c.h.b16 %v6132
    %v6746 = vunpack.c.l.b16 %v6133
    %v6747 = vunpack.c.h.b16 %v6133
    %v6748 = vunpack.c.l.b16 %v6134
    %v6749 = vunpack.c.h.b16 %v6134
    %v6750 = vunpack.c.l.b16 %v6135
    %v6751 = vunpack.c.h.b16 %v6135
    %v6752 = vunpack.c.l.b16 %v6136
    %v6753 = vunpack.c.h.b16 %v6136
    %v6754 = vunpack.c.l.b16 %v6137
    %v6755 = vunpack.c.h.b16 %v6137
    %v6756 = vunpack.c.l.b16 %v6138
    %v6757 = vunpack.c.h.b16 %v6138
    %v6758 = vunpack.c.l.b16 %v6139
    %v6759 = vunpack.c.h.b16 %v6139
    %v6760 = vunpack.c.l.b16 %v6140
    %v6761 = vunpack.c.h.b16 %v6140
    %v6762 = vunpack.c.l.b16 %v6141
    %v6763 = vunpack.c.h.b16 %v6141
    %v6764 = vunpack.c.l.b16 %v6142
    %v6765 = vunpack.c.h.b16 %v6142
    %v6766 = vunpack.c.l.b16 %v6143
    %v6767 = vunpack.c.h.b16 %v6143
    %v6768 = vunpack.c.l.b16 %v6144
    %v6769 = vunpack.c.h.b16 %v6144
    %v6770 = vunpack.c.l.b16 %v6145
    %v6771 = vunpack.c.h.b16 %v6145
    %v6772 = vunpack.c.l.b16 %v6146
    %v6773 = vunpack.c.h.b16 %v6146
    %v6774 = vunpack.c.l.b16 %v6147
    %v6775 = vunpack.c.h.b16 %v6147
    %v6776 = vunpack.c.l.b16 %v6148
    %v6777 = vunpack.c.h.b16 %v6148
    %v6778 = vunpack.c.l.b16 %v6149
    %v6779 = vunpack.c.h.b16 %v6149
    %v6780 = vunpack.c.l.b16 %v6150
    %v6781 = vunpack.c.h.b16 %v6150
    %v6782 = vunpack.c.l.b16 %v6151
    %v6783 = vunpack.c.h.b16 %v6151
    %v6784 = vunpack.c.l.b16 %v6152
    %v6785 = vunpack.c.h.b16 %v6152
    %v6786 = vunpack.c.l.b16 %v6153
    %v6787 = vunpack.c.h.b16 %v6153
    %v6788 = vunpack.c.l.b16 %v6154
    %v6789 = vunpack.c.h.b16 %v6154
    %v6790 = vunpack.c.l.b16 %v6155
    %v6791 = vunpack.c.h.b16 %v6155
    %v6792 = vunpack.c.l.b16 %v6156
    %v6793 = vunpack.c.h.b16 %v6156
    %v6794 = vpack.c.b16 %v6416, %v6410
    %v6795 = vpack.c.b16 %v6417, %v6411
    %v6796 = vpack.c.b16 %v6418, %v6412
    %v6797 = vpack.c.b16 %v6419, %v6413
    %v6798 = vpack.c.b16 %v6420, %v6414
    %v6799 = vpack.c.b16 %v6421, %v6415
    %v6800 = vpack.c.b16 %v6428, %v6422
    %v6801 = vpack.c.b16 %v6429, %v6423
    %v6802 = vpack.c.b16 %v6430, %v6424
    %v6803 = vpack.c.b16 %v6431, %v6425
    %v6804 = vpack.c.b16 %v6432, %v6426
    %v6805 = vpack.c.b16 %v6433, %v6427
    %v6806 = vpack.c.b16 %v6440, %v6434
    %v6807 = vpack.c.b16 %v6441, %v6435
    %v6808 = vpack.c.b16 %v6442, %v6436
    %v6809 = vpack.c.b16 %v6443, %v6437
    %v6810 = vpack.c.b16 %v6444, %v6438
    %v6811 = vpack.c.b16 %v6445, %v6439
    %v6812 = vpack.c.b16 %v6452, %v6446
    %v6813 = vpack.c.b16 %v6453, %v6447
    %v6814 = vpack.c.b16 %v6454, %v6448
    %v6815 = vpack.c.b16 %v6455, %v6449
    %v6816 = vpack.c.b16 %v6456, %v6450
    %v6817 = vpack.c.b16 %v6457, %v6451
    %v6818 = vpack.c.b16 %v6464, %v6458
    %v6819 = vpack.c.b16 %v6465, %v6459
    %v6820 = vpack.c.b16 %v6466, %v6460
    %v6821 = vpack.c.b16 %v6467, %v6461
    %v6822 = vpack.c.b16 %v6468, %v6462
    %v6823 = vpack.c.b16 %v6469, %v6463
    %v6824 = vpack.c.b16 %v6476, %v6470
    %v6825 = vpack.c.b16 %v6477, %v6471
    %v6826 = vpack.c.b16 %v6478, %v6472
    %v6827 = vpack.c.b16 %v6479, %v6473
    %v6828 = vpack.c.b16 %v6480, %v6474
    %v6829 = vpack.c.b16 %v6481, %v6475
    %v6830 = vpack.c.b16 %v6488, %v6482
    %v6831 = vpack.c.b16 %v6489, %v6483
    %v6832 = vpack.c.b16 %v6490, %v6484
    %v6833 = vpack.c.b16 %v6491, %v6485
    %v6834 = vpack.c.b16 %v6492, %v6486
    %v6835 = vpack.c.b16 %v6493, %v6487
    %v6836 = vpack.c.b16 %v6500, %v6494
    %v6837 = vpack.c.b16 %v6501, %v6495
    %v6838 = vpack.c.b16 %v6502, %v6496
    %v6839 = vpack.c.b16 %v6503, %v6497
    %v6840 = vpack.c.b16 %v6504, %v6498
    %v6841 = vpack.c.b16 %v6505, %v6499
    %v6842 = vpack.c.b16 %v6512, %v6506
    %v6843 = vpack.c.b16 %v6513, %v6507
    %v6844 = vpack.c.b16 %v6514, %v6508
    %v6845 = vpack.c.b16 %v6515, %v6509
    %v6846 = vpack.c.b16 %v6516, %v6510
    %v6847 = vpack.c.b16 %v6517, %v6511
    %v6848 = vpack.c.b16 %v6524, %v6518
    %v6849 = vpack.c.b16 %v6525, %v6519
    %v6850 = vpack.c.b16 %v6526, %v6520
    %v6851 = vpack.c.b16 %v6527, %v6521
    %v6852 = vpack.c.b16 %v6528, %v6522
    %v6853 = vpack.c.b16 %v6529, %v6523
    %v6854 = vpack.c.b16 %v6536, %v6530
    %v6855 = vpack.c.b16 %v6537, %v6531
    %v6856 = vpack.c.b16 %v6538, %v6532
    %v6857 = vpack.c.b16 %v6539, %v6533
    %v6858 = vpack.c.b16 %v6540, %v6534
    %v6859 = vpack.c.b16 %v6541, %v6535
    %v6860 = vpack.c.b16 %v6548, %v6542
    %v6861 = vpack.c.b16 %v6549, %v6543
    %v6862 = vpack.c.b16 %v6550, %v6544
    %v6863 = vpack.c.b16 %v6551, %v6545
    %v6864 = vpack.c.b16 %v6552, %v6546
    %v6865 = vpack.c.b16 %v6553, %v6547
    %v6866 = vpack.c.b16 %v6560, %v6554
    %v6867 = vpack.c.b16 %v6561, %v6555
    %v6868 = vpack.c.b16 %v6562, %v6556
    %v6869 = vpack.c.b16 %v6563, %v6557
    %v6870 = vpack.c.b16 %v6564, %v6558
    %v6871 = vpack.c.b16 %v6565, %v6559
    %v6872 = vpack.c.b16 %v6572, %v6566
    %v6873 = vpack.c.b16 %v6573, %v6567
    %v6874 = vpack.c.b16 %v6574, %v6568
    %v6875 = vpack.c.b16 %v6575, %v6569
    %v6876 = vpack.c.b16 %v6576, %v6570
    %v6877 = vpack.c.b16 %v6577, %v6571
    %v6878 = vpack.c.b16 %v6584, %v6578
    %v6879 = vpack.c.b16 %v6585, %v6579
    %v6880 = vpack.c.b16 %v6586, %v6580
    %v6881 = vpack.c.b16 %v6587, %v6581
    %v6882 = vpack.c.b16 %v6588, %v6582
    %v6883 = vpack.c.b16 %v6589, %v6583
    %v6884 = vpack.c.b16 %v6596, %v6590
    %v6885 = vpack.c.b16 %v6597, %v6591
    %v6886 = vpack.c.b16 %v6598, %v6592
    %v6887 = vpack.c.b16 %v6599, %v6593
    %v6888 = vpack.c.b16 %v6600, %v6594
    %v6889 = vpack.c.b16 %v6601, %v6595
    %v6890 = vpack.c.b16 %v6608, %v6602
    %v6891 = vpack.c.b16 %v6609, %v6603
    %v6892 = vpack.c.b16 %v6610, %v6604
    %v6893 = vpack.c.b16 %v6611, %v6605
    %v6894 = vpack.c.b16 %v6612, %v6606
    %v6895 = vpack.c.b16 %v6613, %v6607
    %v6896 = vpack.c.b16 %v6620, %v6614
    %v6897 = vpack.c.b16 %v6621, %v6615
    %v6898 = vpack.c.b16 %v6622, %v6616
    %v6899 = vpack.c.b16 %v6623, %v6617
    %v6900 = vpack.c.b16 %v6624, %v6618
    %v6901 = vpack.c.b16 %v6625, %v6619
    %v6902 = vpack.c.b16 %v6632, %v6626
    %v6903 = vpack.c.b16 %v6633, %v6627
    %v6904 = vpack.c.b16 %v6634, %v6628
    %v6905 = vpack.c.b16 %v6635, %v6629
    %v6906 = vpack.c.b16 %v6636, %v6630
    %v6907 = vpack.c.b16 %v6637, %v6631
    %v6908 = vpack.c.b16 %v6644, %v6638
    %v6909 = vpack.c.b16 %v6645, %v6639
    %v6910 = vpack.c.b16 %v6646, %v6640
    %v6911 = vpack.c.b16 %v6647, %v6641
    %v6912 = vpack.c.b16 %v6648, %v6642
    %v6913 = vpack.c.b16 %v6649, %v6643
    %v6914 = vpack.c.b16 %v6656, %v6650
    %v6915 = vpack.c.b16 %v6657, %v6651
    %v6916 = vpack.c.b16 %v6658, %v6652
    %v6917 = vpack.c.b16 %v6659, %v6653
    %v6918 = vpack.c.b16 %v6660, %v6654
    %v6919 = vpack.c.b16 %v6661, %v6655
    %v6920 = vpack.c.b16 %v6668, %v6662
    %v6921 = vpack.c.b16 %v6669, %v6663
    %v6922 = vpack.c.b16 %v6670, %v6664
    %v6923 = vpack.c.b16 %v6671, %v6665
    %v6924 = vpack.c.b16 %v6672, %v6666
    %v6925 = vpack.c.b16 %v6673, %v6667
    %v6926 = vpack.c.b16 %v6680, %v6674
    %v6927 = vpack.c.b16 %v6681, %v6675
    %v6928 = vpack.c.b16 %v6682, %v6676
    %v6929 = vpack.c.b16 %v6683, %v6677
    %v6930 = vpack.c.b16 %v6684, %v6678
    %v6931 = vpack.c.b16 %v6685, %v6679
    %v6932 = vpack.c.b16 %v6692, %v6686
    %v6933 = vpack.c.b16 %v6693, %v6687
    %v6934 = vpack.c.b16 %v6694, %v6688
    %v6935 = vpack.c.b16 %v6695, %v6689
    %v6936 = vpack.c.b16 %v6696, %v6690
    %v6937 = vpack.c.b16 %v6697, %v6691
    %v6938 = vpack.c.b16 %v6704, %v6698
    %v6939 = vpack.c.b16 %v6705, %v6699
    %v6940 = vpack.c.b16 %v6706, %v6700
    %v6941 = vpack.c.b16 %v6707, %v6701
    %v6942 = vpack.c.b16 %v6708, %v6702
    %v6943 = vpack.c.b16 %v6709, %v6703
    %v6944 = vpack.c.b16 %v6716, %v6710
    %v6945 = vpack.c.b16 %v6717, %v6711
    %v6946 = vpack.c.b16 %v6718, %v6712
    %v6947 = vpack.c.b16 %v6719, %v6713
    %v6948 = vpack.c.b16 %v6720, %v6714
    %v6949 = vpack.c.b16 %v6721, %v6715
    %v6950 = vpack.c.b16 %v6728, %v6722
    %v6951 = vpack.c.b16 %v6729, %v6723
    %v6952 = vpack.c.b16 %v6730, %v6724
    %v6953 = vpack.c.b16 %v6731, %v6725
    %v6954 = vpack.c.b16 %v6732, %v6726
    %v6955 = vpack.c.b16 %v6733, %v6727
    %v6956 = vpack.c.b16 %v6740, %v6734
    %v6957 = vpack.c.b16 %v6741, %v6735
    %v6958 = vpack.c.b16 %v6742, %v6736
    %v6959 = vpack.c.b16 %v6743, %v6737
    %v6960 = vpack.c.b16 %v6744, %v6738
    %v6961 = vpack.c.b16 %v6745, %v6739
    %v6962 = vpack.c.b16 %v6752, %v6746
    %v6963 = vpack.c.b16 %v6753, %v6747
    %v6964 = vpack.c.b16 %v6754, %v6748
    %v6965 = vpack.c.b16 %v6755, %v6749
    %v6966 = vpack.c.b16 %v6756, %v6750
    %v6967 = vpack.c.b16 %v6757, %v6751
    %v6968 = vpack.c.b16 %v6764, %v6758
    %v6969 = vpack.c.b16 %v6765, %v6759
    %v6970 = vpack.c.b16 %v6766, %v6760
    %v6971 = vpack.c.b16 %v6767, %v6761
    %v6972 = vpack.c.b16 %v6768, %v6762
    %v6973 = vpack.c.b16 %v6769, %v6763
    %v6974 = vpack.c.b16 %v6776, %v6770
    %v6975 = vpack.c.b16 %v6777, %v6771
    %v6976 = vpack.c.b16 %v6778, %v6772
    %v6977 = vpack.c.b16 %v6779, %v6773
    %v6978 = vpack.c.b16 %v6780, %v6774
    %v6979 = vpack.c.b16 %v6781, %v6775
    %v6980 = vpack.c.b16 %v6788, %v6782
    %v6981 = vpack.c.b16 %v6789, %v6783
    %v6982 = vpack.c.b16 %v6790, %v6784
    %v6983 = vpack.c.b16 %v6791, %v6785
    %v6984 = vpack.c.b16 %v6792, %v6786
    %v6985 = vpack.c.b16 %v6793, %v6787
    %7178 = vmatprep.subr.bf16.mxu0 %v6795
    %7179 = vmatpush1.bf16.msra.mxu0 %v6794
    %7180 = vmatprep.subr.bf16.mxu0 %v6801
    %7181 = vmatpush1.bf16.msra.mxu0 %v6800
    %7182 = vmatprep.subr.bf16.mxu0 %v6807
    %7183 = vmatpush1.bf16.msra.mxu0 %v6806
    %7184 = vmatprep.subr.bf16.mxu0 %v6813
    %7185 = vmatpush1.bf16.msra.mxu0 %v6812
    %7186 = vmatprep.subr.bf16.mxu0 %v6819
    %7187 = vmatpush1.bf16.msra.mxu0 %v6818
    %7188 = vmatprep.subr.bf16.mxu0 %v6825
    %7189 = vmatpush1.bf16.msra.mxu0 %v6824
    %7190 = vmatprep.subr.bf16.mxu0 %v6831
    %7191 = vmatpush1.bf16.msra.mxu0 %v6830
    %7192 = vmatprep.subr.bf16.mxu0 %v6837
    %7193 = vmatpush1.bf16.msra.mxu0 %v6836
    %7194 = vmatprep.subr.bf16.mxu0 %v6843
    %7195 = vmatpush1.bf16.msra.mxu0 %v6842
    %7196 = vmatprep.subr.bf16.mxu0 %v6849
    %7197 = vmatpush1.bf16.msra.mxu0 %v6848
    %7198 = vmatprep.subr.bf16.mxu0 %v6855
    %7199 = vmatpush1.bf16.msra.mxu0 %v6854
    %7200 = vmatprep.subr.bf16.mxu0 %v6861
    %7201 = vmatpush1.bf16.msra.mxu0 %v6860
    %7202 = vmatprep.subr.bf16.mxu0 %v6867
    %7203 = vmatpush1.bf16.msra.mxu0 %v6866
    %7204 = vmatprep.subr.bf16.mxu0 %v6873
    %7205 = vmatpush1.bf16.msra.mxu0 %v6872
    %7206 = vmatprep.subr.bf16.mxu0 %v6879
    %7207 = vmatpush1.bf16.msra.mxu0 %v6878
    %7208 = vmatprep.subr.bf16.mxu0 %v6885
    %7209 = vmatpush1.bf16.msra.mxu0 %v6884
    %7210 = vmatprep.mubr.bf16.mxu0 %v6211
    %7211 = vmatmul.mubr.bf16.gmra.mrb[0].mxu0 %v6210
    %v7212 = vpop.f32.mrb[0].mxu0
    %v7213 = vadd.f32 %v6162, %v7212
    %v7214 = vpop.f32.mrb[0].mxu0
    %v7215 = vadd.f32 %v6166, %v7214
    %v7216 = vpop.f32.mrb[0].mxu0
    %v7217 = vpop.f32.mrb[0].mxu0
    %7218 = vdwg.mxu0
    %7219 = vmatprep.subr.bf16.mxu0 %v6891
    %7220 = vmatpush1.bf16.msra.mxu0 %v6890
    %7221 = vmatprep.subr.bf16.mxu0 %v6897
    %7222 = vmatpush1.bf16.msra.mxu0 %v6896
    %7223 = vmatprep.subr.bf16.mxu0 %v6903
    %7224 = vmatpush1.bf16.msra.mxu0 %v6902
    %7225 = vmatprep.subr.bf16.mxu0 %v6909
    %7226 = vmatpush1.bf16.msra.mxu0 %v6908
    %7227 = vmatprep.subr.bf16.mxu0 %v6915
    %7228 = vmatpush1.bf16.msra.mxu0 %v6914
    %7229 = vmatprep.subr.bf16.mxu0 %v6921
    %7230 = vmatpush1.bf16.msra.mxu0 %v6920
    %7231 = vmatprep.subr.bf16.mxu0 %v6927
    %7232 = vmatpush1.bf16.msra.mxu0 %v6926
    %7233 = vmatprep.subr.bf16.mxu0 %v6933
    %7234 = vmatpush1.bf16.msra.mxu0 %v6932
    %7235 = vmatprep.subr.bf16.mxu0 %v6939
    %7236 = vmatpush1.bf16.msra.mxu0 %v6938
    %7237 = vmatprep.subr.bf16.mxu0 %v6945
    %7238 = vmatpush1.bf16.msra.mxu0 %v6944
    %7239 = vmatprep.subr.bf16.mxu0 %v6951
    %7240 = vmatpush1.bf16.msra.mxu0 %v6950
    %7241 = vmatprep.subr.bf16.mxu0 %v6957
    %7242 = vmatpush1.bf16.msra.mxu0 %v6956
    %7243 = vmatprep.subr.bf16.mxu0 %v6963
    %7244 = vmatpush1.bf16.msra.mxu0 %v6962
    %7245 = vmatprep.subr.bf16.mxu0 %v6969
    %7246 = vmatpush1.bf16.msra.mxu0 %v6968
    %7247 = vmatprep.subr.bf16.mxu0 %v6975
    %7248 = vmatpush1.bf16.msra.mxu0 %v6974
    %7249 = vmatprep.subr.bf16.mxu0 %v6981
    %7250 = vmatpush1.bf16.msra.mxu0 %v6980
    %7251 = vmatprep.mubr.bf16.mxu0 %v6213
    %7252 = vmatmul.mubr.bf16.gmra.mrb[0].mxu0 %v6212
    %v7253 = vpop.f32.mrb[0].mxu0
    %v7254 = vadd.f32 %v7213, %v7253
    %v7255 = vpop.f32.mrb[0].mxu0
    %v7256 = vadd.f32 %v7215, %v7255
    %v7257 = vpop.f32.mrb[0].mxu0
    %v7258 = vpop.f32.mrb[0].mxu0
    %7259 = vdwg.mxu0
    %7260 = vmatprep.subr.bf16.mxu0 %v6797
    %7261 = vmatpush1.bf16.msra.mxu0 %v6796
    %7262 = vmatprep.subr.bf16.mxu0 %v6803
    %7263 = vmatpush1.bf16.msra.mxu0 %v6802
    %7264 = vmatprep.subr.bf16.mxu0 %v6809
    %7265 = vmatpush1.bf16.msra.mxu0 %v6808
    %7266 = vmatprep.subr.bf16.mxu0 %v6815
    %7267 = vmatpush1.bf16.msra.mxu0 %v6814
    %7268 = vmatprep.subr.bf16.mxu0 %v6821
    %7269 = vmatpush1.bf16.msra.mxu0 %v6820
    %7270 = vmatprep.subr.bf16.mxu0 %v6827
    %7271 = vmatpush1.bf16.msra.mxu0 %v6826
    %7272 = vmatprep.subr.bf16.mxu0 %v6833
    %7273 = vmatpush1.bf16.msra.mxu0 %v6832
    %7274 = vmatprep.subr.bf16.mxu0 %v6839
    %7275 = vmatpush1.bf16.msra.mxu0 %v6838
    %7276 = vmatprep.subr.bf16.mxu0 %v6845
    %7277 = vmatpush1.bf16.msra.mxu0 %v6844
    %7278 = vmatprep.subr.bf16.mxu0 %v6851
    %7279 = vmatpush1.bf16.msra.mxu0 %v6850
    %7280 = vmatprep.subr.bf16.mxu0 %v6857
    %7281 = vmatpush1.bf16.msra.mxu0 %v6856
    %7282 = vmatprep.subr.bf16.mxu0 %v6863
    %7283 = vmatpush1.bf16.msra.mxu0 %v6862
    %7284 = vmatprep.subr.bf16.mxu0 %v6869
    %7285 = vmatpush1.bf16.msra.mxu0 %v6868
    %7286 = vmatprep.subr.bf16.mxu0 %v6875
    %7287 = vmatpush1.bf16.msra.mxu0 %v6874
    %7288 = vmatprep.subr.bf16.mxu0 %v6881
    %7289 = vmatpush1.bf16.msra.mxu0 %v6880
    %7290 = vmatprep.subr.bf16.mxu0 %v6887
    %7291 = vmatpush1.bf16.msra.mxu0 %v6886
    %7292 = vmatprep.mubr.bf16.mxu0 %v6211
    %7293 = vmatmul.mubr.bf16.gmra.mrb[0].mxu0 %v6210
    %v7294 = vpop.f32.mrb[0].mxu0
    %v7295 = vadd.f32 %v6170, %v7294
    %v7296 = vpop.f32.mrb[0].mxu0
    %v7297 = vadd.f32 %v6174, %v7296
    %v7298 = vpop.f32.mrb[0].mxu0
    %v7299 = vpop.f32.mrb[0].mxu0
    %7300 = vdwg.mxu0
    %7301 = vmatprep.subr.bf16.mxu0 %v6893
    %7302 = vmatpush1.bf16.msra.mxu0 %v6892
    %7303 = vmatprep.subr.bf16.mxu0 %v6899
    %7304 = vmatpush1.bf16.msra.mxu0 %v6898
    %7305 = vmatprep.subr.bf16.mxu0 %v6905
    %7306 = vmatpush1.bf16.msra.mxu0 %v6904
    %7307 = vmatprep.subr.bf16.mxu0 %v6911
    %7308 = vmatpush1.bf16.msra.mxu0 %v6910
    %7309 = vmatprep.subr.bf16.mxu0 %v6917
    %7310 = vmatpush1.bf16.msra.mxu0 %v6916
    %7311 = vmatprep.subr.bf16.mxu0 %v6923
    %7312 = vmatpush1.bf16.msra.mxu0 %v6922
    %7313 = vmatprep.subr.bf16.mxu0 %v6929
    %7314 = vmatpush1.bf16.msra.mxu0 %v6928
    %7315 = vmatprep.subr.bf16.mxu0 %v6935
    %7316 = vmatpush1.bf16.msra.mxu0 %v6934
    %7317 = vmatprep.subr.bf16.mxu0 %v6941
    %7318 = vmatpush1.bf16.msra.mxu0 %v6940
    %7319 = vmatprep.subr.bf16.mxu0 %v6947
    %7320 = vmatpush1.bf16.msra.mxu0 %v6946
    %7321 = vmatprep.subr.bf16.mxu0 %v6953
    %7322 = vmatpush1.bf16.msra.mxu0 %v6952
    %7323 = vmatprep.subr.bf16.mxu0 %v6959
    %7324 = vmatpush1.bf16.msra.mxu0 %v6958
    %7325 = vmatprep.subr.bf16.mxu0 %v6965
    %7326 = vmatpush1.bf16.msra.mxu0 %v6964
    %7327 = vmatprep.subr.bf16.mxu0 %v6971
    %7328 = vmatpush1.bf16.msra.mxu0 %v6970
    %7329 = vmatprep.subr.bf16.mxu0 %v6977
    %7330 = vmatpush1.bf16.msra.mxu0 %v6976
    %7331 = vmatprep.subr.bf16.mxu0 %v6983
    %7332 = vmatpush1.bf16.msra.mxu0 %v6982
    %7333 = vmatprep.mubr.bf16.mxu0 %v6213
    %7334 = vmatmul.mubr.bf16.gmra.mrb[0].mxu0 %v6212
    %v7335 = vpop.f32.mrb[0].mxu0
    %v7336 = vadd.f32 %v7295, %v7335
    %v7337 = vpop.f32.mrb[0].mxu0
    %v7338 = vadd.f32 %v7297, %v7337
    %v7339 = vpop.f32.mrb[0].mxu0
    %v7340 = vpop.f32.mrb[0].mxu0
    %7341 = vdwg.mxu0
    %7342 = vmatprep.subr.bf16.mxu0 %v6799
    %7343 = vmatpush1.bf16.msra.mxu0 %v6798
    %7344 = vmatprep.subr.bf16.mxu0 %v6805
    %7345 = vmatpush1.bf16.msra.mxu0 %v6804
    %7346 = vmatprep.subr.bf16.mxu0 %v6811
    %7347 = vmatpush1.bf16.msra.mxu0 %v6810
    %7348 = vmatprep.subr.bf16.mxu0 %v6817
    %7349 = vmatpush1.bf16.msra.mxu0 %v6816
    %7350 = vmatprep.subr.bf16.mxu0 %v6823
    %7351 = vmatpush1.bf16.msra.mxu0 %v6822
    %7352 = vmatprep.subr.bf16.mxu0 %v6829
    %7353 = vmatpush1.bf16.msra.mxu0 %v6828
    %7354 = vmatprep.subr.bf16.mxu0 %v6835
    %7355 = vmatpush1.bf16.msra.mxu0 %v6834
    %7356 = vmatprep.subr.bf16.mxu0 %v6841
    %7357 = vmatpush1.bf16.msra.mxu0 %v6840
    %7358 = vmatprep.subr.bf16.mxu0 %v6847
    %7359 = vmatpush1.bf16.msra.mxu0 %v6846
    %7360 = vmatprep.subr.bf16.mxu0 %v6853
    %7361 = vmatpush1.bf16.msra.mxu0 %v6852
    %7362 = vmatprep.subr.bf16.mxu0 %v6859
    %7363 = vmatpush1.bf16.msra.mxu0 %v6858
    %7364 = vmatprep.subr.bf16.mxu0 %v6865
    %7365 = vmatpush1.bf16.msra.mxu0 %v6864
    %7366 = vmatprep.subr.bf16.mxu0 %v6871
    %7367 = vmatpush1.bf16.msra.mxu0 %v6870
    %7368 = vmatprep.subr.bf16.mxu0 %v6877
    %7369 = vmatpush1.bf16.msra.mxu0 %v6876
    %7370 = vmatprep.subr.bf16.mxu0 %v6883
    %7371 = vmatpush1.bf16.msra.mxu0 %v6882
    %7372 = vmatprep.subr.bf16.mxu0 %v6889
    %7373 = vmatpush1.bf16.msra.mxu0 %v6888
    %7374 = vmatprep.mubr.bf16.mxu0 %v6211
    %7375 = vmatmul.mubr.bf16.gmra.mrb[0].mxu0 %v6210
    %v7376 = vpop.f32.mrb[0].mxu0
    %v7377 = vadd.f32 %v6178, %v7376
    %v7378 = vpop.f32.mrb[0].mxu0
    %v7379 = vadd.f32 %v6182, %v7378
    %v7380 = vpop.f32.mrb[0].mxu0
    %v7381 = vpop.f32.mrb[0].mxu0
    %7382 = vdwg.mxu0
    %7383 = vmatprep.subr.bf16.mxu0 %v6895
    %7384 = vmatpush1.bf16.msra.mxu0 %v6894
    %7385 = vmatprep.subr.bf16.mxu0 %v6901
    %7386 = vmatpush1.bf16.msra.mxu0 %v6900
    %7387 = vmatprep.subr.bf16.mxu0 %v6907
    %7388 = vmatpush1.bf16.msra.mxu0 %v6906
    %7389 = vmatprep.subr.bf16.mxu0 %v6913
    %7390 = vmatpush1.bf16.msra.mxu0 %v6912
    %7391 = vmatprep.subr.bf16.mxu0 %v6919
    %7392 = vmatpush1.bf16.msra.mxu0 %v6918
    %7393 = vmatprep.subr.bf16.mxu0 %v6925
    %7394 = vmatpush1.bf16.msra.mxu0 %v6924
    %7395 = vmatprep.subr.bf16.mxu0 %v6931
    %7396 = vmatpush1.bf16.msra.mxu0 %v6930
    %7397 = vmatprep.subr.bf16.mxu0 %v6937
    %7398 = vmatpush1.bf16.msra.mxu0 %v6936
    %7399 = vmatprep.subr.bf16.mxu0 %v6943
    %7400 = vmatpush1.bf16.msra.mxu0 %v6942
    %7401 = vmatprep.subr.bf16.mxu0 %v6949
    %7402 = vmatpush1.bf16.msra.mxu0 %v6948
    %7403 = vmatprep.subr.bf16.mxu0 %v6955
    %7404 = vmatpush1.bf16.msra.mxu0 %v6954
    %7405 = vmatprep.subr.bf16.mxu0 %v6961
    %7406 = vmatpush1.bf16.msra.mxu0 %v6960
    %7407 = vmatprep.subr.bf16.mxu0 %v6967
    %7408 = vmatpush1.bf16.msra.mxu0 %v6966
    %7409 = vmatprep.subr.bf16.mxu0 %v6973
    %7410 = vmatpush1.bf16.msra.mxu0 %v6972
    %7411 = vmatprep.subr.bf16.mxu0 %v6979
    %7412 = vmatpush1.bf16.msra.mxu0 %v6978
    %7413 = vmatprep.subr.bf16.mxu0 %v6985
    %7414 = vmatpush1.bf16.msra.mxu0 %v6984
    %7415 = vmatprep.mubr.bf16.mxu0 %v6213
    %7416 = vmatmul.mubr.bf16.gmra.mrb[0].mxu0 %v6212
    %v7417 = vpop.f32.mrb[0].mxu0
    %v7418 = vadd.f32 %v7377, %v7417
    %v7419 = vpop.f32.mrb[0].mxu0
    %v7420 = vadd.f32 %v7379, %v7419
    %v7421 = vpop.f32.mrb[0].mxu0
    %v7422 = vpop.f32.mrb[0].mxu0
    %7423 = vdwg.mxu0
    %v7424 = vmul.f32 %v7254, 0.5
    %v7425 = vmul.f32 %v7256, 0.5
    %v7426 = vtanh.pop %v7424
    %v7427 = vtanh.pop %v7425
    %v7428 = vadd.f32 %v7426, 1.0
    %v7429 = vadd.f32 %v7427, 1.0
    %v7430 = vmul.f32 %v7428, 0.5
    %v7431 = vmul.f32 %v7429, 0.5
    %v7432 = vtanh.pop %v7336
    %v7433 = vtanh.pop %v7338
    %v7434 = vmul.f32 %v7418, 0.5
    %v7435 = vmul.f32 %v7420, 0.5
    %v7436 = vtanh.pop %v7434
    %v7437 = vtanh.pop %v7435
    %v7438 = vadd.f32 %v7436, 1.0
    %v7439 = vadd.f32 %v7437, 1.0
    %v7440 = vmul.f32 %v7438, 0.5
    %v7441 = vmul.f32 %v7439, 0.5
    %v7442 = vmul.f32 %v7430, %v7432
    %v7443 = vmul.f32 %v7431, %v7433
    %v7444 = vtanh.pop %v7442
    %v7445 = vtanh.pop %v7443
    %v7446 = vmul.f32 %v7440, %v7444
    %v7447 = vmul.f32 %v7441, %v7445
    %v7448 = vpack.c.bf16 %v7446, %v7446
    %v7449 = vpack.c.bf16 %v7447, %v7447
    %v7450 = vld [vmem:[#allocation8] sm:$0xff]
    %v7451 = vld [vmem:[#allocation8 + $0x8] sm:$0xff]
    %v7452 = vld [vmem:[#allocation8 + $0x10] sm:$0xff]
    %v7453 = vld [vmem:[#allocation8 + $0x18] sm:$0xff]
    %v7454 = vld [vmem:[#allocation8 + $0x20] sm:$0xff]
    %v7455 = vld [vmem:[#allocation8 + $0x28] sm:$0xff]
    %v7456 = vld [vmem:[#allocation8 + $0x30] sm:$0xff]
    %v7457 = vld [vmem:[#allocation8 + $0x38] sm:$0xff]
    %v7458 = vld [vmem:[#allocation8 + $0x40] sm:$0xff]
    %v7459 = vld [vmem:[#allocation8 + $0x48] sm:$0xff]
    %v7460 = vld [vmem:[#allocation8 + $0x50] sm:$0xff]
    %v7461 = vld [vmem:[#allocation8 + $0x58] sm:$0xff]
    %v7462 = vld [vmem:[#allocation8 + $0x60] sm:$0xff]
    %v7463 = vld [vmem:[#allocation8 + $0x68] sm:$0xff]
    %v7464 = vld [vmem:[#allocation8 + $0x70] sm:$0xff]
    %v7465 = vld [vmem:[#allocation8 + $0x78] sm:$0xff]
    %v7466 = vld [vmem:[#allocation8 + $0x80] sm:$0xff]
    %v7467 = vld [vmem:[#allocation8 + $0x88] sm:$0xff]
    %v7468 = vld [vmem:[#allocation8 + $0x90] sm:$0xff]
    %v7469 = vld [vmem:[#allocation8 + $0x98] sm:$0xff]
    %v7470 = vld [vmem:[#allocation8 + $0xa0] sm:$0xff]
    %v7471 = vld [vmem:[#allocation8 + $0xa8] sm:$0xff]
    %v7472 = vld [vmem:[#allocation8 + $0xb0] sm:$0xff]
    %v7473 = vld [vmem:[#allocation8 + $0xb8] sm:$0xff]
    %v7474 = vld [vmem:[#allocation8 + $0xc0] sm:$0xff]
    %v7475 = vld [vmem:[#allocation8 + $0xc8] sm:$0xff]
    %v7476 = vld [vmem:[#allocation8 + $0xd0] sm:$0xff]
    %v7477 = vld [vmem:[#allocation8 + $0xd8] sm:$0xff]
    %v7478 = vld [vmem:[#allocation8 + $0xe0] sm:$0xff]
    %v7479 = vld [vmem:[#allocation8 + $0xe8] sm:$0xff]
    %v7480 = vld [vmem:[#allocation8 + $0xf0] sm:$0xff]
    %v7481 = vld [vmem:[#allocation8 + $0xf8] sm:$0xff]
    %v7482 = vld [vmem:[%s10] sm:$0x3]
    %v7484 = vlaneseq
    %v7485 = vshrl.u32 %v7484, 7
    %v7486 = vsub.s32 0, %v7485
    %v7487 = vrot.slane %v7482, %v7486
    %v7488 = vlaneseq
    %v7489 = vshrl.u32 %v7488, 7
    %v7490 = vsub.s32 1, %v7489
    %v7491 = vrot.slane %v7482, %v7490
    %v7526 = vunpack.c.l.b16 %v7450
    %v7527 = vunpack.c.h.b16 %v7450
    %v7528 = vunpack.c.l.b16 %v7451
    %v7529 = vunpack.c.h.b16 %v7451
    %v7530 = vunpack.c.l.b16 %v7452
    %v7531 = vunpack.c.h.b16 %v7452
    %v7532 = vunpack.c.l.b16 %v7453
    %v7533 = vunpack.c.h.b16 %v7453
    %v7534 = vunpack.c.l.b16 %v7454
    %v7535 = vunpack.c.h.b16 %v7454
    %v7536 = vunpack.c.l.b16 %v7455
    %v7537 = vunpack.c.h.b16 %v7455
    %v7538 = vunpack.c.l.b16 %v7456
    %v7539 = vunpack.c.h.b16 %v7456
    %v7540 = vunpack.c.l.b16 %v7457
    %v7541 = vunpack.c.h.b16 %v7457
    %v7542 = vunpack.c.l.b16 %v7458
    %v7543 = vunpack.c.h.b16 %v7458
    %v7544 = vunpack.c.l.b16 %v7459
    %v7545 = vunpack.c.h.b16 %v7459
    %v7546 = vunpack.c.l.b16 %v7460
    %v7547 = vunpack.c.h.b16 %v7460
    %v7548 = vunpack.c.l.b16 %v7461
    %v7549 = vunpack.c.h.b16 %v7461
    %v7550 = vunpack.c.l.b16 %v7462
    %v7551 = vunpack.c.h.b16 %v7462
    %v7552 = vunpack.c.l.b16 %v7463
    %v7553 = vunpack.c.h.b16 %v7463
    %v7554 = vunpack.c.l.b16 %v7464
    %v7555 = vunpack.c.h.b16 %v7464
    %v7556 = vunpack.c.l.b16 %v7465
    %v7557 = vunpack.c.h.b16 %v7465
    %v7558 = vunpack.c.l.b16 %v7466
    %v7559 = vunpack.c.h.b16 %v7466
    %v7560 = vunpack.c.l.b16 %v7467
    %v7561 = vunpack.c.h.b16 %v7467
    %v7562 = vunpack.c.l.b16 %v7468
    %v7563 = vunpack.c.h.b16 %v7468
    %v7564 = vunpack.c.l.b16 %v7469
    %v7565 = vunpack.c.h.b16 %v7469
    %v7566 = vunpack.c.l.b16 %v7470
    %v7567 = vunpack.c.h.b16 %v7470
    %v7568 = vunpack.c.l.b16 %v7471
    %v7569 = vunpack.c.h.b16 %v7471
    %v7570 = vunpack.c.l.b16 %v7472
    %v7571 = vunpack.c.h.b16 %v7472
    %v7572 = vunpack.c.l.b16 %v7473
    %v7573 = vunpack.c.h.b16 %v7473
    %v7574 = vunpack.c.l.b16 %v7474
    %v7575 = vunpack.c.h.b16 %v7474
    %v7576 = vunpack.c.l.b16 %v7475
    %v7577 = vunpack.c.h.b16 %v7475
    %v7578 = vunpack.c.l.b16 %v7476
    %v7579 = vunpack.c.h.b16 %v7476
    %v7580 = vunpack.c.l.b16 %v7477
    %v7581 = vunpack.c.h.b16 %v7477
    %v7582 = vunpack.c.l.b16 %v7478
    %v7583 = vunpack.c.h.b16 %v7478
    %v7584 = vunpack.c.l.b16 %v7479
    %v7585 = vunpack.c.h.b16 %v7479
    %v7586 = vunpack.c.l.b16 %v7480
    %v7587 = vunpack.c.h.b16 %v7480
    %v7588 = vunpack.c.l.b16 %v7481
    %v7589 = vunpack.c.h.b16 %v7481
    %v7590 = vpack.c.b16 %v7528, %v7526
    %v7591 = vpack.c.b16 %v7529, %v7527
    %v7592 = vpack.c.b16 %v7532, %v7530
    %v7593 = vpack.c.b16 %v7533, %v7531
    %v7594 = vpack.c.b16 %v7536, %v7534
    %v7595 = vpack.c.b16 %v7537, %v7535
    %v7596 = vpack.c.b16 %v7540, %v7538
    %v7597 = vpack.c.b16 %v7541, %v7539
    %v7598 = vpack.c.b16 %v7544, %v7542
    %v7599 = vpack.c.b16 %v7545, %v7543
    %v7600 = vpack.c.b16 %v7548, %v7546
    %v7601 = vpack.c.b16 %v7549, %v7547
    %v7602 = vpack.c.b16 %v7552, %v7550
    %v7603 = vpack.c.b16 %v7553, %v7551
    %v7604 = vpack.c.b16 %v7556, %v7554
    %v7605 = vpack.c.b16 %v7557, %v7555
    %v7606 = vpack.c.b16 %v7560, %v7558
    %v7607 = vpack.c.b16 %v7561, %v7559
    %v7608 = vpack.c.b16 %v7564, %v7562
    %v7609 = vpack.c.b16 %v7565, %v7563
    %v7610 = vpack.c.b16 %v7568, %v7566
    %v7611 = vpack.c.b16 %v7569, %v7567
    %v7612 = vpack.c.b16 %v7572, %v7570
    %v7613 = vpack.c.b16 %v7573, %v7571
    %v7614 = vpack.c.b16 %v7576, %v7574
    %v7615 = vpack.c.b16 %v7577, %v7575
    %v7616 = vpack.c.b16 %v7580, %v7578
    %v7617 = vpack.c.b16 %v7581, %v7579
    %v7618 = vpack.c.b16 %v7584, %v7582
    %v7619 = vpack.c.b16 %v7585, %v7583
    %v7620 = vpack.c.b16 %v7588, %v7586
    %v7621 = vpack.c.b16 %v7589, %v7587
    %7654 = vmatprep.subr.bf16.mxu0 %v7591
    %7655 = vmatpush1.bf16.msra.mxu0 %v7590
    %7656 = vmatprep.subr.bf16.mxu0 %v7593
    %7657 = vmatpush1.bf16.msra.mxu0 %v7592
    %7658 = vmatprep.subr.bf16.mxu0 %v7595
    %7659 = vmatpush1.bf16.msra.mxu0 %v7594
    %7660 = vmatprep.subr.bf16.mxu0 %v7597
    %7661 = vmatpush1.bf16.msra.mxu0 %v7596
    %7662 = vmatprep.subr.bf16.mxu0 %v7599
    %7663 = vmatpush1.bf16.msra.mxu0 %v7598
    %7664 = vmatprep.subr.bf16.mxu0 %v7601
    %7665 = vmatpush1.bf16.msra.mxu0 %v7600
    %7666 = vmatprep.subr.bf16.mxu0 %v7603
    %7667 = vmatpush1.bf16.msra.mxu0 %v7602
    %7668 = vmatprep.subr.bf16.mxu0 %v7605
    %7669 = vmatpush1.bf16.msra.mxu0 %v7604
    %7670 = vmatprep.subr.bf16.mxu0 %v7607
    %7671 = vmatpush1.bf16.msra.mxu0 %v7606
    %7672 = vmatprep.subr.bf16.mxu0 %v7609
    %7673 = vmatpush1.bf16.msra.mxu0 %v7608
    %7674 = vmatprep.subr.bf16.mxu0 %v7611
    %7675 = vmatpush1.bf16.msra.mxu0 %v7610
    %7676 = vmatprep.subr.bf16.mxu0 %v7613
    %7677 = vmatpush1.bf16.msra.mxu0 %v7612
    %7678 = vmatprep.subr.bf16.mxu0 %v7615
    %7679 = vmatpush1.bf16.msra.mxu0 %v7614
    %7680 = vmatprep.subr.bf16.mxu0 %v7617
    %7681 = vmatpush1.bf16.msra.mxu0 %v7616
    %7682 = vmatprep.subr.bf16.mxu0 %v7619
    %7683 = vmatpush1.bf16.msra.mxu0 %v7618
    %7684 = vmatprep.subr.bf16.mxu0 %v7621
    %7685 = vmatpush1.bf16.msra.mxu0 %v7620
    %7686 = vmatprep.mubr.bf16.mxu0 %v7449
    %7687 = vmatmul.mubr.bf16.gmra.mrb[0].mxu0 %v7448
    %v7688 = vpop.f32.mrb[0].mxu0
    %v7689 = vadd.f32 %v7487, %v7688
    %v7690 = vpop.f32.mrb[0].mxu0
    %v7691 = vadd.f32 %v7491, %v7690
    %v7692 = vpop.f32.mrb[0].mxu0
    %v7693 = vpop.f32.mrb[0].mxu0
    %7694 = vdwg.mxu0
    %vm7695 = vcmp.ge.f32.partialorder %v7689, 0.0
    %vm7696 = vcmp.ge.f32.partialorder %v7691, 0.0
    %v7697 = vmul.f32 %v7689, 0.01
    %v7698 = vmul.f32 %v7691, 0.01
    %v7699 = vsel %vm7695, %v7689, %v7697
    %v7700 = vsel %vm7696, %v7691, %v7698
    %v7701 = vpack.c.bf16 %v7699, %v7699
    %v7702 = vpack.c.bf16 %v7700, %v7700
    %v7703 = vld [vmem:[#allocation9] sm:$0xf]
    %v7704 = vld [vmem:[#allocation9 + $0x4] sm:$0xf]
    %v7705 = vld [vmem:[#allocation9 + $0x8] sm:$0xf]
    %v7706 = vld [vmem:[#allocation9 + $0xc] sm:$0xf]
    %v7707 = vld [vmem:[#allocation9 + $0x10] sm:$0xf]
    %v7708 = vld [vmem:[#allocation9 + $0x14] sm:$0xf]
    %v7709 = vld [vmem:[#allocation9 + $0x18] sm:$0xf]
    %v7710 = vld [vmem:[#allocation9 + $0x1c] sm:$0xf]
    %v7711 = vld [vmem:[#allocation9 + $0x20] sm:$0xf]
    %v7712 = vld [vmem:[#allocation9 + $0x24] sm:$0xf]
    %v7713 = vld [vmem:[#allocation9 + $0x28] sm:$0xf]
    %v7714 = vld [vmem:[#allocation9 + $0x2c] sm:$0xf]
    %v7715 = vld [vmem:[#allocation9 + $0x30] sm:$0xf]
    %v7716 = vld [vmem:[#allocation9 + $0x34] sm:$0xf]
    %v7717 = vld [vmem:[#allocation9 + $0x38] sm:$0xf]
    %v7718 = vld [vmem:[#allocation9 + $0x3c] sm:$0xf]
    %v7719 = vld [vmem:[#allocation9 + $0x40] sm:$0xf]
    %v7720 = vld [vmem:[#allocation9 + $0x44] sm:$0xf]
    %v7721 = vld [vmem:[#allocation9 + $0x48] sm:$0xf]
    %v7722 = vld [vmem:[#allocation9 + $0x4c] sm:$0xf]
    %v7723 = vld [vmem:[#allocation9 + $0x50] sm:$0xf]
    %v7724 = vld [vmem:[#allocation9 + $0x54] sm:$0xf]
    %v7725 = vld [vmem:[#allocation9 + $0x58] sm:$0xf]
    %v7726 = vld [vmem:[#allocation9 + $0x5c] sm:$0xf]
    %v7727 = vld [vmem:[#allocation9 + $0x60] sm:$0xf]
    %v7728 = vld [vmem:[#allocation9 + $0x64] sm:$0xf]
    %v7729 = vld [vmem:[#allocation9 + $0x68] sm:$0xf]
    %v7730 = vld [vmem:[#allocation9 + $0x6c] sm:$0xf]
    %v7731 = vld [vmem:[#allocation9 + $0x70] sm:$0xf]
    %v7732 = vld [vmem:[#allocation9 + $0x74] sm:$0xf]
    %v7733 = vld [vmem:[#allocation9 + $0x78] sm:$0xf]
    %v7734 = vld [vmem:[#allocation9 + $0x7c] sm:$0xf]
    %v7735 = vld [vmem:[%s12] sm:$0x1]
    %v7737 = vlaneseq
    %v7738 = vshrl.u32 %v7737, 7
    %v7739 = vsub.s32 0, %v7738
    %v7740 = vrot.slane %v7735, %v7739
    %v7774 = vunpack.c.l.b16 %v7703
    %v7775 = vunpack.c.l.b16 %v7704
    %v7776 = vunpack.c.l.b16 %v7705
    %v7777 = vunpack.c.l.b16 %v7706
    %v7778 = vunpack.c.l.b16 %v7707
    %v7779 = vunpack.c.l.b16 %v7708
    %v7780 = vunpack.c.l.b16 %v7709
    %v7781 = vunpack.c.l.b16 %v7710
    %v7782 = vunpack.c.l.b16 %v7711
    %v7783 = vunpack.c.l.b16 %v7712
    %v7784 = vunpack.c.l.b16 %v7713
    %v7785 = vunpack.c.l.b16 %v7714
    %v7786 = vunpack.c.l.b16 %v7715
    %v7787 = vunpack.c.l.b16 %v7716
    %v7788 = vunpack.c.l.b16 %v7717
    %v7789 = vunpack.c.l.b16 %v7718
    %v7790 = vunpack.c.l.b16 %v7719
    %v7791 = vunpack.c.l.b16 %v7720
    %v7792 = vunpack.c.l.b16 %v7721
    %v7793 = vunpack.c.l.b16 %v7722
    %v7794 = vunpack.c.l.b16 %v7723
    %v7795 = vunpack.c.l.b16 %v7724
    %v7796 = vunpack.c.l.b16 %v7725
    %v7797 = vunpack.c.l.b16 %v7726
    %v7798 = vunpack.c.l.b16 %v7727
    %v7799 = vunpack.c.l.b16 %v7728
    %v7800 = vunpack.c.l.b16 %v7729
    %v7801 = vunpack.c.l.b16 %v7730
    %v7802 = vunpack.c.l.b16 %v7731
    %v7803 = vunpack.c.l.b16 %v7732
    %v7804 = vunpack.c.l.b16 %v7733
    %v7805 = vunpack.c.l.b16 %v7734
    %v7806 = vpack.c.b16 %v7775, %v7774
    %v7807 = vpack.c.b16 %v7777, %v7776
    %v7808 = vpack.c.b16 %v7779, %v7778
    %v7809 = vpack.c.b16 %v7781, %v7780
    %v7810 = vpack.c.b16 %v7783, %v7782
    %v7811 = vpack.c.b16 %v7785, %v7784
    %v7812 = vpack.c.b16 %v7787, %v7786
    %v7813 = vpack.c.b16 %v7789, %v7788
    %v7814 = vpack.c.b16 %v7791, %v7790
    %v7815 = vpack.c.b16 %v7793, %v7792
    %v7816 = vpack.c.b16 %v7795, %v7794
    %v7817 = vpack.c.b16 %v7797, %v7796
    %v7818 = vpack.c.b16 %v7799, %v7798
    %v7819 = vpack.c.b16 %v7801, %v7800
    %v7820 = vpack.c.b16 %v7803, %v7802
    %v7821 = vpack.c.b16 %v7805, %v7804
    %7838 = vmatprep.subr.bf16.mxu0 0
    %7839 = vmatpush1.bf16.msra.mxu0 %v7806
    %7840 = vmatprep.subr.bf16.mxu0 0
    %7841 = vmatpush1.bf16.msra.mxu0 %v7807
    %7842 = vmatprep.subr.bf16.mxu0 0
    %7843 = vmatpush1.bf16.msra.mxu0 %v7808
    %7844 = vmatprep.subr.bf16.mxu0 0
    %7845 = vmatpush1.bf16.msra.mxu0 %v7809
    %7846 = vmatprep.subr.bf16.mxu0 0
    %7847 = vmatpush1.bf16.msra.mxu0 %v7810
    %7848 = vmatprep.subr.bf16.mxu0 0
    %7849 = vmatpush1.bf16.msra.mxu0 %v7811
    %7850 = vmatprep.subr.bf16.mxu0 0
    %7851 = vmatpush1.bf16.msra.mxu0 %v7812
    %7852 = vmatprep.subr.bf16.mxu0 0
    %7853 = vmatpush1.bf16.msra.mxu0 %v7813
    %7854 = vmatprep.subr.bf16.mxu0 0
    %7855 = vmatpush1.bf16.msra.mxu0 %v7814
    %7856 = vmatprep.subr.bf16.mxu0 0
    %7857 = vmatpush1.bf16.msra.mxu0 %v7815
    %7858 = vmatprep.subr.bf16.mxu0 0
    %7859 = vmatpush1.bf16.msra.mxu0 %v7816
    %7860 = vmatprep.subr.bf16.mxu0 0
    %7861 = vmatpush1.bf16.msra.mxu0 %v7817
    %7862 = vmatprep.subr.bf16.mxu0 0
    %7863 = vmatpush1.bf16.msra.mxu0 %v7818
    %7864 = vmatprep.subr.bf16.mxu0 0
    %7865 = vmatpush1.bf16.msra.mxu0 %v7819
    %7866 = vmatprep.subr.bf16.mxu0 0
    %7867 = vmatpush1.bf16.msra.mxu0 %v7820
    %7868 = vmatprep.subr.bf16.mxu0 0
    %7869 = vmatpush1.bf16.msra.mxu0 %v7821
    %7870 = vmatprep.mubr.bf16.mxu0 %v7702
    %7871 = vmatmul.mubr.bf16.gmra.mrb[0].mxu0 %v7701
    %v7872 = vpop.f32.mrb[0].mxu0
    %v7873 = vadd.f32 %v7740, %v7872
    %v7874 = vpop.f32.mrb[0].mxu0
    %v7875 = vpop.f32.mrb[0].mxu0
    %v7876 = vpop.f32.mrb[0].mxu0
    %7877 = vdwg.mxu0
    %7878 = vst [vmem:[#allocation11] sm:$0x3] %v7873
    // Predicated region
    $region70: #{new_model_forward.1} parent=1 // pred_check
      _
    $region71: #{new_model_forward.1} parent=1 // pred_check_branch
      %7880 = sbr.rel (0) target = $region73
    $region72: #{new_model_forward.1} parent=1 // pred_region
      %s7882 = ssub.s32 32, 32
      %7883 = vsyncadd [#allocation5], %s7882
      %s7885 = sshll.u32 [#allocation11], 4
      %s7886 = int_to_ptr.vmem [resolvable:$true] %s7885
      %7888 = dma.vmem_to_hbm [thread:$0]  %s7886, 32, %s13, [#allocation5]
    $region73: #{new_model_forward.1} parent=1 // pred_fallthru
      _
    // Predicated region
    $region74: #{new_model_forward.1} parent=1 // pred_check
      _
    $region75: #{new_model_forward.1} parent=1 // pred_check_branch
      %7890 = sbr.rel (0) target = $region77
    $region76: #{new_model_forward.1} parent=1 // pred_region
      %7891 = dma.done [#allocation5], 32
    $region77: #{new_model_forward.1} parent=1 // pred_fallthru
      _
    %7892 = vsyncpa [#allocation4], 1
    %7893 = vsyncpa [#allocation7], 1
    %7894 = vsyncpa [#allocation10], 1
    %7895 = vsyncpa [#allocation5], 1

</llo_original>
